<compile_context>
chip_gen: v7x
topology: tpu7x:2x2x1
jax: 0.10.0
libtpu: 0.0.40
codegen_flags: <defaults>
</compile_context>

<pallas_src>
import jax
import jax.numpy as jnp
import numpy as np
from jax.experimental import pallas as pl
from jax.experimental.pallas import tpu as pltpu

NB = 128       # samples per grid step; the batch lives on the 128-lane axis
XROWS = 32     # 28 image rows padded to 32 (bf16 sublane-tile aligned)
C1ROWS = 128   # 10*12 conv1 (channel, pooled-row) rows padded to 128 per parity

# fc1 column permutation: in-kernel feature row r = i2*80 + o*4 + j2 maps to
# torch's flatten index o*16 + j2*4 + i2 (c*16 + y*4 + x of the 20x4x4 maps).
_FC1_PERM = np.array(
    [o * 16 + j2 * 4 + i2
     for i2 in range(4) for o in range(20) for j2 in range(4)],
    dtype=np.int32)


def _conv1_toeplitz(w1):
    """conv1 weight (10,1,5,5) -> K-stacked banded matrix (256, 160), bf16.

    row = p*128 + c*12 + j  (p = pool-row parity, j = pooled y; rows 120..127 pad)
    col = dx*32 + yy        (yy = image row; cols 28..31 of each dx block pad)
    value = w1[c, 0, yy - (2j+p), dx] inside the band, 0 elsewhere.
    """
    w = np.asarray(w1, np.float32)[:, 0]               # (10, 5, 5) = (c, dy, dx)
    t = np.zeros((2, C1ROWS, 5, XROWS), np.float32)
    for p in range(2):
        for c in range(10):
            for j in range(12):
                y0 = 2 * j + p
                t[p, c * 12 + j, :, y0:y0 + 5] = w[c].T     # (dx, dy)
    return jnp.asarray(t.reshape(2 * C1ROWS, 5 * XROWS), jnp.bfloat16)


def _conv2_toeplitz(w2):
    """conv2 weight (20,10,5,5) -> K-stacked banded matrix (160, 640), bf16.

    row = p*80 + o*4 + j2
    col = dx*128 + c*12 + yy  (cols 120..127 of each dx block are pad)
    value = w2[o, c, yy - (2*j2+p), dx] inside the band, 0 elsewhere.
    """
    w = np.asarray(w2, np.float32)                      # (o, c, dy, dx)
    t = np.zeros((2, 80, 5, C1ROWS), np.float32)
    for p in range(2):
        for o in range(20):
            for j2 in range(4):
                y0 = 2 * j2 + p
                for c in range(10):
                    t[p, o * 4 + j2, :, c * 12 + y0:c * 12 + y0 + 5] = w[o, c].T
    return jnp.asarray(t.reshape(160, 5 * C1ROWS), jnp.bfloat16)


def fused_kernel(x_ref, t1_ref, b1_ref, t2_ref, b2_ref,
                 fw1_ref, fb1_ref, fw2_ref, fb2_ref, out_ref,
                 rhs1_sc, rhs2_sc, fv_sc):
    # x_ref  : (1, 32, 28*NB) bf16  image rows on sublanes, lanes = x*NB + sample
    # t1_ref : (256, 160) bf16      conv1 Toeplitz, dx stacked on K
    # b1_ref : (128, 1) f32         conv1 bias per (c, j) row (pad rows = 0)
    # t2_ref : (160, 640) bf16      conv2 Toeplitz, dx stacked on K
    # b2_ref : (80, 1) f32          conv2 bias per (o, j2) row
    # fw1_ref: (50, 320) bf16 (cols pre-permuted)  fb1_ref: (50, 1) f32
    # fw2_ref: (10, 50) bf16                       fb2_ref: (10, 1) f32
    # out_ref: (10, NB) f32         logits, batch on lanes
    # rhs1_sc: (160, 24*NB) bf16    conv1 K-stacked RHS
    # rhs2_sc: (640, 8*NB)  bf16    conv2 K-stacked RHS
    # fv_sc  : (320, NB)    bf16    flattened features for fc1
    xm = x_ref[0]                                        # (32, 28*NB) bf16

    # ---- conv1: single MXU dot, dx shifts stacked on the contraction axis ----
    for dx in range(5):
        rhs1_sc[dx * XROWS:(dx + 1) * XROWS, :] = xm[:, dx * NB:(dx + 24) * NB]
    c1 = jnp.dot(t1_ref[...], rhs1_sc[...],
                 preferred_element_type=jnp.float32)     # (256, 24*NB) f32

    # 2x2 maxpool + bias + relu, folded straight into conv2's K-stacked RHS
    # (bias after the pool is valid: constant in the window, max is monotone)
    yp1 = jnp.maximum(c1[:C1ROWS], c1[C1ROWS:])          # max over pool-row parity
    for i in range(12):
        pc = jnp.maximum(yp1[:, (2 * i) * NB:(2 * i + 1) * NB],
                         yp1[:, (2 * i + 1) * NB:(2 * i + 2) * NB])
        pc = jnp.maximum(pc + b1_ref[...], 0.0).astype(jnp.bfloat16)  # (128, NB)
        for dx in range(max(0, i - 7), min(4, i) + 1):
            rhs2_sc[dx * C1ROWS:(dx + 1) * C1ROWS,
                    (i - dx) * NB:(i - dx + 1) * NB] = pc

    # ---- conv2: single MXU dot (K = 640) --------------------------------------
    # TODO(synk): Dropout2d after conv2 is a train-mode op; identity here (eval).
    c2 = jnp.dot(t2_ref[...], rhs2_sc[...],
                 preferred_element_type=jnp.float32)     # (160, 8*NB) f32
    yp2 = jnp.maximum(c2[:80], c2[80:])                  # (80, 8*NB)
    for i2 in range(4):
        pc = jnp.maximum(yp2[:, (2 * i2) * NB:(2 * i2 + 1) * NB],
                         yp2[:, (2 * i2 + 1) * NB:(2 * i2 + 2) * NB])
        pc = jnp.maximum(pc + b2_ref[...], 0.0).astype(jnp.bfloat16)  # (80, NB)
        fv_sc[i2 * 80:(i2 + 1) * 80, :] = pc             # flatten, batch on lanes

    # ---- fc1 + relu + [Dropout == identity] + fc2 (batch stays on lanes) ------
    h = jnp.maximum(
        jnp.dot(fw1_ref[...], fv_sc[...], preferred_element_type=jnp.float32)
        + fb1_ref[...], 0.0).astype(jnp.bfloat16)        # (50, NB)
    out_ref[...] = (jnp.dot(fw2_ref[...], h, preferred_element_type=jnp.float32)
                    + fb2_ref[...])                      # (10, NB) f32


def digit_convolucion_forward(x, params):
    w1, b1, w2, b2, fw1, fb1, fw2, fb2 = params
    if x.ndim == 2:                        # matches torch: x.view(-1, 1, 28, 28)
        x = x.reshape(-1, 1, 28, 28)
    n = x.shape[0]
    n_pad = ((n + NB - 1) // NB) * NB
    nblk = n_pad // NB

    # glue: lane-dense batch-on-lanes image layout (nblk, 32, 28*NB), bf16 cast
    # fused with the layout transpose; rows 28..31 are zero padding.
    ximg = jnp.pad(x.reshape(n, 28, 28).astype(jnp.float32),
                   ((0, n_pad - n), (0, XROWS - 28), (0, 0)))
    xm = (ximg.reshape(nblk, NB, XROWS, 28)
              .transpose(0, 2, 3, 1)
              .astype(jnp.bfloat16)
              .reshape(nblk, XROWS, 28 * NB))

    # glue: matmul-ready parameters (all tiny, host side)
    t1 = _conv1_toeplitz(w1)                              # (256, 160) bf16
    t2 = _conv2_toeplitz(w2)                              # (160, 640) bf16
    b1r = np.zeros((C1ROWS, 1), np.float32)
    b1r[:120, 0] = np.repeat(np.asarray(b1, np.float32), 12)
    b1r = jnp.asarray(b1r)
    b2r = jnp.asarray(np.repeat(np.asarray(b2, np.float32), 4).reshape(80, 1))
    fw1p = jnp.asarray(fw1)[:, _FC1_PERM].astype(jnp.bfloat16)   # (50, 320)
    fb1r = jnp.asarray(fb1, jnp.float32).reshape(50, 1)
    fw2b = jnp.asarray(fw2).astype(jnp.bfloat16)                 # (10, 50)
    fb2r = jnp.asarray(fb2, jnp.float32).reshape(10, 1)

    out = pl.pallas_call(
        fused_kernel,
        out_shape=jax.ShapeDtypeStruct((10, n_pad), jnp.float32),
        grid_spec=pltpu.PrefetchScalarGridSpec(
            num_scalar_prefetch=0,
            grid=(nblk,),
            in_specs=[
                pl.BlockSpec((1, XROWS, 28 * NB), lambda i: (i, 0, 0)),
                pl.BlockSpec((2 * C1ROWS, 5 * XROWS), lambda i: (0, 0)),
                pl.BlockSpec((C1ROWS, 1), lambda i: (0, 0)),
                pl.BlockSpec((160, 5 * C1ROWS), lambda i: (0, 0)),
                pl.BlockSpec((80, 1), lambda i: (0, 0)),
                pl.BlockSpec((50, 320), lambda i: (0, 0)),
                pl.BlockSpec((50, 1), lambda i: (0, 0)),
                pl.BlockSpec((10, 50), lambda i: (0, 0)),
                pl.BlockSpec((10, 1), lambda i: (0, 0)),
            ],
            out_specs=pl.BlockSpec((10, NB), lambda i: (0, i)),
            scratch_shapes=[
                pltpu.VMEM((5 * XROWS, 24 * NB), jnp.bfloat16),   # conv1 RHS
                pltpu.VMEM((5 * C1ROWS, 8 * NB), jnp.bfloat16),   # conv2 RHS
                pltpu.VMEM((320, NB), jnp.bfloat16),              # fc1 operand
            ]),
        compiler_params=pltpu.CompilerParams(
            dimension_semantics=("parallel",),
            vmem_limit_bytes=32 * 1024 * 1024),
    )(xm, t1, b1r, t2, b2r, fw1p, fb1r, fw2b, fb2r)

    return out[:, :n].T                                   # (n, 10)


def reference_forward(x, params):
    """Pure-JAX (XLA, f32) reference matching the PyTorch forward."""
    w1, b1, w2, b2, fw1, fb1, fw2, fb2 = params
    if x.ndim == 2:
        x = x.reshape(-1, 1, 28, 28)
    dn = ("NCHW", "OIHW", "NCHW")
    y = jax.lax.conv_general_dilated(x, w1, (1, 1), "VALID", dimension_numbers=dn)
    y = y + b1[None, :, None, None]
    y = jax.lax.reduce_window(y, -jnp.inf, jax.lax.max, (1, 1, 2, 2), (1, 1, 2, 2), "VALID")
    y = jnp.maximum(y, 0.0)
    y = jax.lax.conv_general_dilated(y, w2, (1, 1), "VALID", dimension_numbers=dn)
    y = y + b2[None, :, None, None]
    y = jax.lax.reduce_window(y, -jnp.inf, jax.lax.max, (1, 1, 2, 2), (1, 1, 2, 2), "VALID")
    y = jnp.maximum(y, 0.0)
    y = y.reshape(y.shape[0], 320)
    y = jnp.maximum(y @ fw1.T + fb1, 0.0)
    return y @ fw2.T + fb2


if __name__ == "__main__":
    key = jax.random.PRNGKey(0)
    ks = jax.random.split(key, 9)
    # deterministic synthetic parameters (shapes from DigitConvolucion.setup_architecture)
    params = (
        jax.random.normal(ks[0], (10, 1, 5, 5), jnp.float32) * 0.2,   # conv1.weight
        jax.random.normal(ks[1], (10,), jnp.float32) * 0.1,           # conv1.bias
        jax.random.normal(ks[2], (20, 10, 5, 5), jnp.float32) * 0.1,  # conv2.weight
        jax.random.normal(ks[3], (20,), jnp.float32) * 0.1,           # conv2.bias
        jax.random.normal(ks[4], (50, 320), jnp.float32) * 0.05,      # fc1.weight
        jax.random.normal(ks[5], (50,), jnp.float32) * 0.05,          # fc1.bias
        jax.random.normal(ks[6], (10, 50), jnp.float32) * 0.1,        # fc2.weight
        jax.random.normal(ks[7], (10,), jnp.float32) * 0.1,           # fc2.bias
    )
    x = jax.random.normal(ks[8], (2, 1, 28, 28), jnp.float32)

    out = jax.block_until_ready(digit_convolucion_forward(x, params))
    ref = jax.block_until_ready(reference_forward(x, params))
    assert out.shape == (2, 10)
    # bf16 MXU operands vs f32 XLA reference -> loosened tolerance
    np.testing.assert_allclose(np.asarray(out), np.asarray(ref), rtol=3e-2, atol=3e-2)
    print("KERNEL_OK")
</pallas_src>

<mosaic_0001>
module attributes {stable_mosaic.version = 11 : i64} {
  func.func @fused_kernel(%arg0: i32, %arg1: memref<1x32x3584xbf16, #tpu.memory_space<vmem>>, %arg2: memref<256x160xbf16, #tpu.memory_space<vmem>>, %arg3: memref<128x1xf32, #tpu.memory_space<vmem>>, %arg4: memref<160x640xbf16, #tpu.memory_space<vmem>>, %arg5: memref<80x1xf32, #tpu.memory_space<vmem>>, %arg6: memref<50x320xbf16, #tpu.memory_space<vmem>>, %arg7: memref<50x1xf32, #tpu.memory_space<vmem>>, %arg8: memref<10x50xbf16, #tpu.memory_space<vmem>>, %arg9: memref<10x1xf32, #tpu.memory_space<vmem>>, %arg10: memref<10x128xf32, #tpu.memory_space<vmem>>, %arg11: memref<160x3072xbf16, #tpu.memory_space<vmem>>, %arg12: memref<640x1024xbf16, #tpu.memory_space<vmem>>, %arg13: memref<320x128xbf16, #tpu.memory_space<vmem>>) attributes {dimension_semantics = [#tpu.dimension_semantics<parallel>], iteration_bounds = array<i64: 1>, scalar_prefetch = 0 : i64, scratch_operands = 3 : i64, tpu.core_type = #tpu.core_type<tc>, window_params = [{transform_indices = @transform_0, window_bounds = array<i64: 1, 32, 3584>}, {pipeline_mode = #tpu.pipeline_mode<synchronous>, transform_indices = @transform_1, window_bounds = array<i64: 256, 160>}, {pipeline_mode = #tpu.pipeline_mode<synchronous>, transform_indices = @transform_2, window_bounds = array<i64: 128, 1>}, {pipeline_mode = #tpu.pipeline_mode<synchronous>, transform_indices = @transform_3, window_bounds = array<i64: 160, 640>}, {pipeline_mode = #tpu.pipeline_mode<synchronous>, transform_indices = @transform_4, window_bounds = array<i64: 80, 1>}, {pipeline_mode = #tpu.pipeline_mode<synchronous>, transform_indices = @transform_5, window_bounds = array<i64: 50, 320>}, {pipeline_mode = #tpu.pipeline_mode<synchronous>, transform_indices = @transform_6, window_bounds = array<i64: 50, 1>}, {pipeline_mode = #tpu.pipeline_mode<synchronous>, transform_indices = @transform_7, window_bounds = array<i64: 10, 50>}, {pipeline_mode = #tpu.pipeline_mode<synchronous>, transform_indices = @transform_8, window_bounds = array<i64: 10, 1>}, {transform_indices = @transform_9, window_bounds = array<i64: 10, 128>}]} {
    %c0 = arith.constant 0 : index
    %c0_0 = arith.constant 0 : index
    %c0_1 = arith.constant 0 : index
    %0 = vector.load %arg1[%c0, %c0_0, %c0_1] : memref<1x32x3584xbf16, #tpu.memory_space<vmem>>, vector<1x32x3584xbf16>
    %1 = vector.shape_cast %0 : vector<1x32x3584xbf16> to vector<32x3584xbf16>
    %2 = vector.extract_strided_slice %1 {offsets = [0, 0], sizes = [32, 3072], strides = [1, 1]} : vector<32x3584xbf16> to vector<32x3072xbf16>
    %c0_2 = arith.constant 0 : index
    %c0_3 = arith.constant 0 : index
    %3 = vector.load %arg11[%c0_2, %c0_3] : memref<160x3072xbf16, #tpu.memory_space<vmem>>, vector<32x3072xbf16>
    tpu.vector_store %arg11[%c0_2, %c0_3], %2 {strides = array<i32>} : memref<160x3072xbf16, #tpu.memory_space<vmem>>, vector<32x3072xbf16>,
    %4 = vector.extract_strided_slice %1 {offsets = [0, 128], sizes = [32, 3072], strides = [1, 1]} : vector<32x3584xbf16> to vector<32x3072xbf16>
    %c32 = arith.constant 32 : index
    %c0_4 = arith.constant 0 : index
    %5 = vector.load %arg11[%c32, %c0_4] : memref<160x3072xbf16, #tpu.memory_space<vmem>>, vector<32x3072xbf16>
    tpu.vector_store %arg11[%c32, %c0_4], %4 {strides = array<i32>} : memref<160x3072xbf16, #tpu.memory_space<vmem>>, vector<32x3072xbf16>,
    %6 = vector.extract_strided_slice %1 {offsets = [0, 256], sizes = [32, 3072], strides = [1, 1]} : vector<32x3584xbf16> to vector<32x3072xbf16>
    %c64 = arith.constant 64 : index
    %c0_5 = arith.constant 0 : index
    %7 = vector.load %arg11[%c64, %c0_5] : memref<160x3072xbf16, #tpu.memory_space<vmem>>, vector<32x3072xbf16>
    tpu.vector_store %arg11[%c64, %c0_5], %6 {strides = array<i32>} : memref<160x3072xbf16, #tpu.memory_space<vmem>>, vector<32x3072xbf16>,
    %8 = vector.extract_strided_slice %1 {offsets = [0, 384], sizes = [32, 3072], strides = [1, 1]} : vector<32x3584xbf16> to vector<32x3072xbf16>
    %c96 = arith.constant 96 : index
    %c0_6 = arith.constant 0 : index
    %9 = vector.load %arg11[%c96, %c0_6] : memref<160x3072xbf16, #tpu.memory_space<vmem>>, vector<32x3072xbf16>
    tpu.vector_store %arg11[%c96, %c0_6], %8 {strides = array<i32>} : memref<160x3072xbf16, #tpu.memory_space<vmem>>, vector<32x3072xbf16>,
    %10 = vector.extract_strided_slice %1 {offsets = [0, 512], sizes = [32, 3072], strides = [1, 1]} : vector<32x3584xbf16> to vector<32x3072xbf16>
    %c128 = arith.constant 128 : index
    %c0_7 = arith.constant 0 : index
    %11 = vector.load %arg11[%c128, %c0_7] : memref<160x3072xbf16, #tpu.memory_space<vmem>>, vector<32x3072xbf16>
    tpu.vector_store %arg11[%c128, %c0_7], %10 {strides = array<i32>} : memref<160x3072xbf16, #tpu.memory_space<vmem>>, vector<32x3072xbf16>,
    %c0_8 = arith.constant 0 : index
    %c0_9 = arith.constant 0 : index
    %12 = vector.load %arg2[%c0_8, %c0_9] : memref<256x160xbf16, #tpu.memory_space<vmem>>, vector<256x160xbf16>
    %c0_10 = arith.constant 0 : index
    %c0_11 = arith.constant 0 : index
    %13 = vector.load %arg11[%c0_10, %c0_11] : memref<160x3072xbf16, #tpu.memory_space<vmem>>, vector<160x3072xbf16>
    %cst = arith.constant dense<0.000000e+00> : vector<256x3072xf32>
    %14 = tpu.matmul %12, %13, %cst {dimension_numbers = #tpu.dot_dimension_numbers<[1], [0], [0], [1], [0, 0, 1, 1], [], []>} : vector<256x160xbf16>, vector<160x3072xbf16>, vector<256x3072xf32> -> vector<256x3072xf32>
    %15 = vector.extract_strided_slice %14 {offsets = [0, 0], sizes = [128, 3072], strides = [1, 1]} : vector<256x3072xf32> to vector<128x3072xf32>
    %16 = vector.extract_strided_slice %14 {offsets = [128, 0], sizes = [128, 3072], strides = [1, 1]} : vector<256x3072xf32> to vector<128x3072xf32>
    %17 = arith.maximumf %15, %16 : vector<128x3072xf32>
    %18 = vector.extract_strided_slice %17 {offsets = [0, 0], sizes = [128, 128], strides = [1, 1]} : vector<128x3072xf32> to vector<128x128xf32>
    %19 = vector.extract_strided_slice %17 {offsets = [0, 128], sizes = [128, 128], strides = [1, 1]} : vector<128x3072xf32> to vector<128x128xf32>
    %20 = arith.maximumf %18, %19 : vector<128x128xf32>
    %c0_12 = arith.constant 0 : index
    %c0_13 = arith.constant 0 : index
    %21 = vector.load %arg3[%c0_12, %c0_13] : memref<128x1xf32, #tpu.memory_space<vmem>>, vector<128x1xf32>
    %22 = vector.broadcast %21 : vector<128x1xf32> to vector<128x128xf32>
    %23 = arith.addf %20, %22 : vector<128x128xf32>
    %cst_14 = arith.constant 0.000000e+00 : f32
    %24 = vector.broadcast %cst_14 : f32 to vector<128x128xf32>
    %25 = arith.maximumf %23, %24 : vector<128x128xf32>
    %26 = arith.truncf %25 : vector<128x128xf32> to vector<128x128xbf16>
    %c0_15 = arith.constant 0 : index
    %c0_16 = arith.constant 0 : index
    %27 = vector.load %arg12[%c0_15, %c0_16] : memref<640x1024xbf16, #tpu.memory_space<vmem>>, vector<128x128xbf16>
    tpu.vector_store %arg12[%c0_15, %c0_16], %26 {strides = array<i32>} : memref<640x1024xbf16, #tpu.memory_space<vmem>>, vector<128x128xbf16>,
    %28 = vector.extract_strided_slice %17 {offsets = [0, 256], sizes = [128, 128], strides = [1, 1]} : vector<128x3072xf32> to vector<128x128xf32>
    %29 = vector.extract_strided_slice %17 {offsets = [0, 384], sizes = [128, 128], strides = [1, 1]} : vector<128x3072xf32> to vector<128x128xf32>
    %30 = arith.maximumf %28, %29 : vector<128x128xf32>
    %c0_17 = arith.constant 0 : index
    %c0_18 = arith.constant 0 : index
    %31 = vector.load %arg3[%c0_17, %c0_18] : memref<128x1xf32, #tpu.memory_space<vmem>>, vector<128x1xf32>
    %32 = vector.broadcast %31 : vector<128x1xf32> to vector<128x128xf32>
    %33 = arith.addf %30, %32 : vector<128x128xf32>
    %cst_19 = arith.constant 0.000000e+00 : f32
    %34 = vector.broadcast %cst_19 : f32 to vector<128x128xf32>
    %35 = arith.maximumf %33, %34 : vector<128x128xf32>
    %36 = arith.truncf %35 : vector<128x128xf32> to vector<128x128xbf16>
    %c0_20 = arith.constant 0 : index
    %c128_21 = arith.constant 128 : index
    %37 = vector.load %arg12[%c0_20, %c128_21] : memref<640x1024xbf16, #tpu.memory_space<vmem>>, vector<128x128xbf16>
    tpu.vector_store %arg12[%c0_20, %c128_21], %36 {strides = array<i32>} : memref<640x1024xbf16, #tpu.memory_space<vmem>>, vector<128x128xbf16>,
    %c128_22 = arith.constant 128 : index
    %c0_23 = arith.constant 0 : index
    %38 = vector.load %arg12[%c128_22, %c0_23] : memref<640x1024xbf16, #tpu.memory_space<vmem>>, vector<128x128xbf16>
    tpu.vector_store %arg12[%c128_22, %c0_23], %36 {strides = array<i32>} : memref<640x1024xbf16, #tpu.memory_space<vmem>>, vector<128x128xbf16>,
    %39 = vector.extract_strided_slice %17 {offsets = [0, 512], sizes = [128, 128], strides = [1, 1]} : vector<128x3072xf32> to vector<128x128xf32>
    %40 = vector.extract_strided_slice %17 {offsets = [0, 640], sizes = [128, 128], strides = [1, 1]} : vector<128x3072xf32> to vector<128x128xf32>
    %41 = arith.maximumf %39, %40 : vector<128x128xf32>
    %c0_24 = arith.constant 0 : index
    %c0_25 = arith.constant 0 : index
    %42 = vector.load %arg3[%c0_24, %c0_25] : memref<128x1xf32, #tpu.memory_space<vmem>>, vector<128x1xf32>
    %43 = vector.broadcast %42 : vector<128x1xf32> to vector<128x128xf32>
    %44 = arith.addf %41, %43 : vector<128x128xf32>
    %cst_26 = arith.constant 0.000000e+00 : f32
    %45 = vector.broadcast %cst_26 : f32 to vector<128x128xf32>
    %46 = arith.maximumf %44, %45 : vector<128x128xf32>
    %47 = arith.truncf %46 : vector<128x128xf32> to vector<128x128xbf16>
    %c0_27 = arith.constant 0 : index
    %c256 = arith.constant 256 : index
    %48 = vector.load %arg12[%c0_27, %c256] : memref<640x1024xbf16, #tpu.memory_space<vmem>>, vector<128x128xbf16>
    tpu.vector_store %arg12[%c0_27, %c256], %47 {strides = array<i32>} : memref<640x1024xbf16, #tpu.memory_space<vmem>>, vector<128x128xbf16>,
    %c128_28 = arith.constant 128 : index
    %c128_29 = arith.constant 128 : index
    %49 = vector.load %arg12[%c128_28, %c128_29] : memref<640x1024xbf16, #tpu.memory_space<vmem>>, vector<128x128xbf16>
    tpu.vector_store %arg12[%c128_28, %c128_29], %47 {strides = array<i32>} : memref<640x1024xbf16, #tpu.memory_space<vmem>>, vector<128x128xbf16>,
    %c256_30 = arith.constant 256 : index
    %c0_31 = arith.constant 0 : index
    %50 = vector.load %arg12[%c256_30, %c0_31] : memref<640x1024xbf16, #tpu.memory_space<vmem>>, vector<128x128xbf16>
    tpu.vector_store %arg12[%c256_30, %c0_31], %47 {strides = array<i32>} : memref<640x1024xbf16, #tpu.memory_space<vmem>>, vector<128x128xbf16>,
    %51 = vector.extract_strided_slice %17 {offsets = [0, 768], sizes = [128, 128], strides = [1, 1]} : vector<128x3072xf32> to vector<128x128xf32>
    %52 = vector.extract_strided_slice %17 {offsets = [0, 896], sizes = [128, 128], strides = [1, 1]} : vector<128x3072xf32> to vector<128x128xf32>
    %53 = arith.maximumf %51, %52 : vector<128x128xf32>
    %c0_32 = arith.constant 0 : index
    %c0_33 = arith.constant 0 : index
    %54 = vector.load %arg3[%c0_32, %c0_33] : memref<128x1xf32, #tpu.memory_space<vmem>>, vector<128x1xf32>
    %55 = vector.broadcast %54 : vector<128x1xf32> to vector<128x128xf32>
    %56 = arith.addf %53, %55 : vector<128x128xf32>
    %cst_34 = arith.constant 0.000000e+00 : f32
    %57 = vector.broadcast %cst_34 : f32 to vector<128x128xf32>
    %58 = arith.maximumf %56, %57 : vector<128x128xf32>
    %59 = arith.truncf %58 : vector<128x128xf32> to vector<128x128xbf16>
    %c0_35 = arith.constant 0 : index
    %c384 = arith.constant 384 : index
    %60 = vector.load %arg12[%c0_35, %c384] : memref<640x1024xbf16, #tpu.memory_space<vmem>>, vector<128x128xbf16>
    tpu.vector_store %arg12[%c0_35, %c384], %59 {strides = array<i32>} : memref<640x1024xbf16, #tpu.memory_space<vmem>>, vector<128x128xbf16>,
    %c128_36 = arith.constant 128 : index
    %c256_37 = arith.constant 256 : index
    %61 = vector.load %arg12[%c128_36, %c256_37] : memref<640x1024xbf16, #tpu.memory_space<vmem>>, vector<128x128xbf16>
    tpu.vector_store %arg12[%c128_36, %c256_37], %59 {strides = array<i32>} : memref<640x1024xbf16, #tpu.memory_space<vmem>>, vector<128x128xbf16>,
    %c256_38 = arith.constant 256 : index
    %c128_39 = arith.constant 128 : index
    %62 = vector.load %arg12[%c256_38, %c128_39] : memref<640x1024xbf16, #tpu.memory_space<vmem>>, vector<128x128xbf16>
    tpu.vector_store %arg12[%c256_38, %c128_39], %59 {strides = array<i32>} : memref<640x1024xbf16, #tpu.memory_space<vmem>>, vector<128x128xbf16>,
    %c384_40 = arith.constant 384 : index
    %c0_41 = arith.constant 0 : index
    %63 = vector.load %arg12[%c384_40, %c0_41] : memref<640x1024xbf16, #tpu.memory_space<vmem>>, vector<128x128xbf16>
    tpu.vector_store %arg12[%c384_40, %c0_41], %59 {strides = array<i32>} : memref<640x1024xbf16, #tpu.memory_space<vmem>>, vector<128x128xbf16>,
    %64 = vector.extract_strided_slice %17 {offsets = [0, 1024], sizes = [128, 128], strides = [1, 1]} : vector<128x3072xf32> to vector<128x128xf32>
    %65 = vector.extract_strided_slice %17 {offsets = [0, 1152], sizes = [128, 128], strides = [1, 1]} : vector<128x3072xf32> to vector<128x128xf32>
    %66 = arith.maximumf %64, %65 : vector<128x128xf32>
    %c0_42 = arith.constant 0 : index
    %c0_43 = arith.constant 0 : index
    %67 = vector.load %arg3[%c0_42, %c0_43] : memref<128x1xf32, #tpu.memory_space<vmem>>, vector<128x1xf32>
    %68 = vector.broadcast %67 : vector<128x1xf32> to vector<128x128xf32>
    %69 = arith.addf %66, %68 : vector<128x128xf32>
    %cst_44 = arith.constant 0.000000e+00 : f32
    %70 = vector.broadcast %cst_44 : f32 to vector<128x128xf32>
    %71 = arith.maximumf %69, %70 : vector<128x128xf32>
    %72 = arith.truncf %71 : vector<128x128xf32> to vector<128x128xbf16>
    %c0_45 = arith.constant 0 : index
    %c512 = arith.constant 512 : index
    %73 = vector.load %arg12[%c0_45, %c512] : memref<640x1024xbf16, #tpu.memory_space<vmem>>, vector<128x128xbf16>
    tpu.vector_store %arg12[%c0_45, %c512], %72 {strides = array<i32>} : memref<640x1024xbf16, #tpu.memory_space<vmem>>, vector<128x128xbf16>,
    %c128_46 = arith.constant 128 : index
    %c384_47 = arith.constant 384 : index
    %74 = vector.load %arg12[%c128_46, %c384_47] : memref<640x1024xbf16, #tpu.memory_space<vmem>>, vector<128x128xbf16>
    tpu.vector_store %arg12[%c128_46, %c384_47], %72 {strides = array<i32>} : memref<640x1024xbf16, #tpu.memory_space<vmem>>, vector<128x128xbf16>,
    %c256_48 = arith.constant 256 : index
    %c256_49 = arith.constant 256 : index
    %75 = vector.load %arg12[%c256_48, %c256_49] : memref<640x1024xbf16, #tpu.memory_space<vmem>>, vector<128x128xbf16>
    tpu.vector_store %arg12[%c256_48, %c256_49], %72 {strides = array<i32>} : memref<640x1024xbf16, #tpu.memory_space<vmem>>, vector<128x128xbf16>,
    %c384_50 = arith.constant 384 : index
    %c128_51 = arith.constant 128 : index
    %76 = vector.load %arg12[%c384_50, %c128_51] : memref<640x1024xbf16, #tpu.memory_space<vmem>>, vector<128x128xbf16>
    tpu.vector_store %arg12[%c384_50, %c128_51], %72 {strides = array<i32>} : memref<640x1024xbf16, #tpu.memory_space<vmem>>, vector<128x128xbf16>,
    %c512_52 = arith.constant 512 : index
    %c0_53 = arith.constant 0 : index
    %77 = vector.load %arg12[%c512_52, %c0_53] : memref<640x1024xbf16, #tpu.memory_space<vmem>>, vector<128x128xbf16>
    tpu.vector_store %arg12[%c512_52, %c0_53], %72 {strides = array<i32>} : memref<640x1024xbf16, #tpu.memory_space<vmem>>, vector<128x128xbf16>,
    %78 = vector.extract_strided_slice %17 {offsets = [0, 1280], sizes = [128, 128], strides = [1, 1]} : vector<128x3072xf32> to vector<128x128xf32>
    %79 = vector.extract_strided_slice %17 {offsets = [0, 1408], sizes = [128, 128], strides = [1, 1]} : vector<128x3072xf32> to vector<128x128xf32>
    %80 = arith.maximumf %78, %79 : vector<128x128xf32>
    %c0_54 = arith.constant 0 : index
    %c0_55 = arith.constant 0 : index
    %81 = vector.load %arg3[%c0_54, %c0_55] : memref<128x1xf32, #tpu.memory_space<vmem>>, vector<128x1xf32>
    %82 = vector.broadcast %81 : vector<128x1xf32> to vector<128x128xf32>
    %83 = arith.addf %80, %82 : vector<128x128xf32>
    %cst_56 = arith.constant 0.000000e+00 : f32
    %84 = vector.broadcast %cst_56 : f32 to vector<128x128xf32>
    %85 = arith.maximumf %83, %84 : vector<128x128xf32>
    %86 = arith.truncf %85 : vector<128x128xf32> to vector<128x128xbf16>
    %c0_57 = arith.constant 0 : index
    %c640 = arith.constant 640 : index
    %87 = vector.load %arg12[%c0_57, %c640] : memref<640x1024xbf16, #tpu.memory_space<vmem>>, vector<128x128xbf16>
    tpu.vector_store %arg12[%c0_57, %c640], %86 {strides = array<i32>} : memref<640x1024xbf16, #tpu.memory_space<vmem>>, vector<128x128xbf16>,
    %c128_58 = arith.constant 128 : index
    %c512_59 = arith.constant 512 : index
    %88 = vector.load %arg12[%c128_58, %c512_59] : memref<640x1024xbf16, #tpu.memory_space<vmem>>, vector<128x128xbf16>
    tpu.vector_store %arg12[%c128_58, %c512_59], %86 {strides = array<i32>} : memref<640x1024xbf16, #tpu.memory_space<vmem>>, vector<128x128xbf16>,
    %c256_60 = arith.constant 256 : index
    %c384_61 = arith.constant 384 : index
    %89 = vector.load %arg12[%c256_60, %c384_61] : memref<640x1024xbf16, #tpu.memory_space<vmem>>, vector<128x128xbf16>
    tpu.vector_store %arg12[%c256_60, %c384_61], %86 {strides = array<i32>} : memref<640x1024xbf16, #tpu.memory_space<vmem>>, vector<128x128xbf16>,
    %c384_62 = arith.constant 384 : index
    %c256_63 = arith.constant 256 : index
    %90 = vector.load %arg12[%c384_62, %c256_63] : memref<640x1024xbf16, #tpu.memory_space<vmem>>, vector<128x128xbf16>
    tpu.vector_store %arg12[%c384_62, %c256_63], %86 {strides = array<i32>} : memref<640x1024xbf16, #tpu.memory_space<vmem>>, vector<128x128xbf16>,
    %c512_64 = arith.constant 512 : index
    %c128_65 = arith.constant 128 : index
    %91 = vector.load %arg12[%c512_64, %c128_65] : memref<640x1024xbf16, #tpu.memory_space<vmem>>, vector<128x128xbf16>
    tpu.vector_store %arg12[%c512_64, %c128_65], %86 {strides = array<i32>} : memref<640x1024xbf16, #tpu.memory_space<vmem>>, vector<128x128xbf16>,
    %92 = vector.extract_strided_slice %17 {offsets = [0, 1536], sizes = [128, 128], strides = [1, 1]} : vector<128x3072xf32> to vector<128x128xf32>
    %93 = vector.extract_strided_slice %17 {offsets = [0, 1664], sizes = [128, 128], strides = [1, 1]} : vector<128x3072xf32> to vector<128x128xf32>
    %94 = arith.maximumf %92, %93 : vector<128x128xf32>
    %c0_66 = arith.constant 0 : index
    %c0_67 = arith.constant 0 : index
    %95 = vector.load %arg3[%c0_66, %c0_67] : memref<128x1xf32, #tpu.memory_space<vmem>>, vector<128x1xf32>
    %96 = vector.broadcast %95 : vector<128x1xf32> to vector<128x128xf32>
    %97 = arith.addf %94, %96 : vector<128x128xf32>
    %cst_68 = arith.constant 0.000000e+00 : f32
    %98 = vector.broadcast %cst_68 : f32 to vector<128x128xf32>
    %99 = arith.maximumf %97, %98 : vector<128x128xf32>
    %100 = arith.truncf %99 : vector<128x128xf32> to vector<128x128xbf16>
    %c0_69 = arith.constant 0 : index
    %c768 = arith.constant 768 : index
    %101 = vector.load %arg12[%c0_69, %c768] : memref<640x1024xbf16, #tpu.memory_space<vmem>>, vector<128x128xbf16>
    tpu.vector_store %arg12[%c0_69, %c768], %100 {strides = array<i32>} : memref<640x1024xbf16, #tpu.memory_space<vmem>>, vector<128x128xbf16>,
    %c128_70 = arith.constant 128 : index
    %c640_71 = arith.constant 640 : index
    %102 = vector.load %arg12[%c128_70, %c640_71] : memref<640x1024xbf16, #tpu.memory_space<vmem>>, vector<128x128xbf16>
    tpu.vector_store %arg12[%c128_70, %c640_71], %100 {strides = array<i32>} : memref<640x1024xbf16, #tpu.memory_space<vmem>>, vector<128x128xbf16>,
    %c256_72 = arith.constant 256 : index
    %c512_73 = arith.constant 512 : index
    %103 = vector.load %arg12[%c256_72, %c512_73] : memref<640x1024xbf16, #tpu.memory_space<vmem>>, vector<128x128xbf16>
    tpu.vector_store %arg12[%c256_72, %c512_73], %100 {strides = array<i32>} : memref<640x1024xbf16, #tpu.memory_space<vmem>>, vector<128x128xbf16>,
    %c384_74 = arith.constant 384 : index
    %c384_75 = arith.constant 384 : index
    %104 = vector.load %arg12[%c384_74, %c384_75] : memref<640x1024xbf16, #tpu.memory_space<vmem>>, vector<128x128xbf16>
    tpu.vector_store %arg12[%c384_74, %c384_75], %100 {strides = array<i32>} : memref<640x1024xbf16, #tpu.memory_space<vmem>>, vector<128x128xbf16>,
    %c512_76 = arith.constant 512 : index
    %c256_77 = arith.constant 256 : index
    %105 = vector.load %arg12[%c512_76, %c256_77] : memref<640x1024xbf16, #tpu.memory_space<vmem>>, vector<128x128xbf16>
    tpu.vector_store %arg12[%c512_76, %c256_77], %100 {strides = array<i32>} : memref<640x1024xbf16, #tpu.memory_space<vmem>>, vector<128x128xbf16>,
    %106 = vector.extract_strided_slice %17 {offsets = [0, 1792], sizes = [128, 128], strides = [1, 1]} : vector<128x3072xf32> to vector<128x128xf32>
    %107 = vector.extract_strided_slice %17 {offsets = [0, 1920], sizes = [128, 128], strides = [1, 1]} : vector<128x3072xf32> to vector<128x128xf32>
    %108 = arith.maximumf %106, %107 : vector<128x128xf32>
    %c0_78 = arith.constant 0 : index
    %c0_79 = arith.constant 0 : index
    %109 = vector.load %arg3[%c0_78, %c0_79] : memref<128x1xf32, #tpu.memory_space<vmem>>, vector<128x1xf32>
    %110 = vector.broadcast %109 : vector<128x1xf32> to vector<128x128xf32>
    %111 = arith.addf %108, %110 : vector<128x128xf32>
    %cst_80 = arith.constant 0.000000e+00 : f32
    %112 = vector.broadcast %cst_80 : f32 to vector<128x128xf32>
    %113 = arith.maximumf %111, %112 : vector<128x128xf32>
    %114 = arith.truncf %113 : vector<128x128xf32> to vector<128x128xbf16>
    %c0_81 = arith.constant 0 : index
    %c896 = arith.constant 896 : index
    %115 = vector.load %arg12[%c0_81, %c896] : memref<640x1024xbf16, #tpu.memory_space<vmem>>, vector<128x128xbf16>
    tpu.vector_store %arg12[%c0_81, %c896], %114 {strides = array<i32>} : memref<640x1024xbf16, #tpu.memory_space<vmem>>, vector<128x128xbf16>,
    %c128_82 = arith.constant 128 : index
    %c768_83 = arith.constant 768 : index
    %116 = vector.load %arg12[%c128_82, %c768_83] : memref<640x1024xbf16, #tpu.memory_space<vmem>>, vector<128x128xbf16>
    tpu.vector_store %arg12[%c128_82, %c768_83], %114 {strides = array<i32>} : memref<640x1024xbf16, #tpu.memory_space<vmem>>, vector<128x128xbf16>,
    %c256_84 = arith.constant 256 : index
    %c640_85 = arith.constant 640 : index
    %117 = vector.load %arg12[%c256_84, %c640_85] : memref<640x1024xbf16, #tpu.memory_space<vmem>>, vector<128x128xbf16>
    tpu.vector_store %arg12[%c256_84, %c640_85], %114 {strides = array<i32>} : memref<640x1024xbf16, #tpu.memory_space<vmem>>, vector<128x128xbf16>,
    %c384_86 = arith.constant 384 : index
    %c512_87 = arith.constant 512 : index
    %118 = vector.load %arg12[%c384_86, %c512_87] : memref<640x1024xbf16, #tpu.memory_space<vmem>>, vector<128x128xbf16>
    tpu.vector_store %arg12[%c384_86, %c512_87], %114 {strides = array<i32>} : memref<640x1024xbf16, #tpu.memory_space<vmem>>, vector<128x128xbf16>,
    %c512_88 = arith.constant 512 : index
    %c384_89 = arith.constant 384 : index
    %119 = vector.load %arg12[%c512_88, %c384_89] : memref<640x1024xbf16, #tpu.memory_space<vmem>>, vector<128x128xbf16>
    tpu.vector_store %arg12[%c512_88, %c384_89], %114 {strides = array<i32>} : memref<640x1024xbf16, #tpu.memory_space<vmem>>, vector<128x128xbf16>,
    %120 = vector.extract_strided_slice %17 {offsets = [0, 2048], sizes = [128, 128], strides = [1, 1]} : vector<128x3072xf32> to vector<128x128xf32>
    %121 = vector.extract_strided_slice %17 {offsets = [0, 2176], sizes = [128, 128], strides = [1, 1]} : vector<128x3072xf32> to vector<128x128xf32>
    %122 = arith.maximumf %120, %121 : vector<128x128xf32>
    %c0_90 = arith.constant 0 : index
    %c0_91 = arith.constant 0 : index
    %123 = vector.load %arg3[%c0_90, %c0_91] : memref<128x1xf32, #tpu.memory_space<vmem>>, vector<128x1xf32>
    %124 = vector.broadcast %123 : vector<128x1xf32> to vector<128x128xf32>
    %125 = arith.addf %122, %124 : vector<128x128xf32>
    %cst_92 = arith.constant 0.000000e+00 : f32
    %126 = vector.broadcast %cst_92 : f32 to vector<128x128xf32>
    %127 = arith.maximumf %125, %126 : vector<128x128xf32>
    %128 = arith.truncf %127 : vector<128x128xf32> to vector<128x128xbf16>
    %c128_93 = arith.constant 128 : index
    %c896_94 = arith.constant 896 : index
    %129 = vector.load %arg12[%c128_93, %c896_94] : memref<640x1024xbf16, #tpu.memory_space<vmem>>, vector<128x128xbf16>
    tpu.vector_store %arg12[%c128_93, %c896_94], %128 {strides = array<i32>} : memref<640x1024xbf16, #tpu.memory_space<vmem>>, vector<128x128xbf16>,
    %c256_95 = arith.constant 256 : index
    %c768_96 = arith.constant 768 : index
    %130 = vector.load %arg12[%c256_95, %c768_96] : memref<640x1024xbf16, #tpu.memory_space<vmem>>, vector<128x128xbf16>
    tpu.vector_store %arg12[%c256_95, %c768_96], %128 {strides = array<i32>} : memref<640x1024xbf16, #tpu.memory_space<vmem>>, vector<128x128xbf16>,
    %c384_97 = arith.constant 384 : index
    %c640_98 = arith.constant 640 : index
    %131 = vector.load %arg12[%c384_97, %c640_98] : memref<640x1024xbf16, #tpu.memory_space<vmem>>, vector<128x128xbf16>
    tpu.vector_store %arg12[%c384_97, %c640_98], %128 {strides = array<i32>} : memref<640x1024xbf16, #tpu.memory_space<vmem>>, vector<128x128xbf16>,
    %c512_99 = arith.constant 512 : index
    %c512_100 = arith.constant 512 : index
    %132 = vector.load %arg12[%c512_99, %c512_100] : memref<640x1024xbf16, #tpu.memory_space<vmem>>, vector<128x128xbf16>
    tpu.vector_store %arg12[%c512_99, %c512_100], %128 {strides = array<i32>} : memref<640x1024xbf16, #tpu.memory_space<vmem>>, vector<128x128xbf16>,
    %133 = vector.extract_strided_slice %17 {offsets = [0, 2304], sizes = [128, 128], strides = [1, 1]} : vector<128x3072xf32> to vector<128x128xf32>
    %134 = vector.extract_strided_slice %17 {offsets = [0, 2432], sizes = [128, 128], strides = [1, 1]} : vector<128x3072xf32> to vector<128x128xf32>
    %135 = arith.maximumf %133, %134 : vector<128x128xf32>
    %c0_101 = arith.constant 0 : index
    %c0_102 = arith.constant 0 : index
    %136 = vector.load %arg3[%c0_101, %c0_102] : memref<128x1xf32, #tpu.memory_space<vmem>>, vector<128x1xf32>
    %137 = vector.broadcast %136 : vector<128x1xf32> to vector<128x128xf32>
    %138 = arith.addf %135, %137 : vector<128x128xf32>
    %cst_103 = arith.constant 0.000000e+00 : f32
    %139 = vector.broadcast %cst_103 : f32 to vector<128x128xf32>
    %140 = arith.maximumf %138, %139 : vector<128x128xf32>
    %141 = arith.truncf %140 : vector<128x128xf32> to vector<128x128xbf16>
    %c256_104 = arith.constant 256 : index
    %c896_105 = arith.constant 896 : index
    %142 = vector.load %arg12[%c256_104, %c896_105] : memref<640x1024xbf16, #tpu.memory_space<vmem>>, vector<128x128xbf16>
    tpu.vector_store %arg12[%c256_104, %c896_105], %141 {strides = array<i32>} : memref<640x1024xbf16, #tpu.memory_space<vmem>>, vector<128x128xbf16>,
    %c384_106 = arith.constant 384 : index
    %c768_107 = arith.constant 768 : index
    %143 = vector.load %arg12[%c384_106, %c768_107] : memref<640x1024xbf16, #tpu.memory_space<vmem>>, vector<128x128xbf16>
    tpu.vector_store %arg12[%c384_106, %c768_107], %141 {strides = array<i32>} : memref<640x1024xbf16, #tpu.memory_space<vmem>>, vector<128x128xbf16>,
    %c512_108 = arith.constant 512 : index
    %c640_109 = arith.constant 640 : index
    %144 = vector.load %arg12[%c512_108, %c640_109] : memref<640x1024xbf16, #tpu.memory_space<vmem>>, vector<128x128xbf16>
    tpu.vector_store %arg12[%c512_108, %c640_109], %141 {strides = array<i32>} : memref<640x1024xbf16, #tpu.memory_space<vmem>>, vector<128x128xbf16>,
    %145 = vector.extract_strided_slice %17 {offsets = [0, 2560], sizes = [128, 128], strides = [1, 1]} : vector<128x3072xf32> to vector<128x128xf32>
    %146 = vector.extract_strided_slice %17 {offsets = [0, 2688], sizes = [128, 128], strides = [1, 1]} : vector<128x3072xf32> to vector<128x128xf32>
    %147 = arith.maximumf %145, %146 : vector<128x128xf32>
    %c0_110 = arith.constant 0 : index
    %c0_111 = arith.constant 0 : index
    %148 = vector.load %arg3[%c0_110, %c0_111] : memref<128x1xf32, #tpu.memory_space<vmem>>, vector<128x1xf32>
    %149 = vector.broadcast %148 : vector<128x1xf32> to vector<128x128xf32>
    %150 = arith.addf %147, %149 : vector<128x128xf32>
    %cst_112 = arith.constant 0.000000e+00 : f32
    %151 = vector.broadcast %cst_112 : f32 to vector<128x128xf32>
    %152 = arith.maximumf %150, %151 : vector<128x128xf32>
    %153 = arith.truncf %152 : vector<128x128xf32> to vector<128x128xbf16>
    %c384_113 = arith.constant 384 : index
    %c896_114 = arith.constant 896 : index
    %154 = vector.load %arg12[%c384_113, %c896_114] : memref<640x1024xbf16, #tpu.memory_space<vmem>>, vector<128x128xbf16>
    tpu.vector_store %arg12[%c384_113, %c896_114], %153 {strides = array<i32>} : memref<640x1024xbf16, #tpu.memory_space<vmem>>, vector<128x128xbf16>,
    %c512_115 = arith.constant 512 : index
    %c768_116 = arith.constant 768 : index
    %155 = vector.load %arg12[%c512_115, %c768_116] : memref<640x1024xbf16, #tpu.memory_space<vmem>>, vector<128x128xbf16>
    tpu.vector_store %arg12[%c512_115, %c768_116], %153 {strides = array<i32>} : memref<640x1024xbf16, #tpu.memory_space<vmem>>, vector<128x128xbf16>,
    %156 = vector.extract_strided_slice %17 {offsets = [0, 2816], sizes = [128, 128], strides = [1, 1]} : vector<128x3072xf32> to vector<128x128xf32>
    %157 = vector.extract_strided_slice %17 {offsets = [0, 2944], sizes = [128, 128], strides = [1, 1]} : vector<128x3072xf32> to vector<128x128xf32>
    %158 = arith.maximumf %156, %157 : vector<128x128xf32>
    %c0_117 = arith.constant 0 : index
    %c0_118 = arith.constant 0 : index
    %159 = vector.load %arg3[%c0_117, %c0_118] : memref<128x1xf32, #tpu.memory_space<vmem>>, vector<128x1xf32>
    %160 = vector.broadcast %159 : vector<128x1xf32> to vector<128x128xf32>
    %161 = arith.addf %158, %160 : vector<128x128xf32>
    %cst_119 = arith.constant 0.000000e+00 : f32
    %162 = vector.broadcast %cst_119 : f32 to vector<128x128xf32>
    %163 = arith.maximumf %161, %162 : vector<128x128xf32>
    %164 = arith.truncf %163 : vector<128x128xf32> to vector<128x128xbf16>
    %c512_120 = arith.constant 512 : index
    %c896_121 = arith.constant 896 : index
    %165 = vector.load %arg12[%c512_120, %c896_121] : memref<640x1024xbf16, #tpu.memory_space<vmem>>, vector<128x128xbf16>
    tpu.vector_store %arg12[%c512_120, %c896_121], %164 {strides = array<i32>} : memref<640x1024xbf16, #tpu.memory_space<vmem>>, vector<128x128xbf16>,
    %c0_122 = arith.constant 0 : index
    %c0_123 = arith.constant 0 : index
    %166 = vector.load %arg4[%c0_122, %c0_123] : memref<160x640xbf16, #tpu.memory_space<vmem>>, vector<160x640xbf16>
    %c0_124 = arith.constant 0 : index
    %c0_125 = arith.constant 0 : index
    %167 = vector.load %arg12[%c0_124, %c0_125] : memref<640x1024xbf16, #tpu.memory_space<vmem>>, vector<640x1024xbf16>
    %cst_126 = arith.constant dense<0.000000e+00> : vector<160x1024xf32>
    %168 = tpu.matmul %166, %167, %cst_126 {dimension_numbers = #tpu.dot_dimension_numbers<[1], [0], [0], [1], [0, 0, 1, 1], [], []>} : vector<160x640xbf16>, vector<640x1024xbf16>, vector<160x1024xf32> -> vector<160x1024xf32>
    %169 = vector.extract_strided_slice %168 {offsets = [0, 0], sizes = [80, 1024], strides = [1, 1]} : vector<160x1024xf32> to vector<80x1024xf32>
    %170 = vector.extract_strided_slice %168 {offsets = [80, 0], sizes = [80, 1024], strides = [1, 1]} : vector<160x1024xf32> to vector<80x1024xf32>
    %171 = arith.maximumf %169, %170 : vector<80x1024xf32>
    %172 = vector.extract_strided_slice %171 {offsets = [0, 0], sizes = [80, 128], strides = [1, 1]} : vector<80x1024xf32> to vector<80x128xf32>
    %173 = vector.extract_strided_slice %171 {offsets = [0, 128], sizes = [80, 128], strides = [1, 1]} : vector<80x1024xf32> to vector<80x128xf32>
    %174 = arith.maximumf %172, %173 : vector<80x128xf32>
    %c0_127 = arith.constant 0 : index
    %c0_128 = arith.constant 0 : index
    %175 = vector.load %arg5[%c0_127, %c0_128] : memref<80x1xf32, #tpu.memory_space<vmem>>, vector<80x1xf32>
    %176 = vector.broadcast %175 : vector<80x1xf32> to vector<80x128xf32>
    %177 = arith.addf %174, %176 : vector<80x128xf32>
    %cst_129 = arith.constant 0.000000e+00 : f32
    %178 = vector.broadcast %cst_129 : f32 to vector<80x128xf32>
    %179 = arith.maximumf %177, %178 : vector<80x128xf32>
    %180 = arith.truncf %179 : vector<80x128xf32> to vector<80x128xbf16>
    %c0_130 = arith.constant 0 : index
    %c0_131 = arith.constant 0 : index
    %181 = vector.load %arg13[%c0_130, %c0_131] : memref<320x128xbf16, #tpu.memory_space<vmem>>, vector<80x128xbf16>
    tpu.vector_store %arg13[%c0_130, %c0_131], %180 {strides = array<i32>} : memref<320x128xbf16, #tpu.memory_space<vmem>>, vector<80x128xbf16>,
    %182 = vector.extract_strided_slice %171 {offsets = [0, 256], sizes = [80, 128], strides = [1, 1]} : vector<80x1024xf32> to vector<80x128xf32>
    %183 = vector.extract_strided_slice %171 {offsets = [0, 384], sizes = [80, 128], strides = [1, 1]} : vector<80x1024xf32> to vector<80x128xf32>
    %184 = arith.maximumf %182, %183 : vector<80x128xf32>
    %c0_132 = arith.constant 0 : index
    %c0_133 = arith.constant 0 : index
    %185 = vector.load %arg5[%c0_132, %c0_133] : memref<80x1xf32, #tpu.memory_space<vmem>>, vector<80x1xf32>
    %186 = vector.broadcast %185 : vector<80x1xf32> to vector<80x128xf32>
    %187 = arith.addf %184, %186 : vector<80x128xf32>
    %cst_134 = arith.constant 0.000000e+00 : f32
    %188 = vector.broadcast %cst_134 : f32 to vector<80x128xf32>
    %189 = arith.maximumf %187, %188 : vector<80x128xf32>
    %190 = arith.truncf %189 : vector<80x128xf32> to vector<80x128xbf16>
    %c80 = arith.constant 80 : index
    %c0_135 = arith.constant 0 : index
    %191 = vector.load %arg13[%c80, %c0_135] : memref<320x128xbf16, #tpu.memory_space<vmem>>, vector<80x128xbf16>
    tpu.vector_store %arg13[%c80, %c0_135], %190 {strides = array<i32>} : memref<320x128xbf16, #tpu.memory_space<vmem>>, vector<80x128xbf16>,
    %192 = vector.extract_strided_slice %171 {offsets = [0, 512], sizes = [80, 128], strides = [1, 1]} : vector<80x1024xf32> to vector<80x128xf32>
    %193 = vector.extract_strided_slice %171 {offsets = [0, 640], sizes = [80, 128], strides = [1, 1]} : vector<80x1024xf32> to vector<80x128xf32>
    %194 = arith.maximumf %192, %193 : vector<80x128xf32>
    %c0_136 = arith.constant 0 : index
    %c0_137 = arith.constant 0 : index
    %195 = vector.load %arg5[%c0_136, %c0_137] : memref<80x1xf32, #tpu.memory_space<vmem>>, vector<80x1xf32>
    %196 = vector.broadcast %195 : vector<80x1xf32> to vector<80x128xf32>
    %197 = arith.addf %194, %196 : vector<80x128xf32>
    %cst_138 = arith.constant 0.000000e+00 : f32
    %198 = vector.broadcast %cst_138 : f32 to vector<80x128xf32>
    %199 = arith.maximumf %197, %198 : vector<80x128xf32>
    %200 = arith.truncf %199 : vector<80x128xf32> to vector<80x128xbf16>
    %c160 = arith.constant 160 : index
    %c0_139 = arith.constant 0 : index
    %201 = vector.load %arg13[%c160, %c0_139] : memref<320x128xbf16, #tpu.memory_space<vmem>>, vector<80x128xbf16>
    tpu.vector_store %arg13[%c160, %c0_139], %200 {strides = array<i32>} : memref<320x128xbf16, #tpu.memory_space<vmem>>, vector<80x128xbf16>,
    %202 = vector.extract_strided_slice %171 {offsets = [0, 768], sizes = [80, 128], strides = [1, 1]} : vector<80x1024xf32> to vector<80x128xf32>
    %203 = vector.extract_strided_slice %171 {offsets = [0, 896], sizes = [80, 128], strides = [1, 1]} : vector<80x1024xf32> to vector<80x128xf32>
    %204 = arith.maximumf %202, %203 : vector<80x128xf32>
    %c0_140 = arith.constant 0 : index
    %c0_141 = arith.constant 0 : index
    %205 = vector.load %arg5[%c0_140, %c0_141] : memref<80x1xf32, #tpu.memory_space<vmem>>, vector<80x1xf32>
    %206 = vector.broadcast %205 : vector<80x1xf32> to vector<80x128xf32>
    %207 = arith.addf %204, %206 : vector<80x128xf32>
    %cst_142 = arith.constant 0.000000e+00 : f32
    %208 = vector.broadcast %cst_142 : f32 to vector<80x128xf32>
    %209 = arith.maximumf %207, %208 : vector<80x128xf32>
    %210 = arith.truncf %209 : vector<80x128xf32> to vector<80x128xbf16>
    %c240 = arith.constant 240 : index
    %c0_143 = arith.constant 0 : index
    %211 = vector.load %arg13[%c240, %c0_143] : memref<320x128xbf16, #tpu.memory_space<vmem>>, vector<80x128xbf16>
    tpu.vector_store %arg13[%c240, %c0_143], %210 {strides = array<i32>} : memref<320x128xbf16, #tpu.memory_space<vmem>>, vector<80x128xbf16>,
    %c0_144 = arith.constant 0 : index
    %c0_145 = arith.constant 0 : index
    %212 = vector.load %arg6[%c0_144, %c0_145] : memref<50x320xbf16, #tpu.memory_space<vmem>>, vector<50x320xbf16>
    %c0_146 = arith.constant 0 : index
    %c0_147 = arith.constant 0 : index
    %213 = vector.load %arg13[%c0_146, %c0_147] : memref<320x128xbf16, #tpu.memory_space<vmem>>, vector<320x128xbf16>
    %cst_148 = arith.constant dense<0.000000e+00> : vector<50x128xf32>
    %214 = tpu.matmul %212, %213, %cst_148 {dimension_numbers = #tpu.dot_dimension_numbers<[1], [0], [0], [1], [0, 0, 1, 1], [], []>} : vector<50x320xbf16>, vector<320x128xbf16>, vector<50x128xf32> -> vector<50x128xf32>
    %c0_149 = arith.constant 0 : index
    %c0_150 = arith.constant 0 : index
    %215 = vector.load %arg7[%c0_149, %c0_150] : memref<50x1xf32, #tpu.memory_space<vmem>>, vector<50x1xf32>
    %216 = vector.broadcast %215 : vector<50x1xf32> to vector<50x128xf32>
    %217 = arith.addf %214, %216 : vector<50x128xf32>
    %cst_151 = arith.constant 0.000000e+00 : f32
    %218 = vector.broadcast %cst_151 : f32 to vector<50x128xf32>
    %219 = arith.maximumf %217, %218 : vector<50x128xf32>
    %220 = arith.truncf %219 : vector<50x128xf32> to vector<50x128xbf16>
    %c0_152 = arith.constant 0 : index
    %c0_153 = arith.constant 0 : index
    %221 = vector.load %arg8[%c0_152, %c0_153] : memref<10x50xbf16, #tpu.memory_space<vmem>>, vector<10x50xbf16>
    %cst_154 = arith.constant dense<0.000000e+00> : vector<10x128xf32>
    %222 = tpu.matmul %221, %220, %cst_154 {dimension_numbers = #tpu.dot_dimension_numbers<[1], [0], [0], [1], [0, 0, 1, 1], [], []>} : vector<10x50xbf16>, vector<50x128xbf16>, vector<10x128xf32> -> vector<10x128xf32>
    %c0_155 = arith.constant 0 : index
    %c0_156 = arith.constant 0 : index
    %223 = vector.load %arg9[%c0_155, %c0_156] : memref<10x1xf32, #tpu.memory_space<vmem>>, vector<10x1xf32>
    %224 = vector.broadcast %223 : vector<10x1xf32> to vector<10x128xf32>
    %225 = arith.addf %222, %224 : vector<10x128xf32>
    %c0_157 = arith.constant 0 : index
    %c0_158 = arith.constant 0 : index
    %226 = vector.load %arg10[%c0_157, %c0_158] : memref<10x128xf32, #tpu.memory_space<vmem>>, vector<10x128xf32>
    tpu.vector_store %arg10[%c0_157, %c0_158], %225 {strides = array<i32>} : memref<10x128xf32, #tpu.memory_space<vmem>>, vector<10x128xf32>,
    return
  }
  func.func @transform_0(%arg0: i32) -> (i32, i32, i32) {
    %c0_i32 = arith.constant 0 : i32
    %c0_i32_0 = arith.constant 0 : i32
    %c0_i32_1 = arith.constant 0 : i32
    return %arg0, %c0_i32, %c0_i32_0 : i32, i32, i32
  }
  func.func @transform_1(%arg0: i32) -> (i32, i32) {
    %c0_i32 = arith.constant 0 : i32
    %c0_i32_0 = arith.constant 0 : i32
    %c0_i32_1 = arith.constant 0 : i32
    return %c0_i32, %c0_i32_0 : i32, i32
  }
  func.func @transform_2(%arg0: i32) -> (i32, i32) {
    %c0_i32 = arith.constant 0 : i32
    %c0_i32_0 = arith.constant 0 : i32
    %c0_i32_1 = arith.constant 0 : i32
    return %c0_i32, %c0_i32_0 : i32, i32
  }
  func.func @transform_3(%arg0: i32) -> (i32, i32) {
    %c0_i32 = arith.constant 0 : i32
    %c0_i32_0 = arith.constant 0 : i32
    %c0_i32_1 = arith.constant 0 : i32
    return %c0_i32, %c0_i32_0 : i32, i32
  }
  func.func @transform_4(%arg0: i32) -> (i32, i32) {
    %c0_i32 = arith.constant 0 : i32
    %c0_i32_0 = arith.constant 0 : i32
    %c0_i32_1 = arith.constant 0 : i32
    return %c0_i32, %c0_i32_0 : i32, i32
  }
  func.func @transform_5(%arg0: i32) -> (i32, i32) {
    %c0_i32 = arith.constant 0 : i32
    %c0_i32_0 = arith.constant 0 : i32
    %c0_i32_1 = arith.constant 0 : i32
    return %c0_i32, %c0_i32_0 : i32, i32
  }
  func.func @transform_6(%arg0: i32) -> (i32, i32) {
    %c0_i32 = arith.constant 0 : i32
    %c0_i32_0 = arith.constant 0 : i32
    %c0_i32_1 = arith.constant 0 : i32
    return %c0_i32, %c0_i32_0 : i32, i32
  }
  func.func @transform_7(%arg0: i32) -> (i32, i32) {
    %c0_i32 = arith.constant 0 : i32
    %c0_i32_0 = arith.constant 0 : i32
    %c0_i32_1 = arith.constant 0 : i32
    return %c0_i32, %c0_i32_0 : i32, i32
  }
  func.func @transform_8(%arg0: i32) -> (i32, i32) {
    %c0_i32 = arith.constant 0 : i32
    %c0_i32_0 = arith.constant 0 : i32
    %c0_i32_1 = arith.constant 0 : i32
    return %c0_i32, %c0_i32_0 : i32, i32
  }
  func.func @transform_9(%arg0: i32) -> (i32, i32) {
    %c0_i32 = arith.constant 0 : i32
    %c0_i32_0 = arith.constant 0 : i32
    return %c0_i32, %arg0 : i32, i32
  }
}

</mosaic_0001>

<llo_original>
// kernel: tpu_custom_call.1
$region0: #{tpu_custom_call.1}
  #allocation0 [shape = 'u32[]', space=smem, size = 0x4, offset = 0x4, fixed_abs, tag = 'smem constant byte address 0x4 - core index']
  #allocation1 [shape = 'u32[144,128]{1,0:T(1,128)}', space=vmem, size = 0x12000, scoped, tag = 'internal scratch']
  #allocation2 [shape = 'bf16[160,3072]{1,0:T(16,128)(2,1)}', space=vmem, size = 0xf0000, scoped, tag = 'scratch operand']
  #allocation3 [shape = 'bf16[640,1024]{1,0:T(16,128)(2,1)}', space=vmem, size = 0x140000, scoped, tag = 'scratch operand']
  #allocation4 [shape = 'bf16[320,128]{1,0:T(16,128)(2,1)}', space=vmem, size = 0x14000, scoped, tag = 'scratch operand']
  %s0 = inlined_call_operand.vmem [shape: bf16[1,32,3584], index: 0, kind: input, shape index: {}]
  %s1 = inlined_call_operand.vmem [shape: bf16[256,160], index: 1, kind: input, shape index: {}]
  %s2 = inlined_call_operand.vmem [shape: f32[128,1], index: 2, kind: input, shape index: {}]
  %s3 = inlined_call_operand.hbm [shape: bf16[160,640], index: 3, kind: input, shape index: {}]
  %s4 = inlined_call_operand.vmem [shape: f32[80,1], index: 4, kind: input, shape index: {}]
  %s5 = inlined_call_operand.vmem [shape: bf16[50,320], index: 5, kind: input, shape index: {}]
  %s6 = inlined_call_operand.vmem [shape: f32[50,1], index: 6, kind: input, shape index: {}]
  %s7 = inlined_call_operand.vmem [shape: bf16[10,50], index: 7, kind: input, shape index: {}]
  %s8 = inlined_call_operand.vmem [shape: f32[10,1], index: 8, kind: input, shape index: {}]
  %s9 = inlined_call_operand.hbm [shape: f32[10,128], index: 9, kind: output, shape index: {}]
  %s10 = sld [smem:[#allocation0]]
  $region50: #{tpu_custom_call.1} parent=0
    _
  %s12 = ssub.s32 1, %s10
  %s13 = scalar_select 0, %s12, %s10
  $region1: #{tpu_custom_call.1} parent=0
    #allocation5 [shape = 'u8[204800]{0}', space=vmem, size = 0x32000, scoped, tag = 'input window, operand 3, single buffered']
    #allocation6 [shape = 's32[1]{0}', space=sflag, size = 0x4, scoped, tag = 'scoped memory for tpu_custom_call.1']
    #allocation7 [shape = 's32[1]{0}', space=sflag, size = 0x4, scoped, tag = 'scoped memory for tpu_custom_call.1']
    #allocation8 [shape = 'u8[8192]{0}', space=vmem, size = 0x2000, scoped, tag = 'output window, operand 0, single buffered']
    %14 = vsyncpa [#allocation6], 0
    %15 = vsyncpa [#allocation7], 0
    // Predicated region
    $region2: #{tpu_custom_call.1} parent=1 // pred_check
      _
    $region3: #{tpu_custom_call.1} parent=1 // pred_check_branch
      %17 = sbr.rel (0) target = $region5
    $region4: #{tpu_custom_call.1} parent=1 // pred_region
      _
    $region5: #{tpu_custom_call.1} parent=1 // pred_fallthru
      _
    // Predicated region
    $region6: #{tpu_custom_call.1} parent=1 // pred_check
      _
    $region7: #{tpu_custom_call.1} parent=1 // pred_check_branch
      %19 = sbr.rel (0) target = $region9
    $region8: #{tpu_custom_call.1} parent=1 // pred_region
      _
    $region9: #{tpu_custom_call.1} parent=1 // pred_fallthru
      _
    // Predicated region
    $region10: #{tpu_custom_call.1} parent=1 // pred_check
      _
    $region11: #{tpu_custom_call.1} parent=1 // pred_check_branch
      %21 = sbr.rel (0) target = $region13
    $region12: #{tpu_custom_call.1} parent=1 // pred_region
      _
    $region13: #{tpu_custom_call.1} parent=1 // pred_fallthru
      _
    // Predicated region
    $region14: #{tpu_custom_call.1} parent=1 // pred_check
      _
    $region15: #{tpu_custom_call.1} parent=1 // pred_check_branch
      %23 = sbr.rel (0) target = $region17
    $region16: #{tpu_custom_call.1} parent=1 // pred_region
      %s25 = ssub.s32 6400, 6400
      %26 = vsyncadd [#allocation6], %s25
      %s27 = sshll.u32 [#allocation5], 4
      %s28 = int_to_ptr.vmem [resolvable:$true] %s27
      %33 = dma.hbm_to_vmem [thread:$0]  %s3, 6400, %s28, [#allocation6], 320, 320, 20
    $region17: #{tpu_custom_call.1} parent=1 // pred_fallthru
      _
    // Predicated region
    $region18: #{tpu_custom_call.1} parent=1 // pred_check
      _
    $region19: #{tpu_custom_call.1} parent=1 // pred_check_branch
      %35 = sbr.rel (0) target = $region21
    $region20: #{tpu_custom_call.1} parent=1 // pred_region
      _
    $region21: #{tpu_custom_call.1} parent=1 // pred_fallthru
      _
    // Predicated region
    $region22: #{tpu_custom_call.1} parent=1 // pred_check
      _
    $region23: #{tpu_custom_call.1} parent=1 // pred_check_branch
      %37 = sbr.rel (0) target = $region25
    $region24: #{tpu_custom_call.1} parent=1 // pred_region
      _
    $region25: #{tpu_custom_call.1} parent=1 // pred_fallthru
      _
    // Predicated region
    $region26: #{tpu_custom_call.1} parent=1 // pred_check
      _
    $region27: #{tpu_custom_call.1} parent=1 // pred_check_branch
      %39 = sbr.rel (0) target = $region29
    $region28: #{tpu_custom_call.1} parent=1 // pred_region
      _
    $region29: #{tpu_custom_call.1} parent=1 // pred_fallthru
      _
    // Predicated region
    $region30: #{tpu_custom_call.1} parent=1 // pred_check
      _
    $region31: #{tpu_custom_call.1} parent=1 // pred_check_branch
      %41 = sbr.rel (0) target = $region33
    $region32: #{tpu_custom_call.1} parent=1 // pred_region
      _
    $region33: #{tpu_custom_call.1} parent=1 // pred_fallthru
      _
    // Predicated region
    $region34: #{tpu_custom_call.1} parent=1 // pred_check
      _
    $region35: #{tpu_custom_call.1} parent=1 // pred_check_branch
      %43 = sbr.rel (0) target = $region37
    $region36: #{tpu_custom_call.1} parent=1 // pred_region
      _
    $region37: #{tpu_custom_call.1} parent=1 // pred_fallthru
      _
    // Predicated region
    $region38: #{tpu_custom_call.1} parent=1 // pred_check
      _
    $region39: #{tpu_custom_call.1} parent=1 // pred_check_branch
      %45 = sbr.rel (0) target = $region41
    $region40: #{tpu_custom_call.1} parent=1 // pred_region
      %46 = dma.done [#allocation6], 6400
    $region41: #{tpu_custom_call.1} parent=1 // pred_fallthru
      _
    %v48 = vld [vmem:[%s0] sm:$0xff]
    %v49 = vld [vmem:[%s0 + $0x8] sm:$0xff]
    %v50 = vld [vmem:[%s0 + $0x10] sm:$0xff]
    %v51 = vld [vmem:[%s0 + $0x18] sm:$0xff]
    %v52 = vld [vmem:[%s0 + $0x20] sm:$0xff]
    %v53 = vld [vmem:[%s0 + $0x28] sm:$0xff]
    %v54 = vld [vmem:[%s0 + $0x30] sm:$0xff]
    %v55 = vld [vmem:[%s0 + $0x38] sm:$0xff]
    %v56 = vld [vmem:[%s0 + $0x40] sm:$0xff]
    %v57 = vld [vmem:[%s0 + $0x48] sm:$0xff]
    %v58 = vld [vmem:[%s0 + $0x50] sm:$0xff]
    %v59 = vld [vmem:[%s0 + $0x58] sm:$0xff]
    %v60 = vld [vmem:[%s0 + $0x60] sm:$0xff]
    %v61 = vld [vmem:[%s0 + $0x68] sm:$0xff]
    %v62 = vld [vmem:[%s0 + $0x70] sm:$0xff]
    %v63 = vld [vmem:[%s0 + $0x78] sm:$0xff]
    %v64 = vld [vmem:[%s0 + $0x80] sm:$0xff]
    %v65 = vld [vmem:[%s0 + $0x88] sm:$0xff]
    %v66 = vld [vmem:[%s0 + $0x90] sm:$0xff]
    %v67 = vld [vmem:[%s0 + $0x98] sm:$0xff]
    %v68 = vld [vmem:[%s0 + $0xa0] sm:$0xff]
    %v69 = vld [vmem:[%s0 + $0xa8] sm:$0xff]
    %v70 = vld [vmem:[%s0 + $0xb0] sm:$0xff]
    %v71 = vld [vmem:[%s0 + $0xb8] sm:$0xff]
    %v72 = vld [vmem:[%s0 + $0xc0] sm:$0xff]
    %v73 = vld [vmem:[%s0 + $0xc8] sm:$0xff]
    %v74 = vld [vmem:[%s0 + $0xd0] sm:$0xff]
    %v75 = vld [vmem:[%s0 + $0xd8] sm:$0xff]
    %v76 = vld [vmem:[%s0 + $0xe0] sm:$0xff]
    %v77 = vld [vmem:[%s0 + $0xe8] sm:$0xff]
    %v78 = vld [vmem:[%s0 + $0xf0] sm:$0xff]
    %v79 = vld [vmem:[%s0 + $0xf8] sm:$0xff]
    %v80 = vld [vmem:[%s0 + $0x100] sm:$0xff]
    %v81 = vld [vmem:[%s0 + $0x108] sm:$0xff]
    %v82 = vld [vmem:[%s0 + $0x110] sm:$0xff]
    %v83 = vld [vmem:[%s0 + $0x118] sm:$0xff]
    %v84 = vld [vmem:[%s0 + $0x120] sm:$0xff]
    %v85 = vld [vmem:[%s0 + $0x128] sm:$0xff]
    %v86 = vld [vmem:[%s0 + $0x130] sm:$0xff]
    %v87 = vld [vmem:[%s0 + $0x138] sm:$0xff]
    %v88 = vld [vmem:[%s0 + $0x140] sm:$0xff]
    %v89 = vld [vmem:[%s0 + $0x148] sm:$0xff]
    %v90 = vld [vmem:[%s0 + $0x150] sm:$0xff]
    %v91 = vld [vmem:[%s0 + $0x158] sm:$0xff]
    %v92 = vld [vmem:[%s0 + $0x160] sm:$0xff]
    %v93 = vld [vmem:[%s0 + $0x168] sm:$0xff]
    %v94 = vld [vmem:[%s0 + $0x170] sm:$0xff]
    %v95 = vld [vmem:[%s0 + $0x178] sm:$0xff]
    %v96 = vld [vmem:[%s0 + $0x180] sm:$0xff]
    %v97 = vld [vmem:[%s0 + $0x188] sm:$0xff]
    %v98 = vld [vmem:[%s0 + $0x190] sm:$0xff]
    %v99 = vld [vmem:[%s0 + $0x198] sm:$0xff]
    %v100 = vld [vmem:[%s0 + $0x1a0] sm:$0xff]
    %v101 = vld [vmem:[%s0 + $0x1a8] sm:$0xff]
    %v102 = vld [vmem:[%s0 + $0x1b0] sm:$0xff]
    %v103 = vld [vmem:[%s0 + $0x1b8] sm:$0xff]
    %v152 = vunpack.c.l.b16 %v48
    %v153 = vunpack.c.h.b16 %v48
    %v154 = vunpack.c.l.b16 %v49
    %v155 = vunpack.c.h.b16 %v49
    %v156 = vunpack.c.l.b16 %v50
    %v157 = vunpack.c.h.b16 %v50
    %v158 = vunpack.c.l.b16 %v51
    %v159 = vunpack.c.h.b16 %v51
    %v160 = vunpack.c.l.b16 %v52
    %v161 = vunpack.c.h.b16 %v52
    %v162 = vunpack.c.l.b16 %v53
    %v163 = vunpack.c.h.b16 %v53
    %v164 = vunpack.c.l.b16 %v54
    %v165 = vunpack.c.h.b16 %v54
    %v166 = vunpack.c.l.b16 %v55
    %v167 = vunpack.c.h.b16 %v55
    %v168 = vunpack.c.l.b16 %v56
    %v169 = vunpack.c.h.b16 %v56
    %v170 = vunpack.c.l.b16 %v57
    %v171 = vunpack.c.h.b16 %v57
    %v172 = vunpack.c.l.b16 %v58
    %v173 = vunpack.c.h.b16 %v58
    %v174 = vunpack.c.l.b16 %v59
    %v175 = vunpack.c.h.b16 %v59
    %v176 = vunpack.c.l.b16 %v62
    %v177 = vunpack.c.h.b16 %v62
    %v178 = vunpack.c.l.b16 %v63
    %v179 = vunpack.c.h.b16 %v63
    %v180 = vunpack.c.l.b16 %v64
    %v181 = vunpack.c.h.b16 %v64
    %v182 = vunpack.c.l.b16 %v65
    %v183 = vunpack.c.h.b16 %v65
    %v184 = vunpack.c.l.b16 %v66
    %v185 = vunpack.c.h.b16 %v66
    %v186 = vunpack.c.l.b16 %v67
    %v187 = vunpack.c.h.b16 %v67
    %v188 = vunpack.c.l.b16 %v68
    %v189 = vunpack.c.h.b16 %v68
    %v190 = vunpack.c.l.b16 %v69
    %v191 = vunpack.c.h.b16 %v69
    %v192 = vunpack.c.l.b16 %v70
    %v193 = vunpack.c.h.b16 %v70
    %v194 = vunpack.c.l.b16 %v71
    %v195 = vunpack.c.h.b16 %v71
    %v196 = vunpack.c.l.b16 %v72
    %v197 = vunpack.c.h.b16 %v72
    %v198 = vunpack.c.l.b16 %v73
    %v199 = vunpack.c.h.b16 %v73
    %v200 = vunpack.c.l.b16 %v76
    %v201 = vunpack.c.h.b16 %v76
    %v202 = vunpack.c.l.b16 %v77
    %v203 = vunpack.c.h.b16 %v77
    %v204 = vunpack.c.l.b16 %v78
    %v205 = vunpack.c.h.b16 %v78
    %v206 = vunpack.c.l.b16 %v79
    %v207 = vunpack.c.h.b16 %v79
    %v208 = vunpack.c.l.b16 %v80
    %v209 = vunpack.c.h.b16 %v80
    %v210 = vunpack.c.l.b16 %v81
    %v211 = vunpack.c.h.b16 %v81
    %v212 = vunpack.c.l.b16 %v82
    %v213 = vunpack.c.h.b16 %v82
    %v214 = vunpack.c.l.b16 %v83
    %v215 = vunpack.c.h.b16 %v83
    %v216 = vunpack.c.l.b16 %v84
    %v217 = vunpack.c.h.b16 %v84
    %v218 = vunpack.c.l.b16 %v85
    %v219 = vunpack.c.h.b16 %v85
    %v220 = vunpack.c.l.b16 %v86
    %v221 = vunpack.c.h.b16 %v86
    %v222 = vunpack.c.l.b16 %v87
    %v223 = vunpack.c.h.b16 %v87
    %v224 = vunpack.c.l.b16 %v90
    %v225 = vunpack.c.h.b16 %v90
    %v226 = vunpack.c.l.b16 %v91
    %v227 = vunpack.c.h.b16 %v91
    %v228 = vunpack.c.l.b16 %v92
    %v229 = vunpack.c.h.b16 %v92
    %v230 = vunpack.c.l.b16 %v93
    %v231 = vunpack.c.h.b16 %v93
    %v232 = vunpack.c.l.b16 %v94
    %v233 = vunpack.c.h.b16 %v94
    %v234 = vunpack.c.l.b16 %v95
    %v235 = vunpack.c.h.b16 %v95
    %v236 = vunpack.c.l.b16 %v96
    %v237 = vunpack.c.h.b16 %v96
    %v238 = vunpack.c.l.b16 %v97
    %v239 = vunpack.c.h.b16 %v97
    %v240 = vunpack.c.l.b16 %v98
    %v241 = vunpack.c.h.b16 %v98
    %v242 = vunpack.c.l.b16 %v99
    %v243 = vunpack.c.h.b16 %v99
    %v244 = vunpack.c.l.b16 %v100
    %v245 = vunpack.c.h.b16 %v100
    %v246 = vunpack.c.l.b16 %v101
    %v247 = vunpack.c.h.b16 %v101
    %v248 = vpack.c.b16 %v176, %v152
    %v249 = vpack.c.b16 %v177, %v153
    %v250 = vpack.c.b16 %v178, %v154
    %v251 = vpack.c.b16 %v179, %v155
    %v252 = vpack.c.b16 %v180, %v156
    %v253 = vpack.c.b16 %v181, %v157
    %v254 = vpack.c.b16 %v182, %v158
    %v255 = vpack.c.b16 %v183, %v159
    %v256 = vpack.c.b16 %v184, %v160
    %v257 = vpack.c.b16 %v185, %v161
    %v258 = vpack.c.b16 %v186, %v162
    %v259 = vpack.c.b16 %v187, %v163
    %v260 = vpack.c.b16 %v188, %v164
    %v261 = vpack.c.b16 %v189, %v165
    %v262 = vpack.c.b16 %v190, %v166
    %v263 = vpack.c.b16 %v191, %v167
    %v264 = vpack.c.b16 %v192, %v168
    %v265 = vpack.c.b16 %v193, %v169
    %v266 = vpack.c.b16 %v194, %v170
    %v267 = vpack.c.b16 %v195, %v171
    %v268 = vpack.c.b16 %v196, %v172
    %v269 = vpack.c.b16 %v197, %v173
    %v270 = vpack.c.b16 %v198, %v174
    %v271 = vpack.c.b16 %v199, %v175
    %v272 = vpack.c.b16 %v224, %v200
    %v273 = vpack.c.b16 %v225, %v201
    %v274 = vpack.c.b16 %v226, %v202
    %v275 = vpack.c.b16 %v227, %v203
    %v276 = vpack.c.b16 %v228, %v204
    %v277 = vpack.c.b16 %v229, %v205
    %v278 = vpack.c.b16 %v230, %v206
    %v279 = vpack.c.b16 %v231, %v207
    %v280 = vpack.c.b16 %v232, %v208
    %v281 = vpack.c.b16 %v233, %v209
    %v282 = vpack.c.b16 %v234, %v210
    %v283 = vpack.c.b16 %v235, %v211
    %v284 = vpack.c.b16 %v236, %v212
    %v285 = vpack.c.b16 %v237, %v213
    %v286 = vpack.c.b16 %v238, %v214
    %v287 = vpack.c.b16 %v239, %v215
    %v288 = vpack.c.b16 %v240, %v216
    %v289 = vpack.c.b16 %v241, %v217
    %v290 = vpack.c.b16 %v242, %v218
    %v291 = vpack.c.b16 %v243, %v219
    %v292 = vpack.c.b16 %v244, %v220
    %v293 = vpack.c.b16 %v245, %v221
    %v294 = vpack.c.b16 %v246, %v222
    %v295 = vpack.c.b16 %v247, %v223
    %344 = vst [vmem:[#allocation2] sm:$0xff] %v248
    %345 = vst [vmem:[#allocation2 + $0x8] sm:$0xff] %v249
    %346 = vst [vmem:[#allocation2 + $0x10] sm:$0xff] %v250
    %347 = vst [vmem:[#allocation2 + $0x18] sm:$0xff] %v251
    %348 = vst [vmem:[#allocation2 + $0x20] sm:$0xff] %v252
    %349 = vst [vmem:[#allocation2 + $0x28] sm:$0xff] %v253
    %350 = vst [vmem:[#allocation2 + $0x30] sm:$0xff] %v254
    %351 = vst [vmem:[#allocation2 + $0x38] sm:$0xff] %v255
    %352 = vst [vmem:[#allocation2 + $0x40] sm:$0xff] %v256
    %353 = vst [vmem:[#allocation2 + $0x48] sm:$0xff] %v257
    %354 = vst [vmem:[#allocation2 + $0x50] sm:$0xff] %v258
    %355 = vst [vmem:[#allocation2 + $0x58] sm:$0xff] %v259
    %356 = vst [vmem:[#allocation2 + $0x60] sm:$0xff] %v260
    %357 = vst [vmem:[#allocation2 + $0x68] sm:$0xff] %v261
    %358 = vst [vmem:[#allocation2 + $0x70] sm:$0xff] %v262
    %359 = vst [vmem:[#allocation2 + $0x78] sm:$0xff] %v263
    %360 = vst [vmem:[#allocation2 + $0x80] sm:$0xff] %v264
    %361 = vst [vmem:[#allocation2 + $0x88] sm:$0xff] %v265
    %362 = vst [vmem:[#allocation2 + $0x90] sm:$0xff] %v266
    %363 = vst [vmem:[#allocation2 + $0x98] sm:$0xff] %v267
    %364 = vst [vmem:[#allocation2 + $0xa0] sm:$0xff] %v268
    %365 = vst [vmem:[#allocation2 + $0xa8] sm:$0xff] %v269
    %366 = vst [vmem:[#allocation2 + $0xb0] sm:$0xff] %v270
    %367 = vst [vmem:[#allocation2 + $0xb8] sm:$0xff] %v271
    %368 = vst [vmem:[#allocation2 + $0xc0] sm:$0xff] %v272
    %369 = vst [vmem:[#allocation2 + $0xc8] sm:$0xff] %v273
    %370 = vst [vmem:[#allocation2 + $0xd0] sm:$0xff] %v274
    %371 = vst [vmem:[#allocation2 + $0xd8] sm:$0xff] %v275
    %372 = vst [vmem:[#allocation2 + $0xe0] sm:$0xff] %v276
    %373 = vst [vmem:[#allocation2 + $0xe8] sm:$0xff] %v277
    %374 = vst [vmem:[#allocation2 + $0xf0] sm:$0xff] %v278
    %375 = vst [vmem:[#allocation2 + $0xf8] sm:$0xff] %v279
    %376 = vst [vmem:[#allocation2 + $0x100] sm:$0xff] %v280
    %377 = vst [vmem:[#allocation2 + $0x108] sm:$0xff] %v281
    %378 = vst [vmem:[#allocation2 + $0x110] sm:$0xff] %v282
    %379 = vst [vmem:[#allocation2 + $0x118] sm:$0xff] %v283
    %380 = vst [vmem:[#allocation2 + $0x120] sm:$0xff] %v284
    %381 = vst [vmem:[#allocation2 + $0x128] sm:$0xff] %v285
    %382 = vst [vmem:[#allocation2 + $0x130] sm:$0xff] %v286
    %383 = vst [vmem:[#allocation2 + $0x138] sm:$0xff] %v287
    %384 = vst [vmem:[#allocation2 + $0x140] sm:$0xff] %v288
    %385 = vst [vmem:[#allocation2 + $0x148] sm:$0xff] %v289
    %386 = vst [vmem:[#allocation2 + $0x150] sm:$0xff] %v290
    %387 = vst [vmem:[#allocation2 + $0x158] sm:$0xff] %v291
    %388 = vst [vmem:[#allocation2 + $0x160] sm:$0xff] %v292
    %389 = vst [vmem:[#allocation2 + $0x168] sm:$0xff] %v293
    %390 = vst [vmem:[#allocation2 + $0x170] sm:$0xff] %v294
    %391 = vst [vmem:[#allocation2 + $0x178] sm:$0xff] %v295
    %v396 = vunpack.c.l.b16 %v60
    %v397 = vunpack.c.l.b16 %v74
    %v398 = vunpack.c.l.b16 %v88
    %v399 = vunpack.c.l.b16 %v102
    %v400 = vpack.c.b16 %v397, %v396
    %v401 = vpack.c.b16 %v399, %v398
    %404 = vst [vmem:[#allocation2 + $0x180] sm:$0xff] %v249
    %405 = vst [vmem:[#allocation2 + $0x188] sm:$0xff] %v250
    %406 = vst [vmem:[#allocation2 + $0x190] sm:$0xff] %v251
    %407 = vst [vmem:[#allocation2 + $0x198] sm:$0xff] %v252
    %408 = vst [vmem:[#allocation2 + $0x1a0] sm:$0xff] %v253
    %409 = vst [vmem:[#allocation2 + $0x1a8] sm:$0xff] %v254
    %410 = vst [vmem:[#allocation2 + $0x1b0] sm:$0xff] %v255
    %411 = vst [vmem:[#allocation2 + $0x1b8] sm:$0xff] %v256
    %412 = vst [vmem:[#allocation2 + $0x1c0] sm:$0xff] %v257
    %413 = vst [vmem:[#allocation2 + $0x1c8] sm:$0xff] %v258
    %414 = vst [vmem:[#allocation2 + $0x1d0] sm:$0xff] %v259
    %415 = vst [vmem:[#allocation2 + $0x1d8] sm:$0xff] %v260
    %416 = vst [vmem:[#allocation2 + $0x1e0] sm:$0xff] %v261
    %417 = vst [vmem:[#allocation2 + $0x1e8] sm:$0xff] %v262
    %418 = vst [vmem:[#allocation2 + $0x1f0] sm:$0xff] %v263
    %419 = vst [vmem:[#allocation2 + $0x1f8] sm:$0xff] %v264
    %420 = vst [vmem:[#allocation2 + $0x200] sm:$0xff] %v265
    %421 = vst [vmem:[#allocation2 + $0x208] sm:$0xff] %v266
    %422 = vst [vmem:[#allocation2 + $0x210] sm:$0xff] %v267
    %423 = vst [vmem:[#allocation2 + $0x218] sm:$0xff] %v268
    %424 = vst [vmem:[#allocation2 + $0x220] sm:$0xff] %v269
    %425 = vst [vmem:[#allocation2 + $0x228] sm:$0xff] %v270
    %426 = vst [vmem:[#allocation2 + $0x230] sm:$0xff] %v271
    %427 = vst [vmem:[#allocation2 + $0x238] sm:$0xff] %v400
    %428 = vst [vmem:[#allocation2 + $0x240] sm:$0xff] %v273
    %429 = vst [vmem:[#allocation2 + $0x248] sm:$0xff] %v274
    %430 = vst [vmem:[#allocation2 + $0x250] sm:$0xff] %v275
    %431 = vst [vmem:[#allocation2 + $0x258] sm:$0xff] %v276
    %432 = vst [vmem:[#allocation2 + $0x260] sm:$0xff] %v277
    %433 = vst [vmem:[#allocation2 + $0x268] sm:$0xff] %v278
    %434 = vst [vmem:[#allocation2 + $0x270] sm:$0xff] %v279
    %435 = vst [vmem:[#allocation2 + $0x278] sm:$0xff] %v280
    %436 = vst [vmem:[#allocation2 + $0x280] sm:$0xff] %v281
    %437 = vst [vmem:[#allocation2 + $0x288] sm:$0xff] %v282
    %438 = vst [vmem:[#allocation2 + $0x290] sm:$0xff] %v283
    %439 = vst [vmem:[#allocation2 + $0x298] sm:$0xff] %v284
    %440 = vst [vmem:[#allocation2 + $0x2a0] sm:$0xff] %v285
    %441 = vst [vmem:[#allocation2 + $0x2a8] sm:$0xff] %v286
    %442 = vst [vmem:[#allocation2 + $0x2b0] sm:$0xff] %v287
    %443 = vst [vmem:[#allocation2 + $0x2b8] sm:$0xff] %v288
    %444 = vst [vmem:[#allocation2 + $0x2c0] sm:$0xff] %v289
    %445 = vst [vmem:[#allocation2 + $0x2c8] sm:$0xff] %v290
    %446 = vst [vmem:[#allocation2 + $0x2d0] sm:$0xff] %v291
    %447 = vst [vmem:[#allocation2 + $0x2d8] sm:$0xff] %v292
    %448 = vst [vmem:[#allocation2 + $0x2e0] sm:$0xff] %v293
    %449 = vst [vmem:[#allocation2 + $0x2e8] sm:$0xff] %v294
    %450 = vst [vmem:[#allocation2 + $0x2f0] sm:$0xff] %v295
    %451 = vst [vmem:[#allocation2 + $0x2f8] sm:$0xff] %v401
    %v452 = vunpack.c.h.b16 %v60
    %v453 = vunpack.c.h.b16 %v74
    %v454 = vunpack.c.h.b16 %v88
    %v455 = vunpack.c.h.b16 %v102
    %v456 = vpack.c.b16 %v453, %v452
    %v457 = vpack.c.b16 %v455, %v454
    %460 = vst [vmem:[#allocation2 + $0x300] sm:$0xff] %v250
    %461 = vst [vmem:[#allocation2 + $0x308] sm:$0xff] %v251
    %462 = vst [vmem:[#allocation2 + $0x310] sm:$0xff] %v252
    %463 = vst [vmem:[#allocation2 + $0x318] sm:$0xff] %v253
    %464 = vst [vmem:[#allocation2 + $0x320] sm:$0xff] %v254
    %465 = vst [vmem:[#allocation2 + $0x328] sm:$0xff] %v255
    %466 = vst [vmem:[#allocation2 + $0x330] sm:$0xff] %v256
    %467 = vst [vmem:[#allocation2 + $0x338] sm:$0xff] %v257
    %468 = vst [vmem:[#allocation2 + $0x340] sm:$0xff] %v258
    %469 = vst [vmem:[#allocation2 + $0x348] sm:$0xff] %v259
    %470 = vst [vmem:[#allocation2 + $0x350] sm:$0xff] %v260
    %471 = vst [vmem:[#allocation2 + $0x358] sm:$0xff] %v261
    %472 = vst [vmem:[#allocation2 + $0x360] sm:$0xff] %v262
    %473 = vst [vmem:[#allocation2 + $0x368] sm:$0xff] %v263
    %474 = vst [vmem:[#allocation2 + $0x370] sm:$0xff] %v264
    %475 = vst [vmem:[#allocation2 + $0x378] sm:$0xff] %v265
    %476 = vst [vmem:[#allocation2 + $0x380] sm:$0xff] %v266
    %477 = vst [vmem:[#allocation2 + $0x388] sm:$0xff] %v267
    %478 = vst [vmem:[#allocation2 + $0x390] sm:$0xff] %v268
    %479 = vst [vmem:[#allocation2 + $0x398] sm:$0xff] %v269
    %480 = vst [vmem:[#allocation2 + $0x3a0] sm:$0xff] %v270
    %481 = vst [vmem:[#allocation2 + $0x3a8] sm:$0xff] %v271
    %482 = vst [vmem:[#allocation2 + $0x3b0] sm:$0xff] %v400
    %483 = vst [vmem:[#allocation2 + $0x3b8] sm:$0xff] %v456
    %484 = vst [vmem:[#allocation2 + $0x3c0] sm:$0xff] %v274
    %485 = vst [vmem:[#allocation2 + $0x3c8] sm:$0xff] %v275
    %486 = vst [vmem:[#allocation2 + $0x3d0] sm:$0xff] %v276
    %487 = vst [vmem:[#allocation2 + $0x3d8] sm:$0xff] %v277
    %488 = vst [vmem:[#allocation2 + $0x3e0] sm:$0xff] %v278
    %489 = vst [vmem:[#allocation2 + $0x3e8] sm:$0xff] %v279
    %490 = vst [vmem:[#allocation2 + $0x3f0] sm:$0xff] %v280
    %491 = vst [vmem:[#allocation2 + $0x3f8] sm:$0xff] %v281
    %492 = vst [vmem:[#allocation2 + $0x400] sm:$0xff] %v282
    %493 = vst [vmem:[#allocation2 + $0x408] sm:$0xff] %v283
    %494 = vst [vmem:[#allocation2 + $0x410] sm:$0xff] %v284
    %495 = vst [vmem:[#allocation2 + $0x418] sm:$0xff] %v285
    %496 = vst [vmem:[#allocation2 + $0x420] sm:$0xff] %v286
    %497 = vst [vmem:[#allocation2 + $0x428] sm:$0xff] %v287
    %498 = vst [vmem:[#allocation2 + $0x430] sm:$0xff] %v288
    %499 = vst [vmem:[#allocation2 + $0x438] sm:$0xff] %v289
    %500 = vst [vmem:[#allocation2 + $0x440] sm:$0xff] %v290
    %501 = vst [vmem:[#allocation2 + $0x448] sm:$0xff] %v291
    %502 = vst [vmem:[#allocation2 + $0x450] sm:$0xff] %v292
    %503 = vst [vmem:[#allocation2 + $0x458] sm:$0xff] %v293
    %504 = vst [vmem:[#allocation2 + $0x460] sm:$0xff] %v294
    %505 = vst [vmem:[#allocation2 + $0x468] sm:$0xff] %v295
    %506 = vst [vmem:[#allocation2 + $0x470] sm:$0xff] %v401
    %507 = vst [vmem:[#allocation2 + $0x478] sm:$0xff] %v457
    %v512 = vunpack.c.l.b16 %v61
    %v513 = vunpack.c.l.b16 %v75
    %v514 = vunpack.c.l.b16 %v89
    %v515 = vunpack.c.l.b16 %v103
    %v516 = vpack.c.b16 %v513, %v512
    %v517 = vpack.c.b16 %v515, %v514
    %520 = vst [vmem:[#allocation2 + $0x480] sm:$0xff] %v251
    %521 = vst [vmem:[#allocation2 + $0x488] sm:$0xff] %v252
    %522 = vst [vmem:[#allocation2 + $0x490] sm:$0xff] %v253
    %523 = vst [vmem:[#allocation2 + $0x498] sm:$0xff] %v254
    %524 = vst [vmem:[#allocation2 + $0x4a0] sm:$0xff] %v255
    %525 = vst [vmem:[#allocation2 + $0x4a8] sm:$0xff] %v256
    %526 = vst [vmem:[#allocation2 + $0x4b0] sm:$0xff] %v257
    %527 = vst [vmem:[#allocation2 + $0x4b8] sm:$0xff] %v258
    %528 = vst [vmem:[#allocation2 + $0x4c0] sm:$0xff] %v259
    %529 = vst [vmem:[#allocation2 + $0x4c8] sm:$0xff] %v260
    %530 = vst [vmem:[#allocation2 + $0x4d0] sm:$0xff] %v261
    %531 = vst [vmem:[#allocation2 + $0x4d8] sm:$0xff] %v262
    %532 = vst [vmem:[#allocation2 + $0x4e0] sm:$0xff] %v263
    %533 = vst [vmem:[#allocation2 + $0x4e8] sm:$0xff] %v264
    %534 = vst [vmem:[#allocation2 + $0x4f0] sm:$0xff] %v265
    %535 = vst [vmem:[#allocation2 + $0x4f8] sm:$0xff] %v266
    %536 = vst [vmem:[#allocation2 + $0x500] sm:$0xff] %v267
    %537 = vst [vmem:[#allocation2 + $0x508] sm:$0xff] %v268
    %538 = vst [vmem:[#allocation2 + $0x510] sm:$0xff] %v269
    %539 = vst [vmem:[#allocation2 + $0x518] sm:$0xff] %v270
    %540 = vst [vmem:[#allocation2 + $0x520] sm:$0xff] %v271
    %541 = vst [vmem:[#allocation2 + $0x528] sm:$0xff] %v400
    %542 = vst [vmem:[#allocation2 + $0x530] sm:$0xff] %v456
    %543 = vst [vmem:[#allocation2 + $0x538] sm:$0xff] %v516
    %544 = vst [vmem:[#allocation2 + $0x540] sm:$0xff] %v275
    %545 = vst [vmem:[#allocation2 + $0x548] sm:$0xff] %v276
    %546 = vst [vmem:[#allocation2 + $0x550] sm:$0xff] %v277
    %547 = vst [vmem:[#allocation2 + $0x558] sm:$0xff] %v278
    %548 = vst [vmem:[#allocation2 + $0x560] sm:$0xff] %v279
    %549 = vst [vmem:[#allocation2 + $0x568] sm:$0xff] %v280
    %550 = vst [vmem:[#allocation2 + $0x570] sm:$0xff] %v281
    %551 = vst [vmem:[#allocation2 + $0x578] sm:$0xff] %v282
    %552 = vst [vmem:[#allocation2 + $0x580] sm:$0xff] %v283
    %553 = vst [vmem:[#allocation2 + $0x588] sm:$0xff] %v284
    %554 = vst [vmem:[#allocation2 + $0x590] sm:$0xff] %v285
    %555 = vst [vmem:[#allocation2 + $0x598] sm:$0xff] %v286
    %556 = vst [vmem:[#allocation2 + $0x5a0] sm:$0xff] %v287
    %557 = vst [vmem:[#allocation2 + $0x5a8] sm:$0xff] %v288
    %558 = vst [vmem:[#allocation2 + $0x5b0] sm:$0xff] %v289
    %559 = vst [vmem:[#allocation2 + $0x5b8] sm:$0xff] %v290
    %560 = vst [vmem:[#allocation2 + $0x5c0] sm:$0xff] %v291
    %561 = vst [vmem:[#allocation2 + $0x5c8] sm:$0xff] %v292
    %562 = vst [vmem:[#allocation2 + $0x5d0] sm:$0xff] %v293
    %563 = vst [vmem:[#allocation2 + $0x5d8] sm:$0xff] %v294
    %564 = vst [vmem:[#allocation2 + $0x5e0] sm:$0xff] %v295
    %565 = vst [vmem:[#allocation2 + $0x5e8] sm:$0xff] %v401
    %566 = vst [vmem:[#allocation2 + $0x5f0] sm:$0xff] %v457
    %567 = vst [vmem:[#allocation2 + $0x5f8] sm:$0xff] %v517
    %v568 = vunpack.c.h.b16 %v61
    %v569 = vunpack.c.h.b16 %v75
    %v570 = vunpack.c.h.b16 %v89
    %v571 = vunpack.c.h.b16 %v103
    %v572 = vpack.c.b16 %v569, %v568
    %v573 = vpack.c.b16 %v571, %v570
    %576 = vst [vmem:[#allocation2 + $0x600] sm:$0xff] %v252
    %577 = vst [vmem:[#allocation2 + $0x608] sm:$0xff] %v253
    %578 = vst [vmem:[#allocation2 + $0x610] sm:$0xff] %v254
    %579 = vst [vmem:[#allocation2 + $0x618] sm:$0xff] %v255
    %580 = vst [vmem:[#allocation2 + $0x620] sm:$0xff] %v256
    %581 = vst [vmem:[#allocation2 + $0x628] sm:$0xff] %v257
    %582 = vst [vmem:[#allocation2 + $0x630] sm:$0xff] %v258
    %583 = vst [vmem:[#allocation2 + $0x638] sm:$0xff] %v259
    %584 = vst [vmem:[#allocation2 + $0x640] sm:$0xff] %v260
    %585 = vst [vmem:[#allocation2 + $0x648] sm:$0xff] %v261
    %586 = vst [vmem:[#allocation2 + $0x650] sm:$0xff] %v262
    %587 = vst [vmem:[#allocation2 + $0x658] sm:$0xff] %v263
    %588 = vst [vmem:[#allocation2 + $0x660] sm:$0xff] %v264
    %589 = vst [vmem:[#allocation2 + $0x668] sm:$0xff] %v265
    %590 = vst [vmem:[#allocation2 + $0x670] sm:$0xff] %v266
    %591 = vst [vmem:[#allocation2 + $0x678] sm:$0xff] %v267
    %592 = vst [vmem:[#allocation2 + $0x680] sm:$0xff] %v268
    %593 = vst [vmem:[#allocation2 + $0x688] sm:$0xff] %v269
    %594 = vst [vmem:[#allocation2 + $0x690] sm:$0xff] %v270
    %595 = vst [vmem:[#allocation2 + $0x698] sm:$0xff] %v271
    %596 = vst [vmem:[#allocation2 + $0x6a0] sm:$0xff] %v400
    %597 = vst [vmem:[#allocation2 + $0x6a8] sm:$0xff] %v456
    %598 = vst [vmem:[#allocation2 + $0x6b0] sm:$0xff] %v516
    %599 = vst [vmem:[#allocation2 + $0x6b8] sm:$0xff] %v572
    %600 = vst [vmem:[#allocation2 + $0x6c0] sm:$0xff] %v276
    %601 = vst [vmem:[#allocation2 + $0x6c8] sm:$0xff] %v277
    %602 = vst [vmem:[#allocation2 + $0x6d0] sm:$0xff] %v278
    %603 = vst [vmem:[#allocation2 + $0x6d8] sm:$0xff] %v279
    %604 = vst [vmem:[#allocation2 + $0x6e0] sm:$0xff] %v280
    %605 = vst [vmem:[#allocation2 + $0x6e8] sm:$0xff] %v281
    %606 = vst [vmem:[#allocation2 + $0x6f0] sm:$0xff] %v282
    %607 = vst [vmem:[#allocation2 + $0x6f8] sm:$0xff] %v283
    %608 = vst [vmem:[#allocation2 + $0x700] sm:$0xff] %v284
    %609 = vst [vmem:[#allocation2 + $0x708] sm:$0xff] %v285
    %610 = vst [vmem:[#allocation2 + $0x710] sm:$0xff] %v286
    %611 = vst [vmem:[#allocation2 + $0x718] sm:$0xff] %v287
    %612 = vst [vmem:[#allocation2 + $0x720] sm:$0xff] %v288
    %613 = vst [vmem:[#allocation2 + $0x728] sm:$0xff] %v289
    %614 = vst [vmem:[#allocation2 + $0x730] sm:$0xff] %v290
    %615 = vst [vmem:[#allocation2 + $0x738] sm:$0xff] %v291
    %616 = vst [vmem:[#allocation2 + $0x740] sm:$0xff] %v292
    %617 = vst [vmem:[#allocation2 + $0x748] sm:$0xff] %v293
    %618 = vst [vmem:[#allocation2 + $0x750] sm:$0xff] %v294
    %619 = vst [vmem:[#allocation2 + $0x758] sm:$0xff] %v295
    %620 = vst [vmem:[#allocation2 + $0x760] sm:$0xff] %v401
    %621 = vst [vmem:[#allocation2 + $0x768] sm:$0xff] %v457
    %622 = vst [vmem:[#allocation2 + $0x770] sm:$0xff] %v517
    %623 = vst [vmem:[#allocation2 + $0x778] sm:$0xff] %v573
    %v624 = vld [vmem:[%s1] sm:$0xff]
    %v625 = vld [vmem:[%s1 + $0x8] sm:$0xff]
    %v626 = vld [vmem:[%s1 + $0x10] sm:$0xff]
    %v627 = vld [vmem:[%s1 + $0x18] sm:$0xff]
    %v628 = vld [vmem:[%s1 + $0x20] sm:$0xff]
    %v629 = vld [vmem:[%s1 + $0x28] sm:$0xff]
    %v630 = vld [vmem:[%s1 + $0x30] sm:$0xff]
    %v631 = vld [vmem:[%s1 + $0x38] sm:$0xff]
    %v632 = vld [vmem:[%s1 + $0x40] sm:$0xff]
    %v633 = vld [vmem:[%s1 + $0x48] sm:$0xff]
    %v634 = vld [vmem:[%s1 + $0x50] sm:$0xff]
    %v635 = vld [vmem:[%s1 + $0x58] sm:$0xff]
    %v636 = vld [vmem:[%s1 + $0x60] sm:$0xff]
    %v637 = vld [vmem:[%s1 + $0x68] sm:$0xff]
    %v638 = vld [vmem:[%s1 + $0x70] sm:$0xff]
    %v639 = vld [vmem:[%s1 + $0x78] sm:$0xff]
    %v640 = vld [vmem:[%s1 + $0x80] sm:$0xff]
    %v641 = vld [vmem:[%s1 + $0x88] sm:$0xff]
    %v642 = vld [vmem:[%s1 + $0x90] sm:$0xff]
    %v643 = vld [vmem:[%s1 + $0x98] sm:$0xff]
    %v644 = vld [vmem:[%s1 + $0xa0] sm:$0xff]
    %v645 = vld [vmem:[%s1 + $0xa8] sm:$0xff]
    %v646 = vld [vmem:[%s1 + $0xb0] sm:$0xff]
    %v647 = vld [vmem:[%s1 + $0xb8] sm:$0xff]
    %v648 = vld [vmem:[%s1 + $0xc0] sm:$0xff]
    %v649 = vld [vmem:[%s1 + $0xc8] sm:$0xff]
    %v650 = vld [vmem:[%s1 + $0xd0] sm:$0xff]
    %v651 = vld [vmem:[%s1 + $0xd8] sm:$0xff]
    %v652 = vld [vmem:[%s1 + $0xe0] sm:$0xff]
    %v653 = vld [vmem:[%s1 + $0xe8] sm:$0xff]
    %v654 = vld [vmem:[%s1 + $0xf0] sm:$0xff]
    %v655 = vld [vmem:[%s1 + $0xf8] sm:$0xff]
    %v656 = vld [vmem:[#allocation2] sm:$0xff]
    %v657 = vld [vmem:[#allocation2 + $0x8] sm:$0xff]
    %v658 = vld [vmem:[#allocation2 + $0x10] sm:$0xff]
    %v659 = vld [vmem:[#allocation2 + $0x18] sm:$0xff]
    %v660 = vld [vmem:[#allocation2 + $0x20] sm:$0xff]
    %v661 = vld [vmem:[#allocation2 + $0x28] sm:$0xff]
    %v662 = vld [vmem:[#allocation2 + $0x30] sm:$0xff]
    %v663 = vld [vmem:[#allocation2 + $0x38] sm:$0xff]
    %v664 = vld [vmem:[#allocation2 + $0x40] sm:$0xff]
    %v665 = vld [vmem:[#allocation2 + $0x48] sm:$0xff]
    %v666 = vld [vmem:[#allocation2 + $0x50] sm:$0xff]
    %v667 = vld [vmem:[#allocation2 + $0x58] sm:$0xff]
    %v668 = vld [vmem:[#allocation2 + $0x60] sm:$0xff]
    %v669 = vld [vmem:[#allocation2 + $0x68] sm:$0xff]
    %v670 = vld [vmem:[#allocation2 + $0x70] sm:$0xff]
    %v671 = vld [vmem:[#allocation2 + $0x78] sm:$0xff]
    %v672 = vld [vmem:[#allocation2 + $0x80] sm:$0xff]
    %v673 = vld [vmem:[#allocation2 + $0x88] sm:$0xff]
    %v674 = vld [vmem:[#allocation2 + $0x90] sm:$0xff]
    %v675 = vld [vmem:[#allocation2 + $0x98] sm:$0xff]
    %v676 = vld [vmem:[#allocation2 + $0xa0] sm:$0xff]
    %v677 = vld [vmem:[#allocation2 + $0xa8] sm:$0xff]
    %v678 = vld [vmem:[#allocation2 + $0xb0] sm:$0xff]
    %v679 = vld [vmem:[#allocation2 + $0xb8] sm:$0xff]
    %v680 = vld [vmem:[#allocation2 + $0xc0] sm:$0xff]
    %v681 = vld [vmem:[#allocation2 + $0xc8] sm:$0xff]
    %v682 = vld [vmem:[#allocation2 + $0xd0] sm:$0xff]
    %v683 = vld [vmem:[#allocation2 + $0xd8] sm:$0xff]
    %v684 = vld [vmem:[#allocation2 + $0xe0] sm:$0xff]
    %v685 = vld [vmem:[#allocation2 + $0xe8] sm:$0xff]
    %v686 = vld [vmem:[#allocation2 + $0xf0] sm:$0xff]
    %v687 = vld [vmem:[#allocation2 + $0xf8] sm:$0xff]
    %v688 = vld [vmem:[#allocation2 + $0x100] sm:$0xff]
    %v689 = vld [vmem:[#allocation2 + $0x108] sm:$0xff]
    %v690 = vld [vmem:[#allocation2 + $0x110] sm:$0xff]
    %v691 = vld [vmem:[#allocation2 + $0x118] sm:$0xff]
    %v692 = vld [vmem:[#allocation2 + $0x120] sm:$0xff]
    %v693 = vld [vmem:[#allocation2 + $0x128] sm:$0xff]
    %v694 = vld [vmem:[#allocation2 + $0x130] sm:$0xff]
    %v695 = vld [vmem:[#allocation2 + $0x138] sm:$0xff]
    %v696 = vld [vmem:[#allocation2 + $0x140] sm:$0xff]
    %v697 = vld [vmem:[#allocation2 + $0x148] sm:$0xff]
    %v698 = vld [vmem:[#allocation2 + $0x150] sm:$0xff]
    %v699 = vld [vmem:[#allocation2 + $0x158] sm:$0xff]
    %v700 = vld [vmem:[#allocation2 + $0x160] sm:$0xff]
    %v701 = vld [vmem:[#allocation2 + $0x168] sm:$0xff]
    %v702 = vld [vmem:[#allocation2 + $0x170] sm:$0xff]
    %v703 = vld [vmem:[#allocation2 + $0x178] sm:$0xff]
    %v704 = vld [vmem:[#allocation2 + $0x180] sm:$0xff]
    %v705 = vld [vmem:[#allocation2 + $0x188] sm:$0xff]
    %v706 = vld [vmem:[#allocation2 + $0x190] sm:$0xff]
    %v707 = vld [vmem:[#allocation2 + $0x198] sm:$0xff]
    %v708 = vld [vmem:[#allocation2 + $0x1a0] sm:$0xff]
    %v709 = vld [vmem:[#allocation2 + $0x1a8] sm:$0xff]
    %v710 = vld [vmem:[#allocation2 + $0x1b0] sm:$0xff]
    %v711 = vld [vmem:[#allocation2 + $0x1b8] sm:$0xff]
    %v712 = vld [vmem:[#allocation2 + $0x1c0] sm:$0xff]
    %v713 = vld [vmem:[#allocation2 + $0x1c8] sm:$0xff]
    %v714 = vld [vmem:[#allocation2 + $0x1d0] sm:$0xff]
    %v715 = vld [vmem:[#allocation2 + $0x1d8] sm:$0xff]
    %v716 = vld [vmem:[#allocation2 + $0x1e0] sm:$0xff]
    %v717 = vld [vmem:[#allocation2 + $0x1e8] sm:$0xff]
    %v718 = vld [vmem:[#allocation2 + $0x1f0] sm:$0xff]
    %v719 = vld [vmem:[#allocation2 + $0x1f8] sm:$0xff]
    %v720 = vld [vmem:[#allocation2 + $0x200] sm:$0xff]
    %v721 = vld [vmem:[#allocation2 + $0x208] sm:$0xff]
    %v722 = vld [vmem:[#allocation2 + $0x210] sm:$0xff]
    %v723 = vld [vmem:[#allocation2 + $0x218] sm:$0xff]
    %v724 = vld [vmem:[#allocation2 + $0x220] sm:$0xff]
    %v725 = vld [vmem:[#allocation2 + $0x228] sm:$0xff]
    %v726 = vld [vmem:[#allocation2 + $0x230] sm:$0xff]
    %v727 = vld [vmem:[#allocation2 + $0x238] sm:$0xff]
    %v728 = vld [vmem:[#allocation2 + $0x240] sm:$0xff]
    %v729 = vld [vmem:[#allocation2 + $0x248] sm:$0xff]
    %v730 = vld [vmem:[#allocation2 + $0x250] sm:$0xff]
    %v731 = vld [vmem:[#allocation2 + $0x258] sm:$0xff]
    %v732 = vld [vmem:[#allocation2 + $0x260] sm:$0xff]
    %v733 = vld [vmem:[#allocation2 + $0x268] sm:$0xff]
    %v734 = vld [vmem:[#allocation2 + $0x270] sm:$0xff]
    %v735 = vld [vmem:[#allocation2 + $0x278] sm:$0xff]
    %v736 = vld [vmem:[#allocation2 + $0x280] sm:$0xff]
    %v737 = vld [vmem:[#allocation2 + $0x288] sm:$0xff]
    %v738 = vld [vmem:[#allocation2 + $0x290] sm:$0xff]
    %v739 = vld [vmem:[#allocation2 + $0x298] sm:$0xff]
    %v740 = vld [vmem:[#allocation2 + $0x2a0] sm:$0xff]
    %v741 = vld [vmem:[#allocation2 + $0x2a8] sm:$0xff]
    %v742 = vld [vmem:[#allocation2 + $0x2b0] sm:$0xff]
    %v743 = vld [vmem:[#allocation2 + $0x2b8] sm:$0xff]
    %v744 = vld [vmem:[#allocation2 + $0x2c0] sm:$0xff]
    %v745 = vld [vmem:[#allocation2 + $0x2c8] sm:$0xff]
    %v746 = vld [vmem:[#allocation2 + $0x2d0] sm:$0xff]
    %v747 = vld [vmem:[#allocation2 + $0x2d8] sm:$0xff]
    %v748 = vld [vmem:[#allocation2 + $0x2e0] sm:$0xff]
    %v749 = vld [vmem:[#allocation2 + $0x2e8] sm:$0xff]
    %v750 = vld [vmem:[#allocation2 + $0x2f0] sm:$0xff]
    %v751 = vld [vmem:[#allocation2 + $0x2f8] sm:$0xff]
    %v752 = vld [vmem:[#allocation2 + $0x300] sm:$0xff]
    %v753 = vld [vmem:[#allocation2 + $0x308] sm:$0xff]
    %v754 = vld [vmem:[#allocation2 + $0x310] sm:$0xff]
    %v755 = vld [vmem:[#allocation2 + $0x318] sm:$0xff]
    %v756 = vld [vmem:[#allocation2 + $0x320] sm:$0xff]
    %v757 = vld [vmem:[#allocation2 + $0x328] sm:$0xff]
    %v758 = vld [vmem:[#allocation2 + $0x330] sm:$0xff]
    %v759 = vld [vmem:[#allocation2 + $0x338] sm:$0xff]
    %v760 = vld [vmem:[#allocation2 + $0x340] sm:$0xff]
    %v761 = vld [vmem:[#allocation2 + $0x348] sm:$0xff]
    %v762 = vld [vmem:[#allocation2 + $0x350] sm:$0xff]
    %v763 = vld [vmem:[#allocation2 + $0x358] sm:$0xff]
    %v764 = vld [vmem:[#allocation2 + $0x360] sm:$0xff]
    %v765 = vld [vmem:[#allocation2 + $0x368] sm:$0xff]
    %v766 = vld [vmem:[#allocation2 + $0x370] sm:$0xff]
    %v767 = vld [vmem:[#allocation2 + $0x378] sm:$0xff]
    %v768 = vld [vmem:[#allocation2 + $0x380] sm:$0xff]
    %v769 = vld [vmem:[#allocation2 + $0x388] sm:$0xff]
    %v770 = vld [vmem:[#allocation2 + $0x390] sm:$0xff]
    %v771 = vld [vmem:[#allocation2 + $0x398] sm:$0xff]
    %v772 = vld [vmem:[#allocation2 + $0x3a0] sm:$0xff]
    %v773 = vld [vmem:[#allocation2 + $0x3a8] sm:$0xff]
    %v774 = vld [vmem:[#allocation2 + $0x3b0] sm:$0xff]
    %v775 = vld [vmem:[#allocation2 + $0x3b8] sm:$0xff]
    %v776 = vld [vmem:[#allocation2 + $0x3c0] sm:$0xff]
    %v777 = vld [vmem:[#allocation2 + $0x3c8] sm:$0xff]
    %v778 = vld [vmem:[#allocation2 + $0x3d0] sm:$0xff]
    %v779 = vld [vmem:[#allocation2 + $0x3d8] sm:$0xff]
    %v780 = vld [vmem:[#allocation2 + $0x3e0] sm:$0xff]
    %v781 = vld [vmem:[#allocation2 + $0x3e8] sm:$0xff]
    %v782 = vld [vmem:[#allocation2 + $0x3f0] sm:$0xff]
    %v783 = vld [vmem:[#allocation2 + $0x3f8] sm:$0xff]
    %v784 = vld [vmem:[#allocation2 + $0x400] sm:$0xff]
    %v785 = vld [vmem:[#allocation2 + $0x408] sm:$0xff]
    %v786 = vld [vmem:[#allocation2 + $0x410] sm:$0xff]
    %v787 = vld [vmem:[#allocation2 + $0x418] sm:$0xff]
    %v788 = vld [vmem:[#allocation2 + $0x420] sm:$0xff]
    %v789 = vld [vmem:[#allocation2 + $0x428] sm:$0xff]
    %v790 = vld [vmem:[#allocation2 + $0x430] sm:$0xff]
    %v791 = vld [vmem:[#allocation2 + $0x438] sm:$0xff]
    %v792 = vld [vmem:[#allocation2 + $0x440] sm:$0xff]
    %v793 = vld [vmem:[#allocation2 + $0x448] sm:$0xff]
    %v794 = vld [vmem:[#allocation2 + $0x450] sm:$0xff]
    %v795 = vld [vmem:[#allocation2 + $0x458] sm:$0xff]
    %v796 = vld [vmem:[#allocation2 + $0x460] sm:$0xff]
    %v797 = vld [vmem:[#allocation2 + $0x468] sm:$0xff]
    %v798 = vld [vmem:[#allocation2 + $0x470] sm:$0xff]
    %v799 = vld [vmem:[#allocation2 + $0x478] sm:$0xff]
    %v800 = vld [vmem:[#allocation2 + $0x480] sm:$0xff]
    %v801 = vld [vmem:[#allocation2 + $0x488] sm:$0xff]
    %v802 = vld [vmem:[#allocation2 + $0x490] sm:$0xff]
    %v803 = vld [vmem:[#allocation2 + $0x498] sm:$0xff]
    %v804 = vld [vmem:[#allocation2 + $0x4a0] sm:$0xff]
    %v805 = vld [vmem:[#allocation2 + $0x4a8] sm:$0xff]
    %v806 = vld [vmem:[#allocation2 + $0x4b0] sm:$0xff]
    %v807 = vld [vmem:[#allocation2 + $0x4b8] sm:$0xff]
    %v808 = vld [vmem:[#allocation2 + $0x4c0] sm:$0xff]
    %v809 = vld [vmem:[#allocation2 + $0x4c8] sm:$0xff]
    %v810 = vld [vmem:[#allocation2 + $0x4d0] sm:$0xff]
    %v811 = vld [vmem:[#allocation2 + $0x4d8] sm:$0xff]
    %v812 = vld [vmem:[#allocation2 + $0x4e0] sm:$0xff]
    %v813 = vld [vmem:[#allocation2 + $0x4e8] sm:$0xff]
    %v814 = vld [vmem:[#allocation2 + $0x4f0] sm:$0xff]
    %v815 = vld [vmem:[#allocation2 + $0x4f8] sm:$0xff]
    %v816 = vld [vmem:[#allocation2 + $0x500] sm:$0xff]
    %v817 = vld [vmem:[#allocation2 + $0x508] sm:$0xff]
    %v818 = vld [vmem:[#allocation2 + $0x510] sm:$0xff]
    %v819 = vld [vmem:[#allocation2 + $0x518] sm:$0xff]
    %v820 = vld [vmem:[#allocation2 + $0x520] sm:$0xff]
    %v821 = vld [vmem:[#allocation2 + $0x528] sm:$0xff]
    %v822 = vld [vmem:[#allocation2 + $0x530] sm:$0xff]
    %v823 = vld [vmem:[#allocation2 + $0x538] sm:$0xff]
    %v824 = vld [vmem:[#allocation2 + $0x540] sm:$0xff]
    %v825 = vld [vmem:[#allocation2 + $0x548] sm:$0xff]
    %v826 = vld [vmem:[#allocation2 + $0x550] sm:$0xff]
    %v827 = vld [vmem:[#allocation2 + $0x558] sm:$0xff]
    %v828 = vld [vmem:[#allocation2 + $0x560] sm:$0xff]
    %v829 = vld [vmem:[#allocation2 + $0x568] sm:$0xff]
    %v830 = vld [vmem:[#allocation2 + $0x570] sm:$0xff]
    %v831 = vld [vmem:[#allocation2 + $0x578] sm:$0xff]
    %v832 = vld [vmem:[#allocation2 + $0x580] sm:$0xff]
    %v833 = vld [vmem:[#allocation2 + $0x588] sm:$0xff]
    %v834 = vld [vmem:[#allocation2 + $0x590] sm:$0xff]
    %v835 = vld [vmem:[#allocation2 + $0x598] sm:$0xff]
    %v836 = vld [vmem:[#allocation2 + $0x5a0] sm:$0xff]
    %v837 = vld [vmem:[#allocation2 + $0x5a8] sm:$0xff]
    %v838 = vld [vmem:[#allocation2 + $0x5b0] sm:$0xff]
    %v839 = vld [vmem:[#allocation2 + $0x5b8] sm:$0xff]
    %v840 = vld [vmem:[#allocation2 + $0x5c0] sm:$0xff]
    %v841 = vld [vmem:[#allocation2 + $0x5c8] sm:$0xff]
    %v842 = vld [vmem:[#allocation2 + $0x5d0] sm:$0xff]
    %v843 = vld [vmem:[#allocation2 + $0x5d8] sm:$0xff]
    %v844 = vld [vmem:[#allocation2 + $0x5e0] sm:$0xff]
    %v845 = vld [vmem:[#allocation2 + $0x5e8] sm:$0xff]
    %v846 = vld [vmem:[#allocation2 + $0x5f0] sm:$0xff]
    %v847 = vld [vmem:[#allocation2 + $0x5f8] sm:$0xff]
    %v848 = vld [vmem:[#allocation2 + $0x600] sm:$0xff]
    %v849 = vld [vmem:[#allocation2 + $0x608] sm:$0xff]
    %v850 = vld [vmem:[#allocation2 + $0x610] sm:$0xff]
    %v851 = vld [vmem:[#allocation2 + $0x618] sm:$0xff]
    %v852 = vld [vmem:[#allocation2 + $0x620] sm:$0xff]
    %v853 = vld [vmem:[#allocation2 + $0x628] sm:$0xff]
    %v854 = vld [vmem:[#allocation2 + $0x630] sm:$0xff]
    %v855 = vld [vmem:[#allocation2 + $0x638] sm:$0xff]
    %v856 = vld [vmem:[#allocation2 + $0x640] sm:$0xff]
    %v857 = vld [vmem:[#allocation2 + $0x648] sm:$0xff]
    %v858 = vld [vmem:[#allocation2 + $0x650] sm:$0xff]
    %v859 = vld [vmem:[#allocation2 + $0x658] sm:$0xff]
    %v860 = vld [vmem:[#allocation2 + $0x660] sm:$0xff]
    %v861 = vld [vmem:[#allocation2 + $0x668] sm:$0xff]
    %v862 = vld [vmem:[#allocation2 + $0x670] sm:$0xff]
    %v863 = vld [vmem:[#allocation2 + $0x678] sm:$0xff]
    %v864 = vld [vmem:[#allocation2 + $0x680] sm:$0xff]
    %v865 = vld [vmem:[#allocation2 + $0x688] sm:$0xff]
    %v866 = vld [vmem:[#allocation2 + $0x690] sm:$0xff]
    %v867 = vld [vmem:[#allocation2 + $0x698] sm:$0xff]
    %v868 = vld [vmem:[#allocation2 + $0x6a0] sm:$0xff]
    %v869 = vld [vmem:[#allocation2 + $0x6a8] sm:$0xff]
    %v870 = vld [vmem:[#allocation2 + $0x6b0] sm:$0xff]
    %v871 = vld [vmem:[#allocation2 + $0x6b8] sm:$0xff]
    %v872 = vld [vmem:[#allocation2 + $0x6c0] sm:$0xff]
    %v873 = vld [vmem:[#allocation2 + $0x6c8] sm:$0xff]
    %v874 = vld [vmem:[#allocation2 + $0x6d0] sm:$0xff]
    %v875 = vld [vmem:[#allocation2 + $0x6d8] sm:$0xff]
    %v876 = vld [vmem:[#allocation2 + $0x6e0] sm:$0xff]
    %v877 = vld [vmem:[#allocation2 + $0x6e8] sm:$0xff]
    %v878 = vld [vmem:[#allocation2 + $0x6f0] sm:$0xff]
    %v879 = vld [vmem:[#allocation2 + $0x6f8] sm:$0xff]
    %v880 = vld [vmem:[#allocation2 + $0x700] sm:$0xff]
    %v881 = vld [vmem:[#allocation2 + $0x708] sm:$0xff]
    %v882 = vld [vmem:[#allocation2 + $0x710] sm:$0xff]
    %v883 = vld [vmem:[#allocation2 + $0x718] sm:$0xff]
    %v884 = vld [vmem:[#allocation2 + $0x720] sm:$0xff]
    %v885 = vld [vmem:[#allocation2 + $0x728] sm:$0xff]
    %v886 = vld [vmem:[#allocation2 + $0x730] sm:$0xff]
    %v887 = vld [vmem:[#allocation2 + $0x738] sm:$0xff]
    %v888 = vld [vmem:[#allocation2 + $0x740] sm:$0xff]
    %v889 = vld [vmem:[#allocation2 + $0x748] sm:$0xff]
    %v890 = vld [vmem:[#allocation2 + $0x750] sm:$0xff]
    %v891 = vld [vmem:[#allocation2 + $0x758] sm:$0xff]
    %v892 = vld [vmem:[#allocation2 + $0x760] sm:$0xff]
    %v893 = vld [vmem:[#allocation2 + $0x768] sm:$0xff]
    %v894 = vld [vmem:[#allocation2 + $0x770] sm:$0xff]
    %v895 = vld [vmem:[#allocation2 + $0x778] sm:$0xff]
    %v928 = vunpack.c.l.b16 %v624
    %v929 = vunpack.c.h.b16 %v624
    %v930 = vunpack.c.l.b16 %v625
    %v931 = vunpack.c.h.b16 %v625
    %v932 = vunpack.c.l.b16 %v626
    %v933 = vunpack.c.h.b16 %v626
    %v934 = vunpack.c.l.b16 %v627
    %v935 = vunpack.c.h.b16 %v627
    %v936 = vunpack.c.l.b16 %v628
    %v937 = vunpack.c.h.b16 %v628
    %v938 = vunpack.c.l.b16 %v629
    %v939 = vunpack.c.h.b16 %v629
    %v940 = vunpack.c.l.b16 %v630
    %v941 = vunpack.c.h.b16 %v630
    %v942 = vunpack.c.l.b16 %v631
    %v943 = vunpack.c.h.b16 %v631
    %v944 = vunpack.c.l.b16 %v632
    %v945 = vunpack.c.h.b16 %v632
    %v946 = vunpack.c.l.b16 %v633
    %v947 = vunpack.c.h.b16 %v633
    %v948 = vunpack.c.l.b16 %v634
    %v949 = vunpack.c.h.b16 %v634
    %v950 = vunpack.c.l.b16 %v635
    %v951 = vunpack.c.h.b16 %v635
    %v952 = vunpack.c.l.b16 %v636
    %v953 = vunpack.c.h.b16 %v636
    %v954 = vunpack.c.l.b16 %v637
    %v955 = vunpack.c.h.b16 %v637
    %v956 = vunpack.c.l.b16 %v638
    %v957 = vunpack.c.h.b16 %v638
    %v958 = vunpack.c.l.b16 %v639
    %v959 = vunpack.c.h.b16 %v639
    %v960 = vunpack.c.l.b16 %v640
    %v961 = vunpack.c.h.b16 %v640
    %v962 = vunpack.c.l.b16 %v641
    %v963 = vunpack.c.h.b16 %v641
    %v964 = vunpack.c.l.b16 %v642
    %v965 = vunpack.c.h.b16 %v642
    %v966 = vunpack.c.l.b16 %v643
    %v967 = vunpack.c.h.b16 %v643
    %v968 = vunpack.c.l.b16 %v644
    %v969 = vunpack.c.h.b16 %v644
    %v970 = vunpack.c.l.b16 %v645
    %v971 = vunpack.c.h.b16 %v645
    %v972 = vunpack.c.l.b16 %v646
    %v973 = vunpack.c.h.b16 %v646
    %v974 = vunpack.c.l.b16 %v647
    %v975 = vunpack.c.h.b16 %v647
    %v976 = vunpack.c.l.b16 %v648
    %v977 = vunpack.c.h.b16 %v648
    %v978 = vunpack.c.l.b16 %v649
    %v979 = vunpack.c.h.b16 %v649
    %v980 = vunpack.c.l.b16 %v650
    %v981 = vunpack.c.h.b16 %v650
    %v982 = vunpack.c.l.b16 %v651
    %v983 = vunpack.c.h.b16 %v651
    %v984 = vunpack.c.l.b16 %v652
    %v985 = vunpack.c.h.b16 %v652
    %v986 = vunpack.c.l.b16 %v653
    %v987 = vunpack.c.h.b16 %v653
    %v988 = vunpack.c.l.b16 %v654
    %v989 = vunpack.c.h.b16 %v654
    %v990 = vunpack.c.l.b16 %v655
    %v991 = vunpack.c.h.b16 %v655
    %v992 = vpack.c.b16 %v930, %v928
    %v993 = vpack.c.b16 %v931, %v929
    %v994 = vpack.c.b16 %v934, %v932
    %v995 = vpack.c.b16 %v935, %v933
    %v996 = vpack.c.b16 %v938, %v936
    %v997 = vpack.c.b16 %v939, %v937
    %v998 = vpack.c.b16 %v942, %v940
    %v999 = vpack.c.b16 %v943, %v941
    %v1000 = vpack.c.b16 %v946, %v944
    %v1001 = vpack.c.b16 %v947, %v945
    %v1002 = vpack.c.b16 %v950, %v948
    %v1003 = vpack.c.b16 %v951, %v949
    %v1004 = vpack.c.b16 %v954, %v952
    %v1005 = vpack.c.b16 %v955, %v953
    %v1006 = vpack.c.b16 %v958, %v956
    %v1007 = vpack.c.b16 %v959, %v957
    %v1008 = vpack.c.b16 %v962, %v960
    %v1009 = vpack.c.b16 %v963, %v961
    %v1010 = vpack.c.b16 %v966, %v964
    %v1011 = vpack.c.b16 %v967, %v965
    %v1012 = vpack.c.b16 %v970, %v968
    %v1013 = vpack.c.b16 %v971, %v969
    %v1014 = vpack.c.b16 %v974, %v972
    %v1015 = vpack.c.b16 %v975, %v973
    %v1016 = vpack.c.b16 %v978, %v976
    %v1017 = vpack.c.b16 %v979, %v977
    %v1018 = vpack.c.b16 %v982, %v980
    %v1019 = vpack.c.b16 %v983, %v981
    %v1020 = vpack.c.b16 %v986, %v984
    %v1021 = vpack.c.b16 %v987, %v985
    %v1022 = vpack.c.b16 %v990, %v988
    %v1023 = vpack.c.b16 %v991, %v989
    %vm1040 = vcmask 261120
    %v1042 = vsel %vm1040, %v993, 0
    %v1045 = vsel %vm1040, %v995, 0
    %v1048 = vsel %vm1040, %v997, 0
    %v1051 = vsel %vm1040, %v999, 0
    %v1054 = vsel %vm1040, %v1001, 0
    %v1057 = vsel %vm1040, %v1003, 0
    %v1060 = vsel %vm1040, %v1005, 0
    %v1063 = vsel %vm1040, %v1007, 0
    %v1066 = vsel %vm1040, %v1009, 0
    %v1069 = vsel %vm1040, %v1011, 0
    %v1072 = vsel %vm1040, %v1013, 0
    %v1075 = vsel %vm1040, %v1015, 0
    %v1078 = vsel %vm1040, %v1017, 0
    %v1081 = vsel %vm1040, %v1019, 0
    %v1084 = vsel %vm1040, %v1021, 0
    %v1087 = vsel %vm1040, %v1023, 0
    %1089 = vmatprep.subr.bf16.mxu0 %v657
    %1090 = vmatpush1.bf16.msra.mxu0 %v656
    %1091 = vmatprep.subr.bf16.mxu0 %v681
    %1092 = vmatpush1.bf16.msra.mxu0 %v680
    %1093 = vmatprep.subr.bf16.mxu0 %v705
    %1094 = vmatpush1.bf16.msra.mxu0 %v704
    %1095 = vmatprep.subr.bf16.mxu0 %v729
    %1096 = vmatpush1.bf16.msra.mxu0 %v728
    %1097 = vmatprep.subr.bf16.mxu0 %v753
    %1098 = vmatpush1.bf16.msra.mxu0 %v752
    %1099 = vmatprep.subr.bf16.mxu0 %v777
    %1100 = vmatpush1.bf16.msra.mxu0 %v776
    %1101 = vmatprep.subr.bf16.mxu0 %v801
    %1102 = vmatpush1.bf16.msra.mxu0 %v800
    %1103 = vmatprep.subr.bf16.mxu0 %v825
    %1104 = vmatpush1.bf16.msra.mxu0 %v824
    %1105 = vmatprep.subr.bf16.mxu0 %v849
    %1106 = vmatpush1.bf16.msra.mxu0 %v848
    %1107 = vmatprep.subr.bf16.mxu0 %v873
    %1108 = vmatpush1.bf16.msra.mxu0 %v872
    %1109 = vmatprep.subr.bf16.mxu0 0
    %1110 = vmatpush1.bf16.msra.mxu0 0
    %1111 = vmatprep.subr.bf16.mxu0 0
    %1112 = vmatpush1.bf16.msra.mxu0 0
    %1113 = vmatprep.subr.bf16.mxu0 0
    %1114 = vmatpush1.bf16.msra.mxu0 0
    %1115 = vmatprep.subr.bf16.mxu0 0
    %1116 = vmatpush1.bf16.msra.mxu0 0
    %1117 = vmatprep.subr.bf16.mxu0 0
    %1118 = vmatpush1.bf16.msra.mxu0 0
    %1119 = vmatprep.subr.bf16.mxu0 0
    %1120 = vmatpush1.bf16.msra.mxu0 0
    %1121 = vmatprep.mubr.bf16.mxu0 %v1042
    %1122 = vmatmul.mubr.bf16.gmra.mrb[0].mxu0 %v992
    %v1123 = vpop.f32.mrb[0].mxu0
    %v1124 = vadd.f32 0.0, %v1123
    %v1125 = vpop.f32.mrb[0].mxu0
    %v1126 = vadd.f32 0.0, %v1125
    %v1127 = vpop.f32.mrb[0].mxu0
    %v1128 = vadd.f32 0.0, %v1127
    %v1129 = vpop.f32.mrb[0].mxu0
    %v1130 = vadd.f32 0.0, %v1129
    %1131 = vmatprep.mubr.bf16.mxu0 %v1045
    %1132 = vmatmul.mubr.bf16.gmra.mrb[0].mxu0 %v994
    %v1133 = vpop.f32.mrb[0].mxu0
    %v1134 = vadd.f32 0.0, %v1133
    %v1135 = vpop.f32.mrb[0].mxu0
    %v1136 = vadd.f32 0.0, %v1135
    %v1137 = vpop.f32.mrb[0].mxu0
    %v1138 = vadd.f32 0.0, %v1137
    %v1139 = vpop.f32.mrb[0].mxu0
    %v1140 = vadd.f32 0.0, %v1139
    %1141 = vmatprep.mubr.bf16.mxu0 %v1048
    %1142 = vmatmul.mubr.bf16.gmra.mrb[0].mxu0 %v996
    %v1143 = vpop.f32.mrb[0].mxu0
    %v1144 = vadd.f32 0.0, %v1143
    %v1145 = vpop.f32.mrb[0].mxu0
    %v1146 = vadd.f32 0.0, %v1145
    %v1147 = vpop.f32.mrb[0].mxu0
    %v1148 = vadd.f32 0.0, %v1147
    %v1149 = vpop.f32.mrb[0].mxu0
    %v1150 = vadd.f32 0.0, %v1149
    %1151 = vmatprep.mubr.bf16.mxu0 %v1051
    %1152 = vmatmul.mubr.bf16.gmra.mrb[0].mxu0 %v998
    %v1153 = vpop.f32.mrb[0].mxu0
    %v1154 = vadd.f32 0.0, %v1153
    %v1155 = vpop.f32.mrb[0].mxu0
    %v1156 = vadd.f32 0.0, %v1155
    %v1157 = vpop.f32.mrb[0].mxu0
    %v1158 = vadd.f32 0.0, %v1157
    %v1159 = vpop.f32.mrb[0].mxu0
    %v1160 = vadd.f32 0.0, %v1159
    %1161 = vmatprep.mubr.bf16.mxu0 %v1054
    %1162 = vmatmul.mubr.bf16.gmra.mrb[0].mxu0 %v1000
    %v1163 = vpop.f32.mrb[0].mxu0
    %v1164 = vadd.f32 0.0, %v1163
    %v1165 = vpop.f32.mrb[0].mxu0
    %v1166 = vadd.f32 0.0, %v1165
    %v1167 = vpop.f32.mrb[0].mxu0
    %v1168 = vadd.f32 0.0, %v1167
    %v1169 = vpop.f32.mrb[0].mxu0
    %v1170 = vadd.f32 0.0, %v1169
    %1171 = vmatprep.mubr.bf16.mxu0 %v1057
    %1172 = vmatmul.mubr.bf16.gmra.mrb[0].mxu0 %v1002
    %v1173 = vpop.f32.mrb[0].mxu0
    %v1174 = vadd.f32 0.0, %v1173
    %v1175 = vpop.f32.mrb[0].mxu0
    %v1176 = vadd.f32 0.0, %v1175
    %v1177 = vpop.f32.mrb[0].mxu0
    %v1178 = vadd.f32 0.0, %v1177
    %v1179 = vpop.f32.mrb[0].mxu0
    %v1180 = vadd.f32 0.0, %v1179
    %1181 = vmatprep.mubr.bf16.mxu0 %v1060
    %1182 = vmatmul.mubr.bf16.gmra.mrb[0].mxu0 %v1004
    %v1183 = vpop.f32.mrb[0].mxu0
    %v1184 = vadd.f32 0.0, %v1183
    %v1185 = vpop.f32.mrb[0].mxu0
    %v1186 = vadd.f32 0.0, %v1185
    %v1187 = vpop.f32.mrb[0].mxu0
    %v1188 = vadd.f32 0.0, %v1187
    %v1189 = vpop.f32.mrb[0].mxu0
    %v1190 = vadd.f32 0.0, %v1189
    %1191 = vmatprep.mubr.bf16.mxu0 %v1063
    %1192 = vmatmul.mubr.bf16.gmra.mrb[0].mxu0 %v1006
    %v1193 = vpop.f32.mrb[0].mxu0
    %v1194 = vadd.f32 0.0, %v1193
    %v1195 = vpop.f32.mrb[0].mxu0
    %v1196 = vadd.f32 0.0, %v1195
    %v1197 = vpop.f32.mrb[0].mxu0
    %v1198 = vadd.f32 0.0, %v1197
    %v1199 = vpop.f32.mrb[0].mxu0
    %v1200 = vadd.f32 0.0, %v1199
    %1201 = vmatprep.mubr.bf16.mxu0 %v1066
    %1202 = vmatmul.mubr.bf16.gmra.mrb[0].mxu0 %v1008
    %v1203 = vpop.f32.mrb[0].mxu0
    %v1204 = vadd.f32 0.0, %v1203
    %v1205 = vpop.f32.mrb[0].mxu0
    %v1206 = vadd.f32 0.0, %v1205
    %v1207 = vpop.f32.mrb[0].mxu0
    %v1208 = vadd.f32 0.0, %v1207
    %v1209 = vpop.f32.mrb[0].mxu0
    %v1210 = vadd.f32 0.0, %v1209
    %1211 = vmatprep.mubr.bf16.mxu0 %v1069
    %1212 = vmatmul.mubr.bf16.gmra.mrb[0].mxu0 %v1010
    %v1213 = vpop.f32.mrb[0].mxu0
    %v1214 = vadd.f32 0.0, %v1213
    %v1215 = vpop.f32.mrb[0].mxu0
    %v1216 = vadd.f32 0.0, %v1215
    %v1217 = vpop.f32.mrb[0].mxu0
    %v1218 = vadd.f32 0.0, %v1217
    %v1219 = vpop.f32.mrb[0].mxu0
    %v1220 = vadd.f32 0.0, %v1219
    %1221 = vmatprep.mubr.bf16.mxu0 %v1072
    %1222 = vmatmul.mubr.bf16.gmra.mrb[0].mxu0 %v1012
    %v1223 = vpop.f32.mrb[0].mxu0
    %v1224 = vadd.f32 0.0, %v1223
    %v1225 = vpop.f32.mrb[0].mxu0
    %v1226 = vadd.f32 0.0, %v1225
    %v1227 = vpop.f32.mrb[0].mxu0
    %v1228 = vadd.f32 0.0, %v1227
    %v1229 = vpop.f32.mrb[0].mxu0
    %v1230 = vadd.f32 0.0, %v1229
    %1231 = vmatprep.mubr.bf16.mxu0 %v1075
    %1232 = vmatmul.mubr.bf16.gmra.mrb[0].mxu0 %v1014
    %v1233 = vpop.f32.mrb[0].mxu0
    %v1234 = vadd.f32 0.0, %v1233
    %v1235 = vpop.f32.mrb[0].mxu0
    %v1236 = vadd.f32 0.0, %v1235
    %v1237 = vpop.f32.mrb[0].mxu0
    %v1238 = vadd.f32 0.0, %v1237
    %v1239 = vpop.f32.mrb[0].mxu0
    %v1240 = vadd.f32 0.0, %v1239
    %1241 = vmatprep.mubr.bf16.mxu0 %v1078
    %1242 = vmatmul.mubr.bf16.gmra.mrb[0].mxu0 %v1016
    %v1243 = vpop.f32.mrb[0].mxu0
    %v1244 = vadd.f32 0.0, %v1243
    %v1245 = vpop.f32.mrb[0].mxu0
    %v1246 = vadd.f32 0.0, %v1245
    %v1247 = vpop.f32.mrb[0].mxu0
    %v1248 = vadd.f32 0.0, %v1247
    %v1249 = vpop.f32.mrb[0].mxu0
    %v1250 = vadd.f32 0.0, %v1249
    %1251 = vmatprep.mubr.bf16.mxu0 %v1081
    %1252 = vmatmul.mubr.bf16.gmra.mrb[0].mxu0 %v1018
    %v1253 = vpop.f32.mrb[0].mxu0
    %v1254 = vadd.f32 0.0, %v1253
    %v1255 = vpop.f32.mrb[0].mxu0
    %v1256 = vadd.f32 0.0, %v1255
    %v1257 = vpop.f32.mrb[0].mxu0
    %v1258 = vadd.f32 0.0, %v1257
    %v1259 = vpop.f32.mrb[0].mxu0
    %v1260 = vadd.f32 0.0, %v1259
    %1261 = vmatprep.mubr.bf16.mxu0 %v1084
    %1262 = vmatmul.mubr.bf16.gmra.mrb[0].mxu0 %v1020
    %v1263 = vpop.f32.mrb[0].mxu0
    %v1264 = vadd.f32 0.0, %v1263
    %v1265 = vpop.f32.mrb[0].mxu0
    %v1266 = vadd.f32 0.0, %v1265
    %v1267 = vpop.f32.mrb[0].mxu0
    %v1268 = vadd.f32 0.0, %v1267
    %v1269 = vpop.f32.mrb[0].mxu0
    %v1270 = vadd.f32 0.0, %v1269
    %1271 = vmatprep.mubr.bf16.mxu0 %v1087
    %1272 = vmatmul.mubr.bf16.gmra.mrb[0].mxu0 %v1022
    %v1273 = vpop.f32.mrb[0].mxu0
    %v1274 = vadd.f32 0.0, %v1273
    %v1275 = vpop.f32.mrb[0].mxu0
    %v1276 = vadd.f32 0.0, %v1275
    %v1277 = vpop.f32.mrb[0].mxu0
    %v1278 = vadd.f32 0.0, %v1277
    %v1279 = vpop.f32.mrb[0].mxu0
    %v1280 = vadd.f32 0.0, %v1279
    %1281 = vdwg.mxu0
    %1282 = vmatprep.subr.bf16.mxu0 %v659
    %1283 = vmatpush1.bf16.msra.mxu0 %v658
    %1284 = vmatprep.subr.bf16.mxu0 %v683
    %1285 = vmatpush1.bf16.msra.mxu0 %v682
    %1286 = vmatprep.subr.bf16.mxu0 %v707
    %1287 = vmatpush1.bf16.msra.mxu0 %v706
    %1288 = vmatprep.subr.bf16.mxu0 %v731
    %1289 = vmatpush1.bf16.msra.mxu0 %v730
    %1290 = vmatprep.subr.bf16.mxu0 %v755
    %1291 = vmatpush1.bf16.msra.mxu0 %v754
    %1292 = vmatprep.subr.bf16.mxu0 %v779
    %1293 = vmatpush1.bf16.msra.mxu0 %v778
    %1294 = vmatprep.subr.bf16.mxu0 %v803
    %1295 = vmatpush1.bf16.msra.mxu0 %v802
    %1296 = vmatprep.subr.bf16.mxu0 %v827
    %1297 = vmatpush1.bf16.msra.mxu0 %v826
    %1298 = vmatprep.subr.bf16.mxu0 %v851
    %1299 = vmatpush1.bf16.msra.mxu0 %v850
    %1300 = vmatprep.subr.bf16.mxu0 %v875
    %1301 = vmatpush1.bf16.msra.mxu0 %v874
    %1302 = vmatprep.subr.bf16.mxu0 0
    %1303 = vmatpush1.bf16.msra.mxu0 0
    %1304 = vmatprep.subr.bf16.mxu0 0
    %1305 = vmatpush1.bf16.msra.mxu0 0
    %1306 = vmatprep.subr.bf16.mxu0 0
    %1307 = vmatpush1.bf16.msra.mxu0 0
    %1308 = vmatprep.subr.bf16.mxu0 0
    %1309 = vmatpush1.bf16.msra.mxu0 0
    %1310 = vmatprep.subr.bf16.mxu0 0
    %1311 = vmatpush1.bf16.msra.mxu0 0
    %1312 = vmatprep.subr.bf16.mxu0 0
    %1313 = vmatpush1.bf16.msra.mxu0 0
    %1314 = vmatprep.mubr.bf16.mxu0 %v1042
    %1315 = vmatmul.mubr.bf16.gmra.mrb[0].mxu0 %v992
    %v1316 = vpop.f32.mrb[0].mxu0
    %v1317 = vadd.f32 0.0, %v1316
    %v1318 = vpop.f32.mrb[0].mxu0
    %v1319 = vadd.f32 0.0, %v1318
    %v1320 = vpop.f32.mrb[0].mxu0
    %v1321 = vadd.f32 0.0, %v1320
    %v1322 = vpop.f32.mrb[0].mxu0
    %v1323 = vadd.f32 0.0, %v1322
    %1324 = vmatprep.mubr.bf16.mxu0 %v1045
    %1325 = vmatmul.mubr.bf16.gmra.mrb[0].mxu0 %v994
    %v1326 = vpop.f32.mrb[0].mxu0
    %v1327 = vadd.f32 0.0, %v1326
    %v1328 = vpop.f32.mrb[0].mxu0
    %v1329 = vadd.f32 0.0, %v1328
    %v1330 = vpop.f32.mrb[0].mxu0
    %v1331 = vadd.f32 0.0, %v1330
    %v1332 = vpop.f32.mrb[0].mxu0
    %v1333 = vadd.f32 0.0, %v1332
    %1334 = vmatprep.mubr.bf16.mxu0 %v1048
    %1335 = vmatmul.mubr.bf16.gmra.mrb[0].mxu0 %v996
    %v1336 = vpop.f32.mrb[0].mxu0
    %v1337 = vadd.f32 0.0, %v1336
    %v1338 = vpop.f32.mrb[0].mxu0
    %v1339 = vadd.f32 0.0, %v1338
    %v1340 = vpop.f32.mrb[0].mxu0
    %v1341 = vadd.f32 0.0, %v1340
    %v1342 = vpop.f32.mrb[0].mxu0
    %v1343 = vadd.f32 0.0, %v1342
    %1344 = vmatprep.mubr.bf16.mxu0 %v1051
    %1345 = vmatmul.mubr.bf16.gmra.mrb[0].mxu0 %v998
    %v1346 = vpop.f32.mrb[0].mxu0
    %v1347 = vadd.f32 0.0, %v1346
    %v1348 = vpop.f32.mrb[0].mxu0
    %v1349 = vadd.f32 0.0, %v1348
    %v1350 = vpop.f32.mrb[0].mxu0
    %v1351 = vadd.f32 0.0, %v1350
    %v1352 = vpop.f32.mrb[0].mxu0
    %v1353 = vadd.f32 0.0, %v1352
    %1354 = vmatprep.mubr.bf16.mxu0 %v1054
    %1355 = vmatmul.mubr.bf16.gmra.mrb[0].mxu0 %v1000
    %v1356 = vpop.f32.mrb[0].mxu0
    %v1357 = vadd.f32 0.0, %v1356
    %v1358 = vpop.f32.mrb[0].mxu0
    %v1359 = vadd.f32 0.0, %v1358
    %v1360 = vpop.f32.mrb[0].mxu0
    %v1361 = vadd.f32 0.0, %v1360
    %v1362 = vpop.f32.mrb[0].mxu0
    %v1363 = vadd.f32 0.0, %v1362
    %1364 = vmatprep.mubr.bf16.mxu0 %v1057
    %1365 = vmatmul.mubr.bf16.gmra.mrb[0].mxu0 %v1002
    %v1366 = vpop.f32.mrb[0].mxu0
    %v1367 = vadd.f32 0.0, %v1366
    %v1368 = vpop.f32.mrb[0].mxu0
    %v1369 = vadd.f32 0.0, %v1368
    %v1370 = vpop.f32.mrb[0].mxu0
    %v1371 = vadd.f32 0.0, %v1370
    %v1372 = vpop.f32.mrb[0].mxu0
    %v1373 = vadd.f32 0.0, %v1372
    %1374 = vmatprep.mubr.bf16.mxu0 %v1060
    %1375 = vmatmul.mubr.bf16.gmra.mrb[0].mxu0 %v1004
    %v1376 = vpop.f32.mrb[0].mxu0
    %v1377 = vadd.f32 0.0, %v1376
    %v1378 = vpop.f32.mrb[0].mxu0
    %v1379 = vadd.f32 0.0, %v1378
    %v1380 = vpop.f32.mrb[0].mxu0
    %v1381 = vadd.f32 0.0, %v1380
    %v1382 = vpop.f32.mrb[0].mxu0
    %v1383 = vadd.f32 0.0, %v1382
    %1384 = vmatprep.mubr.bf16.mxu0 %v1063
    %1385 = vmatmul.mubr.bf16.gmra.mrb[0].mxu0 %v1006
    %v1386 = vpop.f32.mrb[0].mxu0
    %v1387 = vadd.f32 0.0, %v1386
    %v1388 = vpop.f32.mrb[0].mxu0
    %v1389 = vadd.f32 0.0, %v1388
    %v1390 = vpop.f32.mrb[0].mxu0
    %v1391 = vadd.f32 0.0, %v1390
    %v1392 = vpop.f32.mrb[0].mxu0
    %v1393 = vadd.f32 0.0, %v1392
    %1394 = vmatprep.mubr.bf16.mxu0 %v1066
    %1395 = vmatmul.mubr.bf16.gmra.mrb[0].mxu0 %v1008
    %v1396 = vpop.f32.mrb[0].mxu0
    %v1397 = vadd.f32 0.0, %v1396
    %v1398 = vpop.f32.mrb[0].mxu0
    %v1399 = vadd.f32 0.0, %v1398
    %v1400 = vpop.f32.mrb[0].mxu0
    %v1401 = vadd.f32 0.0, %v1400
    %v1402 = vpop.f32.mrb[0].mxu0
    %v1403 = vadd.f32 0.0, %v1402
    %1404 = vmatprep.mubr.bf16.mxu0 %v1069
    %1405 = vmatmul.mubr.bf16.gmra.mrb[0].mxu0 %v1010
    %v1406 = vpop.f32.mrb[0].mxu0
    %v1407 = vadd.f32 0.0, %v1406
    %v1408 = vpop.f32.mrb[0].mxu0
    %v1409 = vadd.f32 0.0, %v1408
    %v1410 = vpop.f32.mrb[0].mxu0
    %v1411 = vadd.f32 0.0, %v1410
    %v1412 = vpop.f32.mrb[0].mxu0
    %v1413 = vadd.f32 0.0, %v1412
    %1414 = vmatprep.mubr.bf16.mxu0 %v1072
    %1415 = vmatmul.mubr.bf16.gmra.mrb[0].mxu0 %v1012
    %v1416 = vpop.f32.mrb[0].mxu0
    %v1417 = vadd.f32 0.0, %v1416
    %v1418 = vpop.f32.mrb[0].mxu0
    %v1419 = vadd.f32 0.0, %v1418
    %v1420 = vpop.f32.mrb[0].mxu0
    %v1421 = vadd.f32 0.0, %v1420
    %v1422 = vpop.f32.mrb[0].mxu0
    %v1423 = vadd.f32 0.0, %v1422
    %1424 = vmatprep.mubr.bf16.mxu0 %v1075
    %1425 = vmatmul.mubr.bf16.gmra.mrb[0].mxu0 %v1014
    %v1426 = vpop.f32.mrb[0].mxu0
    %v1427 = vadd.f32 0.0, %v1426
    %v1428 = vpop.f32.mrb[0].mxu0
    %v1429 = vadd.f32 0.0, %v1428
    %v1430 = vpop.f32.mrb[0].mxu0
    %v1431 = vadd.f32 0.0, %v1430
    %v1432 = vpop.f32.mrb[0].mxu0
    %v1433 = vadd.f32 0.0, %v1432
    %1434 = vmatprep.mubr.bf16.mxu0 %v1078
    %1435 = vmatmul.mubr.bf16.gmra.mrb[0].mxu0 %v1016
    %v1436 = vpop.f32.mrb[0].mxu0
    %v1437 = vadd.f32 0.0, %v1436
    %v1438 = vpop.f32.mrb[0].mxu0
    %v1439 = vadd.f32 0.0, %v1438
    %v1440 = vpop.f32.mrb[0].mxu0
    %v1441 = vadd.f32 0.0, %v1440
    %v1442 = vpop.f32.mrb[0].mxu0
    %v1443 = vadd.f32 0.0, %v1442
    %1444 = vmatprep.mubr.bf16.mxu0 %v1081
    %1445 = vmatmul.mubr.bf16.gmra.mrb[0].mxu0 %v1018
    %v1446 = vpop.f32.mrb[0].mxu0
    %v1447 = vadd.f32 0.0, %v1446
    %v1448 = vpop.f32.mrb[0].mxu0
    %v1449 = vadd.f32 0.0, %v1448
    %v1450 = vpop.f32.mrb[0].mxu0
    %v1451 = vadd.f32 0.0, %v1450
    %v1452 = vpop.f32.mrb[0].mxu0
    %v1453 = vadd.f32 0.0, %v1452
    %1454 = vmatprep.mubr.bf16.mxu0 %v1084
    %1455 = vmatmul.mubr.bf16.gmra.mrb[0].mxu0 %v1020
    %v1456 = vpop.f32.mrb[0].mxu0
    %v1457 = vadd.f32 0.0, %v1456
    %v1458 = vpop.f32.mrb[0].mxu0
    %v1459 = vadd.f32 0.0, %v1458
    %v1460 = vpop.f32.mrb[0].mxu0
    %v1461 = vadd.f32 0.0, %v1460
    %v1462 = vpop.f32.mrb[0].mxu0
    %v1463 = vadd.f32 0.0, %v1462
    %1464 = vmatprep.mubr.bf16.mxu0 %v1087
    %1465 = vmatmul.mubr.bf16.gmra.mrb[0].mxu0 %v1022
    %v1466 = vpop.f32.mrb[0].mxu0
    %v1467 = vadd.f32 0.0, %v1466
    %v1468 = vpop.f32.mrb[0].mxu0
    %v1469 = vadd.f32 0.0, %v1468
    %v1470 = vpop.f32.mrb[0].mxu0
    %v1471 = vadd.f32 0.0, %v1470
    %v1472 = vpop.f32.mrb[0].mxu0
    %v1473 = vadd.f32 0.0, %v1472
    %1474 = vdwg.mxu0
    %1475 = vmatprep.subr.bf16.mxu0 %v661
    %1476 = vmatpush1.bf16.msra.mxu0 %v660
    %1477 = vmatprep.subr.bf16.mxu0 %v685
    %1478 = vmatpush1.bf16.msra.mxu0 %v684
    %1479 = vmatprep.subr.bf16.mxu0 %v709
    %1480 = vmatpush1.bf16.msra.mxu0 %v708
    %1481 = vmatprep.subr.bf16.mxu0 %v733
    %1482 = vmatpush1.bf16.msra.mxu0 %v732
    %1483 = vmatprep.subr.bf16.mxu0 %v757
    %1484 = vmatpush1.bf16.msra.mxu0 %v756
    %1485 = vmatprep.subr.bf16.mxu0 %v781
    %1486 = vmatpush1.bf16.msra.mxu0 %v780
    %1487 = vmatprep.subr.bf16.mxu0 %v805
    %1488 = vmatpush1.bf16.msra.mxu0 %v804
    %1489 = vmatprep.subr.bf16.mxu0 %v829
    %1490 = vmatpush1.bf16.msra.mxu0 %v828
    %1491 = vmatprep.subr.bf16.mxu0 %v853
    %1492 = vmatpush1.bf16.msra.mxu0 %v852
    %1493 = vmatprep.subr.bf16.mxu0 %v877
    %1494 = vmatpush1.bf16.msra.mxu0 %v876
    %1495 = vmatprep.subr.bf16.mxu0 0
    %1496 = vmatpush1.bf16.msra.mxu0 0
    %1497 = vmatprep.subr.bf16.mxu0 0
    %1498 = vmatpush1.bf16.msra.mxu0 0
    %1499 = vmatprep.subr.bf16.mxu0 0
    %1500 = vmatpush1.bf16.msra.mxu0 0
    %1501 = vmatprep.subr.bf16.mxu0 0
    %1502 = vmatpush1.bf16.msra.mxu0 0
    %1503 = vmatprep.subr.bf16.mxu0 0
    %1504 = vmatpush1.bf16.msra.mxu0 0
    %1505 = vmatprep.subr.bf16.mxu0 0
    %1506 = vmatpush1.bf16.msra.mxu0 0
    %1507 = vmatprep.mubr.bf16.mxu0 %v1042
    %1508 = vmatmul.mubr.bf16.gmra.mrb[0].mxu0 %v992
    %v1509 = vpop.f32.mrb[0].mxu0
    %v1510 = vadd.f32 0.0, %v1509
    %v1511 = vpop.f32.mrb[0].mxu0
    %v1512 = vadd.f32 0.0, %v1511
    %v1513 = vpop.f32.mrb[0].mxu0
    %v1514 = vadd.f32 0.0, %v1513
    %v1515 = vpop.f32.mrb[0].mxu0
    %v1516 = vadd.f32 0.0, %v1515
    %1517 = vmatprep.mubr.bf16.mxu0 %v1045
    %1518 = vmatmul.mubr.bf16.gmra.mrb[0].mxu0 %v994
    %v1519 = vpop.f32.mrb[0].mxu0
    %v1520 = vadd.f32 0.0, %v1519
    %v1521 = vpop.f32.mrb[0].mxu0
    %v1522 = vadd.f32 0.0, %v1521
    %v1523 = vpop.f32.mrb[0].mxu0
    %v1524 = vadd.f32 0.0, %v1523
    %v1525 = vpop.f32.mrb[0].mxu0
    %v1526 = vadd.f32 0.0, %v1525
    %1527 = vmatprep.mubr.bf16.mxu0 %v1048
    %1528 = vmatmul.mubr.bf16.gmra.mrb[0].mxu0 %v996
    %v1529 = vpop.f32.mrb[0].mxu0
    %v1530 = vadd.f32 0.0, %v1529
    %v1531 = vpop.f32.mrb[0].mxu0
    %v1532 = vadd.f32 0.0, %v1531
    %v1533 = vpop.f32.mrb[0].mxu0
    %v1534 = vadd.f32 0.0, %v1533
    %v1535 = vpop.f32.mrb[0].mxu0
    %v1536 = vadd.f32 0.0, %v1535
    %1537 = vmatprep.mubr.bf16.mxu0 %v1051
    %1538 = vmatmul.mubr.bf16.gmra.mrb[0].mxu0 %v998
    %v1539 = vpop.f32.mrb[0].mxu0
    %v1540 = vadd.f32 0.0, %v1539
    %v1541 = vpop.f32.mrb[0].mxu0
    %v1542 = vadd.f32 0.0, %v1541
    %v1543 = vpop.f32.mrb[0].mxu0
    %v1544 = vadd.f32 0.0, %v1543
    %v1545 = vpop.f32.mrb[0].mxu0
    %v1546 = vadd.f32 0.0, %v1545
    %1547 = vmatprep.mubr.bf16.mxu0 %v1054
    %1548 = vmatmul.mubr.bf16.gmra.mrb[0].mxu0 %v1000
    %v1549 = vpop.f32.mrb[0].mxu0
    %v1550 = vadd.f32 0.0, %v1549
    %v1551 = vpop.f32.mrb[0].mxu0
    %v1552 = vadd.f32 0.0, %v1551
    %v1553 = vpop.f32.mrb[0].mxu0
    %v1554 = vadd.f32 0.0, %v1553
    %v1555 = vpop.f32.mrb[0].mxu0
    %v1556 = vadd.f32 0.0, %v1555
    %1557 = vmatprep.mubr.bf16.mxu0 %v1057
    %1558 = vmatmul.mubr.bf16.gmra.mrb[0].mxu0 %v1002
    %v1559 = vpop.f32.mrb[0].mxu0
    %v1560 = vadd.f32 0.0, %v1559
    %v1561 = vpop.f32.mrb[0].mxu0
    %v1562 = vadd.f32 0.0, %v1561
    %v1563 = vpop.f32.mrb[0].mxu0
    %v1564 = vadd.f32 0.0, %v1563
    %v1565 = vpop.f32.mrb[0].mxu0
    %v1566 = vadd.f32 0.0, %v1565
    %1567 = vmatprep.mubr.bf16.mxu0 %v1060
    %1568 = vmatmul.mubr.bf16.gmra.mrb[0].mxu0 %v1004
    %v1569 = vpop.f32.mrb[0].mxu0
    %v1570 = vadd.f32 0.0, %v1569
    %v1571 = vpop.f32.mrb[0].mxu0
    %v1572 = vadd.f32 0.0, %v1571
    %v1573 = vpop.f32.mrb[0].mxu0
    %v1574 = vadd.f32 0.0, %v1573
    %v1575 = vpop.f32.mrb[0].mxu0
    %v1576 = vadd.f32 0.0, %v1575
    %1577 = vmatprep.mubr.bf16.mxu0 %v1063
    %1578 = vmatmul.mubr.bf16.gmra.mrb[0].mxu0 %v1006
    %v1579 = vpop.f32.mrb[0].mxu0
    %v1580 = vadd.f32 0.0, %v1579
    %v1581 = vpop.f32.mrb[0].mxu0
    %v1582 = vadd.f32 0.0, %v1581
    %v1583 = vpop.f32.mrb[0].mxu0
    %v1584 = vadd.f32 0.0, %v1583
    %v1585 = vpop.f32.mrb[0].mxu0
    %v1586 = vadd.f32 0.0, %v1585
    %1587 = vmatprep.mubr.bf16.mxu0 %v1066
    %1588 = vmatmul.mubr.bf16.gmra.mrb[0].mxu0 %v1008
    %v1589 = vpop.f32.mrb[0].mxu0
    %v1590 = vadd.f32 0.0, %v1589
    %v1591 = vpop.f32.mrb[0].mxu0
    %v1592 = vadd.f32 0.0, %v1591
    %v1593 = vpop.f32.mrb[0].mxu0
    %v1594 = vadd.f32 0.0, %v1593
    %v1595 = vpop.f32.mrb[0].mxu0
    %v1596 = vadd.f32 0.0, %v1595
    %1597 = vmatprep.mubr.bf16.mxu0 %v1069
    %1598 = vmatmul.mubr.bf16.gmra.mrb[0].mxu0 %v1010
    %v1599 = vpop.f32.mrb[0].mxu0
    %v1600 = vadd.f32 0.0, %v1599
    %v1601 = vpop.f32.mrb[0].mxu0
    %v1602 = vadd.f32 0.0, %v1601
    %v1603 = vpop.f32.mrb[0].mxu0
    %v1604 = vadd.f32 0.0, %v1603
    %v1605 = vpop.f32.mrb[0].mxu0
    %v1606 = vadd.f32 0.0, %v1605
    %1607 = vmatprep.mubr.bf16.mxu0 %v1072
    %1608 = vmatmul.mubr.bf16.gmra.mrb[0].mxu0 %v1012
    %v1609 = vpop.f32.mrb[0].mxu0
    %v1610 = vadd.f32 0.0, %v1609
    %v1611 = vpop.f32.mrb[0].mxu0
    %v1612 = vadd.f32 0.0, %v1611
    %v1613 = vpop.f32.mrb[0].mxu0
    %v1614 = vadd.f32 0.0, %v1613
    %v1615 = vpop.f32.mrb[0].mxu0
    %v1616 = vadd.f32 0.0, %v1615
    %1617 = vmatprep.mubr.bf16.mxu0 %v1075
    %1618 = vmatmul.mubr.bf16.gmra.mrb[0].mxu0 %v1014
    %v1619 = vpop.f32.mrb[0].mxu0
    %v1620 = vadd.f32 0.0, %v1619
    %v1621 = vpop.f32.mrb[0].mxu0
    %v1622 = vadd.f32 0.0, %v1621
    %v1623 = vpop.f32.mrb[0].mxu0
    %v1624 = vadd.f32 0.0, %v1623
    %v1625 = vpop.f32.mrb[0].mxu0
    %v1626 = vadd.f32 0.0, %v1625
    %1627 = vmatprep.mubr.bf16.mxu0 %v1078
    %1628 = vmatmul.mubr.bf16.gmra.mrb[0].mxu0 %v1016
    %v1629 = vpop.f32.mrb[0].mxu0
    %v1630 = vadd.f32 0.0, %v1629
    %v1631 = vpop.f32.mrb[0].mxu0
    %v1632 = vadd.f32 0.0, %v1631
    %v1633 = vpop.f32.mrb[0].mxu0
    %v1634 = vadd.f32 0.0, %v1633
    %v1635 = vpop.f32.mrb[0].mxu0
    %v1636 = vadd.f32 0.0, %v1635
    %1637 = vmatprep.mubr.bf16.mxu0 %v1081
    %1638 = vmatmul.mubr.bf16.gmra.mrb[0].mxu0 %v1018
    %v1639 = vpop.f32.mrb[0].mxu0
    %v1640 = vadd.f32 0.0, %v1639
    %v1641 = vpop.f32.mrb[0].mxu0
    %v1642 = vadd.f32 0.0, %v1641
    %v1643 = vpop.f32.mrb[0].mxu0
    %v1644 = vadd.f32 0.0, %v1643
    %v1645 = vpop.f32.mrb[0].mxu0
    %v1646 = vadd.f32 0.0, %v1645
    %1647 = vmatprep.mubr.bf16.mxu0 %v1084
    %1648 = vmatmul.mubr.bf16.gmra.mrb[0].mxu0 %v1020
    %v1649 = vpop.f32.mrb[0].mxu0
    %v1650 = vadd.f32 0.0, %v1649
    %v1651 = vpop.f32.mrb[0].mxu0
    %v1652 = vadd.f32 0.0, %v1651
    %v1653 = vpop.f32.mrb[0].mxu0
    %v1654 = vadd.f32 0.0, %v1653
    %v1655 = vpop.f32.mrb[0].mxu0
    %v1656 = vadd.f32 0.0, %v1655
    %1657 = vmatprep.mubr.bf16.mxu0 %v1087
    %1658 = vmatmul.mubr.bf16.gmra.mrb[0].mxu0 %v1022
    %v1659 = vpop.f32.mrb[0].mxu0
    %v1660 = vadd.f32 0.0, %v1659
    %v1661 = vpop.f32.mrb[0].mxu0
    %v1662 = vadd.f32 0.0, %v1661
    %v1663 = vpop.f32.mrb[0].mxu0
    %v1664 = vadd.f32 0.0, %v1663
    %v1665 = vpop.f32.mrb[0].mxu0
    %v1666 = vadd.f32 0.0, %v1665
    %1667 = vdwg.mxu0
    %1668 = vmatprep.subr.bf16.mxu0 %v663
    %1669 = vmatpush1.bf16.msra.mxu0 %v662
    %1670 = vmatprep.subr.bf16.mxu0 %v687
    %1671 = vmatpush1.bf16.msra.mxu0 %v686
    %1672 = vmatprep.subr.bf16.mxu0 %v711
    %1673 = vmatpush1.bf16.msra.mxu0 %v710
    %1674 = vmatprep.subr.bf16.mxu0 %v735
    %1675 = vmatpush1.bf16.msra.mxu0 %v734
    %1676 = vmatprep.subr.bf16.mxu0 %v759
    %1677 = vmatpush1.bf16.msra.mxu0 %v758
    %1678 = vmatprep.subr.bf16.mxu0 %v783
    %1679 = vmatpush1.bf16.msra.mxu0 %v782
    %1680 = vmatprep.subr.bf16.mxu0 %v807
    %1681 = vmatpush1.bf16.msra.mxu0 %v806
    %1682 = vmatprep.subr.bf16.mxu0 %v831
    %1683 = vmatpush1.bf16.msra.mxu0 %v830
    %1684 = vmatprep.subr.bf16.mxu0 %v855
    %1685 = vmatpush1.bf16.msra.mxu0 %v854
    %1686 = vmatprep.subr.bf16.mxu0 %v879
    %1687 = vmatpush1.bf16.msra.mxu0 %v878
    %1688 = vmatprep.subr.bf16.mxu0 0
    %1689 = vmatpush1.bf16.msra.mxu0 0
    %1690 = vmatprep.subr.bf16.mxu0 0
    %1691 = vmatpush1.bf16.msra.mxu0 0
    %1692 = vmatprep.subr.bf16.mxu0 0
    %1693 = vmatpush1.bf16.msra.mxu0 0
    %1694 = vmatprep.subr.bf16.mxu0 0
    %1695 = vmatpush1.bf16.msra.mxu0 0
    %1696 = vmatprep.subr.bf16.mxu0 0
    %1697 = vmatpush1.bf16.msra.mxu0 0
    %1698 = vmatprep.subr.bf16.mxu0 0
    %1699 = vmatpush1.bf16.msra.mxu0 0
    %1700 = vmatprep.mubr.bf16.mxu0 %v1042
    %1701 = vmatmul.mubr.bf16.gmra.mrb[0].mxu0 %v992
    %v1702 = vpop.f32.mrb[0].mxu0
    %v1703 = vadd.f32 0.0, %v1702
    %v1704 = vpop.f32.mrb[0].mxu0
    %v1705 = vadd.f32 0.0, %v1704
    %v1706 = vpop.f32.mrb[0].mxu0
    %v1707 = vadd.f32 0.0, %v1706
    %v1708 = vpop.f32.mrb[0].mxu0
    %v1709 = vadd.f32 0.0, %v1708
    %1710 = vmatprep.mubr.bf16.mxu0 %v1045
    %1711 = vmatmul.mubr.bf16.gmra.mrb[0].mxu0 %v994
    %v1712 = vpop.f32.mrb[0].mxu0
    %v1713 = vadd.f32 0.0, %v1712
    %v1714 = vpop.f32.mrb[0].mxu0
    %v1715 = vadd.f32 0.0, %v1714
    %v1716 = vpop.f32.mrb[0].mxu0
    %v1717 = vadd.f32 0.0, %v1716
    %v1718 = vpop.f32.mrb[0].mxu0
    %v1719 = vadd.f32 0.0, %v1718
    %1720 = vmatprep.mubr.bf16.mxu0 %v1048
    %1721 = vmatmul.mubr.bf16.gmra.mrb[0].mxu0 %v996
    %v1722 = vpop.f32.mrb[0].mxu0
    %v1723 = vadd.f32 0.0, %v1722
    %v1724 = vpop.f32.mrb[0].mxu0
    %v1725 = vadd.f32 0.0, %v1724
    %v1726 = vpop.f32.mrb[0].mxu0
    %v1727 = vadd.f32 0.0, %v1726
    %v1728 = vpop.f32.mrb[0].mxu0
    %v1729 = vadd.f32 0.0, %v1728
    %1730 = vmatprep.mubr.bf16.mxu0 %v1051
    %1731 = vmatmul.mubr.bf16.gmra.mrb[0].mxu0 %v998
    %v1732 = vpop.f32.mrb[0].mxu0
    %v1733 = vadd.f32 0.0, %v1732
    %v1734 = vpop.f32.mrb[0].mxu0
    %v1735 = vadd.f32 0.0, %v1734
    %v1736 = vpop.f32.mrb[0].mxu0
    %v1737 = vadd.f32 0.0, %v1736
    %v1738 = vpop.f32.mrb[0].mxu0
    %v1739 = vadd.f32 0.0, %v1738
    %1740 = vmatprep.mubr.bf16.mxu0 %v1054
    %1741 = vmatmul.mubr.bf16.gmra.mrb[0].mxu0 %v1000
    %v1742 = vpop.f32.mrb[0].mxu0
    %v1743 = vadd.f32 0.0, %v1742
    %v1744 = vpop.f32.mrb[0].mxu0
    %v1745 = vadd.f32 0.0, %v1744
    %v1746 = vpop.f32.mrb[0].mxu0
    %v1747 = vadd.f32 0.0, %v1746
    %v1748 = vpop.f32.mrb[0].mxu0
    %v1749 = vadd.f32 0.0, %v1748
    %1750 = vmatprep.mubr.bf16.mxu0 %v1057
    %1751 = vmatmul.mubr.bf16.gmra.mrb[0].mxu0 %v1002
    %v1752 = vpop.f32.mrb[0].mxu0
    %v1753 = vadd.f32 0.0, %v1752
    %v1754 = vpop.f32.mrb[0].mxu0
    %v1755 = vadd.f32 0.0, %v1754
    %v1756 = vpop.f32.mrb[0].mxu0
    %v1757 = vadd.f32 0.0, %v1756
    %v1758 = vpop.f32.mrb[0].mxu0
    %v1759 = vadd.f32 0.0, %v1758
    %1760 = vmatprep.mubr.bf16.mxu0 %v1060
    %1761 = vmatmul.mubr.bf16.gmra.mrb[0].mxu0 %v1004
    %v1762 = vpop.f32.mrb[0].mxu0
    %v1763 = vadd.f32 0.0, %v1762
    %v1764 = vpop.f32.mrb[0].mxu0
    %v1765 = vadd.f32 0.0, %v1764
    %v1766 = vpop.f32.mrb[0].mxu0
    %v1767 = vadd.f32 0.0, %v1766
    %v1768 = vpop.f32.mrb[0].mxu0
    %v1769 = vadd.f32 0.0, %v1768
    %1770 = vmatprep.mubr.bf16.mxu0 %v1063
    %1771 = vmatmul.mubr.bf16.gmra.mrb[0].mxu0 %v1006
    %v1772 = vpop.f32.mrb[0].mxu0
    %v1773 = vadd.f32 0.0, %v1772
    %v1774 = vpop.f32.mrb[0].mxu0
    %v1775 = vadd.f32 0.0, %v1774
    %v1776 = vpop.f32.mrb[0].mxu0
    %v1777 = vadd.f32 0.0, %v1776
    %v1778 = vpop.f32.mrb[0].mxu0
    %v1779 = vadd.f32 0.0, %v1778
    %1780 = vmatprep.mubr.bf16.mxu0 %v1066
    %1781 = vmatmul.mubr.bf16.gmra.mrb[0].mxu0 %v1008
    %v1782 = vpop.f32.mrb[0].mxu0
    %v1783 = vadd.f32 0.0, %v1782
    %v1784 = vpop.f32.mrb[0].mxu0
    %v1785 = vadd.f32 0.0, %v1784
    %v1786 = vpop.f32.mrb[0].mxu0
    %v1787 = vadd.f32 0.0, %v1786
    %v1788 = vpop.f32.mrb[0].mxu0
    %v1789 = vadd.f32 0.0, %v1788
    %1790 = vmatprep.mubr.bf16.mxu0 %v1069
    %1791 = vmatmul.mubr.bf16.gmra.mrb[0].mxu0 %v1010
    %v1792 = vpop.f32.mrb[0].mxu0
    %v1793 = vadd.f32 0.0, %v1792
    %v1794 = vpop.f32.mrb[0].mxu0
    %v1795 = vadd.f32 0.0, %v1794
    %v1796 = vpop.f32.mrb[0].mxu0
    %v1797 = vadd.f32 0.0, %v1796
    %v1798 = vpop.f32.mrb[0].mxu0
    %v1799 = vadd.f32 0.0, %v1798
    %1800 = vmatprep.mubr.bf16.mxu0 %v1072
    %1801 = vmatmul.mubr.bf16.gmra.mrb[0].mxu0 %v1012
    %v1802 = vpop.f32.mrb[0].mxu0
    %v1803 = vadd.f32 0.0, %v1802
    %v1804 = vpop.f32.mrb[0].mxu0
    %v1805 = vadd.f32 0.0, %v1804
    %v1806 = vpop.f32.mrb[0].mxu0
    %v1807 = vadd.f32 0.0, %v1806
    %v1808 = vpop.f32.mrb[0].mxu0
    %v1809 = vadd.f32 0.0, %v1808
    %1810 = vmatprep.mubr.bf16.mxu0 %v1075
    %1811 = vmatmul.mubr.bf16.gmra.mrb[0].mxu0 %v1014
    %v1812 = vpop.f32.mrb[0].mxu0
    %v1813 = vadd.f32 0.0, %v1812
    %v1814 = vpop.f32.mrb[0].mxu0
    %v1815 = vadd.f32 0.0, %v1814
    %v1816 = vpop.f32.mrb[0].mxu0
    %v1817 = vadd.f32 0.0, %v1816
    %v1818 = vpop.f32.mrb[0].mxu0
    %v1819 = vadd.f32 0.0, %v1818
    %1820 = vmatprep.mubr.bf16.mxu0 %v1078
    %1821 = vmatmul.mubr.bf16.gmra.mrb[0].mxu0 %v1016
    %v1822 = vpop.f32.mrb[0].mxu0
    %v1823 = vadd.f32 0.0, %v1822
    %v1824 = vpop.f32.mrb[0].mxu0
    %v1825 = vadd.f32 0.0, %v1824
    %v1826 = vpop.f32.mrb[0].mxu0
    %v1827 = vadd.f32 0.0, %v1826
    %v1828 = vpop.f32.mrb[0].mxu0
    %v1829 = vadd.f32 0.0, %v1828
    %1830 = vmatprep.mubr.bf16.mxu0 %v1081
    %1831 = vmatmul.mubr.bf16.gmra.mrb[0].mxu0 %v1018
    %v1832 = vpop.f32.mrb[0].mxu0
    %v1833 = vadd.f32 0.0, %v1832
    %v1834 = vpop.f32.mrb[0].mxu0
    %v1835 = vadd.f32 0.0, %v1834
    %v1836 = vpop.f32.mrb[0].mxu0
    %v1837 = vadd.f32 0.0, %v1836
    %v1838 = vpop.f32.mrb[0].mxu0
    %v1839 = vadd.f32 0.0, %v1838
    %1840 = vmatprep.mubr.bf16.mxu0 %v1084
    %1841 = vmatmul.mubr.bf16.gmra.mrb[0].mxu0 %v1020
    %v1842 = vpop.f32.mrb[0].mxu0
    %v1843 = vadd.f32 0.0, %v1842
    %v1844 = vpop.f32.mrb[0].mxu0
    %v1845 = vadd.f32 0.0, %v1844
    %v1846 = vpop.f32.mrb[0].mxu0
    %v1847 = vadd.f32 0.0, %v1846
    %v1848 = vpop.f32.mrb[0].mxu0
    %v1849 = vadd.f32 0.0, %v1848
    %1850 = vmatprep.mubr.bf16.mxu0 %v1087
    %1851 = vmatmul.mubr.bf16.gmra.mrb[0].mxu0 %v1022
    %v1852 = vpop.f32.mrb[0].mxu0
    %v1853 = vadd.f32 0.0, %v1852
    %v1854 = vpop.f32.mrb[0].mxu0
    %v1855 = vadd.f32 0.0, %v1854
    %v1856 = vpop.f32.mrb[0].mxu0
    %v1857 = vadd.f32 0.0, %v1856
    %v1858 = vpop.f32.mrb[0].mxu0
    %v1859 = vadd.f32 0.0, %v1858
    %1860 = vdwg.mxu0
    %1861 = vmatprep.subr.bf16.mxu0 %v665
    %1862 = vmatpush1.bf16.msra.mxu0 %v664
    %1863 = vmatprep.subr.bf16.mxu0 %v689
    %1864 = vmatpush1.bf16.msra.mxu0 %v688
    %1865 = vmatprep.subr.bf16.mxu0 %v713
    %1866 = vmatpush1.bf16.msra.mxu0 %v712
    %1867 = vmatprep.subr.bf16.mxu0 %v737
    %1868 = vmatpush1.bf16.msra.mxu0 %v736
    %1869 = vmatprep.subr.bf16.mxu0 %v761
    %1870 = vmatpush1.bf16.msra.mxu0 %v760
    %1871 = vmatprep.subr.bf16.mxu0 %v785
    %1872 = vmatpush1.bf16.msra.mxu0 %v784
    %1873 = vmatprep.subr.bf16.mxu0 %v809
    %1874 = vmatpush1.bf16.msra.mxu0 %v808
    %1875 = vmatprep.subr.bf16.mxu0 %v833
    %1876 = vmatpush1.bf16.msra.mxu0 %v832
    %1877 = vmatprep.subr.bf16.mxu0 %v857
    %1878 = vmatpush1.bf16.msra.mxu0 %v856
    %1879 = vmatprep.subr.bf16.mxu0 %v881
    %1880 = vmatpush1.bf16.msra.mxu0 %v880
    %1881 = vmatprep.subr.bf16.mxu0 0
    %1882 = vmatpush1.bf16.msra.mxu0 0
    %1883 = vmatprep.subr.bf16.mxu0 0
    %1884 = vmatpush1.bf16.msra.mxu0 0
    %1885 = vmatprep.subr.bf16.mxu0 0
    %1886 = vmatpush1.bf16.msra.mxu0 0
    %1887 = vmatprep.subr.bf16.mxu0 0
    %1888 = vmatpush1.bf16.msra.mxu0 0
    %1889 = vmatprep.subr.bf16.mxu0 0
    %1890 = vmatpush1.bf16.msra.mxu0 0
    %1891 = vmatprep.subr.bf16.mxu0 0
    %1892 = vmatpush1.bf16.msra.mxu0 0
    %1893 = vmatprep.mubr.bf16.mxu0 %v1042
    %1894 = vmatmul.mubr.bf16.gmra.mrb[0].mxu0 %v992
    %v1895 = vpop.f32.mrb[0].mxu0
    %v1896 = vadd.f32 0.0, %v1895
    %v1897 = vpop.f32.mrb[0].mxu0
    %v1898 = vadd.f32 0.0, %v1897
    %v1899 = vpop.f32.mrb[0].mxu0
    %v1900 = vadd.f32 0.0, %v1899
    %v1901 = vpop.f32.mrb[0].mxu0
    %v1902 = vadd.f32 0.0, %v1901
    %1903 = vmatprep.mubr.bf16.mxu0 %v1045
    %1904 = vmatmul.mubr.bf16.gmra.mrb[0].mxu0 %v994
    %v1905 = vpop.f32.mrb[0].mxu0
    %v1906 = vadd.f32 0.0, %v1905
    %v1907 = vpop.f32.mrb[0].mxu0
    %v1908 = vadd.f32 0.0, %v1907
    %v1909 = vpop.f32.mrb[0].mxu0
    %v1910 = vadd.f32 0.0, %v1909
    %v1911 = vpop.f32.mrb[0].mxu0
    %v1912 = vadd.f32 0.0, %v1911
    %1913 = vmatprep.mubr.bf16.mxu0 %v1048
    %1914 = vmatmul.mubr.bf16.gmra.mrb[0].mxu0 %v996
    %v1915 = vpop.f32.mrb[0].mxu0
    %v1916 = vadd.f32 0.0, %v1915
    %v1917 = vpop.f32.mrb[0].mxu0
    %v1918 = vadd.f32 0.0, %v1917
    %v1919 = vpop.f32.mrb[0].mxu0
    %v1920 = vadd.f32 0.0, %v1919
    %v1921 = vpop.f32.mrb[0].mxu0
    %v1922 = vadd.f32 0.0, %v1921
    %1923 = vmatprep.mubr.bf16.mxu0 %v1051
    %1924 = vmatmul.mubr.bf16.gmra.mrb[0].mxu0 %v998
    %v1925 = vpop.f32.mrb[0].mxu0
    %v1926 = vadd.f32 0.0, %v1925
    %v1927 = vpop.f32.mrb[0].mxu0
    %v1928 = vadd.f32 0.0, %v1927
    %v1929 = vpop.f32.mrb[0].mxu0
    %v1930 = vadd.f32 0.0, %v1929
    %v1931 = vpop.f32.mrb[0].mxu0
    %v1932 = vadd.f32 0.0, %v1931
    %1933 = vmatprep.mubr.bf16.mxu0 %v1054
    %1934 = vmatmul.mubr.bf16.gmra.mrb[0].mxu0 %v1000
    %v1935 = vpop.f32.mrb[0].mxu0
    %v1936 = vadd.f32 0.0, %v1935
    %v1937 = vpop.f32.mrb[0].mxu0
    %v1938 = vadd.f32 0.0, %v1937
    %v1939 = vpop.f32.mrb[0].mxu0
    %v1940 = vadd.f32 0.0, %v1939
    %v1941 = vpop.f32.mrb[0].mxu0
    %v1942 = vadd.f32 0.0, %v1941
    %1943 = vmatprep.mubr.bf16.mxu0 %v1057
    %1944 = vmatmul.mubr.bf16.gmra.mrb[0].mxu0 %v1002
    %v1945 = vpop.f32.mrb[0].mxu0
    %v1946 = vadd.f32 0.0, %v1945
    %v1947 = vpop.f32.mrb[0].mxu0
    %v1948 = vadd.f32 0.0, %v1947
    %v1949 = vpop.f32.mrb[0].mxu0
    %v1950 = vadd.f32 0.0, %v1949
    %v1951 = vpop.f32.mrb[0].mxu0
    %v1952 = vadd.f32 0.0, %v1951
    %1953 = vmatprep.mubr.bf16.mxu0 %v1060
    %1954 = vmatmul.mubr.bf16.gmra.mrb[0].mxu0 %v1004
    %v1955 = vpop.f32.mrb[0].mxu0
    %v1956 = vadd.f32 0.0, %v1955
    %v1957 = vpop.f32.mrb[0].mxu0
    %v1958 = vadd.f32 0.0, %v1957
    %v1959 = vpop.f32.mrb[0].mxu0
    %v1960 = vadd.f32 0.0, %v1959
    %v1961 = vpop.f32.mrb[0].mxu0
    %v1962 = vadd.f32 0.0, %v1961
    %1963 = vmatprep.mubr.bf16.mxu0 %v1063
    %1964 = vmatmul.mubr.bf16.gmra.mrb[0].mxu0 %v1006
    %v1965 = vpop.f32.mrb[0].mxu0
    %v1966 = vadd.f32 0.0, %v1965
    %v1967 = vpop.f32.mrb[0].mxu0
    %v1968 = vadd.f32 0.0, %v1967
    %v1969 = vpop.f32.mrb[0].mxu0
    %v1970 = vadd.f32 0.0, %v1969
    %v1971 = vpop.f32.mrb[0].mxu0
    %v1972 = vadd.f32 0.0, %v1971
    %1973 = vmatprep.mubr.bf16.mxu0 %v1066
    %1974 = vmatmul.mubr.bf16.gmra.mrb[0].mxu0 %v1008
    %v1975 = vpop.f32.mrb[0].mxu0
    %v1976 = vadd.f32 0.0, %v1975
    %v1977 = vpop.f32.mrb[0].mxu0
    %v1978 = vadd.f32 0.0, %v1977
    %v1979 = vpop.f32.mrb[0].mxu0
    %v1980 = vadd.f32 0.0, %v1979
    %v1981 = vpop.f32.mrb[0].mxu0
    %v1982 = vadd.f32 0.0, %v1981
    %1983 = vmatprep.mubr.bf16.mxu0 %v1069
    %1984 = vmatmul.mubr.bf16.gmra.mrb[0].mxu0 %v1010
    %v1985 = vpop.f32.mrb[0].mxu0
    %v1986 = vadd.f32 0.0, %v1985
    %v1987 = vpop.f32.mrb[0].mxu0
    %v1988 = vadd.f32 0.0, %v1987
    %v1989 = vpop.f32.mrb[0].mxu0
    %v1990 = vadd.f32 0.0, %v1989
    %v1991 = vpop.f32.mrb[0].mxu0
    %v1992 = vadd.f32 0.0, %v1991
    %1993 = vmatprep.mubr.bf16.mxu0 %v1072
    %1994 = vmatmul.mubr.bf16.gmra.mrb[0].mxu0 %v1012
    %v1995 = vpop.f32.mrb[0].mxu0
    %v1996 = vadd.f32 0.0, %v1995
    %v1997 = vpop.f32.mrb[0].mxu0
    %v1998 = vadd.f32 0.0, %v1997
    %v1999 = vpop.f32.mrb[0].mxu0
    %v2000 = vadd.f32 0.0, %v1999
    %v2001 = vpop.f32.mrb[0].mxu0
    %v2002 = vadd.f32 0.0, %v2001
    %2003 = vmatprep.mubr.bf16.mxu0 %v1075
    %2004 = vmatmul.mubr.bf16.gmra.mrb[0].mxu0 %v1014
    %v2005 = vpop.f32.mrb[0].mxu0
    %v2006 = vadd.f32 0.0, %v2005
    %v2007 = vpop.f32.mrb[0].mxu0
    %v2008 = vadd.f32 0.0, %v2007
    %v2009 = vpop.f32.mrb[0].mxu0
    %v2010 = vadd.f32 0.0, %v2009
    %v2011 = vpop.f32.mrb[0].mxu0
    %v2012 = vadd.f32 0.0, %v2011
    %2013 = vmatprep.mubr.bf16.mxu0 %v1078
    %2014 = vmatmul.mubr.bf16.gmra.mrb[0].mxu0 %v1016
    %v2015 = vpop.f32.mrb[0].mxu0
    %v2016 = vadd.f32 0.0, %v2015
    %v2017 = vpop.f32.mrb[0].mxu0
    %v2018 = vadd.f32 0.0, %v2017
    %v2019 = vpop.f32.mrb[0].mxu0
    %v2020 = vadd.f32 0.0, %v2019
    %v2021 = vpop.f32.mrb[0].mxu0
    %v2022 = vadd.f32 0.0, %v2021
    %2023 = vmatprep.mubr.bf16.mxu0 %v1081
    %2024 = vmatmul.mubr.bf16.gmra.mrb[0].mxu0 %v1018
    %v2025 = vpop.f32.mrb[0].mxu0
    %v2026 = vadd.f32 0.0, %v2025
    %v2027 = vpop.f32.mrb[0].mxu0
    %v2028 = vadd.f32 0.0, %v2027
    %v2029 = vpop.f32.mrb[0].mxu0
    %v2030 = vadd.f32 0.0, %v2029
    %v2031 = vpop.f32.mrb[0].mxu0
    %v2032 = vadd.f32 0.0, %v2031
    %2033 = vmatprep.mubr.bf16.mxu0 %v1084
    %2034 = vmatmul.mubr.bf16.gmra.mrb[0].mxu0 %v1020
    %v2035 = vpop.f32.mrb[0].mxu0
    %v2036 = vadd.f32 0.0, %v2035
    %v2037 = vpop.f32.mrb[0].mxu0
    %v2038 = vadd.f32 0.0, %v2037
    %v2039 = vpop.f32.mrb[0].mxu0
    %v2040 = vadd.f32 0.0, %v2039
    %v2041 = vpop.f32.mrb[0].mxu0
    %v2042 = vadd.f32 0.0, %v2041
    %2043 = vmatprep.mubr.bf16.mxu0 %v1087
    %2044 = vmatmul.mubr.bf16.gmra.mrb[0].mxu0 %v1022
    %v2045 = vpop.f32.mrb[0].mxu0
    %v2046 = vadd.f32 0.0, %v2045
    %v2047 = vpop.f32.mrb[0].mxu0
    %v2048 = vadd.f32 0.0, %v2047
    %v2049 = vpop.f32.mrb[0].mxu0
    %v2050 = vadd.f32 0.0, %v2049
    %v2051 = vpop.f32.mrb[0].mxu0
    %v2052 = vadd.f32 0.0, %v2051
    %2053 = vdwg.mxu0
    %2054 = vmatprep.subr.bf16.mxu0 %v667
    %2055 = vmatpush1.bf16.msra.mxu0 %v666
    %2056 = vmatprep.subr.bf16.mxu0 %v691
    %2057 = vmatpush1.bf16.msra.mxu0 %v690
    %2058 = vmatprep.subr.bf16.mxu0 %v715
    %2059 = vmatpush1.bf16.msra.mxu0 %v714
    %2060 = vmatprep.subr.bf16.mxu0 %v739
    %2061 = vmatpush1.bf16.msra.mxu0 %v738
    %2062 = vmatprep.subr.bf16.mxu0 %v763
    %2063 = vmatpush1.bf16.msra.mxu0 %v762
    %2064 = vmatprep.subr.bf16.mxu0 %v787
    %2065 = vmatpush1.bf16.msra.mxu0 %v786
    %2066 = vmatprep.subr.bf16.mxu0 %v811
    %2067 = vmatpush1.bf16.msra.mxu0 %v810
    %2068 = vmatprep.subr.bf16.mxu0 %v835
    %2069 = vmatpush1.bf16.msra.mxu0 %v834
    %2070 = vmatprep.subr.bf16.mxu0 %v859
    %2071 = vmatpush1.bf16.msra.mxu0 %v858
    %2072 = vmatprep.subr.bf16.mxu0 %v883
    %2073 = vmatpush1.bf16.msra.mxu0 %v882
    %2074 = vmatprep.subr.bf16.mxu0 0
    %2075 = vmatpush1.bf16.msra.mxu0 0
    %2076 = vmatprep.subr.bf16.mxu0 0
    %2077 = vmatpush1.bf16.msra.mxu0 0
    %2078 = vmatprep.subr.bf16.mxu0 0
    %2079 = vmatpush1.bf16.msra.mxu0 0
    %2080 = vmatprep.subr.bf16.mxu0 0
    %2081 = vmatpush1.bf16.msra.mxu0 0
    %2082 = vmatprep.subr.bf16.mxu0 0
    %2083 = vmatpush1.bf16.msra.mxu0 0
    %2084 = vmatprep.subr.bf16.mxu0 0
    %2085 = vmatpush1.bf16.msra.mxu0 0
    %2086 = vmatprep.mubr.bf16.mxu0 %v1042
    %2087 = vmatmul.mubr.bf16.gmra.mrb[0].mxu0 %v992
    %v2088 = vpop.f32.mrb[0].mxu0
    %v2089 = vadd.f32 0.0, %v2088
    %v2090 = vpop.f32.mrb[0].mxu0
    %v2091 = vadd.f32 0.0, %v2090
    %v2092 = vpop.f32.mrb[0].mxu0
    %v2093 = vadd.f32 0.0, %v2092
    %v2094 = vpop.f32.mrb[0].mxu0
    %v2095 = vadd.f32 0.0, %v2094
    %2096 = vmatprep.mubr.bf16.mxu0 %v1045
    %2097 = vmatmul.mubr.bf16.gmra.mrb[0].mxu0 %v994
    %v2098 = vpop.f32.mrb[0].mxu0
    %v2099 = vadd.f32 0.0, %v2098
    %v2100 = vpop.f32.mrb[0].mxu0
    %v2101 = vadd.f32 0.0, %v2100
    %v2102 = vpop.f32.mrb[0].mxu0
    %v2103 = vadd.f32 0.0, %v2102
    %v2104 = vpop.f32.mrb[0].mxu0
    %v2105 = vadd.f32 0.0, %v2104
    %2106 = vmatprep.mubr.bf16.mxu0 %v1048
    %2107 = vmatmul.mubr.bf16.gmra.mrb[0].mxu0 %v996
    %v2108 = vpop.f32.mrb[0].mxu0
    %v2109 = vadd.f32 0.0, %v2108
    %v2110 = vpop.f32.mrb[0].mxu0
    %v2111 = vadd.f32 0.0, %v2110
    %v2112 = vpop.f32.mrb[0].mxu0
    %v2113 = vadd.f32 0.0, %v2112
    %v2114 = vpop.f32.mrb[0].mxu0
    %v2115 = vadd.f32 0.0, %v2114
    %2116 = vmatprep.mubr.bf16.mxu0 %v1051
    %2117 = vmatmul.mubr.bf16.gmra.mrb[0].mxu0 %v998
    %v2118 = vpop.f32.mrb[0].mxu0
    %v2119 = vadd.f32 0.0, %v2118
    %v2120 = vpop.f32.mrb[0].mxu0
    %v2121 = vadd.f32 0.0, %v2120
    %v2122 = vpop.f32.mrb[0].mxu0
    %v2123 = vadd.f32 0.0, %v2122
    %v2124 = vpop.f32.mrb[0].mxu0
    %v2125 = vadd.f32 0.0, %v2124
    %2126 = vmatprep.mubr.bf16.mxu0 %v1054
    %2127 = vmatmul.mubr.bf16.gmra.mrb[0].mxu0 %v1000
    %v2128 = vpop.f32.mrb[0].mxu0
    %v2129 = vadd.f32 0.0, %v2128
    %v2130 = vpop.f32.mrb[0].mxu0
    %v2131 = vadd.f32 0.0, %v2130
    %v2132 = vpop.f32.mrb[0].mxu0
    %v2133 = vadd.f32 0.0, %v2132
    %v2134 = vpop.f32.mrb[0].mxu0
    %v2135 = vadd.f32 0.0, %v2134
    %2136 = vmatprep.mubr.bf16.mxu0 %v1057
    %2137 = vmatmul.mubr.bf16.gmra.mrb[0].mxu0 %v1002
    %v2138 = vpop.f32.mrb[0].mxu0
    %v2139 = vadd.f32 0.0, %v2138
    %v2140 = vpop.f32.mrb[0].mxu0
    %v2141 = vadd.f32 0.0, %v2140
    %v2142 = vpop.f32.mrb[0].mxu0
    %v2143 = vadd.f32 0.0, %v2142
    %v2144 = vpop.f32.mrb[0].mxu0
    %v2145 = vadd.f32 0.0, %v2144
    %2146 = vmatprep.mubr.bf16.mxu0 %v1060
    %2147 = vmatmul.mubr.bf16.gmra.mrb[0].mxu0 %v1004
    %v2148 = vpop.f32.mrb[0].mxu0
    %v2149 = vadd.f32 0.0, %v2148
    %v2150 = vpop.f32.mrb[0].mxu0
    %v2151 = vadd.f32 0.0, %v2150
    %v2152 = vpop.f32.mrb[0].mxu0
    %v2153 = vadd.f32 0.0, %v2152
    %v2154 = vpop.f32.mrb[0].mxu0
    %v2155 = vadd.f32 0.0, %v2154
    %2156 = vmatprep.mubr.bf16.mxu0 %v1063
    %2157 = vmatmul.mubr.bf16.gmra.mrb[0].mxu0 %v1006
    %v2158 = vpop.f32.mrb[0].mxu0
    %v2159 = vadd.f32 0.0, %v2158
    %v2160 = vpop.f32.mrb[0].mxu0
    %v2161 = vadd.f32 0.0, %v2160
    %v2162 = vpop.f32.mrb[0].mxu0
    %v2163 = vadd.f32 0.0, %v2162
    %v2164 = vpop.f32.mrb[0].mxu0
    %v2165 = vadd.f32 0.0, %v2164
    %2166 = vmatprep.mubr.bf16.mxu0 %v1066
    %2167 = vmatmul.mubr.bf16.gmra.mrb[0].mxu0 %v1008
    %v2168 = vpop.f32.mrb[0].mxu0
    %v2169 = vadd.f32 0.0, %v2168
    %v2170 = vpop.f32.mrb[0].mxu0
    %v2171 = vadd.f32 0.0, %v2170
    %v2172 = vpop.f32.mrb[0].mxu0
    %v2173 = vadd.f32 0.0, %v2172
    %v2174 = vpop.f32.mrb[0].mxu0
    %v2175 = vadd.f32 0.0, %v2174
    %2176 = vmatprep.mubr.bf16.mxu0 %v1069
    %2177 = vmatmul.mubr.bf16.gmra.mrb[0].mxu0 %v1010
    %v2178 = vpop.f32.mrb[0].mxu0
    %v2179 = vadd.f32 0.0, %v2178
    %v2180 = vpop.f32.mrb[0].mxu0
    %v2181 = vadd.f32 0.0, %v2180
    %v2182 = vpop.f32.mrb[0].mxu0
    %v2183 = vadd.f32 0.0, %v2182
    %v2184 = vpop.f32.mrb[0].mxu0
    %v2185 = vadd.f32 0.0, %v2184
    %2186 = vmatprep.mubr.bf16.mxu0 %v1072
    %2187 = vmatmul.mubr.bf16.gmra.mrb[0].mxu0 %v1012
    %v2188 = vpop.f32.mrb[0].mxu0
    %v2189 = vadd.f32 0.0, %v2188
    %v2190 = vpop.f32.mrb[0].mxu0
    %v2191 = vadd.f32 0.0, %v2190
    %v2192 = vpop.f32.mrb[0].mxu0
    %v2193 = vadd.f32 0.0, %v2192
    %v2194 = vpop.f32.mrb[0].mxu0
    %v2195 = vadd.f32 0.0, %v2194
    %2196 = vmatprep.mubr.bf16.mxu0 %v1075
    %2197 = vmatmul.mubr.bf16.gmra.mrb[0].mxu0 %v1014
    %v2198 = vpop.f32.mrb[0].mxu0
    %v2199 = vadd.f32 0.0, %v2198
    %v2200 = vpop.f32.mrb[0].mxu0
    %v2201 = vadd.f32 0.0, %v2200
    %v2202 = vpop.f32.mrb[0].mxu0
    %v2203 = vadd.f32 0.0, %v2202
    %v2204 = vpop.f32.mrb[0].mxu0
    %v2205 = vadd.f32 0.0, %v2204
    %2206 = vmatprep.mubr.bf16.mxu0 %v1078
    %2207 = vmatmul.mubr.bf16.gmra.mrb[0].mxu0 %v1016
    %v2208 = vpop.f32.mrb[0].mxu0
    %v2209 = vadd.f32 0.0, %v2208
    %v2210 = vpop.f32.mrb[0].mxu0
    %v2211 = vadd.f32 0.0, %v2210
    %v2212 = vpop.f32.mrb[0].mxu0
    %v2213 = vadd.f32 0.0, %v2212
    %v2214 = vpop.f32.mrb[0].mxu0
    %v2215 = vadd.f32 0.0, %v2214
    %2216 = vmatprep.mubr.bf16.mxu0 %v1081
    %2217 = vmatmul.mubr.bf16.gmra.mrb[0].mxu0 %v1018
    %v2218 = vpop.f32.mrb[0].mxu0
    %v2219 = vadd.f32 0.0, %v2218
    %v2220 = vpop.f32.mrb[0].mxu0
    %v2221 = vadd.f32 0.0, %v2220
    %v2222 = vpop.f32.mrb[0].mxu0
    %v2223 = vadd.f32 0.0, %v2222
    %v2224 = vpop.f32.mrb[0].mxu0
    %v2225 = vadd.f32 0.0, %v2224
    %2226 = vmatprep.mubr.bf16.mxu0 %v1084
    %2227 = vmatmul.mubr.bf16.gmra.mrb[0].mxu0 %v1020
    %v2228 = vpop.f32.mrb[0].mxu0
    %v2229 = vadd.f32 0.0, %v2228
    %v2230 = vpop.f32.mrb[0].mxu0
    %v2231 = vadd.f32 0.0, %v2230
    %v2232 = vpop.f32.mrb[0].mxu0
    %v2233 = vadd.f32 0.0, %v2232
    %v2234 = vpop.f32.mrb[0].mxu0
    %v2235 = vadd.f32 0.0, %v2234
    %2236 = vmatprep.mubr.bf16.mxu0 %v1087
    %2237 = vmatmul.mubr.bf16.gmra.mrb[0].mxu0 %v1022
    %v2238 = vpop.f32.mrb[0].mxu0
    %v2239 = vadd.f32 0.0, %v2238
    %v2240 = vpop.f32.mrb[0].mxu0
    %v2241 = vadd.f32 0.0, %v2240
    %v2242 = vpop.f32.mrb[0].mxu0
    %v2243 = vadd.f32 0.0, %v2242
    %v2244 = vpop.f32.mrb[0].mxu0
    %v2245 = vadd.f32 0.0, %v2244
    %2246 = vdwg.mxu0
    %2247 = vmatprep.subr.bf16.mxu0 %v669
    %2248 = vmatpush1.bf16.msra.mxu0 %v668
    %2249 = vmatprep.subr.bf16.mxu0 %v693
    %2250 = vmatpush1.bf16.msra.mxu0 %v692
    %2251 = vmatprep.subr.bf16.mxu0 %v717
    %2252 = vmatpush1.bf16.msra.mxu0 %v716
    %2253 = vmatprep.subr.bf16.mxu0 %v741
    %2254 = vmatpush1.bf16.msra.mxu0 %v740
    %2255 = vmatprep.subr.bf16.mxu0 %v765
    %2256 = vmatpush1.bf16.msra.mxu0 %v764
    %2257 = vmatprep.subr.bf16.mxu0 %v789
    %2258 = vmatpush1.bf16.msra.mxu0 %v788
    %2259 = vmatprep.subr.bf16.mxu0 %v813
    %2260 = vmatpush1.bf16.msra.mxu0 %v812
    %2261 = vmatprep.subr.bf16.mxu0 %v837
    %2262 = vmatpush1.bf16.msra.mxu0 %v836
    %2263 = vmatprep.subr.bf16.mxu0 %v861
    %2264 = vmatpush1.bf16.msra.mxu0 %v860
    %2265 = vmatprep.subr.bf16.mxu0 %v885
    %2266 = vmatpush1.bf16.msra.mxu0 %v884
    %2267 = vmatprep.subr.bf16.mxu0 0
    %2268 = vmatpush1.bf16.msra.mxu0 0
    %2269 = vmatprep.subr.bf16.mxu0 0
    %2270 = vmatpush1.bf16.msra.mxu0 0
    %2271 = vmatprep.subr.bf16.mxu0 0
    %2272 = vmatpush1.bf16.msra.mxu0 0
    %2273 = vmatprep.subr.bf16.mxu0 0
    %2274 = vmatpush1.bf16.msra.mxu0 0
    %2275 = vmatprep.subr.bf16.mxu0 0
    %2276 = vmatpush1.bf16.msra.mxu0 0
    %2277 = vmatprep.subr.bf16.mxu0 0
    %2278 = vmatpush1.bf16.msra.mxu0 0
    %2279 = vmatprep.mubr.bf16.mxu0 %v1042
    %2280 = vmatmul.mubr.bf16.gmra.mrb[0].mxu0 %v992
    %v2281 = vpop.f32.mrb[0].mxu0
    %v2282 = vadd.f32 0.0, %v2281
    %v2283 = vpop.f32.mrb[0].mxu0
    %v2284 = vadd.f32 0.0, %v2283
    %v2285 = vpop.f32.mrb[0].mxu0
    %v2286 = vadd.f32 0.0, %v2285
    %v2287 = vpop.f32.mrb[0].mxu0
    %v2288 = vadd.f32 0.0, %v2287
    %2289 = vmatprep.mubr.bf16.mxu0 %v1045
    %2290 = vmatmul.mubr.bf16.gmra.mrb[0].mxu0 %v994
    %v2291 = vpop.f32.mrb[0].mxu0
    %v2292 = vadd.f32 0.0, %v2291
    %v2293 = vpop.f32.mrb[0].mxu0
    %v2294 = vadd.f32 0.0, %v2293
    %v2295 = vpop.f32.mrb[0].mxu0
    %v2296 = vadd.f32 0.0, %v2295
    %v2297 = vpop.f32.mrb[0].mxu0
    %v2298 = vadd.f32 0.0, %v2297
    %2299 = vmatprep.mubr.bf16.mxu0 %v1048
    %2300 = vmatmul.mubr.bf16.gmra.mrb[0].mxu0 %v996
    %v2301 = vpop.f32.mrb[0].mxu0
    %v2302 = vadd.f32 0.0, %v2301
    %v2303 = vpop.f32.mrb[0].mxu0
    %v2304 = vadd.f32 0.0, %v2303
    %v2305 = vpop.f32.mrb[0].mxu0
    %v2306 = vadd.f32 0.0, %v2305
    %v2307 = vpop.f32.mrb[0].mxu0
    %v2308 = vadd.f32 0.0, %v2307
    %2309 = vmatprep.mubr.bf16.mxu0 %v1051
    %2310 = vmatmul.mubr.bf16.gmra.mrb[0].mxu0 %v998
    %v2311 = vpop.f32.mrb[0].mxu0
    %v2312 = vadd.f32 0.0, %v2311
    %v2313 = vpop.f32.mrb[0].mxu0
    %v2314 = vadd.f32 0.0, %v2313
    %v2315 = vpop.f32.mrb[0].mxu0
    %v2316 = vadd.f32 0.0, %v2315
    %v2317 = vpop.f32.mrb[0].mxu0
    %v2318 = vadd.f32 0.0, %v2317
    %2319 = vmatprep.mubr.bf16.mxu0 %v1054
    %2320 = vmatmul.mubr.bf16.gmra.mrb[0].mxu0 %v1000
    %v2321 = vpop.f32.mrb[0].mxu0
    %v2322 = vadd.f32 0.0, %v2321
    %v2323 = vpop.f32.mrb[0].mxu0
    %v2324 = vadd.f32 0.0, %v2323
    %v2325 = vpop.f32.mrb[0].mxu0
    %v2326 = vadd.f32 0.0, %v2325
    %v2327 = vpop.f32.mrb[0].mxu0
    %v2328 = vadd.f32 0.0, %v2327
    %2329 = vmatprep.mubr.bf16.mxu0 %v1057
    %2330 = vmatmul.mubr.bf16.gmra.mrb[0].mxu0 %v1002
    %v2331 = vpop.f32.mrb[0].mxu0
    %v2332 = vadd.f32 0.0, %v2331
    %v2333 = vpop.f32.mrb[0].mxu0
    %v2334 = vadd.f32 0.0, %v2333
    %v2335 = vpop.f32.mrb[0].mxu0
    %v2336 = vadd.f32 0.0, %v2335
    %v2337 = vpop.f32.mrb[0].mxu0
    %v2338 = vadd.f32 0.0, %v2337
    %2339 = vmatprep.mubr.bf16.mxu0 %v1060
    %2340 = vmatmul.mubr.bf16.gmra.mrb[0].mxu0 %v1004
    %v2341 = vpop.f32.mrb[0].mxu0
    %v2342 = vadd.f32 0.0, %v2341
    %v2343 = vpop.f32.mrb[0].mxu0
    %v2344 = vadd.f32 0.0, %v2343
    %v2345 = vpop.f32.mrb[0].mxu0
    %v2346 = vadd.f32 0.0, %v2345
    %v2347 = vpop.f32.mrb[0].mxu0
    %v2348 = vadd.f32 0.0, %v2347
    %2349 = vmatprep.mubr.bf16.mxu0 %v1063
    %2350 = vmatmul.mubr.bf16.gmra.mrb[0].mxu0 %v1006
    %v2351 = vpop.f32.mrb[0].mxu0
    %v2352 = vadd.f32 0.0, %v2351
    %v2353 = vpop.f32.mrb[0].mxu0
    %v2354 = vadd.f32 0.0, %v2353
    %v2355 = vpop.f32.mrb[0].mxu0
    %v2356 = vadd.f32 0.0, %v2355
    %v2357 = vpop.f32.mrb[0].mxu0
    %v2358 = vadd.f32 0.0, %v2357
    %2359 = vmatprep.mubr.bf16.mxu0 %v1066
    %2360 = vmatmul.mubr.bf16.gmra.mrb[0].mxu0 %v1008
    %v2361 = vpop.f32.mrb[0].mxu0
    %v2362 = vadd.f32 0.0, %v2361
    %v2363 = vpop.f32.mrb[0].mxu0
    %v2364 = vadd.f32 0.0, %v2363
    %v2365 = vpop.f32.mrb[0].mxu0
    %v2366 = vadd.f32 0.0, %v2365
    %v2367 = vpop.f32.mrb[0].mxu0
    %v2368 = vadd.f32 0.0, %v2367
    %2369 = vmatprep.mubr.bf16.mxu0 %v1069
    %2370 = vmatmul.mubr.bf16.gmra.mrb[0].mxu0 %v1010
    %v2371 = vpop.f32.mrb[0].mxu0
    %v2372 = vadd.f32 0.0, %v2371
    %v2373 = vpop.f32.mrb[0].mxu0
    %v2374 = vadd.f32 0.0, %v2373
    %v2375 = vpop.f32.mrb[0].mxu0
    %v2376 = vadd.f32 0.0, %v2375
    %v2377 = vpop.f32.mrb[0].mxu0
    %v2378 = vadd.f32 0.0, %v2377
    %2379 = vmatprep.mubr.bf16.mxu0 %v1072
    %2380 = vmatmul.mubr.bf16.gmra.mrb[0].mxu0 %v1012
    %v2381 = vpop.f32.mrb[0].mxu0
    %v2382 = vadd.f32 0.0, %v2381
    %v2383 = vpop.f32.mrb[0].mxu0
    %v2384 = vadd.f32 0.0, %v2383
    %v2385 = vpop.f32.mrb[0].mxu0
    %v2386 = vadd.f32 0.0, %v2385
    %v2387 = vpop.f32.mrb[0].mxu0
    %v2388 = vadd.f32 0.0, %v2387
    %2389 = vmatprep.mubr.bf16.mxu0 %v1075
    %2390 = vmatmul.mubr.bf16.gmra.mrb[0].mxu0 %v1014
    %v2391 = vpop.f32.mrb[0].mxu0
    %v2392 = vadd.f32 0.0, %v2391
    %v2393 = vpop.f32.mrb[0].mxu0
    %v2394 = vadd.f32 0.0, %v2393
    %v2395 = vpop.f32.mrb[0].mxu0
    %v2396 = vadd.f32 0.0, %v2395
    %v2397 = vpop.f32.mrb[0].mxu0
    %v2398 = vadd.f32 0.0, %v2397
    %2399 = vmatprep.mubr.bf16.mxu0 %v1078
    %2400 = vmatmul.mubr.bf16.gmra.mrb[0].mxu0 %v1016
    %v2401 = vpop.f32.mrb[0].mxu0
    %v2402 = vadd.f32 0.0, %v2401
    %v2403 = vpop.f32.mrb[0].mxu0
    %v2404 = vadd.f32 0.0, %v2403
    %v2405 = vpop.f32.mrb[0].mxu0
    %v2406 = vadd.f32 0.0, %v2405
    %v2407 = vpop.f32.mrb[0].mxu0
    %v2408 = vadd.f32 0.0, %v2407
    %2409 = vmatprep.mubr.bf16.mxu0 %v1081
    %2410 = vmatmul.mubr.bf16.gmra.mrb[0].mxu0 %v1018
    %v2411 = vpop.f32.mrb[0].mxu0
    %v2412 = vadd.f32 0.0, %v2411
    %v2413 = vpop.f32.mrb[0].mxu0
    %v2414 = vadd.f32 0.0, %v2413
    %v2415 = vpop.f32.mrb[0].mxu0
    %v2416 = vadd.f32 0.0, %v2415
    %v2417 = vpop.f32.mrb[0].mxu0
    %v2418 = vadd.f32 0.0, %v2417
    %2419 = vmatprep.mubr.bf16.mxu0 %v1084
    %2420 = vmatmul.mubr.bf16.gmra.mrb[0].mxu0 %v1020
    %v2421 = vpop.f32.mrb[0].mxu0
    %v2422 = vadd.f32 0.0, %v2421
    %v2423 = vpop.f32.mrb[0].mxu0
    %v2424 = vadd.f32 0.0, %v2423
    %v2425 = vpop.f32.mrb[0].mxu0
    %v2426 = vadd.f32 0.0, %v2425
    %v2427 = vpop.f32.mrb[0].mxu0
    %v2428 = vadd.f32 0.0, %v2427
    %2429 = vmatprep.mubr.bf16.mxu0 %v1087
    %2430 = vmatmul.mubr.bf16.gmra.mrb[0].mxu0 %v1022
    %v2431 = vpop.f32.mrb[0].mxu0
    %v2432 = vadd.f32 0.0, %v2431
    %v2433 = vpop.f32.mrb[0].mxu0
    %v2434 = vadd.f32 0.0, %v2433
    %v2435 = vpop.f32.mrb[0].mxu0
    %v2436 = vadd.f32 0.0, %v2435
    %v2437 = vpop.f32.mrb[0].mxu0
    %v2438 = vadd.f32 0.0, %v2437
    %2439 = vdwg.mxu0
    %2440 = vmatprep.subr.bf16.mxu0 %v671
    %2441 = vmatpush1.bf16.msra.mxu0 %v670
    %2442 = vmatprep.subr.bf16.mxu0 %v695
    %2443 = vmatpush1.bf16.msra.mxu0 %v694
    %2444 = vmatprep.subr.bf16.mxu0 %v719
    %2445 = vmatpush1.bf16.msra.mxu0 %v718
    %2446 = vmatprep.subr.bf16.mxu0 %v743
    %2447 = vmatpush1.bf16.msra.mxu0 %v742
    %2448 = vmatprep.subr.bf16.mxu0 %v767
    %2449 = vmatpush1.bf16.msra.mxu0 %v766
    %2450 = vmatprep.subr.bf16.mxu0 %v791
    %2451 = vmatpush1.bf16.msra.mxu0 %v790
    %2452 = vmatprep.subr.bf16.mxu0 %v815
    %2453 = vmatpush1.bf16.msra.mxu0 %v814
    %2454 = vmatprep.subr.bf16.mxu0 %v839
    %2455 = vmatpush1.bf16.msra.mxu0 %v838
    %2456 = vmatprep.subr.bf16.mxu0 %v863
    %2457 = vmatpush1.bf16.msra.mxu0 %v862
    %2458 = vmatprep.subr.bf16.mxu0 %v887
    %2459 = vmatpush1.bf16.msra.mxu0 %v886
    %2460 = vmatprep.subr.bf16.mxu0 0
    %2461 = vmatpush1.bf16.msra.mxu0 0
    %2462 = vmatprep.subr.bf16.mxu0 0
    %2463 = vmatpush1.bf16.msra.mxu0 0
    %2464 = vmatprep.subr.bf16.mxu0 0
    %2465 = vmatpush1.bf16.msra.mxu0 0
    %2466 = vmatprep.subr.bf16.mxu0 0
    %2467 = vmatpush1.bf16.msra.mxu0 0
    %2468 = vmatprep.subr.bf16.mxu0 0
    %2469 = vmatpush1.bf16.msra.mxu0 0
    %2470 = vmatprep.subr.bf16.mxu0 0
    %2471 = vmatpush1.bf16.msra.mxu0 0
    %2472 = vmatprep.mubr.bf16.mxu0 %v1042
    %2473 = vmatmul.mubr.bf16.gmra.mrb[0].mxu0 %v992
    %v2474 = vpop.f32.mrb[0].mxu0
    %v2475 = vadd.f32 0.0, %v2474
    %v2476 = vpop.f32.mrb[0].mxu0
    %v2477 = vadd.f32 0.0, %v2476
    %v2478 = vpop.f32.mrb[0].mxu0
    %v2479 = vadd.f32 0.0, %v2478
    %v2480 = vpop.f32.mrb[0].mxu0
    %v2481 = vadd.f32 0.0, %v2480
    %2482 = vmatprep.mubr.bf16.mxu0 %v1045
    %2483 = vmatmul.mubr.bf16.gmra.mrb[0].mxu0 %v994
    %v2484 = vpop.f32.mrb[0].mxu0
    %v2485 = vadd.f32 0.0, %v2484
    %v2486 = vpop.f32.mrb[0].mxu0
    %v2487 = vadd.f32 0.0, %v2486
    %v2488 = vpop.f32.mrb[0].mxu0
    %v2489 = vadd.f32 0.0, %v2488
    %v2490 = vpop.f32.mrb[0].mxu0
    %v2491 = vadd.f32 0.0, %v2490
    %2492 = vmatprep.mubr.bf16.mxu0 %v1048
    %2493 = vmatmul.mubr.bf16.gmra.mrb[0].mxu0 %v996
    %v2494 = vpop.f32.mrb[0].mxu0
    %v2495 = vadd.f32 0.0, %v2494
    %v2496 = vpop.f32.mrb[0].mxu0
    %v2497 = vadd.f32 0.0, %v2496
    %v2498 = vpop.f32.mrb[0].mxu0
    %v2499 = vadd.f32 0.0, %v2498
    %v2500 = vpop.f32.mrb[0].mxu0
    %v2501 = vadd.f32 0.0, %v2500
    %2502 = vmatprep.mubr.bf16.mxu0 %v1051
    %2503 = vmatmul.mubr.bf16.gmra.mrb[0].mxu0 %v998
    %v2504 = vpop.f32.mrb[0].mxu0
    %v2505 = vadd.f32 0.0, %v2504
    %v2506 = vpop.f32.mrb[0].mxu0
    %v2507 = vadd.f32 0.0, %v2506
    %v2508 = vpop.f32.mrb[0].mxu0
    %v2509 = vadd.f32 0.0, %v2508
    %v2510 = vpop.f32.mrb[0].mxu0
    %v2511 = vadd.f32 0.0, %v2510
    %2512 = vmatprep.mubr.bf16.mxu0 %v1054
    %2513 = vmatmul.mubr.bf16.gmra.mrb[0].mxu0 %v1000
    %v2514 = vpop.f32.mrb[0].mxu0
    %v2515 = vadd.f32 0.0, %v2514
    %v2516 = vpop.f32.mrb[0].mxu0
    %v2517 = vadd.f32 0.0, %v2516
    %v2518 = vpop.f32.mrb[0].mxu0
    %v2519 = vadd.f32 0.0, %v2518
    %v2520 = vpop.f32.mrb[0].mxu0
    %v2521 = vadd.f32 0.0, %v2520
    %2522 = vmatprep.mubr.bf16.mxu0 %v1057
    %2523 = vmatmul.mubr.bf16.gmra.mrb[0].mxu0 %v1002
    %v2524 = vpop.f32.mrb[0].mxu0
    %v2525 = vadd.f32 0.0, %v2524
    %v2526 = vpop.f32.mrb[0].mxu0
    %v2527 = vadd.f32 0.0, %v2526
    %v2528 = vpop.f32.mrb[0].mxu0
    %v2529 = vadd.f32 0.0, %v2528
    %v2530 = vpop.f32.mrb[0].mxu0
    %v2531 = vadd.f32 0.0, %v2530
    %2532 = vmatprep.mubr.bf16.mxu0 %v1060
    %2533 = vmatmul.mubr.bf16.gmra.mrb[0].mxu0 %v1004
    %v2534 = vpop.f32.mrb[0].mxu0
    %v2535 = vadd.f32 0.0, %v2534
    %v2536 = vpop.f32.mrb[0].mxu0
    %v2537 = vadd.f32 0.0, %v2536
    %v2538 = vpop.f32.mrb[0].mxu0
    %v2539 = vadd.f32 0.0, %v2538
    %v2540 = vpop.f32.mrb[0].mxu0
    %v2541 = vadd.f32 0.0, %v2540
    %2542 = vmatprep.mubr.bf16.mxu0 %v1063
    %2543 = vmatmul.mubr.bf16.gmra.mrb[0].mxu0 %v1006
    %v2544 = vpop.f32.mrb[0].mxu0
    %v2545 = vadd.f32 0.0, %v2544
    %v2546 = vpop.f32.mrb[0].mxu0
    %v2547 = vadd.f32 0.0, %v2546
    %v2548 = vpop.f32.mrb[0].mxu0
    %v2549 = vadd.f32 0.0, %v2548
    %v2550 = vpop.f32.mrb[0].mxu0
    %v2551 = vadd.f32 0.0, %v2550
    %2552 = vmatprep.mubr.bf16.mxu0 %v1066
    %2553 = vmatmul.mubr.bf16.gmra.mrb[0].mxu0 %v1008
    %v2554 = vpop.f32.mrb[0].mxu0
    %v2555 = vadd.f32 0.0, %v2554
    %v2556 = vpop.f32.mrb[0].mxu0
    %v2557 = vadd.f32 0.0, %v2556
    %v2558 = vpop.f32.mrb[0].mxu0
    %v2559 = vadd.f32 0.0, %v2558
    %v2560 = vpop.f32.mrb[0].mxu0
    %v2561 = vadd.f32 0.0, %v2560
    %2562 = vmatprep.mubr.bf16.mxu0 %v1069
    %2563 = vmatmul.mubr.bf16.gmra.mrb[0].mxu0 %v1010
    %v2564 = vpop.f32.mrb[0].mxu0
    %v2565 = vadd.f32 0.0, %v2564
    %v2566 = vpop.f32.mrb[0].mxu0
    %v2567 = vadd.f32 0.0, %v2566
    %v2568 = vpop.f32.mrb[0].mxu0
    %v2569 = vadd.f32 0.0, %v2568
    %v2570 = vpop.f32.mrb[0].mxu0
    %v2571 = vadd.f32 0.0, %v2570
    %2572 = vmatprep.mubr.bf16.mxu0 %v1072
    %2573 = vmatmul.mubr.bf16.gmra.mrb[0].mxu0 %v1012
    %v2574 = vpop.f32.mrb[0].mxu0
    %v2575 = vadd.f32 0.0, %v2574
    %v2576 = vpop.f32.mrb[0].mxu0
    %v2577 = vadd.f32 0.0, %v2576
    %v2578 = vpop.f32.mrb[0].mxu0
    %v2579 = vadd.f32 0.0, %v2578
    %v2580 = vpop.f32.mrb[0].mxu0
    %v2581 = vadd.f32 0.0, %v2580
    %2582 = vmatprep.mubr.bf16.mxu0 %v1075
    %2583 = vmatmul.mubr.bf16.gmra.mrb[0].mxu0 %v1014
    %v2584 = vpop.f32.mrb[0].mxu0
    %v2585 = vadd.f32 0.0, %v2584
    %v2586 = vpop.f32.mrb[0].mxu0
    %v2587 = vadd.f32 0.0, %v2586
    %v2588 = vpop.f32.mrb[0].mxu0
    %v2589 = vadd.f32 0.0, %v2588
    %v2590 = vpop.f32.mrb[0].mxu0
    %v2591 = vadd.f32 0.0, %v2590
    %2592 = vmatprep.mubr.bf16.mxu0 %v1078
    %2593 = vmatmul.mubr.bf16.gmra.mrb[0].mxu0 %v1016
    %v2594 = vpop.f32.mrb[0].mxu0
    %v2595 = vadd.f32 0.0, %v2594
    %v2596 = vpop.f32.mrb[0].mxu0
    %v2597 = vadd.f32 0.0, %v2596
    %v2598 = vpop.f32.mrb[0].mxu0
    %v2599 = vadd.f32 0.0, %v2598
    %v2600 = vpop.f32.mrb[0].mxu0
    %v2601 = vadd.f32 0.0, %v2600
    %2602 = vmatprep.mubr.bf16.mxu0 %v1081
    %2603 = vmatmul.mubr.bf16.gmra.mrb[0].mxu0 %v1018
    %v2604 = vpop.f32.mrb[0].mxu0
    %v2605 = vadd.f32 0.0, %v2604
    %v2606 = vpop.f32.mrb[0].mxu0
    %v2607 = vadd.f32 0.0, %v2606
    %v2608 = vpop.f32.mrb[0].mxu0
    %v2609 = vadd.f32 0.0, %v2608
    %v2610 = vpop.f32.mrb[0].mxu0
    %v2611 = vadd.f32 0.0, %v2610
    %2612 = vmatprep.mubr.bf16.mxu0 %v1084
    %2613 = vmatmul.mubr.bf16.gmra.mrb[0].mxu0 %v1020
    %v2614 = vpop.f32.mrb[0].mxu0
    %v2615 = vadd.f32 0.0, %v2614
    %v2616 = vpop.f32.mrb[0].mxu0
    %v2617 = vadd.f32 0.0, %v2616
    %v2618 = vpop.f32.mrb[0].mxu0
    %v2619 = vadd.f32 0.0, %v2618
    %v2620 = vpop.f32.mrb[0].mxu0
    %v2621 = vadd.f32 0.0, %v2620
    %2622 = vmatprep.mubr.bf16.mxu0 %v1087
    %2623 = vmatmul.mubr.bf16.gmra.mrb[0].mxu0 %v1022
    %v2624 = vpop.f32.mrb[0].mxu0
    %v2625 = vadd.f32 0.0, %v2624
    %v2626 = vpop.f32.mrb[0].mxu0
    %v2627 = vadd.f32 0.0, %v2626
    %v2628 = vpop.f32.mrb[0].mxu0
    %v2629 = vadd.f32 0.0, %v2628
    %v2630 = vpop.f32.mrb[0].mxu0
    %v2631 = vadd.f32 0.0, %v2630
    %2632 = vdwg.mxu0
    %2633 = vmatprep.subr.bf16.mxu0 %v673
    %2634 = vmatpush1.bf16.msra.mxu0 %v672
    %2635 = vmatprep.subr.bf16.mxu0 %v697
    %2636 = vmatpush1.bf16.msra.mxu0 %v696
    %2637 = vmatprep.subr.bf16.mxu0 %v721
    %2638 = vmatpush1.bf16.msra.mxu0 %v720
    %2639 = vmatprep.subr.bf16.mxu0 %v745
    %2640 = vmatpush1.bf16.msra.mxu0 %v744
    %2641 = vmatprep.subr.bf16.mxu0 %v769
    %2642 = vmatpush1.bf16.msra.mxu0 %v768
    %2643 = vmatprep.subr.bf16.mxu0 %v793
    %2644 = vmatpush1.bf16.msra.mxu0 %v792
    %2645 = vmatprep.subr.bf16.mxu0 %v817
    %2646 = vmatpush1.bf16.msra.mxu0 %v816
    %2647 = vmatprep.subr.bf16.mxu0 %v841
    %2648 = vmatpush1.bf16.msra.mxu0 %v840
    %2649 = vmatprep.subr.bf16.mxu0 %v865
    %2650 = vmatpush1.bf16.msra.mxu0 %v864
    %2651 = vmatprep.subr.bf16.mxu0 %v889
    %2652 = vmatpush1.bf16.msra.mxu0 %v888
    %2653 = vmatprep.subr.bf16.mxu0 0
    %2654 = vmatpush1.bf16.msra.mxu0 0
    %2655 = vmatprep.subr.bf16.mxu0 0
    %2656 = vmatpush1.bf16.msra.mxu0 0
    %2657 = vmatprep.subr.bf16.mxu0 0
    %2658 = vmatpush1.bf16.msra.mxu0 0
    %2659 = vmatprep.subr.bf16.mxu0 0
    %2660 = vmatpush1.bf16.msra.mxu0 0
    %2661 = vmatprep.subr.bf16.mxu0 0
    %2662 = vmatpush1.bf16.msra.mxu0 0
    %2663 = vmatprep.subr.bf16.mxu0 0
    %2664 = vmatpush1.bf16.msra.mxu0 0
    %2665 = vmatprep.mubr.bf16.mxu0 %v1042
    %2666 = vmatmul.mubr.bf16.gmra.mrb[0].mxu0 %v992
    %v2667 = vpop.f32.mrb[0].mxu0
    %v2668 = vadd.f32 0.0, %v2667
    %v2669 = vpop.f32.mrb[0].mxu0
    %v2670 = vadd.f32 0.0, %v2669
    %v2671 = vpop.f32.mrb[0].mxu0
    %v2672 = vadd.f32 0.0, %v2671
    %v2673 = vpop.f32.mrb[0].mxu0
    %v2674 = vadd.f32 0.0, %v2673
    %2675 = vmatprep.mubr.bf16.mxu0 %v1045
    %2676 = vmatmul.mubr.bf16.gmra.mrb[0].mxu0 %v994
    %v2677 = vpop.f32.mrb[0].mxu0
    %v2678 = vadd.f32 0.0, %v2677
    %v2679 = vpop.f32.mrb[0].mxu0
    %v2680 = vadd.f32 0.0, %v2679
    %v2681 = vpop.f32.mrb[0].mxu0
    %v2682 = vadd.f32 0.0, %v2681
    %v2683 = vpop.f32.mrb[0].mxu0
    %v2684 = vadd.f32 0.0, %v2683
    %2685 = vmatprep.mubr.bf16.mxu0 %v1048
    %2686 = vmatmul.mubr.bf16.gmra.mrb[0].mxu0 %v996
    %v2687 = vpop.f32.mrb[0].mxu0
    %v2688 = vadd.f32 0.0, %v2687
    %v2689 = vpop.f32.mrb[0].mxu0
    %v2690 = vadd.f32 0.0, %v2689
    %v2691 = vpop.f32.mrb[0].mxu0
    %v2692 = vadd.f32 0.0, %v2691
    %v2693 = vpop.f32.mrb[0].mxu0
    %v2694 = vadd.f32 0.0, %v2693
    %2695 = vmatprep.mubr.bf16.mxu0 %v1051
    %2696 = vmatmul.mubr.bf16.gmra.mrb[0].mxu0 %v998
    %v2697 = vpop.f32.mrb[0].mxu0
    %v2698 = vadd.f32 0.0, %v2697
    %v2699 = vpop.f32.mrb[0].mxu0
    %v2700 = vadd.f32 0.0, %v2699
    %v2701 = vpop.f32.mrb[0].mxu0
    %v2702 = vadd.f32 0.0, %v2701
    %v2703 = vpop.f32.mrb[0].mxu0
    %v2704 = vadd.f32 0.0, %v2703
    %2705 = vmatprep.mubr.bf16.mxu0 %v1054
    %2706 = vmatmul.mubr.bf16.gmra.mrb[0].mxu0 %v1000
    %v2707 = vpop.f32.mrb[0].mxu0
    %v2708 = vadd.f32 0.0, %v2707
    %v2709 = vpop.f32.mrb[0].mxu0
    %v2710 = vadd.f32 0.0, %v2709
    %v2711 = vpop.f32.mrb[0].mxu0
    %v2712 = vadd.f32 0.0, %v2711
    %v2713 = vpop.f32.mrb[0].mxu0
    %v2714 = vadd.f32 0.0, %v2713
    %2715 = vmatprep.mubr.bf16.mxu0 %v1057
    %2716 = vmatmul.mubr.bf16.gmra.mrb[0].mxu0 %v1002
    %v2717 = vpop.f32.mrb[0].mxu0
    %v2718 = vadd.f32 0.0, %v2717
    %v2719 = vpop.f32.mrb[0].mxu0
    %v2720 = vadd.f32 0.0, %v2719
    %v2721 = vpop.f32.mrb[0].mxu0
    %v2722 = vadd.f32 0.0, %v2721
    %v2723 = vpop.f32.mrb[0].mxu0
    %v2724 = vadd.f32 0.0, %v2723
    %2725 = vmatprep.mubr.bf16.mxu0 %v1060
    %2726 = vmatmul.mubr.bf16.gmra.mrb[0].mxu0 %v1004
    %v2727 = vpop.f32.mrb[0].mxu0
    %v2728 = vadd.f32 0.0, %v2727
    %v2729 = vpop.f32.mrb[0].mxu0
    %v2730 = vadd.f32 0.0, %v2729
    %v2731 = vpop.f32.mrb[0].mxu0
    %v2732 = vadd.f32 0.0, %v2731
    %v2733 = vpop.f32.mrb[0].mxu0
    %v2734 = vadd.f32 0.0, %v2733
    %2735 = vmatprep.mubr.bf16.mxu0 %v1063
    %2736 = vmatmul.mubr.bf16.gmra.mrb[0].mxu0 %v1006
    %v2737 = vpop.f32.mrb[0].mxu0
    %v2738 = vadd.f32 0.0, %v2737
    %v2739 = vpop.f32.mrb[0].mxu0
    %v2740 = vadd.f32 0.0, %v2739
    %v2741 = vpop.f32.mrb[0].mxu0
    %v2742 = vadd.f32 0.0, %v2741
    %v2743 = vpop.f32.mrb[0].mxu0
    %v2744 = vadd.f32 0.0, %v2743
    %2745 = vmatprep.mubr.bf16.mxu0 %v1066
    %2746 = vmatmul.mubr.bf16.gmra.mrb[0].mxu0 %v1008
    %v2747 = vpop.f32.mrb[0].mxu0
    %v2748 = vadd.f32 0.0, %v2747
    %v2749 = vpop.f32.mrb[0].mxu0
    %v2750 = vadd.f32 0.0, %v2749
    %v2751 = vpop.f32.mrb[0].mxu0
    %v2752 = vadd.f32 0.0, %v2751
    %v2753 = vpop.f32.mrb[0].mxu0
    %v2754 = vadd.f32 0.0, %v2753
    %2755 = vmatprep.mubr.bf16.mxu0 %v1069
    %2756 = vmatmul.mubr.bf16.gmra.mrb[0].mxu0 %v1010
    %v2757 = vpop.f32.mrb[0].mxu0
    %v2758 = vadd.f32 0.0, %v2757
    %v2759 = vpop.f32.mrb[0].mxu0
    %v2760 = vadd.f32 0.0, %v2759
    %v2761 = vpop.f32.mrb[0].mxu0
    %v2762 = vadd.f32 0.0, %v2761
    %v2763 = vpop.f32.mrb[0].mxu0
    %v2764 = vadd.f32 0.0, %v2763
    %2765 = vmatprep.mubr.bf16.mxu0 %v1072
    %2766 = vmatmul.mubr.bf16.gmra.mrb[0].mxu0 %v1012
    %v2767 = vpop.f32.mrb[0].mxu0
    %v2768 = vadd.f32 0.0, %v2767
    %v2769 = vpop.f32.mrb[0].mxu0
    %v2770 = vadd.f32 0.0, %v2769
    %v2771 = vpop.f32.mrb[0].mxu0
    %v2772 = vadd.f32 0.0, %v2771
    %v2773 = vpop.f32.mrb[0].mxu0
    %v2774 = vadd.f32 0.0, %v2773
    %2775 = vmatprep.mubr.bf16.mxu0 %v1075
    %2776 = vmatmul.mubr.bf16.gmra.mrb[0].mxu0 %v1014
    %v2777 = vpop.f32.mrb[0].mxu0
    %v2778 = vadd.f32 0.0, %v2777
    %v2779 = vpop.f32.mrb[0].mxu0
    %v2780 = vadd.f32 0.0, %v2779
    %v2781 = vpop.f32.mrb[0].mxu0
    %v2782 = vadd.f32 0.0, %v2781
    %v2783 = vpop.f32.mrb[0].mxu0
    %v2784 = vadd.f32 0.0, %v2783
    %2785 = vmatprep.mubr.bf16.mxu0 %v1078
    %2786 = vmatmul.mubr.bf16.gmra.mrb[0].mxu0 %v1016
    %v2787 = vpop.f32.mrb[0].mxu0
    %v2788 = vadd.f32 0.0, %v2787
    %v2789 = vpop.f32.mrb[0].mxu0
    %v2790 = vadd.f32 0.0, %v2789
    %v2791 = vpop.f32.mrb[0].mxu0
    %v2792 = vadd.f32 0.0, %v2791
    %v2793 = vpop.f32.mrb[0].mxu0
    %v2794 = vadd.f32 0.0, %v2793
    %2795 = vmatprep.mubr.bf16.mxu0 %v1081
    %2796 = vmatmul.mubr.bf16.gmra.mrb[0].mxu0 %v1018
    %v2797 = vpop.f32.mrb[0].mxu0
    %v2798 = vadd.f32 0.0, %v2797
    %v2799 = vpop.f32.mrb[0].mxu0
    %v2800 = vadd.f32 0.0, %v2799
    %v2801 = vpop.f32.mrb[0].mxu0
    %v2802 = vadd.f32 0.0, %v2801
    %v2803 = vpop.f32.mrb[0].mxu0
    %v2804 = vadd.f32 0.0, %v2803
    %2805 = vmatprep.mubr.bf16.mxu0 %v1084
    %2806 = vmatmul.mubr.bf16.gmra.mrb[0].mxu0 %v1020
    %v2807 = vpop.f32.mrb[0].mxu0
    %v2808 = vadd.f32 0.0, %v2807
    %v2809 = vpop.f32.mrb[0].mxu0
    %v2810 = vadd.f32 0.0, %v2809
    %v2811 = vpop.f32.mrb[0].mxu0
    %v2812 = vadd.f32 0.0, %v2811
    %v2813 = vpop.f32.mrb[0].mxu0
    %v2814 = vadd.f32 0.0, %v2813
    %2815 = vmatprep.mubr.bf16.mxu0 %v1087
    %2816 = vmatmul.mubr.bf16.gmra.mrb[0].mxu0 %v1022
    %v2817 = vpop.f32.mrb[0].mxu0
    %v2818 = vadd.f32 0.0, %v2817
    %v2819 = vpop.f32.mrb[0].mxu0
    %v2820 = vadd.f32 0.0, %v2819
    %v2821 = vpop.f32.mrb[0].mxu0
    %v2822 = vadd.f32 0.0, %v2821
    %v2823 = vpop.f32.mrb[0].mxu0
    %v2824 = vadd.f32 0.0, %v2823
    %2825 = vdwg.mxu0
    %2826 = vmatprep.subr.bf16.mxu0 %v675
    %2827 = vmatpush1.bf16.msra.mxu0 %v674
    %2828 = vmatprep.subr.bf16.mxu0 %v699
    %2829 = vmatpush1.bf16.msra.mxu0 %v698
    %2830 = vmatprep.subr.bf16.mxu0 %v723
    %2831 = vmatpush1.bf16.msra.mxu0 %v722
    %2832 = vmatprep.subr.bf16.mxu0 %v747
    %2833 = vmatpush1.bf16.msra.mxu0 %v746
    %2834 = vmatprep.subr.bf16.mxu0 %v771
    %2835 = vmatpush1.bf16.msra.mxu0 %v770
    %2836 = vmatprep.subr.bf16.mxu0 %v795
    %2837 = vmatpush1.bf16.msra.mxu0 %v794
    %2838 = vmatprep.subr.bf16.mxu0 %v819
    %2839 = vmatpush1.bf16.msra.mxu0 %v818
    %2840 = vmatprep.subr.bf16.mxu0 %v843
    %2841 = vmatpush1.bf16.msra.mxu0 %v842
    %2842 = vmatprep.subr.bf16.mxu0 %v867
    %2843 = vmatpush1.bf16.msra.mxu0 %v866
    %2844 = vmatprep.subr.bf16.mxu0 %v891
    %2845 = vmatpush1.bf16.msra.mxu0 %v890
    %2846 = vmatprep.subr.bf16.mxu0 0
    %2847 = vmatpush1.bf16.msra.mxu0 0
    %2848 = vmatprep.subr.bf16.mxu0 0
    %2849 = vmatpush1.bf16.msra.mxu0 0
    %2850 = vmatprep.subr.bf16.mxu0 0
    %2851 = vmatpush1.bf16.msra.mxu0 0
    %2852 = vmatprep.subr.bf16.mxu0 0
    %2853 = vmatpush1.bf16.msra.mxu0 0
    %2854 = vmatprep.subr.bf16.mxu0 0
    %2855 = vmatpush1.bf16.msra.mxu0 0
    %2856 = vmatprep.subr.bf16.mxu0 0
    %2857 = vmatpush1.bf16.msra.mxu0 0
    %2858 = vmatprep.mubr.bf16.mxu0 %v1042
    %2859 = vmatmul.mubr.bf16.gmra.mrb[0].mxu0 %v992
    %v2860 = vpop.f32.mrb[0].mxu0
    %v2861 = vadd.f32 0.0, %v2860
    %v2862 = vpop.f32.mrb[0].mxu0
    %v2863 = vadd.f32 0.0, %v2862
    %v2864 = vpop.f32.mrb[0].mxu0
    %v2865 = vadd.f32 0.0, %v2864
    %v2866 = vpop.f32.mrb[0].mxu0
    %v2867 = vadd.f32 0.0, %v2866
    %2868 = vmatprep.mubr.bf16.mxu0 %v1045
    %2869 = vmatmul.mubr.bf16.gmra.mrb[0].mxu0 %v994
    %v2870 = vpop.f32.mrb[0].mxu0
    %v2871 = vadd.f32 0.0, %v2870
    %v2872 = vpop.f32.mrb[0].mxu0
    %v2873 = vadd.f32 0.0, %v2872
    %v2874 = vpop.f32.mrb[0].mxu0
    %v2875 = vadd.f32 0.0, %v2874
    %v2876 = vpop.f32.mrb[0].mxu0
    %v2877 = vadd.f32 0.0, %v2876
    %2878 = vmatprep.mubr.bf16.mxu0 %v1048
    %2879 = vmatmul.mubr.bf16.gmra.mrb[0].mxu0 %v996
    %v2880 = vpop.f32.mrb[0].mxu0
    %v2881 = vadd.f32 0.0, %v2880
    %v2882 = vpop.f32.mrb[0].mxu0
    %v2883 = vadd.f32 0.0, %v2882
    %v2884 = vpop.f32.mrb[0].mxu0
    %v2885 = vadd.f32 0.0, %v2884
    %v2886 = vpop.f32.mrb[0].mxu0
    %v2887 = vadd.f32 0.0, %v2886
    %2888 = vmatprep.mubr.bf16.mxu0 %v1051
    %2889 = vmatmul.mubr.bf16.gmra.mrb[0].mxu0 %v998
    %v2890 = vpop.f32.mrb[0].mxu0
    %v2891 = vadd.f32 0.0, %v2890
    %v2892 = vpop.f32.mrb[0].mxu0
    %v2893 = vadd.f32 0.0, %v2892
    %v2894 = vpop.f32.mrb[0].mxu0
    %v2895 = vadd.f32 0.0, %v2894
    %v2896 = vpop.f32.mrb[0].mxu0
    %v2897 = vadd.f32 0.0, %v2896
    %2898 = vmatprep.mubr.bf16.mxu0 %v1054
    %2899 = vmatmul.mubr.bf16.gmra.mrb[0].mxu0 %v1000
    %v2900 = vpop.f32.mrb[0].mxu0
    %v2901 = vadd.f32 0.0, %v2900
    %v2902 = vpop.f32.mrb[0].mxu0
    %v2903 = vadd.f32 0.0, %v2902
    %v2904 = vpop.f32.mrb[0].mxu0
    %v2905 = vadd.f32 0.0, %v2904
    %v2906 = vpop.f32.mrb[0].mxu0
    %v2907 = vadd.f32 0.0, %v2906
    %2908 = vmatprep.mubr.bf16.mxu0 %v1057
    %2909 = vmatmul.mubr.bf16.gmra.mrb[0].mxu0 %v1002
    %v2910 = vpop.f32.mrb[0].mxu0
    %v2911 = vadd.f32 0.0, %v2910
    %v2912 = vpop.f32.mrb[0].mxu0
    %v2913 = vadd.f32 0.0, %v2912
    %v2914 = vpop.f32.mrb[0].mxu0
    %v2915 = vadd.f32 0.0, %v2914
    %v2916 = vpop.f32.mrb[0].mxu0
    %v2917 = vadd.f32 0.0, %v2916
    %2918 = vmatprep.mubr.bf16.mxu0 %v1060
    %2919 = vmatmul.mubr.bf16.gmra.mrb[0].mxu0 %v1004
    %v2920 = vpop.f32.mrb[0].mxu0
    %v2921 = vadd.f32 0.0, %v2920
    %v2922 = vpop.f32.mrb[0].mxu0
    %v2923 = vadd.f32 0.0, %v2922
    %v2924 = vpop.f32.mrb[0].mxu0
    %v2925 = vadd.f32 0.0, %v2924
    %v2926 = vpop.f32.mrb[0].mxu0
    %v2927 = vadd.f32 0.0, %v2926
    %2928 = vmatprep.mubr.bf16.mxu0 %v1063
    %2929 = vmatmul.mubr.bf16.gmra.mrb[0].mxu0 %v1006
    %v2930 = vpop.f32.mrb[0].mxu0
    %v2931 = vadd.f32 0.0, %v2930
    %v2932 = vpop.f32.mrb[0].mxu0
    %v2933 = vadd.f32 0.0, %v2932
    %v2934 = vpop.f32.mrb[0].mxu0
    %v2935 = vadd.f32 0.0, %v2934
    %v2936 = vpop.f32.mrb[0].mxu0
    %v2937 = vadd.f32 0.0, %v2936
    %2938 = vmatprep.mubr.bf16.mxu0 %v1066
    %2939 = vmatmul.mubr.bf16.gmra.mrb[0].mxu0 %v1008
    %v2940 = vpop.f32.mrb[0].mxu0
    %v2941 = vadd.f32 0.0, %v2940
    %v2942 = vpop.f32.mrb[0].mxu0
    %v2943 = vadd.f32 0.0, %v2942
    %v2944 = vpop.f32.mrb[0].mxu0
    %v2945 = vadd.f32 0.0, %v2944
    %v2946 = vpop.f32.mrb[0].mxu0
    %v2947 = vadd.f32 0.0, %v2946
    %2948 = vmatprep.mubr.bf16.mxu0 %v1069
    %2949 = vmatmul.mubr.bf16.gmra.mrb[0].mxu0 %v1010
    %v2950 = vpop.f32.mrb[0].mxu0
    %v2951 = vadd.f32 0.0, %v2950
    %v2952 = vpop.f32.mrb[0].mxu0
    %v2953 = vadd.f32 0.0, %v2952
    %v2954 = vpop.f32.mrb[0].mxu0
    %v2955 = vadd.f32 0.0, %v2954
    %v2956 = vpop.f32.mrb[0].mxu0
    %v2957 = vadd.f32 0.0, %v2956
    %2958 = vmatprep.mubr.bf16.mxu0 %v1072
    %2959 = vmatmul.mubr.bf16.gmra.mrb[0].mxu0 %v1012
    %v2960 = vpop.f32.mrb[0].mxu0
    %v2961 = vadd.f32 0.0, %v2960
    %v2962 = vpop.f32.mrb[0].mxu0
    %v2963 = vadd.f32 0.0, %v2962
    %v2964 = vpop.f32.mrb[0].mxu0
    %v2965 = vadd.f32 0.0, %v2964
    %v2966 = vpop.f32.mrb[0].mxu0
    %v2967 = vadd.f32 0.0, %v2966
    %2968 = vmatprep.mubr.bf16.mxu0 %v1075
    %2969 = vmatmul.mubr.bf16.gmra.mrb[0].mxu0 %v1014
    %v2970 = vpop.f32.mrb[0].mxu0
    %v2971 = vadd.f32 0.0, %v2970
    %v2972 = vpop.f32.mrb[0].mxu0
    %v2973 = vadd.f32 0.0, %v2972
    %v2974 = vpop.f32.mrb[0].mxu0
    %v2975 = vadd.f32 0.0, %v2974
    %v2976 = vpop.f32.mrb[0].mxu0
    %v2977 = vadd.f32 0.0, %v2976
    %2978 = vmatprep.mubr.bf16.mxu0 %v1078
    %2979 = vmatmul.mubr.bf16.gmra.mrb[0].mxu0 %v1016
    %v2980 = vpop.f32.mrb[0].mxu0
    %v2981 = vadd.f32 0.0, %v2980
    %v2982 = vpop.f32.mrb[0].mxu0
    %v2983 = vadd.f32 0.0, %v2982
    %v2984 = vpop.f32.mrb[0].mxu0
    %v2985 = vadd.f32 0.0, %v2984
    %v2986 = vpop.f32.mrb[0].mxu0
    %v2987 = vadd.f32 0.0, %v2986
    %2988 = vmatprep.mubr.bf16.mxu0 %v1081
    %2989 = vmatmul.mubr.bf16.gmra.mrb[0].mxu0 %v1018
    %v2990 = vpop.f32.mrb[0].mxu0
    %v2991 = vadd.f32 0.0, %v2990
    %v2992 = vpop.f32.mrb[0].mxu0
    %v2993 = vadd.f32 0.0, %v2992
    %v2994 = vpop.f32.mrb[0].mxu0
    %v2995 = vadd.f32 0.0, %v2994
    %v2996 = vpop.f32.mrb[0].mxu0
    %v2997 = vadd.f32 0.0, %v2996
    %2998 = vmatprep.mubr.bf16.mxu0 %v1084
    %2999 = vmatmul.mubr.bf16.gmra.mrb[0].mxu0 %v1020
    %v3000 = vpop.f32.mrb[0].mxu0
    %v3001 = vadd.f32 0.0, %v3000
    %v3002 = vpop.f32.mrb[0].mxu0
    %v3003 = vadd.f32 0.0, %v3002
    %v3004 = vpop.f32.mrb[0].mxu0
    %v3005 = vadd.f32 0.0, %v3004
    %v3006 = vpop.f32.mrb[0].mxu0
    %v3007 = vadd.f32 0.0, %v3006
    %3008 = vmatprep.mubr.bf16.mxu0 %v1087
    %3009 = vmatmul.mubr.bf16.gmra.mrb[0].mxu0 %v1022
    %v3010 = vpop.f32.mrb[0].mxu0
    %v3011 = vadd.f32 0.0, %v3010
    %v3012 = vpop.f32.mrb[0].mxu0
    %v3013 = vadd.f32 0.0, %v3012
    %v3014 = vpop.f32.mrb[0].mxu0
    %v3015 = vadd.f32 0.0, %v3014
    %v3016 = vpop.f32.mrb[0].mxu0
    %v3017 = vadd.f32 0.0, %v3016
    %3018 = vdwg.mxu0
    %3019 = vmatprep.subr.bf16.mxu0 %v677
    %3020 = vmatpush1.bf16.msra.mxu0 %v676
    %3021 = vmatprep.subr.bf16.mxu0 %v701
    %3022 = vmatpush1.bf16.msra.mxu0 %v700
    %3023 = vmatprep.subr.bf16.mxu0 %v725
    %3024 = vmatpush1.bf16.msra.mxu0 %v724
    %3025 = vmatprep.subr.bf16.mxu0 %v749
    %3026 = vmatpush1.bf16.msra.mxu0 %v748
    %3027 = vmatprep.subr.bf16.mxu0 %v773
    %3028 = vmatpush1.bf16.msra.mxu0 %v772
    %3029 = vmatprep.subr.bf16.mxu0 %v797
    %3030 = vmatpush1.bf16.msra.mxu0 %v796
    %3031 = vmatprep.subr.bf16.mxu0 %v821
    %3032 = vmatpush1.bf16.msra.mxu0 %v820
    %3033 = vmatprep.subr.bf16.mxu0 %v845
    %3034 = vmatpush1.bf16.msra.mxu0 %v844
    %3035 = vmatprep.subr.bf16.mxu0 %v869
    %3036 = vmatpush1.bf16.msra.mxu0 %v868
    %3037 = vmatprep.subr.bf16.mxu0 %v893
    %3038 = vmatpush1.bf16.msra.mxu0 %v892
    %3039 = vmatprep.subr.bf16.mxu0 0
    %3040 = vmatpush1.bf16.msra.mxu0 0
    %3041 = vmatprep.subr.bf16.mxu0 0
    %3042 = vmatpush1.bf16.msra.mxu0 0
    %3043 = vmatprep.subr.bf16.mxu0 0
    %3044 = vmatpush1.bf16.msra.mxu0 0
    %3045 = vmatprep.subr.bf16.mxu0 0
    %3046 = vmatpush1.bf16.msra.mxu0 0
    %3047 = vmatprep.subr.bf16.mxu0 0
    %3048 = vmatpush1.bf16.msra.mxu0 0
    %3049 = vmatprep.subr.bf16.mxu0 0
    %3050 = vmatpush1.bf16.msra.mxu0 0
    %3051 = vmatprep.mubr.bf16.mxu0 %v1042
    %3052 = vmatmul.mubr.bf16.gmra.mrb[0].mxu0 %v992
    %v3053 = vpop.f32.mrb[0].mxu0
    %v3054 = vadd.f32 0.0, %v3053
    %v3055 = vpop.f32.mrb[0].mxu0
    %v3056 = vadd.f32 0.0, %v3055
    %v3057 = vpop.f32.mrb[0].mxu0
    %v3058 = vadd.f32 0.0, %v3057
    %v3059 = vpop.f32.mrb[0].mxu0
    %v3060 = vadd.f32 0.0, %v3059
    %3061 = vmatprep.mubr.bf16.mxu0 %v1045
    %3062 = vmatmul.mubr.bf16.gmra.mrb[0].mxu0 %v994
    %v3063 = vpop.f32.mrb[0].mxu0
    %v3064 = vadd.f32 0.0, %v3063
    %v3065 = vpop.f32.mrb[0].mxu0
    %v3066 = vadd.f32 0.0, %v3065
    %v3067 = vpop.f32.mrb[0].mxu0
    %v3068 = vadd.f32 0.0, %v3067
    %v3069 = vpop.f32.mrb[0].mxu0
    %v3070 = vadd.f32 0.0, %v3069
    %3071 = vmatprep.mubr.bf16.mxu0 %v1048
    %3072 = vmatmul.mubr.bf16.gmra.mrb[0].mxu0 %v996
    %v3073 = vpop.f32.mrb[0].mxu0
    %v3074 = vadd.f32 0.0, %v3073
    %v3075 = vpop.f32.mrb[0].mxu0
    %v3076 = vadd.f32 0.0, %v3075
    %v3077 = vpop.f32.mrb[0].mxu0
    %v3078 = vadd.f32 0.0, %v3077
    %v3079 = vpop.f32.mrb[0].mxu0
    %v3080 = vadd.f32 0.0, %v3079
    %3081 = vmatprep.mubr.bf16.mxu0 %v1051
    %3082 = vmatmul.mubr.bf16.gmra.mrb[0].mxu0 %v998
    %v3083 = vpop.f32.mrb[0].mxu0
    %v3084 = vadd.f32 0.0, %v3083
    %v3085 = vpop.f32.mrb[0].mxu0
    %v3086 = vadd.f32 0.0, %v3085
    %v3087 = vpop.f32.mrb[0].mxu0
    %v3088 = vadd.f32 0.0, %v3087
    %v3089 = vpop.f32.mrb[0].mxu0
    %v3090 = vadd.f32 0.0, %v3089
    %3091 = vmatprep.mubr.bf16.mxu0 %v1054
    %3092 = vmatmul.mubr.bf16.gmra.mrb[0].mxu0 %v1000
    %v3093 = vpop.f32.mrb[0].mxu0
    %v3094 = vadd.f32 0.0, %v3093
    %v3095 = vpop.f32.mrb[0].mxu0
    %v3096 = vadd.f32 0.0, %v3095
    %v3097 = vpop.f32.mrb[0].mxu0
    %v3098 = vadd.f32 0.0, %v3097
    %v3099 = vpop.f32.mrb[0].mxu0
    %v3100 = vadd.f32 0.0, %v3099
    %3101 = vmatprep.mubr.bf16.mxu0 %v1057
    %3102 = vmatmul.mubr.bf16.gmra.mrb[0].mxu0 %v1002
    %v3103 = vpop.f32.mrb[0].mxu0
    %v3104 = vadd.f32 0.0, %v3103
    %v3105 = vpop.f32.mrb[0].mxu0
    %v3106 = vadd.f32 0.0, %v3105
    %v3107 = vpop.f32.mrb[0].mxu0
    %v3108 = vadd.f32 0.0, %v3107
    %v3109 = vpop.f32.mrb[0].mxu0
    %v3110 = vadd.f32 0.0, %v3109
    %3111 = vmatprep.mubr.bf16.mxu0 %v1060
    %3112 = vmatmul.mubr.bf16.gmra.mrb[0].mxu0 %v1004
    %v3113 = vpop.f32.mrb[0].mxu0
    %v3114 = vadd.f32 0.0, %v3113
    %v3115 = vpop.f32.mrb[0].mxu0
    %v3116 = vadd.f32 0.0, %v3115
    %v3117 = vpop.f32.mrb[0].mxu0
    %v3118 = vadd.f32 0.0, %v3117
    %v3119 = vpop.f32.mrb[0].mxu0
    %v3120 = vadd.f32 0.0, %v3119
    %3121 = vmatprep.mubr.bf16.mxu0 %v1063
    %3122 = vmatmul.mubr.bf16.gmra.mrb[0].mxu0 %v1006
    %v3123 = vpop.f32.mrb[0].mxu0
    %v3124 = vadd.f32 0.0, %v3123
    %v3125 = vpop.f32.mrb[0].mxu0
    %v3126 = vadd.f32 0.0, %v3125
    %v3127 = vpop.f32.mrb[0].mxu0
    %v3128 = vadd.f32 0.0, %v3127
    %v3129 = vpop.f32.mrb[0].mxu0
    %v3130 = vadd.f32 0.0, %v3129
    %3131 = vmatprep.mubr.bf16.mxu0 %v1066
    %3132 = vmatmul.mubr.bf16.gmra.mrb[0].mxu0 %v1008
    %v3133 = vpop.f32.mrb[0].mxu0
    %v3134 = vadd.f32 0.0, %v3133
    %v3135 = vpop.f32.mrb[0].mxu0
    %v3136 = vadd.f32 0.0, %v3135
    %v3137 = vpop.f32.mrb[0].mxu0
    %v3138 = vadd.f32 0.0, %v3137
    %v3139 = vpop.f32.mrb[0].mxu0
    %v3140 = vadd.f32 0.0, %v3139
    %3141 = vmatprep.mubr.bf16.mxu0 %v1069
    %3142 = vmatmul.mubr.bf16.gmra.mrb[0].mxu0 %v1010
    %v3143 = vpop.f32.mrb[0].mxu0
    %v3144 = vadd.f32 0.0, %v3143
    %v3145 = vpop.f32.mrb[0].mxu0
    %v3146 = vadd.f32 0.0, %v3145
    %v3147 = vpop.f32.mrb[0].mxu0
    %v3148 = vadd.f32 0.0, %v3147
    %v3149 = vpop.f32.mrb[0].mxu0
    %v3150 = vadd.f32 0.0, %v3149
    %3151 = vmatprep.mubr.bf16.mxu0 %v1072
    %3152 = vmatmul.mubr.bf16.gmra.mrb[0].mxu0 %v1012
    %v3153 = vpop.f32.mrb[0].mxu0
    %v3154 = vadd.f32 0.0, %v3153
    %v3155 = vpop.f32.mrb[0].mxu0
    %v3156 = vadd.f32 0.0, %v3155
    %v3157 = vpop.f32.mrb[0].mxu0
    %v3158 = vadd.f32 0.0, %v3157
    %v3159 = vpop.f32.mrb[0].mxu0
    %v3160 = vadd.f32 0.0, %v3159
    %3161 = vmatprep.mubr.bf16.mxu0 %v1075
    %3162 = vmatmul.mubr.bf16.gmra.mrb[0].mxu0 %v1014
    %v3163 = vpop.f32.mrb[0].mxu0
    %v3164 = vadd.f32 0.0, %v3163
    %v3165 = vpop.f32.mrb[0].mxu0
    %v3166 = vadd.f32 0.0, %v3165
    %v3167 = vpop.f32.mrb[0].mxu0
    %v3168 = vadd.f32 0.0, %v3167
    %v3169 = vpop.f32.mrb[0].mxu0
    %v3170 = vadd.f32 0.0, %v3169
    %3171 = vmatprep.mubr.bf16.mxu0 %v1078
    %3172 = vmatmul.mubr.bf16.gmra.mrb[0].mxu0 %v1016
    %v3173 = vpop.f32.mrb[0].mxu0
    %v3174 = vadd.f32 0.0, %v3173
    %v3175 = vpop.f32.mrb[0].mxu0
    %v3176 = vadd.f32 0.0, %v3175
    %v3177 = vpop.f32.mrb[0].mxu0
    %v3178 = vadd.f32 0.0, %v3177
    %v3179 = vpop.f32.mrb[0].mxu0
    %v3180 = vadd.f32 0.0, %v3179
    %3181 = vmatprep.mubr.bf16.mxu0 %v1081
    %3182 = vmatmul.mubr.bf16.gmra.mrb[0].mxu0 %v1018
    %v3183 = vpop.f32.mrb[0].mxu0
    %v3184 = vadd.f32 0.0, %v3183
    %v3185 = vpop.f32.mrb[0].mxu0
    %v3186 = vadd.f32 0.0, %v3185
    %v3187 = vpop.f32.mrb[0].mxu0
    %v3188 = vadd.f32 0.0, %v3187
    %v3189 = vpop.f32.mrb[0].mxu0
    %v3190 = vadd.f32 0.0, %v3189
    %3191 = vmatprep.mubr.bf16.mxu0 %v1084
    %3192 = vmatmul.mubr.bf16.gmra.mrb[0].mxu0 %v1020
    %v3193 = vpop.f32.mrb[0].mxu0
    %v3194 = vadd.f32 0.0, %v3193
    %v3195 = vpop.f32.mrb[0].mxu0
    %v3196 = vadd.f32 0.0, %v3195
    %v3197 = vpop.f32.mrb[0].mxu0
    %v3198 = vadd.f32 0.0, %v3197
    %v3199 = vpop.f32.mrb[0].mxu0
    %v3200 = vadd.f32 0.0, %v3199
    %3201 = vmatprep.mubr.bf16.mxu0 %v1087
    %3202 = vmatmul.mubr.bf16.gmra.mrb[0].mxu0 %v1022
    %v3203 = vpop.f32.mrb[0].mxu0
    %v3204 = vadd.f32 0.0, %v3203
    %v3205 = vpop.f32.mrb[0].mxu0
    %v3206 = vadd.f32 0.0, %v3205
    %v3207 = vpop.f32.mrb[0].mxu0
    %v3208 = vadd.f32 0.0, %v3207
    %v3209 = vpop.f32.mrb[0].mxu0
    %v3210 = vadd.f32 0.0, %v3209
    %3211 = vdwg.mxu0
    %3212 = vmatprep.subr.bf16.mxu0 %v679
    %3213 = vmatpush1.bf16.msra.mxu0 %v678
    %3214 = vmatprep.subr.bf16.mxu0 %v703
    %3215 = vmatpush1.bf16.msra.mxu0 %v702
    %3216 = vmatprep.subr.bf16.mxu0 %v727
    %3217 = vmatpush1.bf16.msra.mxu0 %v726
    %3218 = vmatprep.subr.bf16.mxu0 %v751
    %3219 = vmatpush1.bf16.msra.mxu0 %v750
    %3220 = vmatprep.subr.bf16.mxu0 %v775
    %3221 = vmatpush1.bf16.msra.mxu0 %v774
    %3222 = vmatprep.subr.bf16.mxu0 %v799
    %3223 = vmatpush1.bf16.msra.mxu0 %v798
    %3224 = vmatprep.subr.bf16.mxu0 %v823
    %3225 = vmatpush1.bf16.msra.mxu0 %v822
    %3226 = vmatprep.subr.bf16.mxu0 %v847
    %3227 = vmatpush1.bf16.msra.mxu0 %v846
    %3228 = vmatprep.subr.bf16.mxu0 %v871
    %3229 = vmatpush1.bf16.msra.mxu0 %v870
    %3230 = vmatprep.subr.bf16.mxu0 %v895
    %3231 = vmatpush1.bf16.msra.mxu0 %v894
    %3232 = vmatprep.subr.bf16.mxu0 0
    %3233 = vmatpush1.bf16.msra.mxu0 0
    %3234 = vmatprep.subr.bf16.mxu0 0
    %3235 = vmatpush1.bf16.msra.mxu0 0
    %3236 = vmatprep.subr.bf16.mxu0 0
    %3237 = vmatpush1.bf16.msra.mxu0 0
    %3238 = vmatprep.subr.bf16.mxu0 0
    %3239 = vmatpush1.bf16.msra.mxu0 0
    %3240 = vmatprep.subr.bf16.mxu0 0
    %3241 = vmatpush1.bf16.msra.mxu0 0
    %3242 = vmatprep.subr.bf16.mxu0 0
    %3243 = vmatpush1.bf16.msra.mxu0 0
    %3244 = vmatprep.mubr.bf16.mxu0 %v1042
    %3245 = vmatmul.mubr.bf16.gmra.mrb[0].mxu0 %v992
    %v3246 = vpop.f32.mrb[0].mxu0
    %v3247 = vadd.f32 0.0, %v3246
    %v3248 = vpop.f32.mrb[0].mxu0
    %v3249 = vadd.f32 0.0, %v3248
    %v3250 = vpop.f32.mrb[0].mxu0
    %v3251 = vadd.f32 0.0, %v3250
    %v3252 = vpop.f32.mrb[0].mxu0
    %v3253 = vadd.f32 0.0, %v3252
    %3254 = vmatprep.mubr.bf16.mxu0 %v1045
    %3255 = vmatmul.mubr.bf16.gmra.mrb[0].mxu0 %v994
    %v3256 = vpop.f32.mrb[0].mxu0
    %v3257 = vadd.f32 0.0, %v3256
    %v3258 = vpop.f32.mrb[0].mxu0
    %v3259 = vadd.f32 0.0, %v3258
    %v3260 = vpop.f32.mrb[0].mxu0
    %v3261 = vadd.f32 0.0, %v3260
    %v3262 = vpop.f32.mrb[0].mxu0
    %v3263 = vadd.f32 0.0, %v3262
    %3264 = vmatprep.mubr.bf16.mxu0 %v1048
    %3265 = vmatmul.mubr.bf16.gmra.mrb[0].mxu0 %v996
    %v3266 = vpop.f32.mrb[0].mxu0
    %v3267 = vadd.f32 0.0, %v3266
    %v3268 = vpop.f32.mrb[0].mxu0
    %v3269 = vadd.f32 0.0, %v3268
    %v3270 = vpop.f32.mrb[0].mxu0
    %v3271 = vadd.f32 0.0, %v3270
    %v3272 = vpop.f32.mrb[0].mxu0
    %v3273 = vadd.f32 0.0, %v3272
    %3274 = vmatprep.mubr.bf16.mxu0 %v1051
    %3275 = vmatmul.mubr.bf16.gmra.mrb[0].mxu0 %v998
    %v3276 = vpop.f32.mrb[0].mxu0
    %v3277 = vadd.f32 0.0, %v3276
    %v3278 = vpop.f32.mrb[0].mxu0
    %v3279 = vadd.f32 0.0, %v3278
    %v3280 = vpop.f32.mrb[0].mxu0
    %v3281 = vadd.f32 0.0, %v3280
    %v3282 = vpop.f32.mrb[0].mxu0
    %v3283 = vadd.f32 0.0, %v3282
    %3284 = vmatprep.mubr.bf16.mxu0 %v1054
    %3285 = vmatmul.mubr.bf16.gmra.mrb[0].mxu0 %v1000
    %v3286 = vpop.f32.mrb[0].mxu0
    %v3287 = vadd.f32 0.0, %v3286
    %v3288 = vpop.f32.mrb[0].mxu0
    %v3289 = vadd.f32 0.0, %v3288
    %v3290 = vpop.f32.mrb[0].mxu0
    %v3291 = vadd.f32 0.0, %v3290
    %v3292 = vpop.f32.mrb[0].mxu0
    %v3293 = vadd.f32 0.0, %v3292
    %3294 = vmatprep.mubr.bf16.mxu0 %v1057
    %3295 = vmatmul.mubr.bf16.gmra.mrb[0].mxu0 %v1002
    %v3296 = vpop.f32.mrb[0].mxu0
    %v3297 = vadd.f32 0.0, %v3296
    %v3298 = vpop.f32.mrb[0].mxu0
    %v3299 = vadd.f32 0.0, %v3298
    %v3300 = vpop.f32.mrb[0].mxu0
    %v3301 = vadd.f32 0.0, %v3300
    %v3302 = vpop.f32.mrb[0].mxu0
    %v3303 = vadd.f32 0.0, %v3302
    %3304 = vmatprep.mubr.bf16.mxu0 %v1060
    %3305 = vmatmul.mubr.bf16.gmra.mrb[0].mxu0 %v1004
    %v3306 = vpop.f32.mrb[0].mxu0
    %v3307 = vadd.f32 0.0, %v3306
    %v3308 = vpop.f32.mrb[0].mxu0
    %v3309 = vadd.f32 0.0, %v3308
    %v3310 = vpop.f32.mrb[0].mxu0
    %v3311 = vadd.f32 0.0, %v3310
    %v3312 = vpop.f32.mrb[0].mxu0
    %v3313 = vadd.f32 0.0, %v3312
    %3314 = vmatprep.mubr.bf16.mxu0 %v1063
    %3315 = vmatmul.mubr.bf16.gmra.mrb[0].mxu0 %v1006
    %v3316 = vpop.f32.mrb[0].mxu0
    %v3317 = vadd.f32 0.0, %v3316
    %v3318 = vpop.f32.mrb[0].mxu0
    %v3319 = vadd.f32 0.0, %v3318
    %v3320 = vpop.f32.mrb[0].mxu0
    %v3321 = vadd.f32 0.0, %v3320
    %v3322 = vpop.f32.mrb[0].mxu0
    %v3323 = vadd.f32 0.0, %v3322
    %3324 = vmatprep.mubr.bf16.mxu0 %v1066
    %3325 = vmatmul.mubr.bf16.gmra.mrb[0].mxu0 %v1008
    %v3326 = vpop.f32.mrb[0].mxu0
    %v3327 = vadd.f32 0.0, %v3326
    %v3328 = vpop.f32.mrb[0].mxu0
    %v3329 = vadd.f32 0.0, %v3328
    %v3330 = vpop.f32.mrb[0].mxu0
    %v3331 = vadd.f32 0.0, %v3330
    %v3332 = vpop.f32.mrb[0].mxu0
    %v3333 = vadd.f32 0.0, %v3332
    %3334 = vmatprep.mubr.bf16.mxu0 %v1069
    %3335 = vmatmul.mubr.bf16.gmra.mrb[0].mxu0 %v1010
    %v3336 = vpop.f32.mrb[0].mxu0
    %v3337 = vadd.f32 0.0, %v3336
    %v3338 = vpop.f32.mrb[0].mxu0
    %v3339 = vadd.f32 0.0, %v3338
    %v3340 = vpop.f32.mrb[0].mxu0
    %v3341 = vadd.f32 0.0, %v3340
    %v3342 = vpop.f32.mrb[0].mxu0
    %v3343 = vadd.f32 0.0, %v3342
    %3344 = vmatprep.mubr.bf16.mxu0 %v1072
    %3345 = vmatmul.mubr.bf16.gmra.mrb[0].mxu0 %v1012
    %v3346 = vpop.f32.mrb[0].mxu0
    %v3347 = vadd.f32 0.0, %v3346
    %v3348 = vpop.f32.mrb[0].mxu0
    %v3349 = vadd.f32 0.0, %v3348
    %v3350 = vpop.f32.mrb[0].mxu0
    %v3351 = vadd.f32 0.0, %v3350
    %v3352 = vpop.f32.mrb[0].mxu0
    %v3353 = vadd.f32 0.0, %v3352
    %3354 = vmatprep.mubr.bf16.mxu0 %v1075
    %3355 = vmatmul.mubr.bf16.gmra.mrb[0].mxu0 %v1014
    %v3356 = vpop.f32.mrb[0].mxu0
    %v3357 = vadd.f32 0.0, %v3356
    %v3358 = vpop.f32.mrb[0].mxu0
    %v3359 = vadd.f32 0.0, %v3358
    %v3360 = vpop.f32.mrb[0].mxu0
    %v3361 = vadd.f32 0.0, %v3360
    %v3362 = vpop.f32.mrb[0].mxu0
    %v3363 = vadd.f32 0.0, %v3362
    %3364 = vmatprep.mubr.bf16.mxu0 %v1078
    %3365 = vmatmul.mubr.bf16.gmra.mrb[0].mxu0 %v1016
    %v3366 = vpop.f32.mrb[0].mxu0
    %v3367 = vadd.f32 0.0, %v3366
    %v3368 = vpop.f32.mrb[0].mxu0
    %v3369 = vadd.f32 0.0, %v3368
    %v3370 = vpop.f32.mrb[0].mxu0
    %v3371 = vadd.f32 0.0, %v3370
    %v3372 = vpop.f32.mrb[0].mxu0
    %v3373 = vadd.f32 0.0, %v3372
    %3374 = vmatprep.mubr.bf16.mxu0 %v1081
    %3375 = vmatmul.mubr.bf16.gmra.mrb[0].mxu0 %v1018
    %v3376 = vpop.f32.mrb[0].mxu0
    %v3377 = vadd.f32 0.0, %v3376
    %v3378 = vpop.f32.mrb[0].mxu0
    %v3379 = vadd.f32 0.0, %v3378
    %v3380 = vpop.f32.mrb[0].mxu0
    %v3381 = vadd.f32 0.0, %v3380
    %v3382 = vpop.f32.mrb[0].mxu0
    %v3383 = vadd.f32 0.0, %v3382
    %3384 = vmatprep.mubr.bf16.mxu0 %v1084
    %3385 = vmatmul.mubr.bf16.gmra.mrb[0].mxu0 %v1020
    %v3386 = vpop.f32.mrb[0].mxu0
    %v3387 = vadd.f32 0.0, %v3386
    %v3388 = vpop.f32.mrb[0].mxu0
    %v3389 = vadd.f32 0.0, %v3388
    %v3390 = vpop.f32.mrb[0].mxu0
    %v3391 = vadd.f32 0.0, %v3390
    %v3392 = vpop.f32.mrb[0].mxu0
    %v3393 = vadd.f32 0.0, %v3392
    %3394 = vmatprep.mubr.bf16.mxu0 %v1087
    %3395 = vmatmul.mubr.bf16.gmra.mrb[0].mxu0 %v1022
    %v3396 = vpop.f32.mrb[0].mxu0
    %v3397 = vadd.f32 0.0, %v3396
    %v3398 = vpop.f32.mrb[0].mxu0
    %v3399 = vadd.f32 0.0, %v3398
    %v3400 = vpop.f32.mrb[0].mxu0
    %v3401 = vadd.f32 0.0, %v3400
    %v3402 = vpop.f32.mrb[0].mxu0
    %v3403 = vadd.f32 0.0, %v3402
    %3404 = vdwg.mxu0
    %v3405 = vmax.f32 %v1124, %v1204
    %v3406 = vmax.f32 %v1126, %v1206
    %v3407 = vmax.f32 %v1317, %v1397
    %v3408 = vmax.f32 %v1319, %v1399
    %v3409 = vmax.f32 %v1510, %v1590
    %v3410 = vmax.f32 %v1512, %v1592
    %v3411 = vmax.f32 %v1703, %v1783
    %v3412 = vmax.f32 %v1705, %v1785
    %v3413 = vmax.f32 %v1896, %v1976
    %v3414 = vmax.f32 %v1898, %v1978
    %v3415 = vmax.f32 %v2089, %v2169
    %v3416 = vmax.f32 %v2091, %v2171
    %v3417 = vmax.f32 %v2282, %v2362
    %v3418 = vmax.f32 %v2284, %v2364
    %v3419 = vmax.f32 %v2475, %v2555
    %v3420 = vmax.f32 %v2477, %v2557
    %v3421 = vmax.f32 %v2668, %v2748
    %v3422 = vmax.f32 %v2670, %v2750
    %v3423 = vmax.f32 %v2861, %v2941
    %v3424 = vmax.f32 %v2863, %v2943
    %v3425 = vmax.f32 %v3054, %v3134
    %v3426 = vmax.f32 %v3056, %v3136
    %v3427 = vmax.f32 %v3247, %v3327
    %v3428 = vmax.f32 %v3249, %v3329
    %v3429 = vmax.f32 %v1128, %v1208
    %v3430 = vmax.f32 %v1130, %v1210
    %v3431 = vmax.f32 %v1321, %v1401
    %v3432 = vmax.f32 %v1323, %v1403
    %v3433 = vmax.f32 %v1514, %v1594
    %v3434 = vmax.f32 %v1516, %v1596
    %v3435 = vmax.f32 %v1707, %v1787
    %v3436 = vmax.f32 %v1709, %v1789
    %v3437 = vmax.f32 %v1900, %v1980
    %v3438 = vmax.f32 %v1902, %v1982
    %v3439 = vmax.f32 %v2093, %v2173
    %v3440 = vmax.f32 %v2095, %v2175
    %v3441 = vmax.f32 %v2286, %v2366
    %v3442 = vmax.f32 %v2288, %v2368
    %v3443 = vmax.f32 %v2479, %v2559
    %v3444 = vmax.f32 %v2481, %v2561
    %v3445 = vmax.f32 %v2672, %v2752
    %v3446 = vmax.f32 %v2674, %v2754
    %v3447 = vmax.f32 %v2865, %v2945
    %v3448 = vmax.f32 %v2867, %v2947
    %v3449 = vmax.f32 %v3058, %v3138
    %v3450 = vmax.f32 %v3060, %v3140
    %v3451 = vmax.f32 %v3251, %v3331
    %v3452 = vmax.f32 %v3253, %v3333
    %v3453 = vmax.f32 %v1134, %v1214
    %v3454 = vmax.f32 %v1136, %v1216
    %v3455 = vmax.f32 %v1327, %v1407
    %v3456 = vmax.f32 %v1329, %v1409
    %v3457 = vmax.f32 %v1520, %v1600
    %v3458 = vmax.f32 %v1522, %v1602
    %v3459 = vmax.f32 %v1713, %v1793
    %v3460 = vmax.f32 %v1715, %v1795
    %v3461 = vmax.f32 %v1906, %v1986
    %v3462 = vmax.f32 %v1908, %v1988
    %v3463 = vmax.f32 %v2099, %v2179
    %v3464 = vmax.f32 %v2101, %v2181
    %v3465 = vmax.f32 %v2292, %v2372
    %v3466 = vmax.f32 %v2294, %v2374
    %v3467 = vmax.f32 %v2485, %v2565
    %v3468 = vmax.f32 %v2487, %v2567
    %v3469 = vmax.f32 %v2678, %v2758
    %v3470 = vmax.f32 %v2680, %v2760
    %v3471 = vmax.f32 %v2871, %v2951
    %v3472 = vmax.f32 %v2873, %v2953
    %v3473 = vmax.f32 %v3064, %v3144
    %v3474 = vmax.f32 %v3066, %v3146
    %v3475 = vmax.f32 %v3257, %v3337
    %v3476 = vmax.f32 %v3259, %v3339
    %v3477 = vmax.f32 %v1138, %v1218
    %v3478 = vmax.f32 %v1140, %v1220
    %v3479 = vmax.f32 %v1331, %v1411
    %v3480 = vmax.f32 %v1333, %v1413
    %v3481 = vmax.f32 %v1524, %v1604
    %v3482 = vmax.f32 %v1526, %v1606
    %v3483 = vmax.f32 %v1717, %v1797
    %v3484 = vmax.f32 %v1719, %v1799
    %v3485 = vmax.f32 %v1910, %v1990
    %v3486 = vmax.f32 %v1912, %v1992
    %v3487 = vmax.f32 %v2103, %v2183
    %v3488 = vmax.f32 %v2105, %v2185
    %v3489 = vmax.f32 %v2296, %v2376
    %v3490 = vmax.f32 %v2298, %v2378
    %v3491 = vmax.f32 %v2489, %v2569
    %v3492 = vmax.f32 %v2491, %v2571
    %v3493 = vmax.f32 %v2682, %v2762
    %v3494 = vmax.f32 %v2684, %v2764
    %v3495 = vmax.f32 %v2875, %v2955
    %v3496 = vmax.f32 %v2877, %v2957
    %v3497 = vmax.f32 %v3068, %v3148
    %v3498 = vmax.f32 %v3070, %v3150
    %v3499 = vmax.f32 %v3261, %v3341
    %v3500 = vmax.f32 %v3263, %v3343
    %v3501 = vmax.f32 %v1144, %v1224
    %v3502 = vmax.f32 %v1146, %v1226
    %v3503 = vmax.f32 %v1337, %v1417
    %v3504 = vmax.f32 %v1339, %v1419
    %v3505 = vmax.f32 %v1530, %v1610
    %v3506 = vmax.f32 %v1532, %v1612
    %v3507 = vmax.f32 %v1723, %v1803
    %v3508 = vmax.f32 %v1725, %v1805
    %v3509 = vmax.f32 %v1916, %v1996
    %v3510 = vmax.f32 %v1918, %v1998
    %v3511 = vmax.f32 %v2109, %v2189
    %v3512 = vmax.f32 %v2111, %v2191
    %v3513 = vmax.f32 %v2302, %v2382
    %v3514 = vmax.f32 %v2304, %v2384
    %v3515 = vmax.f32 %v2495, %v2575
    %v3516 = vmax.f32 %v2497, %v2577
    %v3517 = vmax.f32 %v2688, %v2768
    %v3518 = vmax.f32 %v2690, %v2770
    %v3519 = vmax.f32 %v2881, %v2961
    %v3520 = vmax.f32 %v2883, %v2963
    %v3521 = vmax.f32 %v3074, %v3154
    %v3522 = vmax.f32 %v3076, %v3156
    %v3523 = vmax.f32 %v3267, %v3347
    %v3524 = vmax.f32 %v3269, %v3349
    %v3525 = vmax.f32 %v1148, %v1228
    %v3526 = vmax.f32 %v1150, %v1230
    %v3527 = vmax.f32 %v1341, %v1421
    %v3528 = vmax.f32 %v1343, %v1423
    %v3529 = vmax.f32 %v1534, %v1614
    %v3530 = vmax.f32 %v1536, %v1616
    %v3531 = vmax.f32 %v1727, %v1807
    %v3532 = vmax.f32 %v1729, %v1809
    %v3533 = vmax.f32 %v1920, %v2000
    %v3534 = vmax.f32 %v1922, %v2002
    %v3535 = vmax.f32 %v2113, %v2193
    %v3536 = vmax.f32 %v2115, %v2195
    %v3537 = vmax.f32 %v2306, %v2386
    %v3538 = vmax.f32 %v2308, %v2388
    %v3539 = vmax.f32 %v2499, %v2579
    %v3540 = vmax.f32 %v2501, %v2581
    %v3541 = vmax.f32 %v2692, %v2772
    %v3542 = vmax.f32 %v2694, %v2774
    %v3543 = vmax.f32 %v2885, %v2965
    %v3544 = vmax.f32 %v2887, %v2967
    %v3545 = vmax.f32 %v3078, %v3158
    %v3546 = vmax.f32 %v3080, %v3160
    %v3547 = vmax.f32 %v3271, %v3351
    %v3548 = vmax.f32 %v3273, %v3353
    %v3549 = vmax.f32 %v1154, %v1234
    %v3550 = vmax.f32 %v1156, %v1236
    %v3551 = vmax.f32 %v1347, %v1427
    %v3552 = vmax.f32 %v1349, %v1429
    %v3553 = vmax.f32 %v1540, %v1620
    %v3554 = vmax.f32 %v1542, %v1622
    %v3555 = vmax.f32 %v1733, %v1813
    %v3556 = vmax.f32 %v1735, %v1815
    %v3557 = vmax.f32 %v1926, %v2006
    %v3558 = vmax.f32 %v1928, %v2008
    %v3559 = vmax.f32 %v2119, %v2199
    %v3560 = vmax.f32 %v2121, %v2201
    %v3561 = vmax.f32 %v2312, %v2392
    %v3562 = vmax.f32 %v2314, %v2394
    %v3563 = vmax.f32 %v2505, %v2585
    %v3564 = vmax.f32 %v2507, %v2587
    %v3565 = vmax.f32 %v2698, %v2778
    %v3566 = vmax.f32 %v2700, %v2780
    %v3567 = vmax.f32 %v2891, %v2971
    %v3568 = vmax.f32 %v2893, %v2973
    %v3569 = vmax.f32 %v3084, %v3164
    %v3570 = vmax.f32 %v3086, %v3166
    %v3571 = vmax.f32 %v3277, %v3357
    %v3572 = vmax.f32 %v3279, %v3359
    %v3573 = vmax.f32 %v1158, %v1238
    %v3574 = vmax.f32 %v1160, %v1240
    %v3575 = vmax.f32 %v1351, %v1431
    %v3576 = vmax.f32 %v1353, %v1433
    %v3577 = vmax.f32 %v1544, %v1624
    %v3578 = vmax.f32 %v1546, %v1626
    %v3579 = vmax.f32 %v1737, %v1817
    %v3580 = vmax.f32 %v1739, %v1819
    %v3581 = vmax.f32 %v1930, %v2010
    %v3582 = vmax.f32 %v1932, %v2012
    %v3583 = vmax.f32 %v2123, %v2203
    %v3584 = vmax.f32 %v2125, %v2205
    %v3585 = vmax.f32 %v2316, %v2396
    %v3586 = vmax.f32 %v2318, %v2398
    %v3587 = vmax.f32 %v2509, %v2589
    %v3588 = vmax.f32 %v2511, %v2591
    %v3589 = vmax.f32 %v2702, %v2782
    %v3590 = vmax.f32 %v2704, %v2784
    %v3591 = vmax.f32 %v2895, %v2975
    %v3592 = vmax.f32 %v2897, %v2977
    %v3593 = vmax.f32 %v3088, %v3168
    %v3594 = vmax.f32 %v3090, %v3170
    %v3595 = vmax.f32 %v3281, %v3361
    %v3596 = vmax.f32 %v3283, %v3363
    %v3597 = vmax.f32 %v1164, %v1244
    %v3598 = vmax.f32 %v1166, %v1246
    %v3599 = vmax.f32 %v1357, %v1437
    %v3600 = vmax.f32 %v1359, %v1439
    %v3601 = vmax.f32 %v1550, %v1630
    %v3602 = vmax.f32 %v1552, %v1632
    %v3603 = vmax.f32 %v1743, %v1823
    %v3604 = vmax.f32 %v1745, %v1825
    %v3605 = vmax.f32 %v1936, %v2016
    %v3606 = vmax.f32 %v1938, %v2018
    %v3607 = vmax.f32 %v2129, %v2209
    %v3608 = vmax.f32 %v2131, %v2211
    %v3609 = vmax.f32 %v2322, %v2402
    %v3610 = vmax.f32 %v2324, %v2404
    %v3611 = vmax.f32 %v2515, %v2595
    %v3612 = vmax.f32 %v2517, %v2597
    %v3613 = vmax.f32 %v2708, %v2788
    %v3614 = vmax.f32 %v2710, %v2790
    %v3615 = vmax.f32 %v2901, %v2981
    %v3616 = vmax.f32 %v2903, %v2983
    %v3617 = vmax.f32 %v3094, %v3174
    %v3618 = vmax.f32 %v3096, %v3176
    %v3619 = vmax.f32 %v3287, %v3367
    %v3620 = vmax.f32 %v3289, %v3369
    %v3621 = vmax.f32 %v1168, %v1248
    %v3622 = vmax.f32 %v1170, %v1250
    %v3623 = vmax.f32 %v1361, %v1441
    %v3624 = vmax.f32 %v1363, %v1443
    %v3625 = vmax.f32 %v1554, %v1634
    %v3626 = vmax.f32 %v1556, %v1636
    %v3627 = vmax.f32 %v1747, %v1827
    %v3628 = vmax.f32 %v1749, %v1829
    %v3629 = vmax.f32 %v1940, %v2020
    %v3630 = vmax.f32 %v1942, %v2022
    %v3631 = vmax.f32 %v2133, %v2213
    %v3632 = vmax.f32 %v2135, %v2215
    %v3633 = vmax.f32 %v2326, %v2406
    %v3634 = vmax.f32 %v2328, %v2408
    %v3635 = vmax.f32 %v2519, %v2599
    %v3636 = vmax.f32 %v2521, %v2601
    %v3637 = vmax.f32 %v2712, %v2792
    %v3638 = vmax.f32 %v2714, %v2794
    %v3639 = vmax.f32 %v2905, %v2985
    %v3640 = vmax.f32 %v2907, %v2987
    %v3641 = vmax.f32 %v3098, %v3178
    %v3642 = vmax.f32 %v3100, %v3180
    %v3643 = vmax.f32 %v3291, %v3371
    %v3644 = vmax.f32 %v3293, %v3373
    %v3645 = vmax.f32 %v1174, %v1254
    %v3646 = vmax.f32 %v1176, %v1256
    %v3647 = vmax.f32 %v1367, %v1447
    %v3648 = vmax.f32 %v1369, %v1449
    %v3649 = vmax.f32 %v1560, %v1640
    %v3650 = vmax.f32 %v1562, %v1642
    %v3651 = vmax.f32 %v1753, %v1833
    %v3652 = vmax.f32 %v1755, %v1835
    %v3653 = vmax.f32 %v1946, %v2026
    %v3654 = vmax.f32 %v1948, %v2028
    %v3655 = vmax.f32 %v2139, %v2219
    %v3656 = vmax.f32 %v2141, %v2221
    %v3657 = vmax.f32 %v2332, %v2412
    %v3658 = vmax.f32 %v2334, %v2414
    %v3659 = vmax.f32 %v2525, %v2605
    %v3660 = vmax.f32 %v2527, %v2607
    %v3661 = vmax.f32 %v2718, %v2798
    %v3662 = vmax.f32 %v2720, %v2800
    %v3663 = vmax.f32 %v2911, %v2991
    %v3664 = vmax.f32 %v2913, %v2993
    %v3665 = vmax.f32 %v3104, %v3184
    %v3666 = vmax.f32 %v3106, %v3186
    %v3667 = vmax.f32 %v3297, %v3377
    %v3668 = vmax.f32 %v3299, %v3379
    %v3669 = vmax.f32 %v1178, %v1258
    %v3670 = vmax.f32 %v1180, %v1260
    %v3671 = vmax.f32 %v1371, %v1451
    %v3672 = vmax.f32 %v1373, %v1453
    %v3673 = vmax.f32 %v1564, %v1644
    %v3674 = vmax.f32 %v1566, %v1646
    %v3675 = vmax.f32 %v1757, %v1837
    %v3676 = vmax.f32 %v1759, %v1839
    %v3677 = vmax.f32 %v1950, %v2030
    %v3678 = vmax.f32 %v1952, %v2032
    %v3679 = vmax.f32 %v2143, %v2223
    %v3680 = vmax.f32 %v2145, %v2225
    %v3681 = vmax.f32 %v2336, %v2416
    %v3682 = vmax.f32 %v2338, %v2418
    %v3683 = vmax.f32 %v2529, %v2609
    %v3684 = vmax.f32 %v2531, %v2611
    %v3685 = vmax.f32 %v2722, %v2802
    %v3686 = vmax.f32 %v2724, %v2804
    %v3687 = vmax.f32 %v2915, %v2995
    %v3688 = vmax.f32 %v2917, %v2997
    %v3689 = vmax.f32 %v3108, %v3188
    %v3690 = vmax.f32 %v3110, %v3190
    %v3691 = vmax.f32 %v3301, %v3381
    %v3692 = vmax.f32 %v3303, %v3383
    %v3693 = vmax.f32 %v1184, %v1264
    %v3694 = vmax.f32 %v1186, %v1266
    %v3695 = vmax.f32 %v1377, %v1457
    %v3696 = vmax.f32 %v1379, %v1459
    %v3697 = vmax.f32 %v1570, %v1650
    %v3698 = vmax.f32 %v1572, %v1652
    %v3699 = vmax.f32 %v1763, %v1843
    %v3700 = vmax.f32 %v1765, %v1845
    %v3701 = vmax.f32 %v1956, %v2036
    %v3702 = vmax.f32 %v1958, %v2038
    %v3703 = vmax.f32 %v2149, %v2229
    %v3704 = vmax.f32 %v2151, %v2231
    %v3705 = vmax.f32 %v2342, %v2422
    %v3706 = vmax.f32 %v2344, %v2424
    %v3707 = vmax.f32 %v2535, %v2615
    %v3708 = vmax.f32 %v2537, %v2617
    %v3709 = vmax.f32 %v2728, %v2808
    %v3710 = vmax.f32 %v2730, %v2810
    %v3711 = vmax.f32 %v2921, %v3001
    %v3712 = vmax.f32 %v2923, %v3003
    %v3713 = vmax.f32 %v3114, %v3194
    %v3714 = vmax.f32 %v3116, %v3196
    %v3715 = vmax.f32 %v3307, %v3387
    %v3716 = vmax.f32 %v3309, %v3389
    %v3717 = vmax.f32 %v1188, %v1268
    %v3718 = vmax.f32 %v1190, %v1270
    %v3719 = vmax.f32 %v1381, %v1461
    %v3720 = vmax.f32 %v1383, %v1463
    %v3721 = vmax.f32 %v1574, %v1654
    %v3722 = vmax.f32 %v1576, %v1656
    %v3723 = vmax.f32 %v1767, %v1847
    %v3724 = vmax.f32 %v1769, %v1849
    %v3725 = vmax.f32 %v1960, %v2040
    %v3726 = vmax.f32 %v1962, %v2042
    %v3727 = vmax.f32 %v2153, %v2233
    %v3728 = vmax.f32 %v2155, %v2235
    %v3729 = vmax.f32 %v2346, %v2426
    %v3730 = vmax.f32 %v2348, %v2428
    %v3731 = vmax.f32 %v2539, %v2619
    %v3732 = vmax.f32 %v2541, %v2621
    %v3733 = vmax.f32 %v2732, %v2812
    %v3734 = vmax.f32 %v2734, %v2814
    %v3735 = vmax.f32 %v2925, %v3005
    %v3736 = vmax.f32 %v2927, %v3007
    %v3737 = vmax.f32 %v3118, %v3198
    %v3738 = vmax.f32 %v3120, %v3200
    %v3739 = vmax.f32 %v3311, %v3391
    %v3740 = vmax.f32 %v3313, %v3393
    %v3741 = vmax.f32 %v1194, %v1274
    %v3742 = vmax.f32 %v1196, %v1276
    %v3743 = vmax.f32 %v1387, %v1467
    %v3744 = vmax.f32 %v1389, %v1469
    %v3745 = vmax.f32 %v1580, %v1660
    %v3746 = vmax.f32 %v1582, %v1662
    %v3747 = vmax.f32 %v1773, %v1853
    %v3748 = vmax.f32 %v1775, %v1855
    %v3749 = vmax.f32 %v1966, %v2046
    %v3750 = vmax.f32 %v1968, %v2048
    %v3751 = vmax.f32 %v2159, %v2239
    %v3752 = vmax.f32 %v2161, %v2241
    %v3753 = vmax.f32 %v2352, %v2432
    %v3754 = vmax.f32 %v2354, %v2434
    %v3755 = vmax.f32 %v2545, %v2625
    %v3756 = vmax.f32 %v2547, %v2627
    %v3757 = vmax.f32 %v2738, %v2818
    %v3758 = vmax.f32 %v2740, %v2820
    %v3759 = vmax.f32 %v2931, %v3011
    %v3760 = vmax.f32 %v2933, %v3013
    %v3761 = vmax.f32 %v3124, %v3204
    %v3762 = vmax.f32 %v3126, %v3206
    %v3763 = vmax.f32 %v3317, %v3397
    %v3764 = vmax.f32 %v3319, %v3399
    %v3765 = vmax.f32 %v1198, %v1278
    %v3766 = vmax.f32 %v1200, %v1280
    %v3767 = vmax.f32 %v1391, %v1471
    %v3768 = vmax.f32 %v1393, %v1473
    %v3769 = vmax.f32 %v1584, %v1664
    %v3770 = vmax.f32 %v1586, %v1666
    %v3771 = vmax.f32 %v1777, %v1857
    %v3772 = vmax.f32 %v1779, %v1859
    %v3773 = vmax.f32 %v1970, %v2050
    %v3774 = vmax.f32 %v1972, %v2052
    %v3775 = vmax.f32 %v2163, %v2243
    %v3776 = vmax.f32 %v2165, %v2245
    %v3777 = vmax.f32 %v2356, %v2436
    %v3778 = vmax.f32 %v2358, %v2438
    %v3779 = vmax.f32 %v2549, %v2629
    %v3780 = vmax.f32 %v2551, %v2631
    %v3781 = vmax.f32 %v2742, %v2822
    %v3782 = vmax.f32 %v2744, %v2824
    %v3783 = vmax.f32 %v2935, %v3015
    %v3784 = vmax.f32 %v2937, %v3017
    %v3785 = vmax.f32 %v3128, %v3208
    %v3786 = vmax.f32 %v3130, %v3210
    %v3787 = vmax.f32 %v3321, %v3401
    %v3788 = vmax.f32 %v3323, %v3403
    %v3789 = vmax.f32 %v3405, %v3406
    %v3790 = vmax.f32 %v3429, %v3430
    %v3791 = vmax.f32 %v3453, %v3454
    %v3792 = vmax.f32 %v3477, %v3478
    %v3793 = vmax.f32 %v3501, %v3502
    %v3794 = vmax.f32 %v3525, %v3526
    %v3795 = vmax.f32 %v3549, %v3550
    %v3796 = vmax.f32 %v3573, %v3574
    %v3797 = vmax.f32 %v3597, %v3598
    %v3798 = vmax.f32 %v3621, %v3622
    %v3799 = vmax.f32 %v3645, %v3646
    %v3800 = vmax.f32 %v3669, %v3670
    %v3801 = vmax.f32 %v3693, %v3694
    %v3802 = vmax.f32 %v3717, %v3718
    %v3803 = vmax.f32 %v3741, %v3742
    %v3804 = vmax.f32 %v3765, %v3766
    %v3805 = vld [vmem:[%s2] sm:$0xff]
    %v3806 = vld [vmem:[%s2 + $0x8] sm:$0xff]
    %v3807 = vld [vmem:[%s2 + $0x10] sm:$0xff]
    %v3808 = vld [vmem:[%s2 + $0x18] sm:$0xff]
    %v3809 = vld [vmem:[%s2 + $0x20] sm:$0xff]
    %v3810 = vld [vmem:[%s2 + $0x28] sm:$0xff]
    %v3811 = vld [vmem:[%s2 + $0x30] sm:$0xff]
    %v3812 = vld [vmem:[%s2 + $0x38] sm:$0xff]
    %v3813 = vld [vmem:[%s2 + $0x40] sm:$0xff]
    %v3814 = vld [vmem:[%s2 + $0x48] sm:$0xff]
    %v3815 = vld [vmem:[%s2 + $0x50] sm:$0xff]
    %v3816 = vld [vmem:[%s2 + $0x58] sm:$0xff]
    %v3817 = vld [vmem:[%s2 + $0x60] sm:$0xff]
    %v3818 = vld [vmem:[%s2 + $0x68] sm:$0xff]
    %v3819 = vld [vmem:[%s2 + $0x70] sm:$0xff]
    %v3820 = vld [vmem:[%s2 + $0x78] sm:$0xff]
    %3822 = vset.pattern.permute.xlu0 0
    %3823 = vperm.xlu0 %3822, %v3805
    %v3824 = vpop.permute.xlu0 %3823
    %3827 = vset.pattern.permute.xlu0 0
    %3828 = vperm.xlu0 %3827, %v3806
    %v3829 = vpop.permute.xlu0 %3828
    %3832 = vset.pattern.permute.xlu0 0
    %3833 = vperm.xlu0 %3832, %v3807
    %v3834 = vpop.permute.xlu0 %3833
    %3837 = vset.pattern.permute.xlu0 0
    %3838 = vperm.xlu0 %3837, %v3808
    %v3839 = vpop.permute.xlu0 %3838
    %3842 = vset.pattern.permute.xlu0 0
    %3843 = vperm.xlu0 %3842, %v3809
    %v3844 = vpop.permute.xlu0 %3843
    %3847 = vset.pattern.permute.xlu0 0
    %3848 = vperm.xlu0 %3847, %v3810
    %v3849 = vpop.permute.xlu0 %3848
    %3852 = vset.pattern.permute.xlu0 0
    %3853 = vperm.xlu0 %3852, %v3811
    %v3854 = vpop.permute.xlu0 %3853
    %3857 = vset.pattern.permute.xlu0 0
    %3858 = vperm.xlu0 %3857, %v3812
    %v3859 = vpop.permute.xlu0 %3858
    %3862 = vset.pattern.permute.xlu0 0
    %3863 = vperm.xlu0 %3862, %v3813
    %v3864 = vpop.permute.xlu0 %3863
    %3867 = vset.pattern.permute.xlu0 0
    %3868 = vperm.xlu0 %3867, %v3814
    %v3869 = vpop.permute.xlu0 %3868
    %3872 = vset.pattern.permute.xlu0 0
    %3873 = vperm.xlu0 %3872, %v3815
    %v3874 = vpop.permute.xlu0 %3873
    %3877 = vset.pattern.permute.xlu0 0
    %3878 = vperm.xlu0 %3877, %v3816
    %v3879 = vpop.permute.xlu0 %3878
    %3882 = vset.pattern.permute.xlu0 0
    %3883 = vperm.xlu0 %3882, %v3817
    %v3884 = vpop.permute.xlu0 %3883
    %3887 = vset.pattern.permute.xlu0 0
    %3888 = vperm.xlu0 %3887, %v3818
    %v3889 = vpop.permute.xlu0 %3888
    %3892 = vset.pattern.permute.xlu0 0
    %3893 = vperm.xlu0 %3892, %v3819
    %v3894 = vpop.permute.xlu0 %3893
    %3897 = vset.pattern.permute.xlu0 0
    %3898 = vperm.xlu0 %3897, %v3820
    %v3899 = vpop.permute.xlu0 %3898
    %v3901 = vadd.f32 %v3789, %v3824
    %v3902 = vadd.f32 %v3790, %v3829
    %v3903 = vadd.f32 %v3791, %v3834
    %v3904 = vadd.f32 %v3792, %v3839
    %v3905 = vadd.f32 %v3793, %v3844
    %v3906 = vadd.f32 %v3794, %v3849
    %v3907 = vadd.f32 %v3795, %v3854
    %v3908 = vadd.f32 %v3796, %v3859
    %v3909 = vadd.f32 %v3797, %v3864
    %v3910 = vadd.f32 %v3798, %v3869
    %v3911 = vadd.f32 %v3799, %v3874
    %v3912 = vadd.f32 %v3800, %v3879
    %v3913 = vadd.f32 %v3801, %v3884
    %v3914 = vadd.f32 %v3802, %v3889
    %v3915 = vadd.f32 %v3803, %v3894
    %v3916 = vadd.f32 %v3804, %v3899
    %v3917 = vmax.f32 %v3901, 0.0
    %v3918 = vmax.f32 %v3902, 0.0
    %v3919 = vmax.f32 %v3903, 0.0
    %v3920 = vmax.f32 %v3904, 0.0
    %v3921 = vmax.f32 %v3905, 0.0
    %v3922 = vmax.f32 %v3906, 0.0
    %v3923 = vmax.f32 %v3907, 0.0
    %v3924 = vmax.f32 %v3908, 0.0
    %v3925 = vmax.f32 %v3909, 0.0
    %v3926 = vmax.f32 %v3910, 0.0
    %v3927 = vmax.f32 %v3911, 0.0
    %v3928 = vmax.f32 %v3912, 0.0
    %v3929 = vmax.f32 %v3913, 0.0
    %v3930 = vmax.f32 %v3914, 0.0
    %v3931 = vmax.f32 %v3915, 0.0
    %v3932 = vmax.f32 %v3916, 0.0
    %v3933 = vpack.c.bf16 %v3918, %v3917
    %v3934 = vpack.c.bf16 %v3920, %v3919
    %v3935 = vpack.c.bf16 %v3922, %v3921
    %v3936 = vpack.c.bf16 %v3924, %v3923
    %v3937 = vpack.c.bf16 %v3926, %v3925
    %v3938 = vpack.c.bf16 %v3928, %v3927
    %v3939 = vpack.c.bf16 %v3930, %v3929
    %v3940 = vpack.c.bf16 %v3932, %v3931
    %3941 = vst [vmem:[#allocation3] sm:$0xff] %v3933
    %3942 = vst [vmem:[#allocation3 + $0x40] sm:$0xff] %v3934
    %3943 = vst [vmem:[#allocation3 + $0x80] sm:$0xff] %v3935
    %3944 = vst [vmem:[#allocation3 + $0xc0] sm:$0xff] %v3936
    %3945 = vst [vmem:[#allocation3 + $0x100] sm:$0xff] %v3937
    %3946 = vst [vmem:[#allocation3 + $0x140] sm:$0xff] %v3938
    %3947 = vst [vmem:[#allocation3 + $0x180] sm:$0xff] %v3939
    %3948 = vst [vmem:[#allocation3 + $0x1c0] sm:$0xff] %v3940
    %v3949 = vmax.f32 %v3407, %v3408
    %v3950 = vmax.f32 %v3431, %v3432
    %v3951 = vmax.f32 %v3455, %v3456
    %v3952 = vmax.f32 %v3479, %v3480
    %v3953 = vmax.f32 %v3503, %v3504
    %v3954 = vmax.f32 %v3527, %v3528
    %v3955 = vmax.f32 %v3551, %v3552
    %v3956 = vmax.f32 %v3575, %v3576
    %v3957 = vmax.f32 %v3599, %v3600
    %v3958 = vmax.f32 %v3623, %v3624
    %v3959 = vmax.f32 %v3647, %v3648
    %v3960 = vmax.f32 %v3671, %v3672
    %v3961 = vmax.f32 %v3695, %v3696
    %v3962 = vmax.f32 %v3719, %v3720
    %v3963 = vmax.f32 %v3743, %v3744
    %v3964 = vmax.f32 %v3767, %v3768
    %v3965 = vld [vmem:[%s2] sm:$0xff]
    %v3966 = vld [vmem:[%s2 + $0x8] sm:$0xff]
    %v3967 = vld [vmem:[%s2 + $0x10] sm:$0xff]
    %v3968 = vld [vmem:[%s2 + $0x18] sm:$0xff]
    %v3969 = vld [vmem:[%s2 + $0x20] sm:$0xff]
    %v3970 = vld [vmem:[%s2 + $0x28] sm:$0xff]
    %v3971 = vld [vmem:[%s2 + $0x30] sm:$0xff]
    %v3972 = vld [vmem:[%s2 + $0x38] sm:$0xff]
    %v3973 = vld [vmem:[%s2 + $0x40] sm:$0xff]
    %v3974 = vld [vmem:[%s2 + $0x48] sm:$0xff]
    %v3975 = vld [vmem:[%s2 + $0x50] sm:$0xff]
    %v3976 = vld [vmem:[%s2 + $0x58] sm:$0xff]
    %v3977 = vld [vmem:[%s2 + $0x60] sm:$0xff]
    %v3978 = vld [vmem:[%s2 + $0x68] sm:$0xff]
    %v3979 = vld [vmem:[%s2 + $0x70] sm:$0xff]
    %v3980 = vld [vmem:[%s2 + $0x78] sm:$0xff]
    %3982 = vset.pattern.permute.xlu0 0
    %3983 = vperm.xlu0 %3982, %v3965
    %v3984 = vpop.permute.xlu0 %3983
    %3987 = vset.pattern.permute.xlu0 0
    %3988 = vperm.xlu0 %3987, %v3966
    %v3989 = vpop.permute.xlu0 %3988
    %3992 = vset.pattern.permute.xlu0 0
    %3993 = vperm.xlu0 %3992, %v3967
    %v3994 = vpop.permute.xlu0 %3993
    %3997 = vset.pattern.permute.xlu0 0
    %3998 = vperm.xlu0 %3997, %v3968
    %v3999 = vpop.permute.xlu0 %3998
    %4002 = vset.pattern.permute.xlu0 0
    %4003 = vperm.xlu0 %4002, %v3969
    %v4004 = vpop.permute.xlu0 %4003
    %4007 = vset.pattern.permute.xlu0 0
    %4008 = vperm.xlu0 %4007, %v3970
    %v4009 = vpop.permute.xlu0 %4008
    %4012 = vset.pattern.permute.xlu0 0
    %4013 = vperm.xlu0 %4012, %v3971
    %v4014 = vpop.permute.xlu0 %4013
    %4017 = vset.pattern.permute.xlu0 0
    %4018 = vperm.xlu0 %4017, %v3972
    %v4019 = vpop.permute.xlu0 %4018
    %4022 = vset.pattern.permute.xlu0 0
    %4023 = vperm.xlu0 %4022, %v3973
    %v4024 = vpop.permute.xlu0 %4023
    %4027 = vset.pattern.permute.xlu0 0
    %4028 = vperm.xlu0 %4027, %v3974
    %v4029 = vpop.permute.xlu0 %4028
    %4032 = vset.pattern.permute.xlu0 0
    %4033 = vperm.xlu0 %4032, %v3975
    %v4034 = vpop.permute.xlu0 %4033
    %4037 = vset.pattern.permute.xlu0 0
    %4038 = vperm.xlu0 %4037, %v3976
    %v4039 = vpop.permute.xlu0 %4038
    %4042 = vset.pattern.permute.xlu0 0
    %4043 = vperm.xlu0 %4042, %v3977
    %v4044 = vpop.permute.xlu0 %4043
    %4047 = vset.pattern.permute.xlu0 0
    %4048 = vperm.xlu0 %4047, %v3978
    %v4049 = vpop.permute.xlu0 %4048
    %4052 = vset.pattern.permute.xlu0 0
    %4053 = vperm.xlu0 %4052, %v3979
    %v4054 = vpop.permute.xlu0 %4053
    %4057 = vset.pattern.permute.xlu0 0
    %4058 = vperm.xlu0 %4057, %v3980
    %v4059 = vpop.permute.xlu0 %4058
    %v4061 = vadd.f32 %v3949, %v3984
    %v4062 = vadd.f32 %v3950, %v3989
    %v4063 = vadd.f32 %v3951, %v3994
    %v4064 = vadd.f32 %v3952, %v3999
    %v4065 = vadd.f32 %v3953, %v4004
    %v4066 = vadd.f32 %v3954, %v4009
    %v4067 = vadd.f32 %v3955, %v4014
    %v4068 = vadd.f32 %v3956, %v4019
    %v4069 = vadd.f32 %v3957, %v4024
    %v4070 = vadd.f32 %v3958, %v4029
    %v4071 = vadd.f32 %v3959, %v4034
    %v4072 = vadd.f32 %v3960, %v4039
    %v4073 = vadd.f32 %v3961, %v4044
    %v4074 = vadd.f32 %v3962, %v4049
    %v4075 = vadd.f32 %v3963, %v4054
    %v4076 = vadd.f32 %v3964, %v4059
    %v4077 = vmax.f32 %v4061, 0.0
    %v4078 = vmax.f32 %v4062, 0.0
    %v4079 = vmax.f32 %v4063, 0.0
    %v4080 = vmax.f32 %v4064, 0.0
    %v4081 = vmax.f32 %v4065, 0.0
    %v4082 = vmax.f32 %v4066, 0.0
    %v4083 = vmax.f32 %v4067, 0.0
    %v4084 = vmax.f32 %v4068, 0.0
    %v4085 = vmax.f32 %v4069, 0.0
    %v4086 = vmax.f32 %v4070, 0.0
    %v4087 = vmax.f32 %v4071, 0.0
    %v4088 = vmax.f32 %v4072, 0.0
    %v4089 = vmax.f32 %v4073, 0.0
    %v4090 = vmax.f32 %v4074, 0.0
    %v4091 = vmax.f32 %v4075, 0.0
    %v4092 = vmax.f32 %v4076, 0.0
    %v4093 = vpack.c.bf16 %v4078, %v4077
    %v4094 = vpack.c.bf16 %v4080, %v4079
    %v4095 = vpack.c.bf16 %v4082, %v4081
    %v4096 = vpack.c.bf16 %v4084, %v4083
    %v4097 = vpack.c.bf16 %v4086, %v4085
    %v4098 = vpack.c.bf16 %v4088, %v4087
    %v4099 = vpack.c.bf16 %v4090, %v4089
    %v4100 = vpack.c.bf16 %v4092, %v4091
    %4101 = vst [vmem:[#allocation3 + $0x8] sm:$0xff] %v4093
    %4102 = vst [vmem:[#allocation3 + $0x48] sm:$0xff] %v4094
    %4103 = vst [vmem:[#allocation3 + $0x88] sm:$0xff] %v4095
    %4104 = vst [vmem:[#allocation3 + $0xc8] sm:$0xff] %v4096
    %4105 = vst [vmem:[#allocation3 + $0x108] sm:$0xff] %v4097
    %4106 = vst [vmem:[#allocation3 + $0x148] sm:$0xff] %v4098
    %4107 = vst [vmem:[#allocation3 + $0x188] sm:$0xff] %v4099
    %4108 = vst [vmem:[#allocation3 + $0x1c8] sm:$0xff] %v4100
    %4109 = vst [vmem:[#allocation3 + $0x200] sm:$0xff] %v4093
    %4110 = vst [vmem:[#allocation3 + $0x240] sm:$0xff] %v4094
    %4111 = vst [vmem:[#allocation3 + $0x280] sm:$0xff] %v4095
    %4112 = vst [vmem:[#allocation3 + $0x2c0] sm:$0xff] %v4096
    %4113 = vst [vmem:[#allocation3 + $0x300] sm:$0xff] %v4097
    %4114 = vst [vmem:[#allocation3 + $0x340] sm:$0xff] %v4098
    %4115 = vst [vmem:[#allocation3 + $0x380] sm:$0xff] %v4099
    %4116 = vst [vmem:[#allocation3 + $0x3c0] sm:$0xff] %v4100
    %v4117 = vmax.f32 %v3409, %v3410
    %v4118 = vmax.f32 %v3433, %v3434
    %v4119 = vmax.f32 %v3457, %v3458
    %v4120 = vmax.f32 %v3481, %v3482
    %v4121 = vmax.f32 %v3505, %v3506
    %v4122 = vmax.f32 %v3529, %v3530
    %v4123 = vmax.f32 %v3553, %v3554
    %v4124 = vmax.f32 %v3577, %v3578
    %v4125 = vmax.f32 %v3601, %v3602
    %v4126 = vmax.f32 %v3625, %v3626
    %v4127 = vmax.f32 %v3649, %v3650
    %v4128 = vmax.f32 %v3673, %v3674
    %v4129 = vmax.f32 %v3697, %v3698
    %v4130 = vmax.f32 %v3721, %v3722
    %v4131 = vmax.f32 %v3745, %v3746
    %v4132 = vmax.f32 %v3769, %v3770
    %v4133 = vld [vmem:[%s2] sm:$0xff]
    %v4134 = vld [vmem:[%s2 + $0x8] sm:$0xff]
    %v4135 = vld [vmem:[%s2 + $0x10] sm:$0xff]
    %v4136 = vld [vmem:[%s2 + $0x18] sm:$0xff]
    %v4137 = vld [vmem:[%s2 + $0x20] sm:$0xff]
    %v4138 = vld [vmem:[%s2 + $0x28] sm:$0xff]
    %v4139 = vld [vmem:[%s2 + $0x30] sm:$0xff]
    %v4140 = vld [vmem:[%s2 + $0x38] sm:$0xff]
    %v4141 = vld [vmem:[%s2 + $0x40] sm:$0xff]
    %v4142 = vld [vmem:[%s2 + $0x48] sm:$0xff]
    %v4143 = vld [vmem:[%s2 + $0x50] sm:$0xff]
    %v4144 = vld [vmem:[%s2 + $0x58] sm:$0xff]
    %v4145 = vld [vmem:[%s2 + $0x60] sm:$0xff]
    %v4146 = vld [vmem:[%s2 + $0x68] sm:$0xff]
    %v4147 = vld [vmem:[%s2 + $0x70] sm:$0xff]
    %v4148 = vld [vmem:[%s2 + $0x78] sm:$0xff]
    %4150 = vset.pattern.permute.xlu0 0
    %4151 = vperm.xlu0 %4150, %v4133
    %v4152 = vpop.permute.xlu0 %4151
    %4155 = vset.pattern.permute.xlu0 0
    %4156 = vperm.xlu0 %4155, %v4134
    %v4157 = vpop.permute.xlu0 %4156
    %4160 = vset.pattern.permute.xlu0 0
    %4161 = vperm.xlu0 %4160, %v4135
    %v4162 = vpop.permute.xlu0 %4161
    %4165 = vset.pattern.permute.xlu0 0
    %4166 = vperm.xlu0 %4165, %v4136
    %v4167 = vpop.permute.xlu0 %4166
    %4170 = vset.pattern.permute.xlu0 0
    %4171 = vperm.xlu0 %4170, %v4137
    %v4172 = vpop.permute.xlu0 %4171
    %4175 = vset.pattern.permute.xlu0 0
    %4176 = vperm.xlu0 %4175, %v4138
    %v4177 = vpop.permute.xlu0 %4176
    %4180 = vset.pattern.permute.xlu0 0
    %4181 = vperm.xlu0 %4180, %v4139
    %v4182 = vpop.permute.xlu0 %4181
    %4185 = vset.pattern.permute.xlu0 0
    %4186 = vperm.xlu0 %4185, %v4140
    %v4187 = vpop.permute.xlu0 %4186
    %4190 = vset.pattern.permute.xlu0 0
    %4191 = vperm.xlu0 %4190, %v4141
    %v4192 = vpop.permute.xlu0 %4191
    %4195 = vset.pattern.permute.xlu0 0
    %4196 = vperm.xlu0 %4195, %v4142
    %v4197 = vpop.permute.xlu0 %4196
    %4200 = vset.pattern.permute.xlu0 0
    %4201 = vperm.xlu0 %4200, %v4143
    %v4202 = vpop.permute.xlu0 %4201
    %4205 = vset.pattern.permute.xlu0 0
    %4206 = vperm.xlu0 %4205, %v4144
    %v4207 = vpop.permute.xlu0 %4206
    %4210 = vset.pattern.permute.xlu0 0
    %4211 = vperm.xlu0 %4210, %v4145
    %v4212 = vpop.permute.xlu0 %4211
    %4215 = vset.pattern.permute.xlu0 0
    %4216 = vperm.xlu0 %4215, %v4146
    %v4217 = vpop.permute.xlu0 %4216
    %4220 = vset.pattern.permute.xlu0 0
    %4221 = vperm.xlu0 %4220, %v4147
    %v4222 = vpop.permute.xlu0 %4221
    %4225 = vset.pattern.permute.xlu0 0
    %4226 = vperm.xlu0 %4225, %v4148
    %v4227 = vpop.permute.xlu0 %4226
    %v4229 = vadd.f32 %v4117, %v4152
    %v4230 = vadd.f32 %v4118, %v4157
    %v4231 = vadd.f32 %v4119, %v4162
    %v4232 = vadd.f32 %v4120, %v4167
    %v4233 = vadd.f32 %v4121, %v4172
    %v4234 = vadd.f32 %v4122, %v4177
    %v4235 = vadd.f32 %v4123, %v4182
    %v4236 = vadd.f32 %v4124, %v4187
    %v4237 = vadd.f32 %v4125, %v4192
    %v4238 = vadd.f32 %v4126, %v4197
    %v4239 = vadd.f32 %v4127, %v4202
    %v4240 = vadd.f32 %v4128, %v4207
    %v4241 = vadd.f32 %v4129, %v4212
    %v4242 = vadd.f32 %v4130, %v4217
    %v4243 = vadd.f32 %v4131, %v4222
    %v4244 = vadd.f32 %v4132, %v4227
    %v4245 = vmax.f32 %v4229, 0.0
    %v4246 = vmax.f32 %v4230, 0.0
    %v4247 = vmax.f32 %v4231, 0.0
    %v4248 = vmax.f32 %v4232, 0.0
    %v4249 = vmax.f32 %v4233, 0.0
    %v4250 = vmax.f32 %v4234, 0.0
    %v4251 = vmax.f32 %v4235, 0.0
    %v4252 = vmax.f32 %v4236, 0.0
    %v4253 = vmax.f32 %v4237, 0.0
    %v4254 = vmax.f32 %v4238, 0.0
    %v4255 = vmax.f32 %v4239, 0.0
    %v4256 = vmax.f32 %v4240, 0.0
    %v4257 = vmax.f32 %v4241, 0.0
    %v4258 = vmax.f32 %v4242, 0.0
    %v4259 = vmax.f32 %v4243, 0.0
    %v4260 = vmax.f32 %v4244, 0.0
    %v4261 = vpack.c.bf16 %v4246, %v4245
    %v4262 = vpack.c.bf16 %v4248, %v4247
    %v4263 = vpack.c.bf16 %v4250, %v4249
    %v4264 = vpack.c.bf16 %v4252, %v4251
    %v4265 = vpack.c.bf16 %v4254, %v4253
    %v4266 = vpack.c.bf16 %v4256, %v4255
    %v4267 = vpack.c.bf16 %v4258, %v4257
    %v4268 = vpack.c.bf16 %v4260, %v4259
    %4269 = vst [vmem:[#allocation3 + $0x10] sm:$0xff] %v4261
    %4270 = vst [vmem:[#allocation3 + $0x50] sm:$0xff] %v4262
    %4271 = vst [vmem:[#allocation3 + $0x90] sm:$0xff] %v4263
    %4272 = vst [vmem:[#allocation3 + $0xd0] sm:$0xff] %v4264
    %4273 = vst [vmem:[#allocation3 + $0x110] sm:$0xff] %v4265
    %4274 = vst [vmem:[#allocation3 + $0x150] sm:$0xff] %v4266
    %4275 = vst [vmem:[#allocation3 + $0x190] sm:$0xff] %v4267
    %4276 = vst [vmem:[#allocation3 + $0x1d0] sm:$0xff] %v4268
    %4277 = vst [vmem:[#allocation3 + $0x208] sm:$0xff] %v4261
    %4278 = vst [vmem:[#allocation3 + $0x248] sm:$0xff] %v4262
    %4279 = vst [vmem:[#allocation3 + $0x288] sm:$0xff] %v4263
    %4280 = vst [vmem:[#allocation3 + $0x2c8] sm:$0xff] %v4264
    %4281 = vst [vmem:[#allocation3 + $0x308] sm:$0xff] %v4265
    %4282 = vst [vmem:[#allocation3 + $0x348] sm:$0xff] %v4266
    %4283 = vst [vmem:[#allocation3 + $0x388] sm:$0xff] %v4267
    %4284 = vst [vmem:[#allocation3 + $0x3c8] sm:$0xff] %v4268
    %4285 = vst [vmem:[#allocation3 + $0x400] sm:$0xff] %v4261
    %4286 = vst [vmem:[#allocation3 + $0x440] sm:$0xff] %v4262
    %4287 = vst [vmem:[#allocation3 + $0x480] sm:$0xff] %v4263
    %4288 = vst [vmem:[#allocation3 + $0x4c0] sm:$0xff] %v4264
    %4289 = vst [vmem:[#allocation3 + $0x500] sm:$0xff] %v4265
    %4290 = vst [vmem:[#allocation3 + $0x540] sm:$0xff] %v4266
    %4291 = vst [vmem:[#allocation3 + $0x580] sm:$0xff] %v4267
    %4292 = vst [vmem:[#allocation3 + $0x5c0] sm:$0xff] %v4268
    %v4293 = vmax.f32 %v3411, %v3412
    %v4294 = vmax.f32 %v3435, %v3436
    %v4295 = vmax.f32 %v3459, %v3460
    %v4296 = vmax.f32 %v3483, %v3484
    %v4297 = vmax.f32 %v3507, %v3508
    %v4298 = vmax.f32 %v3531, %v3532
    %v4299 = vmax.f32 %v3555, %v3556
    %v4300 = vmax.f32 %v3579, %v3580
    %v4301 = vmax.f32 %v3603, %v3604
    %v4302 = vmax.f32 %v3627, %v3628
    %v4303 = vmax.f32 %v3651, %v3652
    %v4304 = vmax.f32 %v3675, %v3676
    %v4305 = vmax.f32 %v3699, %v3700
    %v4306 = vmax.f32 %v3723, %v3724
    %v4307 = vmax.f32 %v3747, %v3748
    %v4308 = vmax.f32 %v3771, %v3772
    %v4309 = vld [vmem:[%s2] sm:$0xff]
    %v4310 = vld [vmem:[%s2 + $0x8] sm:$0xff]
    %v4311 = vld [vmem:[%s2 + $0x10] sm:$0xff]
    %v4312 = vld [vmem:[%s2 + $0x18] sm:$0xff]
    %v4313 = vld [vmem:[%s2 + $0x20] sm:$0xff]
    %v4314 = vld [vmem:[%s2 + $0x28] sm:$0xff]
    %v4315 = vld [vmem:[%s2 + $0x30] sm:$0xff]
    %v4316 = vld [vmem:[%s2 + $0x38] sm:$0xff]
    %v4317 = vld [vmem:[%s2 + $0x40] sm:$0xff]
    %v4318 = vld [vmem:[%s2 + $0x48] sm:$0xff]
    %v4319 = vld [vmem:[%s2 + $0x50] sm:$0xff]
    %v4320 = vld [vmem:[%s2 + $0x58] sm:$0xff]
    %v4321 = vld [vmem:[%s2 + $0x60] sm:$0xff]
    %v4322 = vld [vmem:[%s2 + $0x68] sm:$0xff]
    %v4323 = vld [vmem:[%s2 + $0x70] sm:$0xff]
    %v4324 = vld [vmem:[%s2 + $0x78] sm:$0xff]
    %4326 = vset.pattern.permute.xlu0 0
    %4327 = vperm.xlu0 %4326, %v4309
    %v4328 = vpop.permute.xlu0 %4327
    %4331 = vset.pattern.permute.xlu0 0
    %4332 = vperm.xlu0 %4331, %v4310
    %v4333 = vpop.permute.xlu0 %4332
    %4336 = vset.pattern.permute.xlu0 0
    %4337 = vperm.xlu0 %4336, %v4311
    %v4338 = vpop.permute.xlu0 %4337
    %4341 = vset.pattern.permute.xlu0 0
    %4342 = vperm.xlu0 %4341, %v4312
    %v4343 = vpop.permute.xlu0 %4342
    %4346 = vset.pattern.permute.xlu0 0
    %4347 = vperm.xlu0 %4346, %v4313
    %v4348 = vpop.permute.xlu0 %4347
    %4351 = vset.pattern.permute.xlu0 0
    %4352 = vperm.xlu0 %4351, %v4314
    %v4353 = vpop.permute.xlu0 %4352
    %4356 = vset.pattern.permute.xlu0 0
    %4357 = vperm.xlu0 %4356, %v4315
    %v4358 = vpop.permute.xlu0 %4357
    %4361 = vset.pattern.permute.xlu0 0
    %4362 = vperm.xlu0 %4361, %v4316
    %v4363 = vpop.permute.xlu0 %4362
    %4366 = vset.pattern.permute.xlu0 0
    %4367 = vperm.xlu0 %4366, %v4317
    %v4368 = vpop.permute.xlu0 %4367
    %4371 = vset.pattern.permute.xlu0 0
    %4372 = vperm.xlu0 %4371, %v4318
    %v4373 = vpop.permute.xlu0 %4372
    %4376 = vset.pattern.permute.xlu0 0
    %4377 = vperm.xlu0 %4376, %v4319
    %v4378 = vpop.permute.xlu0 %4377
    %4381 = vset.pattern.permute.xlu0 0
    %4382 = vperm.xlu0 %4381, %v4320
    %v4383 = vpop.permute.xlu0 %4382
    %4386 = vset.pattern.permute.xlu0 0
    %4387 = vperm.xlu0 %4386, %v4321
    %v4388 = vpop.permute.xlu0 %4387
    %4391 = vset.pattern.permute.xlu0 0
    %4392 = vperm.xlu0 %4391, %v4322
    %v4393 = vpop.permute.xlu0 %4392
    %4396 = vset.pattern.permute.xlu0 0
    %4397 = vperm.xlu0 %4396, %v4323
    %v4398 = vpop.permute.xlu0 %4397
    %4401 = vset.pattern.permute.xlu0 0
    %4402 = vperm.xlu0 %4401, %v4324
    %v4403 = vpop.permute.xlu0 %4402
    %v4405 = vadd.f32 %v4293, %v4328
    %v4406 = vadd.f32 %v4294, %v4333
    %v4407 = vadd.f32 %v4295, %v4338
    %v4408 = vadd.f32 %v4296, %v4343
    %v4409 = vadd.f32 %v4297, %v4348
    %v4410 = vadd.f32 %v4298, %v4353
    %v4411 = vadd.f32 %v4299, %v4358
    %v4412 = vadd.f32 %v4300, %v4363
    %v4413 = vadd.f32 %v4301, %v4368
    %v4414 = vadd.f32 %v4302, %v4373
    %v4415 = vadd.f32 %v4303, %v4378
    %v4416 = vadd.f32 %v4304, %v4383
    %v4417 = vadd.f32 %v4305, %v4388
    %v4418 = vadd.f32 %v4306, %v4393
    %v4419 = vadd.f32 %v4307, %v4398
    %v4420 = vadd.f32 %v4308, %v4403
    %v4421 = vmax.f32 %v4405, 0.0
    %v4422 = vmax.f32 %v4406, 0.0
    %v4423 = vmax.f32 %v4407, 0.0
    %v4424 = vmax.f32 %v4408, 0.0
    %v4425 = vmax.f32 %v4409, 0.0
    %v4426 = vmax.f32 %v4410, 0.0
    %v4427 = vmax.f32 %v4411, 0.0
    %v4428 = vmax.f32 %v4412, 0.0
    %v4429 = vmax.f32 %v4413, 0.0
    %v4430 = vmax.f32 %v4414, 0.0
    %v4431 = vmax.f32 %v4415, 0.0
    %v4432 = vmax.f32 %v4416, 0.0
    %v4433 = vmax.f32 %v4417, 0.0
    %v4434 = vmax.f32 %v4418, 0.0
    %v4435 = vmax.f32 %v4419, 0.0
    %v4436 = vmax.f32 %v4420, 0.0
    %v4437 = vpack.c.bf16 %v4422, %v4421
    %v4438 = vpack.c.bf16 %v4424, %v4423
    %v4439 = vpack.c.bf16 %v4426, %v4425
    %v4440 = vpack.c.bf16 %v4428, %v4427
    %v4441 = vpack.c.bf16 %v4430, %v4429
    %v4442 = vpack.c.bf16 %v4432, %v4431
    %v4443 = vpack.c.bf16 %v4434, %v4433
    %v4444 = vpack.c.bf16 %v4436, %v4435
    %4445 = vst [vmem:[#allocation3 + $0x18] sm:$0xff] %v4437
    %4446 = vst [vmem:[#allocation3 + $0x58] sm:$0xff] %v4438
    %4447 = vst [vmem:[#allocation3 + $0x98] sm:$0xff] %v4439
    %4448 = vst [vmem:[#allocation3 + $0xd8] sm:$0xff] %v4440
    %4449 = vst [vmem:[#allocation3 + $0x118] sm:$0xff] %v4441
    %4450 = vst [vmem:[#allocation3 + $0x158] sm:$0xff] %v4442
    %4451 = vst [vmem:[#allocation3 + $0x198] sm:$0xff] %v4443
    %4452 = vst [vmem:[#allocation3 + $0x1d8] sm:$0xff] %v4444
    %4453 = vst [vmem:[#allocation3 + $0x210] sm:$0xff] %v4437
    %4454 = vst [vmem:[#allocation3 + $0x250] sm:$0xff] %v4438
    %4455 = vst [vmem:[#allocation3 + $0x290] sm:$0xff] %v4439
    %4456 = vst [vmem:[#allocation3 + $0x2d0] sm:$0xff] %v4440
    %4457 = vst [vmem:[#allocation3 + $0x310] sm:$0xff] %v4441
    %4458 = vst [vmem:[#allocation3 + $0x350] sm:$0xff] %v4442
    %4459 = vst [vmem:[#allocation3 + $0x390] sm:$0xff] %v4443
    %4460 = vst [vmem:[#allocation3 + $0x3d0] sm:$0xff] %v4444
    %4461 = vst [vmem:[#allocation3 + $0x408] sm:$0xff] %v4437
    %4462 = vst [vmem:[#allocation3 + $0x448] sm:$0xff] %v4438
    %4463 = vst [vmem:[#allocation3 + $0x488] sm:$0xff] %v4439
    %4464 = vst [vmem:[#allocation3 + $0x4c8] sm:$0xff] %v4440
    %4465 = vst [vmem:[#allocation3 + $0x508] sm:$0xff] %v4441
    %4466 = vst [vmem:[#allocation3 + $0x548] sm:$0xff] %v4442
    %4467 = vst [vmem:[#allocation3 + $0x588] sm:$0xff] %v4443
    %4468 = vst [vmem:[#allocation3 + $0x5c8] sm:$0xff] %v4444
    %4469 = vst [vmem:[#allocation3 + $0x600] sm:$0xff] %v4437
    %4470 = vst [vmem:[#allocation3 + $0x640] sm:$0xff] %v4438
    %4471 = vst [vmem:[#allocation3 + $0x680] sm:$0xff] %v4439
    %4472 = vst [vmem:[#allocation3 + $0x6c0] sm:$0xff] %v4440
    %4473 = vst [vmem:[#allocation3 + $0x700] sm:$0xff] %v4441
    %4474 = vst [vmem:[#allocation3 + $0x740] sm:$0xff] %v4442
    %4475 = vst [vmem:[#allocation3 + $0x780] sm:$0xff] %v4443
    %4476 = vst [vmem:[#allocation3 + $0x7c0] sm:$0xff] %v4444
    %v4477 = vmax.f32 %v3413, %v3414
    %v4478 = vmax.f32 %v3437, %v3438
    %v4479 = vmax.f32 %v3461, %v3462
    %v4480 = vmax.f32 %v3485, %v3486
    %v4481 = vmax.f32 %v3509, %v3510
    %v4482 = vmax.f32 %v3533, %v3534
    %v4483 = vmax.f32 %v3557, %v3558
    %v4484 = vmax.f32 %v3581, %v3582
    %v4485 = vmax.f32 %v3605, %v3606
    %v4486 = vmax.f32 %v3629, %v3630
    %v4487 = vmax.f32 %v3653, %v3654
    %v4488 = vmax.f32 %v3677, %v3678
    %v4489 = vmax.f32 %v3701, %v3702
    %v4490 = vmax.f32 %v3725, %v3726
    %v4491 = vmax.f32 %v3749, %v3750
    %v4492 = vmax.f32 %v3773, %v3774
    %v4493 = vld [vmem:[%s2] sm:$0xff]
    %v4494 = vld [vmem:[%s2 + $0x8] sm:$0xff]
    %v4495 = vld [vmem:[%s2 + $0x10] sm:$0xff]
    %v4496 = vld [vmem:[%s2 + $0x18] sm:$0xff]
    %v4497 = vld [vmem:[%s2 + $0x20] sm:$0xff]
    %v4498 = vld [vmem:[%s2 + $0x28] sm:$0xff]
    %v4499 = vld [vmem:[%s2 + $0x30] sm:$0xff]
    %v4500 = vld [vmem:[%s2 + $0x38] sm:$0xff]
    %v4501 = vld [vmem:[%s2 + $0x40] sm:$0xff]
    %v4502 = vld [vmem:[%s2 + $0x48] sm:$0xff]
    %v4503 = vld [vmem:[%s2 + $0x50] sm:$0xff]
    %v4504 = vld [vmem:[%s2 + $0x58] sm:$0xff]
    %v4505 = vld [vmem:[%s2 + $0x60] sm:$0xff]
    %v4506 = vld [vmem:[%s2 + $0x68] sm:$0xff]
    %v4507 = vld [vmem:[%s2 + $0x70] sm:$0xff]
    %v4508 = vld [vmem:[%s2 + $0x78] sm:$0xff]
    %4510 = vset.pattern.permute.xlu0 0
    %4511 = vperm.xlu0 %4510, %v4493
    %v4512 = vpop.permute.xlu0 %4511
    %4515 = vset.pattern.permute.xlu0 0
    %4516 = vperm.xlu0 %4515, %v4494
    %v4517 = vpop.permute.xlu0 %4516
    %4520 = vset.pattern.permute.xlu0 0
    %4521 = vperm.xlu0 %4520, %v4495
    %v4522 = vpop.permute.xlu0 %4521
    %4525 = vset.pattern.permute.xlu0 0
    %4526 = vperm.xlu0 %4525, %v4496
    %v4527 = vpop.permute.xlu0 %4526
    %4530 = vset.pattern.permute.xlu0 0
    %4531 = vperm.xlu0 %4530, %v4497
    %v4532 = vpop.permute.xlu0 %4531
    %4535 = vset.pattern.permute.xlu0 0
    %4536 = vperm.xlu0 %4535, %v4498
    %v4537 = vpop.permute.xlu0 %4536
    %4540 = vset.pattern.permute.xlu0 0
    %4541 = vperm.xlu0 %4540, %v4499
    %v4542 = vpop.permute.xlu0 %4541
    %4545 = vset.pattern.permute.xlu0 0
    %4546 = vperm.xlu0 %4545, %v4500
    %v4547 = vpop.permute.xlu0 %4546
    %4550 = vset.pattern.permute.xlu0 0
    %4551 = vperm.xlu0 %4550, %v4501
    %v4552 = vpop.permute.xlu0 %4551
    %4555 = vset.pattern.permute.xlu0 0
    %4556 = vperm.xlu0 %4555, %v4502
    %v4557 = vpop.permute.xlu0 %4556
    %4560 = vset.pattern.permute.xlu0 0
    %4561 = vperm.xlu0 %4560, %v4503
    %v4562 = vpop.permute.xlu0 %4561
    %4565 = vset.pattern.permute.xlu0 0
    %4566 = vperm.xlu0 %4565, %v4504
    %v4567 = vpop.permute.xlu0 %4566
    %4570 = vset.pattern.permute.xlu0 0
    %4571 = vperm.xlu0 %4570, %v4505
    %v4572 = vpop.permute.xlu0 %4571
    %4575 = vset.pattern.permute.xlu0 0
    %4576 = vperm.xlu0 %4575, %v4506
    %v4577 = vpop.permute.xlu0 %4576
    %4580 = vset.pattern.permute.xlu0 0
    %4581 = vperm.xlu0 %4580, %v4507
    %v4582 = vpop.permute.xlu0 %4581
    %4585 = vset.pattern.permute.xlu0 0
    %4586 = vperm.xlu0 %4585, %v4508
    %v4587 = vpop.permute.xlu0 %4586
    %v4589 = vadd.f32 %v4477, %v4512
    %v4590 = vadd.f32 %v4478, %v4517
    %v4591 = vadd.f32 %v4479, %v4522
    %v4592 = vadd.f32 %v4480, %v4527
    %v4593 = vadd.f32 %v4481, %v4532
    %v4594 = vadd.f32 %v4482, %v4537
    %v4595 = vadd.f32 %v4483, %v4542
    %v4596 = vadd.f32 %v4484, %v4547
    %v4597 = vadd.f32 %v4485, %v4552
    %v4598 = vadd.f32 %v4486, %v4557
    %v4599 = vadd.f32 %v4487, %v4562
    %v4600 = vadd.f32 %v4488, %v4567
    %v4601 = vadd.f32 %v4489, %v4572
    %v4602 = vadd.f32 %v4490, %v4577
    %v4603 = vadd.f32 %v4491, %v4582
    %v4604 = vadd.f32 %v4492, %v4587
    %v4605 = vmax.f32 %v4589, 0.0
    %v4606 = vmax.f32 %v4590, 0.0
    %v4607 = vmax.f32 %v4591, 0.0
    %v4608 = vmax.f32 %v4592, 0.0
    %v4609 = vmax.f32 %v4593, 0.0
    %v4610 = vmax.f32 %v4594, 0.0
    %v4611 = vmax.f32 %v4595, 0.0
    %v4612 = vmax.f32 %v4596, 0.0
    %v4613 = vmax.f32 %v4597, 0.0
    %v4614 = vmax.f32 %v4598, 0.0
    %v4615 = vmax.f32 %v4599, 0.0
    %v4616 = vmax.f32 %v4600, 0.0
    %v4617 = vmax.f32 %v4601, 0.0
    %v4618 = vmax.f32 %v4602, 0.0
    %v4619 = vmax.f32 %v4603, 0.0
    %v4620 = vmax.f32 %v4604, 0.0
    %v4621 = vpack.c.bf16 %v4606, %v4605
    %v4622 = vpack.c.bf16 %v4608, %v4607
    %v4623 = vpack.c.bf16 %v4610, %v4609
    %v4624 = vpack.c.bf16 %v4612, %v4611
    %v4625 = vpack.c.bf16 %v4614, %v4613
    %v4626 = vpack.c.bf16 %v4616, %v4615
    %v4627 = vpack.c.bf16 %v4618, %v4617
    %v4628 = vpack.c.bf16 %v4620, %v4619
    %4629 = vst [vmem:[#allocation3 + $0x20] sm:$0xff] %v4621
    %4630 = vst [vmem:[#allocation3 + $0x60] sm:$0xff] %v4622
    %4631 = vst [vmem:[#allocation3 + $0xa0] sm:$0xff] %v4623
    %4632 = vst [vmem:[#allocation3 + $0xe0] sm:$0xff] %v4624
    %4633 = vst [vmem:[#allocation3 + $0x120] sm:$0xff] %v4625
    %4634 = vst [vmem:[#allocation3 + $0x160] sm:$0xff] %v4626
    %4635 = vst [vmem:[#allocation3 + $0x1a0] sm:$0xff] %v4627
    %4636 = vst [vmem:[#allocation3 + $0x1e0] sm:$0xff] %v4628
    %4637 = vst [vmem:[#allocation3 + $0x218] sm:$0xff] %v4621
    %4638 = vst [vmem:[#allocation3 + $0x258] sm:$0xff] %v4622
    %4639 = vst [vmem:[#allocation3 + $0x298] sm:$0xff] %v4623
    %4640 = vst [vmem:[#allocation3 + $0x2d8] sm:$0xff] %v4624
    %4641 = vst [vmem:[#allocation3 + $0x318] sm:$0xff] %v4625
    %4642 = vst [vmem:[#allocation3 + $0x358] sm:$0xff] %v4626
    %4643 = vst [vmem:[#allocation3 + $0x398] sm:$0xff] %v4627
    %4644 = vst [vmem:[#allocation3 + $0x3d8] sm:$0xff] %v4628
    %4645 = vst [vmem:[#allocation3 + $0x410] sm:$0xff] %v4621
    %4646 = vst [vmem:[#allocation3 + $0x450] sm:$0xff] %v4622
    %4647 = vst [vmem:[#allocation3 + $0x490] sm:$0xff] %v4623
    %4648 = vst [vmem:[#allocation3 + $0x4d0] sm:$0xff] %v4624
    %4649 = vst [vmem:[#allocation3 + $0x510] sm:$0xff] %v4625
    %4650 = vst [vmem:[#allocation3 + $0x550] sm:$0xff] %v4626
    %4651 = vst [vmem:[#allocation3 + $0x590] sm:$0xff] %v4627
    %4652 = vst [vmem:[#allocation3 + $0x5d0] sm:$0xff] %v4628
    %4653 = vst [vmem:[#allocation3 + $0x608] sm:$0xff] %v4621
    %4654 = vst [vmem:[#allocation3 + $0x648] sm:$0xff] %v4622
    %4655 = vst [vmem:[#allocation3 + $0x688] sm:$0xff] %v4623
    %4656 = vst [vmem:[#allocation3 + $0x6c8] sm:$0xff] %v4624
    %4657 = vst [vmem:[#allocation3 + $0x708] sm:$0xff] %v4625
    %4658 = vst [vmem:[#allocation3 + $0x748] sm:$0xff] %v4626
    %4659 = vst [vmem:[#allocation3 + $0x788] sm:$0xff] %v4627
    %4660 = vst [vmem:[#allocation3 + $0x7c8] sm:$0xff] %v4628
    %4661 = vst [vmem:[#allocation3 + $0x800] sm:$0xff] %v4621
    %4662 = vst [vmem:[#allocation3 + $0x840] sm:$0xff] %v4622
    %4663 = vst [vmem:[#allocation3 + $0x880] sm:$0xff] %v4623
    %4664 = vst [vmem:[#allocation3 + $0x8c0] sm:$0xff] %v4624
    %4665 = vst [vmem:[#allocation3 + $0x900] sm:$0xff] %v4625
    %4666 = vst [vmem:[#allocation3 + $0x940] sm:$0xff] %v4626
    %4667 = vst [vmem:[#allocation3 + $0x980] sm:$0xff] %v4627
    %4668 = vst [vmem:[#allocation3 + $0x9c0] sm:$0xff] %v4628
    %v4669 = vmax.f32 %v3415, %v3416
    %v4670 = vmax.f32 %v3439, %v3440
    %v4671 = vmax.f32 %v3463, %v3464
    %v4672 = vmax.f32 %v3487, %v3488
    %v4673 = vmax.f32 %v3511, %v3512
    %v4674 = vmax.f32 %v3535, %v3536
    %v4675 = vmax.f32 %v3559, %v3560
    %v4676 = vmax.f32 %v3583, %v3584
    %v4677 = vmax.f32 %v3607, %v3608
    %v4678 = vmax.f32 %v3631, %v3632
    %v4679 = vmax.f32 %v3655, %v3656
    %v4680 = vmax.f32 %v3679, %v3680
    %v4681 = vmax.f32 %v3703, %v3704
    %v4682 = vmax.f32 %v3727, %v3728
    %v4683 = vmax.f32 %v3751, %v3752
    %v4684 = vmax.f32 %v3775, %v3776
    %v4685 = vld [vmem:[%s2] sm:$0xff]
    %v4686 = vld [vmem:[%s2 + $0x8] sm:$0xff]
    %v4687 = vld [vmem:[%s2 + $0x10] sm:$0xff]
    %v4688 = vld [vmem:[%s2 + $0x18] sm:$0xff]
    %v4689 = vld [vmem:[%s2 + $0x20] sm:$0xff]
    %v4690 = vld [vmem:[%s2 + $0x28] sm:$0xff]
    %v4691 = vld [vmem:[%s2 + $0x30] sm:$0xff]
    %v4692 = vld [vmem:[%s2 + $0x38] sm:$0xff]
    %v4693 = vld [vmem:[%s2 + $0x40] sm:$0xff]
    %v4694 = vld [vmem:[%s2 + $0x48] sm:$0xff]
    %v4695 = vld [vmem:[%s2 + $0x50] sm:$0xff]
    %v4696 = vld [vmem:[%s2 + $0x58] sm:$0xff]
    %v4697 = vld [vmem:[%s2 + $0x60] sm:$0xff]
    %v4698 = vld [vmem:[%s2 + $0x68] sm:$0xff]
    %v4699 = vld [vmem:[%s2 + $0x70] sm:$0xff]
    %v4700 = vld [vmem:[%s2 + $0x78] sm:$0xff]
    %4702 = vset.pattern.permute.xlu0 0
    %4703 = vperm.xlu0 %4702, %v4685
    %v4704 = vpop.permute.xlu0 %4703
    %4707 = vset.pattern.permute.xlu0 0
    %4708 = vperm.xlu0 %4707, %v4686
    %v4709 = vpop.permute.xlu0 %4708
    %4712 = vset.pattern.permute.xlu0 0
    %4713 = vperm.xlu0 %4712, %v4687
    %v4714 = vpop.permute.xlu0 %4713
    %4717 = vset.pattern.permute.xlu0 0
    %4718 = vperm.xlu0 %4717, %v4688
    %v4719 = vpop.permute.xlu0 %4718
    %4722 = vset.pattern.permute.xlu0 0
    %4723 = vperm.xlu0 %4722, %v4689
    %v4724 = vpop.permute.xlu0 %4723
    %4727 = vset.pattern.permute.xlu0 0
    %4728 = vperm.xlu0 %4727, %v4690
    %v4729 = vpop.permute.xlu0 %4728
    %4732 = vset.pattern.permute.xlu0 0
    %4733 = vperm.xlu0 %4732, %v4691
    %v4734 = vpop.permute.xlu0 %4733
    %4737 = vset.pattern.permute.xlu0 0
    %4738 = vperm.xlu0 %4737, %v4692
    %v4739 = vpop.permute.xlu0 %4738
    %4742 = vset.pattern.permute.xlu0 0
    %4743 = vperm.xlu0 %4742, %v4693
    %v4744 = vpop.permute.xlu0 %4743
    %4747 = vset.pattern.permute.xlu0 0
    %4748 = vperm.xlu0 %4747, %v4694
    %v4749 = vpop.permute.xlu0 %4748
    %4752 = vset.pattern.permute.xlu0 0
    %4753 = vperm.xlu0 %4752, %v4695
    %v4754 = vpop.permute.xlu0 %4753
    %4757 = vset.pattern.permute.xlu0 0
    %4758 = vperm.xlu0 %4757, %v4696
    %v4759 = vpop.permute.xlu0 %4758
    %4762 = vset.pattern.permute.xlu0 0
    %4763 = vperm.xlu0 %4762, %v4697
    %v4764 = vpop.permute.xlu0 %4763
    %4767 = vset.pattern.permute.xlu0 0
    %4768 = vperm.xlu0 %4767, %v4698
    %v4769 = vpop.permute.xlu0 %4768
    %4772 = vset.pattern.permute.xlu0 0
    %4773 = vperm.xlu0 %4772, %v4699
    %v4774 = vpop.permute.xlu0 %4773
    %4777 = vset.pattern.permute.xlu0 0
    %4778 = vperm.xlu0 %4777, %v4700
    %v4779 = vpop.permute.xlu0 %4778
    %v4781 = vadd.f32 %v4669, %v4704
    %v4782 = vadd.f32 %v4670, %v4709
    %v4783 = vadd.f32 %v4671, %v4714
    %v4784 = vadd.f32 %v4672, %v4719
    %v4785 = vadd.f32 %v4673, %v4724
    %v4786 = vadd.f32 %v4674, %v4729
    %v4787 = vadd.f32 %v4675, %v4734
    %v4788 = vadd.f32 %v4676, %v4739
    %v4789 = vadd.f32 %v4677, %v4744
    %v4790 = vadd.f32 %v4678, %v4749
    %v4791 = vadd.f32 %v4679, %v4754
    %v4792 = vadd.f32 %v4680, %v4759
    %v4793 = vadd.f32 %v4681, %v4764
    %v4794 = vadd.f32 %v4682, %v4769
    %v4795 = vadd.f32 %v4683, %v4774
    %v4796 = vadd.f32 %v4684, %v4779
    %v4797 = vmax.f32 %v4781, 0.0
    %v4798 = vmax.f32 %v4782, 0.0
    %v4799 = vmax.f32 %v4783, 0.0
    %v4800 = vmax.f32 %v4784, 0.0
    %v4801 = vmax.f32 %v4785, 0.0
    %v4802 = vmax.f32 %v4786, 0.0
    %v4803 = vmax.f32 %v4787, 0.0
    %v4804 = vmax.f32 %v4788, 0.0
    %v4805 = vmax.f32 %v4789, 0.0
    %v4806 = vmax.f32 %v4790, 0.0
    %v4807 = vmax.f32 %v4791, 0.0
    %v4808 = vmax.f32 %v4792, 0.0
    %v4809 = vmax.f32 %v4793, 0.0
    %v4810 = vmax.f32 %v4794, 0.0
    %v4811 = vmax.f32 %v4795, 0.0
    %v4812 = vmax.f32 %v4796, 0.0
    %v4813 = vpack.c.bf16 %v4798, %v4797
    %v4814 = vpack.c.bf16 %v4800, %v4799
    %v4815 = vpack.c.bf16 %v4802, %v4801
    %v4816 = vpack.c.bf16 %v4804, %v4803
    %v4817 = vpack.c.bf16 %v4806, %v4805
    %v4818 = vpack.c.bf16 %v4808, %v4807
    %v4819 = vpack.c.bf16 %v4810, %v4809
    %v4820 = vpack.c.bf16 %v4812, %v4811
    %4821 = vst [vmem:[#allocation3 + $0x28] sm:$0xff] %v4813
    %4822 = vst [vmem:[#allocation3 + $0x68] sm:$0xff] %v4814
    %4823 = vst [vmem:[#allocation3 + $0xa8] sm:$0xff] %v4815
    %4824 = vst [vmem:[#allocation3 + $0xe8] sm:$0xff] %v4816
    %4825 = vst [vmem:[#allocation3 + $0x128] sm:$0xff] %v4817
    %4826 = vst [vmem:[#allocation3 + $0x168] sm:$0xff] %v4818
    %4827 = vst [vmem:[#allocation3 + $0x1a8] sm:$0xff] %v4819
    %4828 = vst [vmem:[#allocation3 + $0x1e8] sm:$0xff] %v4820
    %4829 = vst [vmem:[#allocation3 + $0x220] sm:$0xff] %v4813
    %4830 = vst [vmem:[#allocation3 + $0x260] sm:$0xff] %v4814
    %4831 = vst [vmem:[#allocation3 + $0x2a0] sm:$0xff] %v4815
    %4832 = vst [vmem:[#allocation3 + $0x2e0] sm:$0xff] %v4816
    %4833 = vst [vmem:[#allocation3 + $0x320] sm:$0xff] %v4817
    %4834 = vst [vmem:[#allocation3 + $0x360] sm:$0xff] %v4818
    %4835 = vst [vmem:[#allocation3 + $0x3a0] sm:$0xff] %v4819
    %4836 = vst [vmem:[#allocation3 + $0x3e0] sm:$0xff] %v4820
    %4837 = vst [vmem:[#allocation3 + $0x418] sm:$0xff] %v4813
    %4838 = vst [vmem:[#allocation3 + $0x458] sm:$0xff] %v4814
    %4839 = vst [vmem:[#allocation3 + $0x498] sm:$0xff] %v4815
    %4840 = vst [vmem:[#allocation3 + $0x4d8] sm:$0xff] %v4816
    %4841 = vst [vmem:[#allocation3 + $0x518] sm:$0xff] %v4817
    %4842 = vst [vmem:[#allocation3 + $0x558] sm:$0xff] %v4818
    %4843 = vst [vmem:[#allocation3 + $0x598] sm:$0xff] %v4819
    %4844 = vst [vmem:[#allocation3 + $0x5d8] sm:$0xff] %v4820
    %4845 = vst [vmem:[#allocation3 + $0x610] sm:$0xff] %v4813
    %4846 = vst [vmem:[#allocation3 + $0x650] sm:$0xff] %v4814
    %4847 = vst [vmem:[#allocation3 + $0x690] sm:$0xff] %v4815
    %4848 = vst [vmem:[#allocation3 + $0x6d0] sm:$0xff] %v4816
    %4849 = vst [vmem:[#allocation3 + $0x710] sm:$0xff] %v4817
    %4850 = vst [vmem:[#allocation3 + $0x750] sm:$0xff] %v4818
    %4851 = vst [vmem:[#allocation3 + $0x790] sm:$0xff] %v4819
    %4852 = vst [vmem:[#allocation3 + $0x7d0] sm:$0xff] %v4820
    %4853 = vst [vmem:[#allocation3 + $0x808] sm:$0xff] %v4813
    %4854 = vst [vmem:[#allocation3 + $0x848] sm:$0xff] %v4814
    %4855 = vst [vmem:[#allocation3 + $0x888] sm:$0xff] %v4815
    %4856 = vst [vmem:[#allocation3 + $0x8c8] sm:$0xff] %v4816
    %4857 = vst [vmem:[#allocation3 + $0x908] sm:$0xff] %v4817
    %4858 = vst [vmem:[#allocation3 + $0x948] sm:$0xff] %v4818
    %4859 = vst [vmem:[#allocation3 + $0x988] sm:$0xff] %v4819
    %4860 = vst [vmem:[#allocation3 + $0x9c8] sm:$0xff] %v4820
    %v4861 = vmax.f32 %v3417, %v3418
    %v4862 = vmax.f32 %v3441, %v3442
    %v4863 = vmax.f32 %v3465, %v3466
    %v4864 = vmax.f32 %v3489, %v3490
    %v4865 = vmax.f32 %v3513, %v3514
    %v4866 = vmax.f32 %v3537, %v3538
    %v4867 = vmax.f32 %v3561, %v3562
    %v4868 = vmax.f32 %v3585, %v3586
    %v4869 = vmax.f32 %v3609, %v3610
    %v4870 = vmax.f32 %v3633, %v3634
    %v4871 = vmax.f32 %v3657, %v3658
    %v4872 = vmax.f32 %v3681, %v3682
    %v4873 = vmax.f32 %v3705, %v3706
    %v4874 = vmax.f32 %v3729, %v3730
    %v4875 = vmax.f32 %v3753, %v3754
    %v4876 = vmax.f32 %v3777, %v3778
    %v4877 = vld [vmem:[%s2] sm:$0xff]
    %v4878 = vld [vmem:[%s2 + $0x8] sm:$0xff]
    %v4879 = vld [vmem:[%s2 + $0x10] sm:$0xff]
    %v4880 = vld [vmem:[%s2 + $0x18] sm:$0xff]
    %v4881 = vld [vmem:[%s2 + $0x20] sm:$0xff]
    %v4882 = vld [vmem:[%s2 + $0x28] sm:$0xff]
    %v4883 = vld [vmem:[%s2 + $0x30] sm:$0xff]
    %v4884 = vld [vmem:[%s2 + $0x38] sm:$0xff]
    %v4885 = vld [vmem:[%s2 + $0x40] sm:$0xff]
    %v4886 = vld [vmem:[%s2 + $0x48] sm:$0xff]
    %v4887 = vld [vmem:[%s2 + $0x50] sm:$0xff]
    %v4888 = vld [vmem:[%s2 + $0x58] sm:$0xff]
    %v4889 = vld [vmem:[%s2 + $0x60] sm:$0xff]
    %v4890 = vld [vmem:[%s2 + $0x68] sm:$0xff]
    %v4891 = vld [vmem:[%s2 + $0x70] sm:$0xff]
    %v4892 = vld [vmem:[%s2 + $0x78] sm:$0xff]
    %4894 = vset.pattern.permute.xlu0 0
    %4895 = vperm.xlu0 %4894, %v4877
    %v4896 = vpop.permute.xlu0 %4895
    %4899 = vset.pattern.permute.xlu0 0
    %4900 = vperm.xlu0 %4899, %v4878
    %v4901 = vpop.permute.xlu0 %4900
    %4904 = vset.pattern.permute.xlu0 0
    %4905 = vperm.xlu0 %4904, %v4879
    %v4906 = vpop.permute.xlu0 %4905
    %4909 = vset.pattern.permute.xlu0 0
    %4910 = vperm.xlu0 %4909, %v4880
    %v4911 = vpop.permute.xlu0 %4910
    %4914 = vset.pattern.permute.xlu0 0
    %4915 = vperm.xlu0 %4914, %v4881
    %v4916 = vpop.permute.xlu0 %4915
    %4919 = vset.pattern.permute.xlu0 0
    %4920 = vperm.xlu0 %4919, %v4882
    %v4921 = vpop.permute.xlu0 %4920
    %4924 = vset.pattern.permute.xlu0 0
    %4925 = vperm.xlu0 %4924, %v4883
    %v4926 = vpop.permute.xlu0 %4925
    %4929 = vset.pattern.permute.xlu0 0
    %4930 = vperm.xlu0 %4929, %v4884
    %v4931 = vpop.permute.xlu0 %4930
    %4934 = vset.pattern.permute.xlu0 0
    %4935 = vperm.xlu0 %4934, %v4885
    %v4936 = vpop.permute.xlu0 %4935
    %4939 = vset.pattern.permute.xlu0 0
    %4940 = vperm.xlu0 %4939, %v4886
    %v4941 = vpop.permute.xlu0 %4940
    %4944 = vset.pattern.permute.xlu0 0
    %4945 = vperm.xlu0 %4944, %v4887
    %v4946 = vpop.permute.xlu0 %4945
    %4949 = vset.pattern.permute.xlu0 0
    %4950 = vperm.xlu0 %4949, %v4888
    %v4951 = vpop.permute.xlu0 %4950
    %4954 = vset.pattern.permute.xlu0 0
    %4955 = vperm.xlu0 %4954, %v4889
    %v4956 = vpop.permute.xlu0 %4955
    %4959 = vset.pattern.permute.xlu0 0
    %4960 = vperm.xlu0 %4959, %v4890
    %v4961 = vpop.permute.xlu0 %4960
    %4964 = vset.pattern.permute.xlu0 0
    %4965 = vperm.xlu0 %4964, %v4891
    %v4966 = vpop.permute.xlu0 %4965
    %4969 = vset.pattern.permute.xlu0 0
    %4970 = vperm.xlu0 %4969, %v4892
    %v4971 = vpop.permute.xlu0 %4970
    %v4973 = vadd.f32 %v4861, %v4896
    %v4974 = vadd.f32 %v4862, %v4901
    %v4975 = vadd.f32 %v4863, %v4906
    %v4976 = vadd.f32 %v4864, %v4911
    %v4977 = vadd.f32 %v4865, %v4916
    %v4978 = vadd.f32 %v4866, %v4921
    %v4979 = vadd.f32 %v4867, %v4926
    %v4980 = vadd.f32 %v4868, %v4931
    %v4981 = vadd.f32 %v4869, %v4936
    %v4982 = vadd.f32 %v4870, %v4941
    %v4983 = vadd.f32 %v4871, %v4946
    %v4984 = vadd.f32 %v4872, %v4951
    %v4985 = vadd.f32 %v4873, %v4956
    %v4986 = vadd.f32 %v4874, %v4961
    %v4987 = vadd.f32 %v4875, %v4966
    %v4988 = vadd.f32 %v4876, %v4971
    %v4989 = vmax.f32 %v4973, 0.0
    %v4990 = vmax.f32 %v4974, 0.0
    %v4991 = vmax.f32 %v4975, 0.0
    %v4992 = vmax.f32 %v4976, 0.0
    %v4993 = vmax.f32 %v4977, 0.0
    %v4994 = vmax.f32 %v4978, 0.0
    %v4995 = vmax.f32 %v4979, 0.0
    %v4996 = vmax.f32 %v4980, 0.0
    %v4997 = vmax.f32 %v4981, 0.0
    %v4998 = vmax.f32 %v4982, 0.0
    %v4999 = vmax.f32 %v4983, 0.0
    %v5000 = vmax.f32 %v4984, 0.0
    %v5001 = vmax.f32 %v4985, 0.0
    %v5002 = vmax.f32 %v4986, 0.0
    %v5003 = vmax.f32 %v4987, 0.0
    %v5004 = vmax.f32 %v4988, 0.0
    %v5005 = vpack.c.bf16 %v4990, %v4989
    %v5006 = vpack.c.bf16 %v4992, %v4991
    %v5007 = vpack.c.bf16 %v4994, %v4993
    %v5008 = vpack.c.bf16 %v4996, %v4995
    %v5009 = vpack.c.bf16 %v4998, %v4997
    %v5010 = vpack.c.bf16 %v5000, %v4999
    %v5011 = vpack.c.bf16 %v5002, %v5001
    %v5012 = vpack.c.bf16 %v5004, %v5003
    %5013 = vst [vmem:[#allocation3 + $0x30] sm:$0xff] %v5005
    %5014 = vst [vmem:[#allocation3 + $0x70] sm:$0xff] %v5006
    %5015 = vst [vmem:[#allocation3 + $0xb0] sm:$0xff] %v5007
    %5016 = vst [vmem:[#allocation3 + $0xf0] sm:$0xff] %v5008
    %5017 = vst [vmem:[#allocation3 + $0x130] sm:$0xff] %v5009
    %5018 = vst [vmem:[#allocation3 + $0x170] sm:$0xff] %v5010
    %5019 = vst [vmem:[#allocation3 + $0x1b0] sm:$0xff] %v5011
    %5020 = vst [vmem:[#allocation3 + $0x1f0] sm:$0xff] %v5012
    %5021 = vst [vmem:[#allocation3 + $0x228] sm:$0xff] %v5005
    %5022 = vst [vmem:[#allocation3 + $0x268] sm:$0xff] %v5006
    %5023 = vst [vmem:[#allocation3 + $0x2a8] sm:$0xff] %v5007
    %5024 = vst [vmem:[#allocation3 + $0x2e8] sm:$0xff] %v5008
    %5025 = vst [vmem:[#allocation3 + $0x328] sm:$0xff] %v5009
    %5026 = vst [vmem:[#allocation3 + $0x368] sm:$0xff] %v5010
    %5027 = vst [vmem:[#allocation3 + $0x3a8] sm:$0xff] %v5011
    %5028 = vst [vmem:[#allocation3 + $0x3e8] sm:$0xff] %v5012
    %5029 = vst [vmem:[#allocation3 + $0x420] sm:$0xff] %v5005
    %5030 = vst [vmem:[#allocation3 + $0x460] sm:$0xff] %v5006
    %5031 = vst [vmem:[#allocation3 + $0x4a0] sm:$0xff] %v5007
    %5032 = vst [vmem:[#allocation3 + $0x4e0] sm:$0xff] %v5008
    %5033 = vst [vmem:[#allocation3 + $0x520] sm:$0xff] %v5009
    %5034 = vst [vmem:[#allocation3 + $0x560] sm:$0xff] %v5010
    %5035 = vst [vmem:[#allocation3 + $0x5a0] sm:$0xff] %v5011
    %5036 = vst [vmem:[#allocation3 + $0x5e0] sm:$0xff] %v5012
    %5037 = vst [vmem:[#allocation3 + $0x618] sm:$0xff] %v5005
    %5038 = vst [vmem:[#allocation3 + $0x658] sm:$0xff] %v5006
    %5039 = vst [vmem:[#allocation3 + $0x698] sm:$0xff] %v5007
    %5040 = vst [vmem:[#allocation3 + $0x6d8] sm:$0xff] %v5008
    %5041 = vst [vmem:[#allocation3 + $0x718] sm:$0xff] %v5009
    %5042 = vst [vmem:[#allocation3 + $0x758] sm:$0xff] %v5010
    %5043 = vst [vmem:[#allocation3 + $0x798] sm:$0xff] %v5011
    %5044 = vst [vmem:[#allocation3 + $0x7d8] sm:$0xff] %v5012
    %5045 = vst [vmem:[#allocation3 + $0x810] sm:$0xff] %v5005
    %5046 = vst [vmem:[#allocation3 + $0x850] sm:$0xff] %v5006
    %5047 = vst [vmem:[#allocation3 + $0x890] sm:$0xff] %v5007
    %5048 = vst [vmem:[#allocation3 + $0x8d0] sm:$0xff] %v5008
    %5049 = vst [vmem:[#allocation3 + $0x910] sm:$0xff] %v5009
    %5050 = vst [vmem:[#allocation3 + $0x950] sm:$0xff] %v5010
    %5051 = vst [vmem:[#allocation3 + $0x990] sm:$0xff] %v5011
    %5052 = vst [vmem:[#allocation3 + $0x9d0] sm:$0xff] %v5012
    %v5053 = vmax.f32 %v3419, %v3420
    %v5054 = vmax.f32 %v3443, %v3444
    %v5055 = vmax.f32 %v3467, %v3468
    %v5056 = vmax.f32 %v3491, %v3492
    %v5057 = vmax.f32 %v3515, %v3516
    %v5058 = vmax.f32 %v3539, %v3540
    %v5059 = vmax.f32 %v3563, %v3564
    %v5060 = vmax.f32 %v3587, %v3588
    %v5061 = vmax.f32 %v3611, %v3612
    %v5062 = vmax.f32 %v3635, %v3636
    %v5063 = vmax.f32 %v3659, %v3660
    %v5064 = vmax.f32 %v3683, %v3684
    %v5065 = vmax.f32 %v3707, %v3708
    %v5066 = vmax.f32 %v3731, %v3732
    %v5067 = vmax.f32 %v3755, %v3756
    %v5068 = vmax.f32 %v3779, %v3780
    %v5069 = vld [vmem:[%s2] sm:$0xff]
    %v5070 = vld [vmem:[%s2 + $0x8] sm:$0xff]
    %v5071 = vld [vmem:[%s2 + $0x10] sm:$0xff]
    %v5072 = vld [vmem:[%s2 + $0x18] sm:$0xff]
    %v5073 = vld [vmem:[%s2 + $0x20] sm:$0xff]
    %v5074 = vld [vmem:[%s2 + $0x28] sm:$0xff]
    %v5075 = vld [vmem:[%s2 + $0x30] sm:$0xff]
    %v5076 = vld [vmem:[%s2 + $0x38] sm:$0xff]
    %v5077 = vld [vmem:[%s2 + $0x40] sm:$0xff]
    %v5078 = vld [vmem:[%s2 + $0x48] sm:$0xff]
    %v5079 = vld [vmem:[%s2 + $0x50] sm:$0xff]
    %v5080 = vld [vmem:[%s2 + $0x58] sm:$0xff]
    %v5081 = vld [vmem:[%s2 + $0x60] sm:$0xff]
    %v5082 = vld [vmem:[%s2 + $0x68] sm:$0xff]
    %v5083 = vld [vmem:[%s2 + $0x70] sm:$0xff]
    %v5084 = vld [vmem:[%s2 + $0x78] sm:$0xff]
    %5086 = vset.pattern.permute.xlu0 0
    %5087 = vperm.xlu0 %5086, %v5069
    %v5088 = vpop.permute.xlu0 %5087
    %5091 = vset.pattern.permute.xlu0 0
    %5092 = vperm.xlu0 %5091, %v5070
    %v5093 = vpop.permute.xlu0 %5092
    %5096 = vset.pattern.permute.xlu0 0
    %5097 = vperm.xlu0 %5096, %v5071
    %v5098 = vpop.permute.xlu0 %5097
    %5101 = vset.pattern.permute.xlu0 0
    %5102 = vperm.xlu0 %5101, %v5072
    %v5103 = vpop.permute.xlu0 %5102
    %5106 = vset.pattern.permute.xlu0 0
    %5107 = vperm.xlu0 %5106, %v5073
    %v5108 = vpop.permute.xlu0 %5107
    %5111 = vset.pattern.permute.xlu0 0
    %5112 = vperm.xlu0 %5111, %v5074
    %v5113 = vpop.permute.xlu0 %5112
    %5116 = vset.pattern.permute.xlu0 0
    %5117 = vperm.xlu0 %5116, %v5075
    %v5118 = vpop.permute.xlu0 %5117
    %5121 = vset.pattern.permute.xlu0 0
    %5122 = vperm.xlu0 %5121, %v5076
    %v5123 = vpop.permute.xlu0 %5122
    %5126 = vset.pattern.permute.xlu0 0
    %5127 = vperm.xlu0 %5126, %v5077
    %v5128 = vpop.permute.xlu0 %5127
    %5131 = vset.pattern.permute.xlu0 0
    %5132 = vperm.xlu0 %5131, %v5078
    %v5133 = vpop.permute.xlu0 %5132
    %5136 = vset.pattern.permute.xlu0 0
    %5137 = vperm.xlu0 %5136, %v5079
    %v5138 = vpop.permute.xlu0 %5137
    %5141 = vset.pattern.permute.xlu0 0
    %5142 = vperm.xlu0 %5141, %v5080
    %v5143 = vpop.permute.xlu0 %5142
    %5146 = vset.pattern.permute.xlu0 0
    %5147 = vperm.xlu0 %5146, %v5081
    %v5148 = vpop.permute.xlu0 %5147
    %5151 = vset.pattern.permute.xlu0 0
    %5152 = vperm.xlu0 %5151, %v5082
    %v5153 = vpop.permute.xlu0 %5152
    %5156 = vset.pattern.permute.xlu0 0
    %5157 = vperm.xlu0 %5156, %v5083
    %v5158 = vpop.permute.xlu0 %5157
    %5161 = vset.pattern.permute.xlu0 0
    %5162 = vperm.xlu0 %5161, %v5084
    %v5163 = vpop.permute.xlu0 %5162
    %v5165 = vadd.f32 %v5053, %v5088
    %v5166 = vadd.f32 %v5054, %v5093
    %v5167 = vadd.f32 %v5055, %v5098
    %v5168 = vadd.f32 %v5056, %v5103
    %v5169 = vadd.f32 %v5057, %v5108
    %v5170 = vadd.f32 %v5058, %v5113
    %v5171 = vadd.f32 %v5059, %v5118
    %v5172 = vadd.f32 %v5060, %v5123
    %v5173 = vadd.f32 %v5061, %v5128
    %v5174 = vadd.f32 %v5062, %v5133
    %v5175 = vadd.f32 %v5063, %v5138
    %v5176 = vadd.f32 %v5064, %v5143
    %v5177 = vadd.f32 %v5065, %v5148
    %v5178 = vadd.f32 %v5066, %v5153
    %v5179 = vadd.f32 %v5067, %v5158
    %v5180 = vadd.f32 %v5068, %v5163
    %v5181 = vmax.f32 %v5165, 0.0
    %v5182 = vmax.f32 %v5166, 0.0
    %v5183 = vmax.f32 %v5167, 0.0
    %v5184 = vmax.f32 %v5168, 0.0
    %v5185 = vmax.f32 %v5169, 0.0
    %v5186 = vmax.f32 %v5170, 0.0
    %v5187 = vmax.f32 %v5171, 0.0
    %v5188 = vmax.f32 %v5172, 0.0
    %v5189 = vmax.f32 %v5173, 0.0
    %v5190 = vmax.f32 %v5174, 0.0
    %v5191 = vmax.f32 %v5175, 0.0
    %v5192 = vmax.f32 %v5176, 0.0
    %v5193 = vmax.f32 %v5177, 0.0
    %v5194 = vmax.f32 %v5178, 0.0
    %v5195 = vmax.f32 %v5179, 0.0
    %v5196 = vmax.f32 %v5180, 0.0
    %v5197 = vpack.c.bf16 %v5182, %v5181
    %v5198 = vpack.c.bf16 %v5184, %v5183
    %v5199 = vpack.c.bf16 %v5186, %v5185
    %v5200 = vpack.c.bf16 %v5188, %v5187
    %v5201 = vpack.c.bf16 %v5190, %v5189
    %v5202 = vpack.c.bf16 %v5192, %v5191
    %v5203 = vpack.c.bf16 %v5194, %v5193
    %v5204 = vpack.c.bf16 %v5196, %v5195
    %5205 = vst [vmem:[#allocation3 + $0x38] sm:$0xff] %v5197
    %5206 = vst [vmem:[#allocation3 + $0x78] sm:$0xff] %v5198
    %5207 = vst [vmem:[#allocation3 + $0xb8] sm:$0xff] %v5199
    %5208 = vst [vmem:[#allocation3 + $0xf8] sm:$0xff] %v5200
    %5209 = vst [vmem:[#allocation3 + $0x138] sm:$0xff] %v5201
    %5210 = vst [vmem:[#allocation3 + $0x178] sm:$0xff] %v5202
    %5211 = vst [vmem:[#allocation3 + $0x1b8] sm:$0xff] %v5203
    %5212 = vst [vmem:[#allocation3 + $0x1f8] sm:$0xff] %v5204
    %5213 = vst [vmem:[#allocation3 + $0x230] sm:$0xff] %v5197
    %5214 = vst [vmem:[#allocation3 + $0x270] sm:$0xff] %v5198
    %5215 = vst [vmem:[#allocation3 + $0x2b0] sm:$0xff] %v5199
    %5216 = vst [vmem:[#allocation3 + $0x2f0] sm:$0xff] %v5200
    %5217 = vst [vmem:[#allocation3 + $0x330] sm:$0xff] %v5201
    %5218 = vst [vmem:[#allocation3 + $0x370] sm:$0xff] %v5202
    %5219 = vst [vmem:[#allocation3 + $0x3b0] sm:$0xff] %v5203
    %5220 = vst [vmem:[#allocation3 + $0x3f0] sm:$0xff] %v5204
    %5221 = vst [vmem:[#allocation3 + $0x428] sm:$0xff] %v5197
    %5222 = vst [vmem:[#allocation3 + $0x468] sm:$0xff] %v5198
    %5223 = vst [vmem:[#allocation3 + $0x4a8] sm:$0xff] %v5199
    %5224 = vst [vmem:[#allocation3 + $0x4e8] sm:$0xff] %v5200
    %5225 = vst [vmem:[#allocation3 + $0x528] sm:$0xff] %v5201
    %5226 = vst [vmem:[#allocation3 + $0x568] sm:$0xff] %v5202
    %5227 = vst [vmem:[#allocation3 + $0x5a8] sm:$0xff] %v5203
    %5228 = vst [vmem:[#allocation3 + $0x5e8] sm:$0xff] %v5204
    %5229 = vst [vmem:[#allocation3 + $0x620] sm:$0xff] %v5197
    %5230 = vst [vmem:[#allocation3 + $0x660] sm:$0xff] %v5198
    %5231 = vst [vmem:[#allocation3 + $0x6a0] sm:$0xff] %v5199
    %5232 = vst [vmem:[#allocation3 + $0x6e0] sm:$0xff] %v5200
    %5233 = vst [vmem:[#allocation3 + $0x720] sm:$0xff] %v5201
    %5234 = vst [vmem:[#allocation3 + $0x760] sm:$0xff] %v5202
    %5235 = vst [vmem:[#allocation3 + $0x7a0] sm:$0xff] %v5203
    %5236 = vst [vmem:[#allocation3 + $0x7e0] sm:$0xff] %v5204
    %5237 = vst [vmem:[#allocation3 + $0x818] sm:$0xff] %v5197
    %5238 = vst [vmem:[#allocation3 + $0x858] sm:$0xff] %v5198
    %5239 = vst [vmem:[#allocation3 + $0x898] sm:$0xff] %v5199
    %5240 = vst [vmem:[#allocation3 + $0x8d8] sm:$0xff] %v5200
    %5241 = vst [vmem:[#allocation3 + $0x918] sm:$0xff] %v5201
    %5242 = vst [vmem:[#allocation3 + $0x958] sm:$0xff] %v5202
    %5243 = vst [vmem:[#allocation3 + $0x998] sm:$0xff] %v5203
    %5244 = vst [vmem:[#allocation3 + $0x9d8] sm:$0xff] %v5204
    %v5245 = vmax.f32 %v3421, %v3422
    %v5246 = vmax.f32 %v3445, %v3446
    %v5247 = vmax.f32 %v3469, %v3470
    %v5248 = vmax.f32 %v3493, %v3494
    %v5249 = vmax.f32 %v3517, %v3518
    %v5250 = vmax.f32 %v3541, %v3542
    %v5251 = vmax.f32 %v3565, %v3566
    %v5252 = vmax.f32 %v3589, %v3590
    %v5253 = vmax.f32 %v3613, %v3614
    %v5254 = vmax.f32 %v3637, %v3638
    %v5255 = vmax.f32 %v3661, %v3662
    %v5256 = vmax.f32 %v3685, %v3686
    %v5257 = vmax.f32 %v3709, %v3710
    %v5258 = vmax.f32 %v3733, %v3734
    %v5259 = vmax.f32 %v3757, %v3758
    %v5260 = vmax.f32 %v3781, %v3782
    %v5261 = vld [vmem:[%s2] sm:$0xff]
    %v5262 = vld [vmem:[%s2 + $0x8] sm:$0xff]
    %v5263 = vld [vmem:[%s2 + $0x10] sm:$0xff]
    %v5264 = vld [vmem:[%s2 + $0x18] sm:$0xff]
    %v5265 = vld [vmem:[%s2 + $0x20] sm:$0xff]
    %v5266 = vld [vmem:[%s2 + $0x28] sm:$0xff]
    %v5267 = vld [vmem:[%s2 + $0x30] sm:$0xff]
    %v5268 = vld [vmem:[%s2 + $0x38] sm:$0xff]
    %v5269 = vld [vmem:[%s2 + $0x40] sm:$0xff]
    %v5270 = vld [vmem:[%s2 + $0x48] sm:$0xff]
    %v5271 = vld [vmem:[%s2 + $0x50] sm:$0xff]
    %v5272 = vld [vmem:[%s2 + $0x58] sm:$0xff]
    %v5273 = vld [vmem:[%s2 + $0x60] sm:$0xff]
    %v5274 = vld [vmem:[%s2 + $0x68] sm:$0xff]
    %v5275 = vld [vmem:[%s2 + $0x70] sm:$0xff]
    %v5276 = vld [vmem:[%s2 + $0x78] sm:$0xff]
    %5278 = vset.pattern.permute.xlu0 0
    %5279 = vperm.xlu0 %5278, %v5261
    %v5280 = vpop.permute.xlu0 %5279
    %5283 = vset.pattern.permute.xlu0 0
    %5284 = vperm.xlu0 %5283, %v5262
    %v5285 = vpop.permute.xlu0 %5284
    %5288 = vset.pattern.permute.xlu0 0
    %5289 = vperm.xlu0 %5288, %v5263
    %v5290 = vpop.permute.xlu0 %5289
    %5293 = vset.pattern.permute.xlu0 0
    %5294 = vperm.xlu0 %5293, %v5264
    %v5295 = vpop.permute.xlu0 %5294
    %5298 = vset.pattern.permute.xlu0 0
    %5299 = vperm.xlu0 %5298, %v5265
    %v5300 = vpop.permute.xlu0 %5299
    %5303 = vset.pattern.permute.xlu0 0
    %5304 = vperm.xlu0 %5303, %v5266
    %v5305 = vpop.permute.xlu0 %5304
    %5308 = vset.pattern.permute.xlu0 0
    %5309 = vperm.xlu0 %5308, %v5267
    %v5310 = vpop.permute.xlu0 %5309
    %5313 = vset.pattern.permute.xlu0 0
    %5314 = vperm.xlu0 %5313, %v5268
    %v5315 = vpop.permute.xlu0 %5314
    %5318 = vset.pattern.permute.xlu0 0
    %5319 = vperm.xlu0 %5318, %v5269
    %v5320 = vpop.permute.xlu0 %5319
    %5323 = vset.pattern.permute.xlu0 0
    %5324 = vperm.xlu0 %5323, %v5270
    %v5325 = vpop.permute.xlu0 %5324
    %5328 = vset.pattern.permute.xlu0 0
    %5329 = vperm.xlu0 %5328, %v5271
    %v5330 = vpop.permute.xlu0 %5329
    %5333 = vset.pattern.permute.xlu0 0
    %5334 = vperm.xlu0 %5333, %v5272
    %v5335 = vpop.permute.xlu0 %5334
    %5338 = vset.pattern.permute.xlu0 0
    %5339 = vperm.xlu0 %5338, %v5273
    %v5340 = vpop.permute.xlu0 %5339
    %5343 = vset.pattern.permute.xlu0 0
    %5344 = vperm.xlu0 %5343, %v5274
    %v5345 = vpop.permute.xlu0 %5344
    %5348 = vset.pattern.permute.xlu0 0
    %5349 = vperm.xlu0 %5348, %v5275
    %v5350 = vpop.permute.xlu0 %5349
    %5353 = vset.pattern.permute.xlu0 0
    %5354 = vperm.xlu0 %5353, %v5276
    %v5355 = vpop.permute.xlu0 %5354
    %v5357 = vadd.f32 %v5245, %v5280
    %v5358 = vadd.f32 %v5246, %v5285
    %v5359 = vadd.f32 %v5247, %v5290
    %v5360 = vadd.f32 %v5248, %v5295
    %v5361 = vadd.f32 %v5249, %v5300
    %v5362 = vadd.f32 %v5250, %v5305
    %v5363 = vadd.f32 %v5251, %v5310
    %v5364 = vadd.f32 %v5252, %v5315
    %v5365 = vadd.f32 %v5253, %v5320
    %v5366 = vadd.f32 %v5254, %v5325
    %v5367 = vadd.f32 %v5255, %v5330
    %v5368 = vadd.f32 %v5256, %v5335
    %v5369 = vadd.f32 %v5257, %v5340
    %v5370 = vadd.f32 %v5258, %v5345
    %v5371 = vadd.f32 %v5259, %v5350
    %v5372 = vadd.f32 %v5260, %v5355
    %v5373 = vmax.f32 %v5357, 0.0
    %v5374 = vmax.f32 %v5358, 0.0
    %v5375 = vmax.f32 %v5359, 0.0
    %v5376 = vmax.f32 %v5360, 0.0
    %v5377 = vmax.f32 %v5361, 0.0
    %v5378 = vmax.f32 %v5362, 0.0
    %v5379 = vmax.f32 %v5363, 0.0
    %v5380 = vmax.f32 %v5364, 0.0
    %v5381 = vmax.f32 %v5365, 0.0
    %v5382 = vmax.f32 %v5366, 0.0
    %v5383 = vmax.f32 %v5367, 0.0
    %v5384 = vmax.f32 %v5368, 0.0
    %v5385 = vmax.f32 %v5369, 0.0
    %v5386 = vmax.f32 %v5370, 0.0
    %v5387 = vmax.f32 %v5371, 0.0
    %v5388 = vmax.f32 %v5372, 0.0
    %v5389 = vpack.c.bf16 %v5374, %v5373
    %v5390 = vpack.c.bf16 %v5376, %v5375
    %v5391 = vpack.c.bf16 %v5378, %v5377
    %v5392 = vpack.c.bf16 %v5380, %v5379
    %v5393 = vpack.c.bf16 %v5382, %v5381
    %v5394 = vpack.c.bf16 %v5384, %v5383
    %v5395 = vpack.c.bf16 %v5386, %v5385
    %v5396 = vpack.c.bf16 %v5388, %v5387
    %5397 = vst [vmem:[#allocation3 + $0x238] sm:$0xff] %v5389
    %5398 = vst [vmem:[#allocation3 + $0x278] sm:$0xff] %v5390
    %5399 = vst [vmem:[#allocation3 + $0x2b8] sm:$0xff] %v5391
    %5400 = vst [vmem:[#allocation3 + $0x2f8] sm:$0xff] %v5392
    %5401 = vst [vmem:[#allocation3 + $0x338] sm:$0xff] %v5393
    %5402 = vst [vmem:[#allocation3 + $0x378] sm:$0xff] %v5394
    %5403 = vst [vmem:[#allocation3 + $0x3b8] sm:$0xff] %v5395
    %5404 = vst [vmem:[#allocation3 + $0x3f8] sm:$0xff] %v5396
    %5405 = vst [vmem:[#allocation3 + $0x430] sm:$0xff] %v5389
    %5406 = vst [vmem:[#allocation3 + $0x470] sm:$0xff] %v5390
    %5407 = vst [vmem:[#allocation3 + $0x4b0] sm:$0xff] %v5391
    %5408 = vst [vmem:[#allocation3 + $0x4f0] sm:$0xff] %v5392
    %5409 = vst [vmem:[#allocation3 + $0x530] sm:$0xff] %v5393
    %5410 = vst [vmem:[#allocation3 + $0x570] sm:$0xff] %v5394
    %5411 = vst [vmem:[#allocation3 + $0x5b0] sm:$0xff] %v5395
    %5412 = vst [vmem:[#allocation3 + $0x5f0] sm:$0xff] %v5396
    %5413 = vst [vmem:[#allocation3 + $0x628] sm:$0xff] %v5389
    %5414 = vst [vmem:[#allocation3 + $0x668] sm:$0xff] %v5390
    %5415 = vst [vmem:[#allocation3 + $0x6a8] sm:$0xff] %v5391
    %5416 = vst [vmem:[#allocation3 + $0x6e8] sm:$0xff] %v5392
    %5417 = vst [vmem:[#allocation3 + $0x728] sm:$0xff] %v5393
    %5418 = vst [vmem:[#allocation3 + $0x768] sm:$0xff] %v5394
    %5419 = vst [vmem:[#allocation3 + $0x7a8] sm:$0xff] %v5395
    %5420 = vst [vmem:[#allocation3 + $0x7e8] sm:$0xff] %v5396
    %5421 = vst [vmem:[#allocation3 + $0x820] sm:$0xff] %v5389
    %5422 = vst [vmem:[#allocation3 + $0x860] sm:$0xff] %v5390
    %5423 = vst [vmem:[#allocation3 + $0x8a0] sm:$0xff] %v5391
    %5424 = vst [vmem:[#allocation3 + $0x8e0] sm:$0xff] %v5392
    %5425 = vst [vmem:[#allocation3 + $0x920] sm:$0xff] %v5393
    %5426 = vst [vmem:[#allocation3 + $0x960] sm:$0xff] %v5394
    %5427 = vst [vmem:[#allocation3 + $0x9a0] sm:$0xff] %v5395
    %5428 = vst [vmem:[#allocation3 + $0x9e0] sm:$0xff] %v5396
    %v5429 = vmax.f32 %v3423, %v3424
    %v5430 = vmax.f32 %v3447, %v3448
    %v5431 = vmax.f32 %v3471, %v3472
    %v5432 = vmax.f32 %v3495, %v3496
    %v5433 = vmax.f32 %v3519, %v3520
    %v5434 = vmax.f32 %v3543, %v3544
    %v5435 = vmax.f32 %v3567, %v3568
    %v5436 = vmax.f32 %v3591, %v3592
    %v5437 = vmax.f32 %v3615, %v3616
    %v5438 = vmax.f32 %v3639, %v3640
    %v5439 = vmax.f32 %v3663, %v3664
    %v5440 = vmax.f32 %v3687, %v3688
    %v5441 = vmax.f32 %v3711, %v3712
    %v5442 = vmax.f32 %v3735, %v3736
    %v5443 = vmax.f32 %v3759, %v3760
    %v5444 = vmax.f32 %v3783, %v3784
    %v5445 = vld [vmem:[%s2] sm:$0xff]
    %v5446 = vld [vmem:[%s2 + $0x8] sm:$0xff]
    %v5447 = vld [vmem:[%s2 + $0x10] sm:$0xff]
    %v5448 = vld [vmem:[%s2 + $0x18] sm:$0xff]
    %v5449 = vld [vmem:[%s2 + $0x20] sm:$0xff]
    %v5450 = vld [vmem:[%s2 + $0x28] sm:$0xff]
    %v5451 = vld [vmem:[%s2 + $0x30] sm:$0xff]
    %v5452 = vld [vmem:[%s2 + $0x38] sm:$0xff]
    %v5453 = vld [vmem:[%s2 + $0x40] sm:$0xff]
    %v5454 = vld [vmem:[%s2 + $0x48] sm:$0xff]
    %v5455 = vld [vmem:[%s2 + $0x50] sm:$0xff]
    %v5456 = vld [vmem:[%s2 + $0x58] sm:$0xff]
    %v5457 = vld [vmem:[%s2 + $0x60] sm:$0xff]
    %v5458 = vld [vmem:[%s2 + $0x68] sm:$0xff]
    %v5459 = vld [vmem:[%s2 + $0x70] sm:$0xff]
    %v5460 = vld [vmem:[%s2 + $0x78] sm:$0xff]
    %5462 = vset.pattern.permute.xlu0 0
    %5463 = vperm.xlu0 %5462, %v5445
    %v5464 = vpop.permute.xlu0 %5463
    %5467 = vset.pattern.permute.xlu0 0
    %5468 = vperm.xlu0 %5467, %v5446
    %v5469 = vpop.permute.xlu0 %5468
    %5472 = vset.pattern.permute.xlu0 0
    %5473 = vperm.xlu0 %5472, %v5447
    %v5474 = vpop.permute.xlu0 %5473
    %5477 = vset.pattern.permute.xlu0 0
    %5478 = vperm.xlu0 %5477, %v5448
    %v5479 = vpop.permute.xlu0 %5478
    %5482 = vset.pattern.permute.xlu0 0
    %5483 = vperm.xlu0 %5482, %v5449
    %v5484 = vpop.permute.xlu0 %5483
    %5487 = vset.pattern.permute.xlu0 0
    %5488 = vperm.xlu0 %5487, %v5450
    %v5489 = vpop.permute.xlu0 %5488
    %5492 = vset.pattern.permute.xlu0 0
    %5493 = vperm.xlu0 %5492, %v5451
    %v5494 = vpop.permute.xlu0 %5493
    %5497 = vset.pattern.permute.xlu0 0
    %5498 = vperm.xlu0 %5497, %v5452
    %v5499 = vpop.permute.xlu0 %5498
    %5502 = vset.pattern.permute.xlu0 0
    %5503 = vperm.xlu0 %5502, %v5453
    %v5504 = vpop.permute.xlu0 %5503
    %5507 = vset.pattern.permute.xlu0 0
    %5508 = vperm.xlu0 %5507, %v5454
    %v5509 = vpop.permute.xlu0 %5508
    %5512 = vset.pattern.permute.xlu0 0
    %5513 = vperm.xlu0 %5512, %v5455
    %v5514 = vpop.permute.xlu0 %5513
    %5517 = vset.pattern.permute.xlu0 0
    %5518 = vperm.xlu0 %5517, %v5456
    %v5519 = vpop.permute.xlu0 %5518
    %5522 = vset.pattern.permute.xlu0 0
    %5523 = vperm.xlu0 %5522, %v5457
    %v5524 = vpop.permute.xlu0 %5523
    %5527 = vset.pattern.permute.xlu0 0
    %5528 = vperm.xlu0 %5527, %v5458
    %v5529 = vpop.permute.xlu0 %5528
    %5532 = vset.pattern.permute.xlu0 0
    %5533 = vperm.xlu0 %5532, %v5459
    %v5534 = vpop.permute.xlu0 %5533
    %5537 = vset.pattern.permute.xlu0 0
    %5538 = vperm.xlu0 %5537, %v5460
    %v5539 = vpop.permute.xlu0 %5538
    %v5541 = vadd.f32 %v5429, %v5464
    %v5542 = vadd.f32 %v5430, %v5469
    %v5543 = vadd.f32 %v5431, %v5474
    %v5544 = vadd.f32 %v5432, %v5479
    %v5545 = vadd.f32 %v5433, %v5484
    %v5546 = vadd.f32 %v5434, %v5489
    %v5547 = vadd.f32 %v5435, %v5494
    %v5548 = vadd.f32 %v5436, %v5499
    %v5549 = vadd.f32 %v5437, %v5504
    %v5550 = vadd.f32 %v5438, %v5509
    %v5551 = vadd.f32 %v5439, %v5514
    %v5552 = vadd.f32 %v5440, %v5519
    %v5553 = vadd.f32 %v5441, %v5524
    %v5554 = vadd.f32 %v5442, %v5529
    %v5555 = vadd.f32 %v5443, %v5534
    %v5556 = vadd.f32 %v5444, %v5539
    %v5557 = vmax.f32 %v5541, 0.0
    %v5558 = vmax.f32 %v5542, 0.0
    %v5559 = vmax.f32 %v5543, 0.0
    %v5560 = vmax.f32 %v5544, 0.0
    %v5561 = vmax.f32 %v5545, 0.0
    %v5562 = vmax.f32 %v5546, 0.0
    %v5563 = vmax.f32 %v5547, 0.0
    %v5564 = vmax.f32 %v5548, 0.0
    %v5565 = vmax.f32 %v5549, 0.0
    %v5566 = vmax.f32 %v5550, 0.0
    %v5567 = vmax.f32 %v5551, 0.0
    %v5568 = vmax.f32 %v5552, 0.0
    %v5569 = vmax.f32 %v5553, 0.0
    %v5570 = vmax.f32 %v5554, 0.0
    %v5571 = vmax.f32 %v5555, 0.0
    %v5572 = vmax.f32 %v5556, 0.0
    %v5573 = vpack.c.bf16 %v5558, %v5557
    %v5574 = vpack.c.bf16 %v5560, %v5559
    %v5575 = vpack.c.bf16 %v5562, %v5561
    %v5576 = vpack.c.bf16 %v5564, %v5563
    %v5577 = vpack.c.bf16 %v5566, %v5565
    %v5578 = vpack.c.bf16 %v5568, %v5567
    %v5579 = vpack.c.bf16 %v5570, %v5569
    %v5580 = vpack.c.bf16 %v5572, %v5571
    %5581 = vst [vmem:[#allocation3 + $0x438] sm:$0xff] %v5573
    %5582 = vst [vmem:[#allocation3 + $0x478] sm:$0xff] %v5574
    %5583 = vst [vmem:[#allocation3 + $0x4b8] sm:$0xff] %v5575
    %5584 = vst [vmem:[#allocation3 + $0x4f8] sm:$0xff] %v5576
    %5585 = vst [vmem:[#allocation3 + $0x538] sm:$0xff] %v5577
    %5586 = vst [vmem:[#allocation3 + $0x578] sm:$0xff] %v5578
    %5587 = vst [vmem:[#allocation3 + $0x5b8] sm:$0xff] %v5579
    %5588 = vst [vmem:[#allocation3 + $0x5f8] sm:$0xff] %v5580
    %5589 = vst [vmem:[#allocation3 + $0x630] sm:$0xff] %v5573
    %5590 = vst [vmem:[#allocation3 + $0x670] sm:$0xff] %v5574
    %5591 = vst [vmem:[#allocation3 + $0x6b0] sm:$0xff] %v5575
    %5592 = vst [vmem:[#allocation3 + $0x6f0] sm:$0xff] %v5576
    %5593 = vst [vmem:[#allocation3 + $0x730] sm:$0xff] %v5577
    %5594 = vst [vmem:[#allocation3 + $0x770] sm:$0xff] %v5578
    %5595 = vst [vmem:[#allocation3 + $0x7b0] sm:$0xff] %v5579
    %5596 = vst [vmem:[#allocation3 + $0x7f0] sm:$0xff] %v5580
    %5597 = vst [vmem:[#allocation3 + $0x828] sm:$0xff] %v5573
    %5598 = vst [vmem:[#allocation3 + $0x868] sm:$0xff] %v5574
    %5599 = vst [vmem:[#allocation3 + $0x8a8] sm:$0xff] %v5575
    %5600 = vst [vmem:[#allocation3 + $0x8e8] sm:$0xff] %v5576
    %5601 = vst [vmem:[#allocation3 + $0x928] sm:$0xff] %v5577
    %5602 = vst [vmem:[#allocation3 + $0x968] sm:$0xff] %v5578
    %5603 = vst [vmem:[#allocation3 + $0x9a8] sm:$0xff] %v5579
    %5604 = vst [vmem:[#allocation3 + $0x9e8] sm:$0xff] %v5580
    %v5605 = vmax.f32 %v3425, %v3426
    %v5606 = vmax.f32 %v3449, %v3450
    %v5607 = vmax.f32 %v3473, %v3474
    %v5608 = vmax.f32 %v3497, %v3498
    %v5609 = vmax.f32 %v3521, %v3522
    %v5610 = vmax.f32 %v3545, %v3546
    %v5611 = vmax.f32 %v3569, %v3570
    %v5612 = vmax.f32 %v3593, %v3594
    %v5613 = vmax.f32 %v3617, %v3618
    %v5614 = vmax.f32 %v3641, %v3642
    %v5615 = vmax.f32 %v3665, %v3666
    %v5616 = vmax.f32 %v3689, %v3690
    %v5617 = vmax.f32 %v3713, %v3714
    %v5618 = vmax.f32 %v3737, %v3738
    %v5619 = vmax.f32 %v3761, %v3762
    %v5620 = vmax.f32 %v3785, %v3786
    %v5621 = vld [vmem:[%s2] sm:$0xff]
    %v5622 = vld [vmem:[%s2 + $0x8] sm:$0xff]
    %v5623 = vld [vmem:[%s2 + $0x10] sm:$0xff]
    %v5624 = vld [vmem:[%s2 + $0x18] sm:$0xff]
    %v5625 = vld [vmem:[%s2 + $0x20] sm:$0xff]
    %v5626 = vld [vmem:[%s2 + $0x28] sm:$0xff]
    %v5627 = vld [vmem:[%s2 + $0x30] sm:$0xff]
    %v5628 = vld [vmem:[%s2 + $0x38] sm:$0xff]
    %v5629 = vld [vmem:[%s2 + $0x40] sm:$0xff]
    %v5630 = vld [vmem:[%s2 + $0x48] sm:$0xff]
    %v5631 = vld [vmem:[%s2 + $0x50] sm:$0xff]
    %v5632 = vld [vmem:[%s2 + $0x58] sm:$0xff]
    %v5633 = vld [vmem:[%s2 + $0x60] sm:$0xff]
    %v5634 = vld [vmem:[%s2 + $0x68] sm:$0xff]
    %v5635 = vld [vmem:[%s2 + $0x70] sm:$0xff]
    %v5636 = vld [vmem:[%s2 + $0x78] sm:$0xff]
    %5638 = vset.pattern.permute.xlu0 0
    %5639 = vperm.xlu0 %5638, %v5621
    %v5640 = vpop.permute.xlu0 %5639
    %5643 = vset.pattern.permute.xlu0 0
    %5644 = vperm.xlu0 %5643, %v5622
    %v5645 = vpop.permute.xlu0 %5644
    %5648 = vset.pattern.permute.xlu0 0
    %5649 = vperm.xlu0 %5648, %v5623
    %v5650 = vpop.permute.xlu0 %5649
    %5653 = vset.pattern.permute.xlu0 0
    %5654 = vperm.xlu0 %5653, %v5624
    %v5655 = vpop.permute.xlu0 %5654
    %5658 = vset.pattern.permute.xlu0 0
    %5659 = vperm.xlu0 %5658, %v5625
    %v5660 = vpop.permute.xlu0 %5659
    %5663 = vset.pattern.permute.xlu0 0
    %5664 = vperm.xlu0 %5663, %v5626
    %v5665 = vpop.permute.xlu0 %5664
    %5668 = vset.pattern.permute.xlu0 0
    %5669 = vperm.xlu0 %5668, %v5627
    %v5670 = vpop.permute.xlu0 %5669
    %5673 = vset.pattern.permute.xlu0 0
    %5674 = vperm.xlu0 %5673, %v5628
    %v5675 = vpop.permute.xlu0 %5674
    %5678 = vset.pattern.permute.xlu0 0
    %5679 = vperm.xlu0 %5678, %v5629
    %v5680 = vpop.permute.xlu0 %5679
    %5683 = vset.pattern.permute.xlu0 0
    %5684 = vperm.xlu0 %5683, %v5630
    %v5685 = vpop.permute.xlu0 %5684
    %5688 = vset.pattern.permute.xlu0 0
    %5689 = vperm.xlu0 %5688, %v5631
    %v5690 = vpop.permute.xlu0 %5689
    %5693 = vset.pattern.permute.xlu0 0
    %5694 = vperm.xlu0 %5693, %v5632
    %v5695 = vpop.permute.xlu0 %5694
    %5698 = vset.pattern.permute.xlu0 0
    %5699 = vperm.xlu0 %5698, %v5633
    %v5700 = vpop.permute.xlu0 %5699
    %5703 = vset.pattern.permute.xlu0 0
    %5704 = vperm.xlu0 %5703, %v5634
    %v5705 = vpop.permute.xlu0 %5704
    %5708 = vset.pattern.permute.xlu0 0
    %5709 = vperm.xlu0 %5708, %v5635
    %v5710 = vpop.permute.xlu0 %5709
    %5713 = vset.pattern.permute.xlu0 0
    %5714 = vperm.xlu0 %5713, %v5636
    %v5715 = vpop.permute.xlu0 %5714
    %v5717 = vadd.f32 %v5605, %v5640
    %v5718 = vadd.f32 %v5606, %v5645
    %v5719 = vadd.f32 %v5607, %v5650
    %v5720 = vadd.f32 %v5608, %v5655
    %v5721 = vadd.f32 %v5609, %v5660
    %v5722 = vadd.f32 %v5610, %v5665
    %v5723 = vadd.f32 %v5611, %v5670
    %v5724 = vadd.f32 %v5612, %v5675
    %v5725 = vadd.f32 %v5613, %v5680
    %v5726 = vadd.f32 %v5614, %v5685
    %v5727 = vadd.f32 %v5615, %v5690
    %v5728 = vadd.f32 %v5616, %v5695
    %v5729 = vadd.f32 %v5617, %v5700
    %v5730 = vadd.f32 %v5618, %v5705
    %v5731 = vadd.f32 %v5619, %v5710
    %v5732 = vadd.f32 %v5620, %v5715
    %v5733 = vmax.f32 %v5717, 0.0
    %v5734 = vmax.f32 %v5718, 0.0
    %v5735 = vmax.f32 %v5719, 0.0
    %v5736 = vmax.f32 %v5720, 0.0
    %v5737 = vmax.f32 %v5721, 0.0
    %v5738 = vmax.f32 %v5722, 0.0
    %v5739 = vmax.f32 %v5723, 0.0
    %v5740 = vmax.f32 %v5724, 0.0
    %v5741 = vmax.f32 %v5725, 0.0
    %v5742 = vmax.f32 %v5726, 0.0
    %v5743 = vmax.f32 %v5727, 0.0
    %v5744 = vmax.f32 %v5728, 0.0
    %v5745 = vmax.f32 %v5729, 0.0
    %v5746 = vmax.f32 %v5730, 0.0
    %v5747 = vmax.f32 %v5731, 0.0
    %v5748 = vmax.f32 %v5732, 0.0
    %v5749 = vpack.c.bf16 %v5734, %v5733
    %v5750 = vpack.c.bf16 %v5736, %v5735
    %v5751 = vpack.c.bf16 %v5738, %v5737
    %v5752 = vpack.c.bf16 %v5740, %v5739
    %v5753 = vpack.c.bf16 %v5742, %v5741
    %v5754 = vpack.c.bf16 %v5744, %v5743
    %v5755 = vpack.c.bf16 %v5746, %v5745
    %v5756 = vpack.c.bf16 %v5748, %v5747
    %5757 = vst [vmem:[#allocation3 + $0x638] sm:$0xff] %v5749
    %5758 = vst [vmem:[#allocation3 + $0x678] sm:$0xff] %v5750
    %5759 = vst [vmem:[#allocation3 + $0x6b8] sm:$0xff] %v5751
    %5760 = vst [vmem:[#allocation3 + $0x6f8] sm:$0xff] %v5752
    %5761 = vst [vmem:[#allocation3 + $0x738] sm:$0xff] %v5753
    %5762 = vst [vmem:[#allocation3 + $0x778] sm:$0xff] %v5754
    %5763 = vst [vmem:[#allocation3 + $0x7b8] sm:$0xff] %v5755
    %5764 = vst [vmem:[#allocation3 + $0x7f8] sm:$0xff] %v5756
    %5765 = vst [vmem:[#allocation3 + $0x830] sm:$0xff] %v5749
    %5766 = vst [vmem:[#allocation3 + $0x870] sm:$0xff] %v5750
    %5767 = vst [vmem:[#allocation3 + $0x8b0] sm:$0xff] %v5751
    %5768 = vst [vmem:[#allocation3 + $0x8f0] sm:$0xff] %v5752
    %5769 = vst [vmem:[#allocation3 + $0x930] sm:$0xff] %v5753
    %5770 = vst [vmem:[#allocation3 + $0x970] sm:$0xff] %v5754
    %5771 = vst [vmem:[#allocation3 + $0x9b0] sm:$0xff] %v5755
    %5772 = vst [vmem:[#allocation3 + $0x9f0] sm:$0xff] %v5756
    %v5773 = vmax.f32 %v3427, %v3428
    %v5774 = vmax.f32 %v3451, %v3452
    %v5775 = vmax.f32 %v3475, %v3476
    %v5776 = vmax.f32 %v3499, %v3500
    %v5777 = vmax.f32 %v3523, %v3524
    %v5778 = vmax.f32 %v3547, %v3548
    %v5779 = vmax.f32 %v3571, %v3572
    %v5780 = vmax.f32 %v3595, %v3596
    %v5781 = vmax.f32 %v3619, %v3620
    %v5782 = vmax.f32 %v3643, %v3644
    %v5783 = vmax.f32 %v3667, %v3668
    %v5784 = vmax.f32 %v3691, %v3692
    %v5785 = vmax.f32 %v3715, %v3716
    %v5786 = vmax.f32 %v3739, %v3740
    %v5787 = vmax.f32 %v3763, %v3764
    %v5788 = vmax.f32 %v3787, %v3788
    %v5789 = vld [vmem:[%s2] sm:$0xff]
    %v5790 = vld [vmem:[%s2 + $0x8] sm:$0xff]
    %v5791 = vld [vmem:[%s2 + $0x10] sm:$0xff]
    %v5792 = vld [vmem:[%s2 + $0x18] sm:$0xff]
    %v5793 = vld [vmem:[%s2 + $0x20] sm:$0xff]
    %v5794 = vld [vmem:[%s2 + $0x28] sm:$0xff]
    %v5795 = vld [vmem:[%s2 + $0x30] sm:$0xff]
    %v5796 = vld [vmem:[%s2 + $0x38] sm:$0xff]
    %v5797 = vld [vmem:[%s2 + $0x40] sm:$0xff]
    %v5798 = vld [vmem:[%s2 + $0x48] sm:$0xff]
    %v5799 = vld [vmem:[%s2 + $0x50] sm:$0xff]
    %v5800 = vld [vmem:[%s2 + $0x58] sm:$0xff]
    %v5801 = vld [vmem:[%s2 + $0x60] sm:$0xff]
    %v5802 = vld [vmem:[%s2 + $0x68] sm:$0xff]
    %v5803 = vld [vmem:[%s2 + $0x70] sm:$0xff]
    %v5804 = vld [vmem:[%s2 + $0x78] sm:$0xff]
    %5806 = vset.pattern.permute.xlu0 0
    %5807 = vperm.xlu0 %5806, %v5789
    %v5808 = vpop.permute.xlu0 %5807
    %5811 = vset.pattern.permute.xlu0 0
    %5812 = vperm.xlu0 %5811, %v5790
    %v5813 = vpop.permute.xlu0 %5812
    %5816 = vset.pattern.permute.xlu0 0
    %5817 = vperm.xlu0 %5816, %v5791
    %v5818 = vpop.permute.xlu0 %5817
    %5821 = vset.pattern.permute.xlu0 0
    %5822 = vperm.xlu0 %5821, %v5792
    %v5823 = vpop.permute.xlu0 %5822
    %5826 = vset.pattern.permute.xlu0 0
    %5827 = vperm.xlu0 %5826, %v5793
    %v5828 = vpop.permute.xlu0 %5827
    %5831 = vset.pattern.permute.xlu0 0
    %5832 = vperm.xlu0 %5831, %v5794
    %v5833 = vpop.permute.xlu0 %5832
    %5836 = vset.pattern.permute.xlu0 0
    %5837 = vperm.xlu0 %5836, %v5795
    %v5838 = vpop.permute.xlu0 %5837
    %5841 = vset.pattern.permute.xlu0 0
    %5842 = vperm.xlu0 %5841, %v5796
    %v5843 = vpop.permute.xlu0 %5842
    %5846 = vset.pattern.permute.xlu0 0
    %5847 = vperm.xlu0 %5846, %v5797
    %v5848 = vpop.permute.xlu0 %5847
    %5851 = vset.pattern.permute.xlu0 0
    %5852 = vperm.xlu0 %5851, %v5798
    %v5853 = vpop.permute.xlu0 %5852
    %5856 = vset.pattern.permute.xlu0 0
    %5857 = vperm.xlu0 %5856, %v5799
    %v5858 = vpop.permute.xlu0 %5857
    %5861 = vset.pattern.permute.xlu0 0
    %5862 = vperm.xlu0 %5861, %v5800
    %v5863 = vpop.permute.xlu0 %5862
    %5866 = vset.pattern.permute.xlu0 0
    %5867 = vperm.xlu0 %5866, %v5801
    %v5868 = vpop.permute.xlu0 %5867
    %5871 = vset.pattern.permute.xlu0 0
    %5872 = vperm.xlu0 %5871, %v5802
    %v5873 = vpop.permute.xlu0 %5872
    %5876 = vset.pattern.permute.xlu0 0
    %5877 = vperm.xlu0 %5876, %v5803
    %v5878 = vpop.permute.xlu0 %5877
    %5881 = vset.pattern.permute.xlu0 0
    %5882 = vperm.xlu0 %5881, %v5804
    %v5883 = vpop.permute.xlu0 %5882
    %v5885 = vadd.f32 %v5773, %v5808
    %v5886 = vadd.f32 %v5774, %v5813
    %v5887 = vadd.f32 %v5775, %v5818
    %v5888 = vadd.f32 %v5776, %v5823
    %v5889 = vadd.f32 %v5777, %v5828
    %v5890 = vadd.f32 %v5778, %v5833
    %v5891 = vadd.f32 %v5779, %v5838
    %v5892 = vadd.f32 %v5780, %v5843
    %v5893 = vadd.f32 %v5781, %v5848
    %v5894 = vadd.f32 %v5782, %v5853
    %v5895 = vadd.f32 %v5783, %v5858
    %v5896 = vadd.f32 %v5784, %v5863
    %v5897 = vadd.f32 %v5785, %v5868
    %v5898 = vadd.f32 %v5786, %v5873
    %v5899 = vadd.f32 %v5787, %v5878
    %v5900 = vadd.f32 %v5788, %v5883
    %v5901 = vmax.f32 %v5885, 0.0
    %v5902 = vmax.f32 %v5886, 0.0
    %v5903 = vmax.f32 %v5887, 0.0
    %v5904 = vmax.f32 %v5888, 0.0
    %v5905 = vmax.f32 %v5889, 0.0
    %v5906 = vmax.f32 %v5890, 0.0
    %v5907 = vmax.f32 %v5891, 0.0
    %v5908 = vmax.f32 %v5892, 0.0
    %v5909 = vmax.f32 %v5893, 0.0
    %v5910 = vmax.f32 %v5894, 0.0
    %v5911 = vmax.f32 %v5895, 0.0
    %v5912 = vmax.f32 %v5896, 0.0
    %v5913 = vmax.f32 %v5897, 0.0
    %v5914 = vmax.f32 %v5898, 0.0
    %v5915 = vmax.f32 %v5899, 0.0
    %v5916 = vmax.f32 %v5900, 0.0
    %v5917 = vpack.c.bf16 %v5902, %v5901
    %v5918 = vpack.c.bf16 %v5904, %v5903
    %v5919 = vpack.c.bf16 %v5906, %v5905
    %v5920 = vpack.c.bf16 %v5908, %v5907
    %v5921 = vpack.c.bf16 %v5910, %v5909
    %v5922 = vpack.c.bf16 %v5912, %v5911
    %v5923 = vpack.c.bf16 %v5914, %v5913
    %v5924 = vpack.c.bf16 %v5916, %v5915
    %5925 = vst [vmem:[#allocation3 + $0x838] sm:$0xff] %v5917
    %5926 = vst [vmem:[#allocation3 + $0x878] sm:$0xff] %v5918
    %5927 = vst [vmem:[#allocation3 + $0x8b8] sm:$0xff] %v5919
    %5928 = vst [vmem:[#allocation3 + $0x8f8] sm:$0xff] %v5920
    %5929 = vst [vmem:[#allocation3 + $0x938] sm:$0xff] %v5921
    %5930 = vst [vmem:[#allocation3 + $0x978] sm:$0xff] %v5922
    %5931 = vst [vmem:[#allocation3 + $0x9b8] sm:$0xff] %v5923
    %5932 = vst [vmem:[#allocation3 + $0x9f8] sm:$0xff] %v5924
    %v5933 = vld [vmem:[#allocation5] sm:$0xff]
    %v5934 = vld [vmem:[#allocation5 + $0x8] sm:$0xff]
    %v5935 = vld [vmem:[#allocation5 + $0x10] sm:$0xf]
    %v5936 = vld [vmem:[#allocation5 + $0x14] sm:$0xff]
    %v5937 = vld [vmem:[#allocation5 + $0x1c] sm:$0xff]
    %v5938 = vld [vmem:[#allocation5 + $0x24] sm:$0xf]
    %v5939 = vld [vmem:[#allocation5 + $0x28] sm:$0xff]
    %v5940 = vld [vmem:[#allocation5 + $0x30] sm:$0xff]
    %v5941 = vld [vmem:[#allocation5 + $0x38] sm:$0xf]
    %v5942 = vld [vmem:[#allocation5 + $0x3c] sm:$0xff]
    %v5943 = vld [vmem:[#allocation5 + $0x44] sm:$0xff]
    %v5944 = vld [vmem:[#allocation5 + $0x4c] sm:$0xf]
    %v5945 = vld [vmem:[#allocation5 + $0x50] sm:$0xff]
    %v5946 = vld [vmem:[#allocation5 + $0x58] sm:$0xff]
    %v5947 = vld [vmem:[#allocation5 + $0x60] sm:$0xf]
    %v5948 = vld [vmem:[#allocation5 + $0x64] sm:$0xff]
    %v5949 = vld [vmem:[#allocation5 + $0x6c] sm:$0xff]
    %v5950 = vld [vmem:[#allocation5 + $0x74] sm:$0xf]
    %v5951 = vld [vmem:[#allocation5 + $0x78] sm:$0xff]
    %v5952 = vld [vmem:[#allocation5 + $0x80] sm:$0xff]
    %v5953 = vld [vmem:[#allocation5 + $0x88] sm:$0xf]
    %v5954 = vld [vmem:[#allocation5 + $0x8c] sm:$0xff]
    %v5955 = vld [vmem:[#allocation5 + $0x94] sm:$0xff]
    %v5956 = vld [vmem:[#allocation5 + $0x9c] sm:$0xf]
    %v5957 = vld [vmem:[#allocation5 + $0xa0] sm:$0xff]
    %v5958 = vld [vmem:[#allocation5 + $0xa8] sm:$0xff]
    %v5959 = vld [vmem:[#allocation5 + $0xb0] sm:$0xf]
    %v5960 = vld [vmem:[#allocation5 + $0xb4] sm:$0xff]
    %v5961 = vld [vmem:[#allocation5 + $0xbc] sm:$0xff]
    %v5962 = vld [vmem:[#allocation5 + $0xc4] sm:$0xf]
    %v5963 = vld [vmem:[#allocation5 + $0xc8] sm:$0xff]
    %v5964 = vld [vmem:[#allocation5 + $0xd0] sm:$0xff]
    %v5965 = vld [vmem:[#allocation5 + $0xd8] sm:$0xf]
    %v5966 = vld [vmem:[#allocation5 + $0xdc] sm:$0xff]
    %v5967 = vld [vmem:[#allocation5 + $0xe4] sm:$0xff]
    %v5968 = vld [vmem:[#allocation5 + $0xec] sm:$0xf]
    %v5969 = vld [vmem:[#allocation5 + $0xf0] sm:$0xff]
    %v5970 = vld [vmem:[#allocation5 + $0xf8] sm:$0xff]
    %v5971 = vld [vmem:[#allocation5 + $0x100] sm:$0xf]
    %v5972 = vld [vmem:[#allocation5 + $0x104] sm:$0xff]
    %v5973 = vld [vmem:[#allocation5 + $0x10c] sm:$0xff]
    %v5974 = vld [vmem:[#allocation5 + $0x114] sm:$0xf]
    %v5975 = vld [vmem:[#allocation5 + $0x118] sm:$0xff]
    %v5976 = vld [vmem:[#allocation5 + $0x120] sm:$0xff]
    %v5977 = vld [vmem:[#allocation5 + $0x128] sm:$0xf]
    %v5978 = vld [vmem:[#allocation5 + $0x12c] sm:$0xff]
    %v5979 = vld [vmem:[#allocation5 + $0x134] sm:$0xff]
    %v5980 = vld [vmem:[#allocation5 + $0x13c] sm:$0xf]
    %v5981 = vld [vmem:[#allocation5 + $0x140] sm:$0xff]
    %v5982 = vld [vmem:[#allocation5 + $0x148] sm:$0xff]
    %v5983 = vld [vmem:[#allocation5 + $0x150] sm:$0xf]
    %v5984 = vld [vmem:[#allocation5 + $0x154] sm:$0xff]
    %v5985 = vld [vmem:[#allocation5 + $0x15c] sm:$0xff]
    %v5986 = vld [vmem:[#allocation5 + $0x164] sm:$0xf]
    %v5987 = vld [vmem:[#allocation5 + $0x168] sm:$0xff]
    %v5988 = vld [vmem:[#allocation5 + $0x170] sm:$0xff]
    %v5989 = vld [vmem:[#allocation5 + $0x178] sm:$0xf]
    %v5990 = vld [vmem:[#allocation5 + $0x17c] sm:$0xff]
    %v5991 = vld [vmem:[#allocation5 + $0x184] sm:$0xff]
    %v5992 = vld [vmem:[#allocation5 + $0x18c] sm:$0xf]
    %v5993 = vld [vmem:[#allocation3] sm:$0xff]
    %v5994 = vld [vmem:[#allocation3 + $0x8] sm:$0xff]
    %v5995 = vld [vmem:[#allocation3 + $0x10] sm:$0xff]
    %v5996 = vld [vmem:[#allocation3 + $0x18] sm:$0xff]
    %v5997 = vld [vmem:[#allocation3 + $0x20] sm:$0xff]
    %v5998 = vld [vmem:[#allocation3 + $0x28] sm:$0xff]
    %v5999 = vld [vmem:[#allocation3 + $0x30] sm:$0xff]
    %v6000 = vld [vmem:[#allocation3 + $0x38] sm:$0xff]
    %v6001 = vld [vmem:[#allocation3 + $0x40] sm:$0xff]
    %v6002 = vld [vmem:[#allocation3 + $0x48] sm:$0xff]
    %v6003 = vld [vmem:[#allocation3 + $0x50] sm:$0xff]
    %v6004 = vld [vmem:[#allocation3 + $0x58] sm:$0xff]
    %v6005 = vld [vmem:[#allocation3 + $0x60] sm:$0xff]
    %v6006 = vld [vmem:[#allocation3 + $0x68] sm:$0xff]
    %v6007 = vld [vmem:[#allocation3 + $0x70] sm:$0xff]
    %v6008 = vld [vmem:[#allocation3 + $0x78] sm:$0xff]
    %v6009 = vld [vmem:[#allocation3 + $0x80] sm:$0xff]
    %v6010 = vld [vmem:[#allocation3 + $0x88] sm:$0xff]
    %v6011 = vld [vmem:[#allocation3 + $0x90] sm:$0xff]
    %v6012 = vld [vmem:[#allocation3 + $0x98] sm:$0xff]
    %v6013 = vld [vmem:[#allocation3 + $0xa0] sm:$0xff]
    %v6014 = vld [vmem:[#allocation3 + $0xa8] sm:$0xff]
    %v6015 = vld [vmem:[#allocation3 + $0xb0] sm:$0xff]
    %v6016 = vld [vmem:[#allocation3 + $0xb8] sm:$0xff]
    %v6017 = vld [vmem:[#allocation3 + $0xc0] sm:$0xff]
    %v6018 = vld [vmem:[#allocation3 + $0xc8] sm:$0xff]
    %v6019 = vld [vmem:[#allocation3 + $0xd0] sm:$0xff]
    %v6020 = vld [vmem:[#allocation3 + $0xd8] sm:$0xff]
    %v6021 = vld [vmem:[#allocation3 + $0xe0] sm:$0xff]
    %v6022 = vld [vmem:[#allocation3 + $0xe8] sm:$0xff]
    %v6023 = vld [vmem:[#allocation3 + $0xf0] sm:$0xff]
    %v6024 = vld [vmem:[#allocation3 + $0xf8] sm:$0xff]
    %v6025 = vld [vmem:[#allocation3 + $0x100] sm:$0xff]
    %v6026 = vld [vmem:[#allocation3 + $0x108] sm:$0xff]
    %v6027 = vld [vmem:[#allocation3 + $0x110] sm:$0xff]
    %v6028 = vld [vmem:[#allocation3 + $0x118] sm:$0xff]
    %v6029 = vld [vmem:[#allocation3 + $0x120] sm:$0xff]
    %v6030 = vld [vmem:[#allocation3 + $0x128] sm:$0xff]
    %v6031 = vld [vmem:[#allocation3 + $0x130] sm:$0xff]
    %v6032 = vld [vmem:[#allocation3 + $0x138] sm:$0xff]
    %v6033 = vld [vmem:[#allocation3 + $0x140] sm:$0xff]
    %v6034 = vld [vmem:[#allocation3 + $0x148] sm:$0xff]
    %v6035 = vld [vmem:[#allocation3 + $0x150] sm:$0xff]
    %v6036 = vld [vmem:[#allocation3 + $0x158] sm:$0xff]
    %v6037 = vld [vmem:[#allocation3 + $0x160] sm:$0xff]
    %v6038 = vld [vmem:[#allocation3 + $0x168] sm:$0xff]
    %v6039 = vld [vmem:[#allocation3 + $0x170] sm:$0xff]
    %v6040 = vld [vmem:[#allocation3 + $0x178] sm:$0xff]
    %v6041 = vld [vmem:[#allocation3 + $0x180] sm:$0xff]
    %v6042 = vld [vmem:[#allocation3 + $0x188] sm:$0xff]
    %v6043 = vld [vmem:[#allocation3 + $0x190] sm:$0xff]
    %v6044 = vld [vmem:[#allocation3 + $0x198] sm:$0xff]
    %v6045 = vld [vmem:[#allocation3 + $0x1a0] sm:$0xff]
    %v6046 = vld [vmem:[#allocation3 + $0x1a8] sm:$0xff]
    %v6047 = vld [vmem:[#allocation3 + $0x1b0] sm:$0xff]
    %v6048 = vld [vmem:[#allocation3 + $0x1b8] sm:$0xff]
    %v6049 = vld [vmem:[#allocation3 + $0x1c0] sm:$0xff]
    %v6050 = vld [vmem:[#allocation3 + $0x1c8] sm:$0xff]
    %v6051 = vld [vmem:[#allocation3 + $0x1d0] sm:$0xff]
    %v6052 = vld [vmem:[#allocation3 + $0x1d8] sm:$0xff]
    %v6053 = vld [vmem:[#allocation3 + $0x1e0] sm:$0xff]
    %v6054 = vld [vmem:[#allocation3 + $0x1e8] sm:$0xff]
    %v6055 = vld [vmem:[#allocation3 + $0x1f0] sm:$0xff]
    %v6056 = vld [vmem:[#allocation3 + $0x1f8] sm:$0xff]
    %v6057 = vld [vmem:[#allocation3 + $0x200] sm:$0xff]
    %v6058 = vld [vmem:[#allocation3 + $0x208] sm:$0xff]
    %v6059 = vld [vmem:[#allocation3 + $0x210] sm:$0xff]
    %v6060 = vld [vmem:[#allocation3 + $0x218] sm:$0xff]
    %v6061 = vld [vmem:[#allocation3 + $0x220] sm:$0xff]
    %v6062 = vld [vmem:[#allocation3 + $0x228] sm:$0xff]
    %v6063 = vld [vmem:[#allocation3 + $0x230] sm:$0xff]
    %v6064 = vld [vmem:[#allocation3 + $0x238] sm:$0xff]
    %v6065 = vld [vmem:[#allocation3 + $0x240] sm:$0xff]
    %v6066 = vld [vmem:[#allocation3 + $0x248] sm:$0xff]
    %v6067 = vld [vmem:[#allocation3 + $0x250] sm:$0xff]
    %v6068 = vld [vmem:[#allocation3 + $0x258] sm:$0xff]
    %v6069 = vld [vmem:[#allocation3 + $0x260] sm:$0xff]
    %v6070 = vld [vmem:[#allocation3 + $0x268] sm:$0xff]
    %v6071 = vld [vmem:[#allocation3 + $0x270] sm:$0xff]
    %v6072 = vld [vmem:[#allocation3 + $0x278] sm:$0xff]
    %v6073 = vld [vmem:[#allocation3 + $0x280] sm:$0xff]
    %v6074 = vld [vmem:[#allocation3 + $0x288] sm:$0xff]
    %v6075 = vld [vmem:[#allocation3 + $0x290] sm:$0xff]
    %v6076 = vld [vmem:[#allocation3 + $0x298] sm:$0xff]
    %v6077 = vld [vmem:[#allocation3 + $0x2a0] sm:$0xff]
    %v6078 = vld [vmem:[#allocation3 + $0x2a8] sm:$0xff]
    %v6079 = vld [vmem:[#allocation3 + $0x2b0] sm:$0xff]
    %v6080 = vld [vmem:[#allocation3 + $0x2b8] sm:$0xff]
    %v6081 = vld [vmem:[#allocation3 + $0x2c0] sm:$0xff]
    %v6082 = vld [vmem:[#allocation3 + $0x2c8] sm:$0xff]
    %v6083 = vld [vmem:[#allocation3 + $0x2d0] sm:$0xff]
    %v6084 = vld [vmem:[#allocation3 + $0x2d8] sm:$0xff]
    %v6085 = vld [vmem:[#allocation3 + $0x2e0] sm:$0xff]
    %v6086 = vld [vmem:[#allocation3 + $0x2e8] sm:$0xff]
    %v6087 = vld [vmem:[#allocation3 + $0x2f0] sm:$0xff]
    %v6088 = vld [vmem:[#allocation3 + $0x2f8] sm:$0xff]
    %v6089 = vld [vmem:[#allocation3 + $0x300] sm:$0xff]
    %v6090 = vld [vmem:[#allocation3 + $0x308] sm:$0xff]
    %v6091 = vld [vmem:[#allocation3 + $0x310] sm:$0xff]
    %v6092 = vld [vmem:[#allocation3 + $0x318] sm:$0xff]
    %v6093 = vld [vmem:[#allocation3 + $0x320] sm:$0xff]
    %v6094 = vld [vmem:[#allocation3 + $0x328] sm:$0xff]
    %v6095 = vld [vmem:[#allocation3 + $0x330] sm:$0xff]
    %v6096 = vld [vmem:[#allocation3 + $0x338] sm:$0xff]
    %v6097 = vld [vmem:[#allocation3 + $0x340] sm:$0xff]
    %v6098 = vld [vmem:[#allocation3 + $0x348] sm:$0xff]
    %v6099 = vld [vmem:[#allocation3 + $0x350] sm:$0xff]
    %v6100 = vld [vmem:[#allocation3 + $0x358] sm:$0xff]
    %v6101 = vld [vmem:[#allocation3 + $0x360] sm:$0xff]
    %v6102 = vld [vmem:[#allocation3 + $0x368] sm:$0xff]
    %v6103 = vld [vmem:[#allocation3 + $0x370] sm:$0xff]
    %v6104 = vld [vmem:[#allocation3 + $0x378] sm:$0xff]
    %v6105 = vld [vmem:[#allocation3 + $0x380] sm:$0xff]
    %v6106 = vld [vmem:[#allocation3 + $0x388] sm:$0xff]
    %v6107 = vld [vmem:[#allocation3 + $0x390] sm:$0xff]
    %v6108 = vld [vmem:[#allocation3 + $0x398] sm:$0xff]
    %v6109 = vld [vmem:[#allocation3 + $0x3a0] sm:$0xff]
    %v6110 = vld [vmem:[#allocation3 + $0x3a8] sm:$0xff]
    %v6111 = vld [vmem:[#allocation3 + $0x3b0] sm:$0xff]
    %v6112 = vld [vmem:[#allocation3 + $0x3b8] sm:$0xff]
    %v6113 = vld [vmem:[#allocation3 + $0x3c0] sm:$0xff]
    %v6114 = vld [vmem:[#allocation3 + $0x3c8] sm:$0xff]
    %v6115 = vld [vmem:[#allocation3 + $0x3d0] sm:$0xff]
    %v6116 = vld [vmem:[#allocation3 + $0x3d8] sm:$0xff]
    %v6117 = vld [vmem:[#allocation3 + $0x3e0] sm:$0xff]
    %v6118 = vld [vmem:[#allocation3 + $0x3e8] sm:$0xff]
    %v6119 = vld [vmem:[#allocation3 + $0x3f0] sm:$0xff]
    %v6120 = vld [vmem:[#allocation3 + $0x3f8] sm:$0xff]
    %v6121 = vld [vmem:[#allocation3 + $0x400] sm:$0xff]
    %v6122 = vld [vmem:[#allocation3 + $0x408] sm:$0xff]
    %v6123 = vld [vmem:[#allocation3 + $0x410] sm:$0xff]
    %v6124 = vld [vmem:[#allocation3 + $0x418] sm:$0xff]
    %v6125 = vld [vmem:[#allocation3 + $0x420] sm:$0xff]
    %v6126 = vld [vmem:[#allocation3 + $0x428] sm:$0xff]
    %v6127 = vld [vmem:[#allocation3 + $0x430] sm:$0xff]
    %v6128 = vld [vmem:[#allocation3 + $0x438] sm:$0xff]
    %v6129 = vld [vmem:[#allocation3 + $0x440] sm:$0xff]
    %v6130 = vld [vmem:[#allocation3 + $0x448] sm:$0xff]
    %v6131 = vld [vmem:[#allocation3 + $0x450] sm:$0xff]
    %v6132 = vld [vmem:[#allocation3 + $0x458] sm:$0xff]
    %v6133 = vld [vmem:[#allocation3 + $0x460] sm:$0xff]
    %v6134 = vld [vmem:[#allocation3 + $0x468] sm:$0xff]
    %v6135 = vld [vmem:[#allocation3 + $0x470] sm:$0xff]
    %v6136 = vld [vmem:[#allocation3 + $0x478] sm:$0xff]
    %v6137 = vld [vmem:[#allocation3 + $0x480] sm:$0xff]
    %v6138 = vld [vmem:[#allocation3 + $0x488] sm:$0xff]
    %v6139 = vld [vmem:[#allocation3 + $0x490] sm:$0xff]
    %v6140 = vld [vmem:[#allocation3 + $0x498] sm:$0xff]
    %v6141 = vld [vmem:[#allocation3 + $0x4a0] sm:$0xff]
    %v6142 = vld [vmem:[#allocation3 + $0x4a8] sm:$0xff]
    %v6143 = vld [vmem:[#allocation3 + $0x4b0] sm:$0xff]
    %v6144 = vld [vmem:[#allocation3 + $0x4b8] sm:$0xff]
    %v6145 = vld [vmem:[#allocation3 + $0x4c0] sm:$0xff]
    %v6146 = vld [vmem:[#allocation3 + $0x4c8] sm:$0xff]
    %v6147 = vld [vmem:[#allocation3 + $0x4d0] sm:$0xff]
    %v6148 = vld [vmem:[#allocation3 + $0x4d8] sm:$0xff]
    %v6149 = vld [vmem:[#allocation3 + $0x4e0] sm:$0xff]
    %v6150 = vld [vmem:[#allocation3 + $0x4e8] sm:$0xff]
    %v6151 = vld [vmem:[#allocation3 + $0x4f0] sm:$0xff]
    %v6152 = vld [vmem:[#allocation3 + $0x4f8] sm:$0xff]
    %v6153 = vld [vmem:[#allocation3 + $0x500] sm:$0xff]
    %v6154 = vld [vmem:[#allocation3 + $0x508] sm:$0xff]
    %v6155 = vld [vmem:[#allocation3 + $0x510] sm:$0xff]
    %v6156 = vld [vmem:[#allocation3 + $0x518] sm:$0xff]
    %v6157 = vld [vmem:[#allocation3 + $0x520] sm:$0xff]
    %v6158 = vld [vmem:[#allocation3 + $0x528] sm:$0xff]
    %v6159 = vld [vmem:[#allocation3 + $0x530] sm:$0xff]
    %v6160 = vld [vmem:[#allocation3 + $0x538] sm:$0xff]
    %v6161 = vld [vmem:[#allocation3 + $0x540] sm:$0xff]
    %v6162 = vld [vmem:[#allocation3 + $0x548] sm:$0xff]
    %v6163 = vld [vmem:[#allocation3 + $0x550] sm:$0xff]
    %v6164 = vld [vmem:[#allocation3 + $0x558] sm:$0xff]
    %v6165 = vld [vmem:[#allocation3 + $0x560] sm:$0xff]
    %v6166 = vld [vmem:[#allocation3 + $0x568] sm:$0xff]
    %v6167 = vld [vmem:[#allocation3 + $0x570] sm:$0xff]
    %v6168 = vld [vmem:[#allocation3 + $0x578] sm:$0xff]
    %v6169 = vld [vmem:[#allocation3 + $0x580] sm:$0xff]
    %v6170 = vld [vmem:[#allocation3 + $0x588] sm:$0xff]
    %v6171 = vld [vmem:[#allocation3 + $0x590] sm:$0xff]
    %v6172 = vld [vmem:[#allocation3 + $0x598] sm:$0xff]
    %v6173 = vld [vmem:[#allocation3 + $0x5a0] sm:$0xff]
    %v6174 = vld [vmem:[#allocation3 + $0x5a8] sm:$0xff]
    %v6175 = vld [vmem:[#allocation3 + $0x5b0] sm:$0xff]
    %v6176 = vld [vmem:[#allocation3 + $0x5b8] sm:$0xff]
    %v6177 = vld [vmem:[#allocation3 + $0x5c0] sm:$0xff]
    %v6178 = vld [vmem:[#allocation3 + $0x5c8] sm:$0xff]
    %v6179 = vld [vmem:[#allocation3 + $0x5d0] sm:$0xff]
    %v6180 = vld [vmem:[#allocation3 + $0x5d8] sm:$0xff]
    %v6181 = vld [vmem:[#allocation3 + $0x5e0] sm:$0xff]
    %v6182 = vld [vmem:[#allocation3 + $0x5e8] sm:$0xff]
    %v6183 = vld [vmem:[#allocation3 + $0x5f0] sm:$0xff]
    %v6184 = vld [vmem:[#allocation3 + $0x5f8] sm:$0xff]
    %v6185 = vld [vmem:[#allocation3 + $0x600] sm:$0xff]
    %v6186 = vld [vmem:[#allocation3 + $0x608] sm:$0xff]
    %v6187 = vld [vmem:[#allocation3 + $0x610] sm:$0xff]
    %v6188 = vld [vmem:[#allocation3 + $0x618] sm:$0xff]
    %v6189 = vld [vmem:[#allocation3 + $0x620] sm:$0xff]
    %v6190 = vld [vmem:[#allocation3 + $0x628] sm:$0xff]
    %v6191 = vld [vmem:[#allocation3 + $0x630] sm:$0xff]
    %v6192 = vld [vmem:[#allocation3 + $0x638] sm:$0xff]
    %v6193 = vld [vmem:[#allocation3 + $0x640] sm:$0xff]
    %v6194 = vld [vmem:[#allocation3 + $0x648] sm:$0xff]
    %v6195 = vld [vmem:[#allocation3 + $0x650] sm:$0xff]
    %v6196 = vld [vmem:[#allocation3 + $0x658] sm:$0xff]
    %v6197 = vld [vmem:[#allocation3 + $0x660] sm:$0xff]
    %v6198 = vld [vmem:[#allocation3 + $0x668] sm:$0xff]
    %v6199 = vld [vmem:[#allocation3 + $0x670] sm:$0xff]
    %v6200 = vld [vmem:[#allocation3 + $0x678] sm:$0xff]
    %v6201 = vld [vmem:[#allocation3 + $0x680] sm:$0xff]
    %v6202 = vld [vmem:[#allocation3 + $0x688] sm:$0xff]
    %v6203 = vld [vmem:[#allocation3 + $0x690] sm:$0xff]
    %v6204 = vld [vmem:[#allocation3 + $0x698] sm:$0xff]
    %v6205 = vld [vmem:[#allocation3 + $0x6a0] sm:$0xff]
    %v6206 = vld [vmem:[#allocation3 + $0x6a8] sm:$0xff]
    %v6207 = vld [vmem:[#allocation3 + $0x6b0] sm:$0xff]
    %v6208 = vld [vmem:[#allocation3 + $0x6b8] sm:$0xff]
    %v6209 = vld [vmem:[#allocation3 + $0x6c0] sm:$0xff]
    %v6210 = vld [vmem:[#allocation3 + $0x6c8] sm:$0xff]
    %v6211 = vld [vmem:[#allocation3 + $0x6d0] sm:$0xff]
    %v6212 = vld [vmem:[#allocation3 + $0x6d8] sm:$0xff]
    %v6213 = vld [vmem:[#allocation3 + $0x6e0] sm:$0xff]
    %v6214 = vld [vmem:[#allocation3 + $0x6e8] sm:$0xff]
    %v6215 = vld [vmem:[#allocation3 + $0x6f0] sm:$0xff]
    %v6216 = vld [vmem:[#allocation3 + $0x6f8] sm:$0xff]
    %v6217 = vld [vmem:[#allocation3 + $0x700] sm:$0xff]
    %v6218 = vld [vmem:[#allocation3 + $0x708] sm:$0xff]
    %v6219 = vld [vmem:[#allocation3 + $0x710] sm:$0xff]
    %v6220 = vld [vmem:[#allocation3 + $0x718] sm:$0xff]
    %v6221 = vld [vmem:[#allocation3 + $0x720] sm:$0xff]
    %v6222 = vld [vmem:[#allocation3 + $0x728] sm:$0xff]
    %v6223 = vld [vmem:[#allocation3 + $0x730] sm:$0xff]
    %v6224 = vld [vmem:[#allocation3 + $0x738] sm:$0xff]
    %v6225 = vld [vmem:[#allocation3 + $0x740] sm:$0xff]
    %v6226 = vld [vmem:[#allocation3 + $0x748] sm:$0xff]
    %v6227 = vld [vmem:[#allocation3 + $0x750] sm:$0xff]
    %v6228 = vld [vmem:[#allocation3 + $0x758] sm:$0xff]
    %v6229 = vld [vmem:[#allocation3 + $0x760] sm:$0xff]
    %v6230 = vld [vmem:[#allocation3 + $0x768] sm:$0xff]
    %v6231 = vld [vmem:[#allocation3 + $0x770] sm:$0xff]
    %v6232 = vld [vmem:[#allocation3 + $0x778] sm:$0xff]
    %v6233 = vld [vmem:[#allocation3 + $0x780] sm:$0xff]
    %v6234 = vld [vmem:[#allocation3 + $0x788] sm:$0xff]
    %v6235 = vld [vmem:[#allocation3 + $0x790] sm:$0xff]
    %v6236 = vld [vmem:[#allocation3 + $0x798] sm:$0xff]
    %v6237 = vld [vmem:[#allocation3 + $0x7a0] sm:$0xff]
    %v6238 = vld [vmem:[#allocation3 + $0x7a8] sm:$0xff]
    %v6239 = vld [vmem:[#allocation3 + $0x7b0] sm:$0xff]
    %v6240 = vld [vmem:[#allocation3 + $0x7b8] sm:$0xff]
    %v6241 = vld [vmem:[#allocation3 + $0x7c0] sm:$0xff]
    %v6242 = vld [vmem:[#allocation3 + $0x7c8] sm:$0xff]
    %v6243 = vld [vmem:[#allocation3 + $0x7d0] sm:$0xff]
    %v6244 = vld [vmem:[#allocation3 + $0x7d8] sm:$0xff]
    %v6245 = vld [vmem:[#allocation3 + $0x7e0] sm:$0xff]
    %v6246 = vld [vmem:[#allocation3 + $0x7e8] sm:$0xff]
    %v6247 = vld [vmem:[#allocation3 + $0x7f0] sm:$0xff]
    %v6248 = vld [vmem:[#allocation3 + $0x7f8] sm:$0xff]
    %v6249 = vld [vmem:[#allocation3 + $0x800] sm:$0xff]
    %v6250 = vld [vmem:[#allocation3 + $0x808] sm:$0xff]
    %v6251 = vld [vmem:[#allocation3 + $0x810] sm:$0xff]
    %v6252 = vld [vmem:[#allocation3 + $0x818] sm:$0xff]
    %v6253 = vld [vmem:[#allocation3 + $0x820] sm:$0xff]
    %v6254 = vld [vmem:[#allocation3 + $0x828] sm:$0xff]
    %v6255 = vld [vmem:[#allocation3 + $0x830] sm:$0xff]
    %v6256 = vld [vmem:[#allocation3 + $0x838] sm:$0xff]
    %v6257 = vld [vmem:[#allocation3 + $0x840] sm:$0xff]
    %v6258 = vld [vmem:[#allocation3 + $0x848] sm:$0xff]
    %v6259 = vld [vmem:[#allocation3 + $0x850] sm:$0xff]
    %v6260 = vld [vmem:[#allocation3 + $0x858] sm:$0xff]
    %v6261 = vld [vmem:[#allocation3 + $0x860] sm:$0xff]
    %v6262 = vld [vmem:[#allocation3 + $0x868] sm:$0xff]
    %v6263 = vld [vmem:[#allocation3 + $0x870] sm:$0xff]
    %v6264 = vld [vmem:[#allocation3 + $0x878] sm:$0xff]
    %v6265 = vld [vmem:[#allocation3 + $0x880] sm:$0xff]
    %v6266 = vld [vmem:[#allocation3 + $0x888] sm:$0xff]
    %v6267 = vld [vmem:[#allocation3 + $0x890] sm:$0xff]
    %v6268 = vld [vmem:[#allocation3 + $0x898] sm:$0xff]
    %v6269 = vld [vmem:[#allocation3 + $0x8a0] sm:$0xff]
    %v6270 = vld [vmem:[#allocation3 + $0x8a8] sm:$0xff]
    %v6271 = vld [vmem:[#allocation3 + $0x8b0] sm:$0xff]
    %v6272 = vld [vmem:[#allocation3 + $0x8b8] sm:$0xff]
    %v6273 = vld [vmem:[#allocation3 + $0x8c0] sm:$0xff]
    %v6274 = vld [vmem:[#allocation3 + $0x8c8] sm:$0xff]
    %v6275 = vld [vmem:[#allocation3 + $0x8d0] sm:$0xff]
    %v6276 = vld [vmem:[#allocation3 + $0x8d8] sm:$0xff]
    %v6277 = vld [vmem:[#allocation3 + $0x8e0] sm:$0xff]
    %v6278 = vld [vmem:[#allocation3 + $0x8e8] sm:$0xff]
    %v6279 = vld [vmem:[#allocation3 + $0x8f0] sm:$0xff]
    %v6280 = vld [vmem:[#allocation3 + $0x8f8] sm:$0xff]
    %v6281 = vld [vmem:[#allocation3 + $0x900] sm:$0xff]
    %v6282 = vld [vmem:[#allocation3 + $0x908] sm:$0xff]
    %v6283 = vld [vmem:[#allocation3 + $0x910] sm:$0xff]
    %v6284 = vld [vmem:[#allocation3 + $0x918] sm:$0xff]
    %v6285 = vld [vmem:[#allocation3 + $0x920] sm:$0xff]
    %v6286 = vld [vmem:[#allocation3 + $0x928] sm:$0xff]
    %v6287 = vld [vmem:[#allocation3 + $0x930] sm:$0xff]
    %v6288 = vld [vmem:[#allocation3 + $0x938] sm:$0xff]
    %v6289 = vld [vmem:[#allocation3 + $0x940] sm:$0xff]
    %v6290 = vld [vmem:[#allocation3 + $0x948] sm:$0xff]
    %v6291 = vld [vmem:[#allocation3 + $0x950] sm:$0xff]
    %v6292 = vld [vmem:[#allocation3 + $0x958] sm:$0xff]
    %v6293 = vld [vmem:[#allocation3 + $0x960] sm:$0xff]
    %v6294 = vld [vmem:[#allocation3 + $0x968] sm:$0xff]
    %v6295 = vld [vmem:[#allocation3 + $0x970] sm:$0xff]
    %v6296 = vld [vmem:[#allocation3 + $0x978] sm:$0xff]
    %v6297 = vld [vmem:[#allocation3 + $0x980] sm:$0xff]
    %v6298 = vld [vmem:[#allocation3 + $0x988] sm:$0xff]
    %v6299 = vld [vmem:[#allocation3 + $0x990] sm:$0xff]
    %v6300 = vld [vmem:[#allocation3 + $0x998] sm:$0xff]
    %v6301 = vld [vmem:[#allocation3 + $0x9a0] sm:$0xff]
    %v6302 = vld [vmem:[#allocation3 + $0x9a8] sm:$0xff]
    %v6303 = vld [vmem:[#allocation3 + $0x9b0] sm:$0xff]
    %v6304 = vld [vmem:[#allocation3 + $0x9b8] sm:$0xff]
    %v6305 = vld [vmem:[#allocation3 + $0x9c0] sm:$0xff]
    %v6306 = vld [vmem:[#allocation3 + $0x9c8] sm:$0xff]
    %v6307 = vld [vmem:[#allocation3 + $0x9d0] sm:$0xff]
    %v6308 = vld [vmem:[#allocation3 + $0x9d8] sm:$0xff]
    %v6309 = vld [vmem:[#allocation3 + $0x9e0] sm:$0xff]
    %v6310 = vld [vmem:[#allocation3 + $0x9e8] sm:$0xff]
    %v6311 = vld [vmem:[#allocation3 + $0x9f0] sm:$0xff]
    %v6312 = vld [vmem:[#allocation3 + $0x9f8] sm:$0xff]
    %v6373 = vunpack.c.l.b16 %v5933
    %v6374 = vunpack.c.h.b16 %v5933
    %v6375 = vunpack.c.l.b16 %v5934
    %v6376 = vunpack.c.h.b16 %v5934
    %v6377 = vunpack.c.l.b16 %v5935
    %v6378 = vunpack.c.l.b16 %v5936
    %v6379 = vunpack.c.h.b16 %v5936
    %v6380 = vunpack.c.l.b16 %v5937
    %v6381 = vunpack.c.h.b16 %v5937
    %v6382 = vunpack.c.l.b16 %v5938
    %v6383 = vunpack.c.l.b16 %v5939
    %v6384 = vunpack.c.h.b16 %v5939
    %v6385 = vunpack.c.l.b16 %v5940
    %v6386 = vunpack.c.h.b16 %v5940
    %v6387 = vunpack.c.l.b16 %v5941
    %v6388 = vunpack.c.l.b16 %v5942
    %v6389 = vunpack.c.h.b16 %v5942
    %v6390 = vunpack.c.l.b16 %v5943
    %v6391 = vunpack.c.h.b16 %v5943
    %v6392 = vunpack.c.l.b16 %v5944
    %v6393 = vunpack.c.l.b16 %v5945
    %v6394 = vunpack.c.h.b16 %v5945
    %v6395 = vunpack.c.l.b16 %v5946
    %v6396 = vunpack.c.h.b16 %v5946
    %v6397 = vunpack.c.l.b16 %v5947
    %v6398 = vunpack.c.l.b16 %v5948
    %v6399 = vunpack.c.h.b16 %v5948
    %v6400 = vunpack.c.l.b16 %v5949
    %v6401 = vunpack.c.h.b16 %v5949
    %v6402 = vunpack.c.l.b16 %v5950
    %v6403 = vunpack.c.l.b16 %v5951
    %v6404 = vunpack.c.h.b16 %v5951
    %v6405 = vunpack.c.l.b16 %v5952
    %v6406 = vunpack.c.h.b16 %v5952
    %v6407 = vunpack.c.l.b16 %v5953
    %v6408 = vunpack.c.l.b16 %v5954
    %v6409 = vunpack.c.h.b16 %v5954
    %v6410 = vunpack.c.l.b16 %v5955
    %v6411 = vunpack.c.h.b16 %v5955
    %v6412 = vunpack.c.l.b16 %v5956
    %v6413 = vunpack.c.l.b16 %v5957
    %v6414 = vunpack.c.h.b16 %v5957
    %v6415 = vunpack.c.l.b16 %v5958
    %v6416 = vunpack.c.h.b16 %v5958
    %v6417 = vunpack.c.l.b16 %v5959
    %v6418 = vunpack.c.l.b16 %v5960
    %v6419 = vunpack.c.h.b16 %v5960
    %v6420 = vunpack.c.l.b16 %v5961
    %v6421 = vunpack.c.h.b16 %v5961
    %v6422 = vunpack.c.l.b16 %v5962
    %v6423 = vunpack.c.l.b16 %v5963
    %v6424 = vunpack.c.h.b16 %v5963
    %v6425 = vunpack.c.l.b16 %v5964
    %v6426 = vunpack.c.h.b16 %v5964
    %v6427 = vunpack.c.l.b16 %v5965
    %v6428 = vunpack.c.l.b16 %v5966
    %v6429 = vunpack.c.h.b16 %v5966
    %v6430 = vunpack.c.l.b16 %v5967
    %v6431 = vunpack.c.h.b16 %v5967
    %v6432 = vunpack.c.l.b16 %v5968
    %v6433 = vunpack.c.l.b16 %v5969
    %v6434 = vunpack.c.h.b16 %v5969
    %v6435 = vunpack.c.l.b16 %v5970
    %v6436 = vunpack.c.h.b16 %v5970
    %v6437 = vunpack.c.l.b16 %v5971
    %v6438 = vunpack.c.l.b16 %v5972
    %v6439 = vunpack.c.h.b16 %v5972
    %v6440 = vunpack.c.l.b16 %v5973
    %v6441 = vunpack.c.h.b16 %v5973
    %v6442 = vunpack.c.l.b16 %v5974
    %v6443 = vunpack.c.l.b16 %v5975
    %v6444 = vunpack.c.h.b16 %v5975
    %v6445 = vunpack.c.l.b16 %v5976
    %v6446 = vunpack.c.h.b16 %v5976
    %v6447 = vunpack.c.l.b16 %v5977
    %v6448 = vunpack.c.l.b16 %v5978
    %v6449 = vunpack.c.h.b16 %v5978
    %v6450 = vunpack.c.l.b16 %v5979
    %v6451 = vunpack.c.h.b16 %v5979
    %v6452 = vunpack.c.l.b16 %v5980
    %v6453 = vunpack.c.l.b16 %v5981
    %v6454 = vunpack.c.h.b16 %v5981
    %v6455 = vunpack.c.l.b16 %v5982
    %v6456 = vunpack.c.h.b16 %v5982
    %v6457 = vunpack.c.l.b16 %v5983
    %v6458 = vunpack.c.l.b16 %v5984
    %v6459 = vunpack.c.h.b16 %v5984
    %v6460 = vunpack.c.l.b16 %v5985
    %v6461 = vunpack.c.h.b16 %v5985
    %v6462 = vunpack.c.l.b16 %v5986
    %v6463 = vunpack.c.l.b16 %v5987
    %v6464 = vunpack.c.h.b16 %v5987
    %v6465 = vunpack.c.l.b16 %v5988
    %v6466 = vunpack.c.h.b16 %v5988
    %v6467 = vunpack.c.l.b16 %v5989
    %v6468 = vunpack.c.l.b16 %v5990
    %v6469 = vunpack.c.h.b16 %v5990
    %v6470 = vunpack.c.l.b16 %v5991
    %v6471 = vunpack.c.h.b16 %v5991
    %v6472 = vunpack.c.l.b16 %v5992
    %v6473 = vpack.c.b16 %v6378, %v6373
    %v6474 = vpack.c.b16 %v6379, %v6374
    %v6475 = vpack.c.b16 %v6380, %v6375
    %v6476 = vpack.c.b16 %v6381, %v6376
    %v6477 = vpack.c.b16 %v6382, %v6377
    %v6478 = vpack.c.b16 %v6388, %v6383
    %v6479 = vpack.c.b16 %v6389, %v6384
    %v6480 = vpack.c.b16 %v6390, %v6385
    %v6481 = vpack.c.b16 %v6391, %v6386
    %v6482 = vpack.c.b16 %v6392, %v6387
    %v6483 = vpack.c.b16 %v6398, %v6393
    %v6484 = vpack.c.b16 %v6399, %v6394
    %v6485 = vpack.c.b16 %v6400, %v6395
    %v6486 = vpack.c.b16 %v6401, %v6396
    %v6487 = vpack.c.b16 %v6402, %v6397
    %v6488 = vpack.c.b16 %v6408, %v6403
    %v6489 = vpack.c.b16 %v6409, %v6404
    %v6490 = vpack.c.b16 %v6410, %v6405
    %v6491 = vpack.c.b16 %v6411, %v6406
    %v6492 = vpack.c.b16 %v6412, %v6407
    %v6493 = vpack.c.b16 %v6418, %v6413
    %v6494 = vpack.c.b16 %v6419, %v6414
    %v6495 = vpack.c.b16 %v6420, %v6415
    %v6496 = vpack.c.b16 %v6421, %v6416
    %v6497 = vpack.c.b16 %v6422, %v6417
    %v6498 = vpack.c.b16 %v6428, %v6423
    %v6499 = vpack.c.b16 %v6429, %v6424
    %v6500 = vpack.c.b16 %v6430, %v6425
    %v6501 = vpack.c.b16 %v6431, %v6426
    %v6502 = vpack.c.b16 %v6432, %v6427
    %v6503 = vpack.c.b16 %v6438, %v6433
    %v6504 = vpack.c.b16 %v6439, %v6434
    %v6505 = vpack.c.b16 %v6440, %v6435
    %v6506 = vpack.c.b16 %v6441, %v6436
    %v6507 = vpack.c.b16 %v6442, %v6437
    %v6508 = vpack.c.b16 %v6448, %v6443
    %v6509 = vpack.c.b16 %v6449, %v6444
    %v6510 = vpack.c.b16 %v6450, %v6445
    %v6511 = vpack.c.b16 %v6451, %v6446
    %v6512 = vpack.c.b16 %v6452, %v6447
    %v6513 = vpack.c.b16 %v6458, %v6453
    %v6514 = vpack.c.b16 %v6459, %v6454
    %v6515 = vpack.c.b16 %v6460, %v6455
    %v6516 = vpack.c.b16 %v6461, %v6456
    %v6517 = vpack.c.b16 %v6462, %v6457
    %v6518 = vpack.c.b16 %v6468, %v6463
    %v6519 = vpack.c.b16 %v6469, %v6464
    %v6520 = vpack.c.b16 %v6470, %v6465
    %v6521 = vpack.c.b16 %v6471, %v6466
    %v6522 = vpack.c.b16 %v6472, %v6467
    %6573 = vmatprep.subr.bf16.mxu0 %v5994
    %6574 = vmatpush1.bf16.msra.mxu0 %v5993
    %6575 = vmatprep.subr.bf16.mxu0 %v6002
    %6576 = vmatpush1.bf16.msra.mxu0 %v6001
    %6577 = vmatprep.subr.bf16.mxu0 %v6010
    %6578 = vmatpush1.bf16.msra.mxu0 %v6009
    %6579 = vmatprep.subr.bf16.mxu0 %v6018
    %6580 = vmatpush1.bf16.msra.mxu0 %v6017
    %6581 = vmatprep.subr.bf16.mxu0 %v6026
    %6582 = vmatpush1.bf16.msra.mxu0 %v6025
    %6583 = vmatprep.subr.bf16.mxu0 %v6034
    %6584 = vmatpush1.bf16.msra.mxu0 %v6033
    %6585 = vmatprep.subr.bf16.mxu0 %v6042
    %6586 = vmatpush1.bf16.msra.mxu0 %v6041
    %6587 = vmatprep.subr.bf16.mxu0 %v6050
    %6588 = vmatpush1.bf16.msra.mxu0 %v6049
    %6589 = vmatprep.subr.bf16.mxu0 %v6058
    %6590 = vmatpush1.bf16.msra.mxu0 %v6057
    %6591 = vmatprep.subr.bf16.mxu0 %v6066
    %6592 = vmatpush1.bf16.msra.mxu0 %v6065
    %6593 = vmatprep.subr.bf16.mxu0 %v6074
    %6594 = vmatpush1.bf16.msra.mxu0 %v6073
    %6595 = vmatprep.subr.bf16.mxu0 %v6082
    %6596 = vmatpush1.bf16.msra.mxu0 %v6081
    %6597 = vmatprep.subr.bf16.mxu0 %v6090
    %6598 = vmatpush1.bf16.msra.mxu0 %v6089
    %6599 = vmatprep.subr.bf16.mxu0 %v6098
    %6600 = vmatpush1.bf16.msra.mxu0 %v6097
    %6601 = vmatprep.subr.bf16.mxu0 %v6106
    %6602 = vmatpush1.bf16.msra.mxu0 %v6105
    %6603 = vmatprep.subr.bf16.mxu0 %v6114
    %6604 = vmatpush1.bf16.msra.mxu0 %v6113
    %6605 = vmatprep.mubr.bf16.mxu0 %v6474
    %6606 = vmatmul.mubr.bf16.gmra.mrb[0].mxu0 %v6473
    %v6607 = vpop.f32.mrb[0].mxu0
    %v6608 = vadd.f32 0.0, %v6607
    %v6609 = vpop.f32.mrb[0].mxu0
    %v6610 = vadd.f32 0.0, %v6609
    %v6611 = vpop.f32.mrb[0].mxu0
    %v6612 = vadd.f32 0.0, %v6611
    %v6613 = vpop.f32.mrb[0].mxu0
    %v6614 = vadd.f32 0.0, %v6613
    %6615 = vmatprep.mubr.bf16.mxu0 %v6479
    %6616 = vmatmul.mubr.bf16.gmra.mrb[0].mxu0 %v6478
    %v6617 = vpop.f32.mrb[0].mxu0
    %v6618 = vadd.f32 0.0, %v6617
    %v6619 = vpop.f32.mrb[0].mxu0
    %v6620 = vadd.f32 0.0, %v6619
    %v6621 = vpop.f32.mrb[0].mxu0
    %v6622 = vadd.f32 0.0, %v6621
    %v6623 = vpop.f32.mrb[0].mxu0
    %v6624 = vadd.f32 0.0, %v6623
    %6625 = vmatprep.mubr.bf16.mxu0 %v6484
    %6626 = vmatmul.mubr.bf16.gmra.mrb[0].mxu0 %v6483
    %v6627 = vpop.f32.mrb[0].mxu0
    %v6628 = vadd.f32 0.0, %v6627
    %v6629 = vpop.f32.mrb[0].mxu0
    %v6630 = vadd.f32 0.0, %v6629
    %v6631 = vpop.f32.mrb[0].mxu0
    %v6632 = vadd.f32 0.0, %v6631
    %v6633 = vpop.f32.mrb[0].mxu0
    %v6634 = vadd.f32 0.0, %v6633
    %6635 = vmatprep.mubr.bf16.mxu0 %v6489
    %6636 = vmatmul.mubr.bf16.gmra.mrb[0].mxu0 %v6488
    %v6637 = vpop.f32.mrb[0].mxu0
    %v6638 = vadd.f32 0.0, %v6637
    %v6639 = vpop.f32.mrb[0].mxu0
    %v6640 = vadd.f32 0.0, %v6639
    %v6641 = vpop.f32.mrb[0].mxu0
    %v6642 = vadd.f32 0.0, %v6641
    %v6643 = vpop.f32.mrb[0].mxu0
    %v6644 = vadd.f32 0.0, %v6643
    %6645 = vmatprep.mubr.bf16.mxu0 %v6494
    %6646 = vmatmul.mubr.bf16.gmra.mrb[0].mxu0 %v6493
    %v6647 = vpop.f32.mrb[0].mxu0
    %v6648 = vadd.f32 0.0, %v6647
    %v6649 = vpop.f32.mrb[0].mxu0
    %v6650 = vadd.f32 0.0, %v6649
    %v6651 = vpop.f32.mrb[0].mxu0
    %v6652 = vadd.f32 0.0, %v6651
    %v6653 = vpop.f32.mrb[0].mxu0
    %v6654 = vadd.f32 0.0, %v6653
    %6655 = vmatprep.mubr.bf16.mxu0 %v6499
    %6656 = vmatmul.mubr.bf16.gmra.mrb[0].mxu0 %v6498
    %v6657 = vpop.f32.mrb[0].mxu0
    %v6658 = vadd.f32 0.0, %v6657
    %v6659 = vpop.f32.mrb[0].mxu0
    %v6660 = vadd.f32 0.0, %v6659
    %v6661 = vpop.f32.mrb[0].mxu0
    %v6662 = vadd.f32 0.0, %v6661
    %v6663 = vpop.f32.mrb[0].mxu0
    %v6664 = vadd.f32 0.0, %v6663
    %6665 = vmatprep.mubr.bf16.mxu0 %v6504
    %6666 = vmatmul.mubr.bf16.gmra.mrb[0].mxu0 %v6503
    %v6667 = vpop.f32.mrb[0].mxu0
    %v6668 = vadd.f32 0.0, %v6667
    %v6669 = vpop.f32.mrb[0].mxu0
    %v6670 = vadd.f32 0.0, %v6669
    %v6671 = vpop.f32.mrb[0].mxu0
    %v6672 = vadd.f32 0.0, %v6671
    %v6673 = vpop.f32.mrb[0].mxu0
    %v6674 = vadd.f32 0.0, %v6673
    %6675 = vmatprep.mubr.bf16.mxu0 %v6509
    %6676 = vmatmul.mubr.bf16.gmra.mrb[0].mxu0 %v6508
    %v6677 = vpop.f32.mrb[0].mxu0
    %v6678 = vadd.f32 0.0, %v6677
    %v6679 = vpop.f32.mrb[0].mxu0
    %v6680 = vadd.f32 0.0, %v6679
    %v6681 = vpop.f32.mrb[0].mxu0
    %v6682 = vadd.f32 0.0, %v6681
    %v6683 = vpop.f32.mrb[0].mxu0
    %v6684 = vadd.f32 0.0, %v6683
    %6685 = vmatprep.mubr.bf16.mxu0 %v6514
    %6686 = vmatmul.mubr.bf16.gmra.mrb[0].mxu0 %v6513
    %v6687 = vpop.f32.mrb[0].mxu0
    %v6688 = vadd.f32 0.0, %v6687
    %v6689 = vpop.f32.mrb[0].mxu0
    %v6690 = vadd.f32 0.0, %v6689
    %v6691 = vpop.f32.mrb[0].mxu0
    %v6692 = vadd.f32 0.0, %v6691
    %v6693 = vpop.f32.mrb[0].mxu0
    %v6694 = vadd.f32 0.0, %v6693
    %6695 = vmatprep.mubr.bf16.mxu0 %v6519
    %6696 = vmatmul.mubr.bf16.gmra.mrb[0].mxu0 %v6518
    %v6697 = vpop.f32.mrb[0].mxu0
    %v6698 = vadd.f32 0.0, %v6697
    %v6699 = vpop.f32.mrb[0].mxu0
    %v6700 = vadd.f32 0.0, %v6699
    %v6701 = vpop.f32.mrb[0].mxu0
    %v6702 = vadd.f32 0.0, %v6701
    %v6703 = vpop.f32.mrb[0].mxu0
    %v6704 = vadd.f32 0.0, %v6703
    %6705 = vdwg.mxu0
    %6706 = vmatprep.subr.bf16.mxu0 %v6122
    %6707 = vmatpush1.bf16.msra.mxu0 %v6121
    %6708 = vmatprep.subr.bf16.mxu0 %v6130
    %6709 = vmatpush1.bf16.msra.mxu0 %v6129
    %6710 = vmatprep.subr.bf16.mxu0 %v6138
    %6711 = vmatpush1.bf16.msra.mxu0 %v6137
    %6712 = vmatprep.subr.bf16.mxu0 %v6146
    %6713 = vmatpush1.bf16.msra.mxu0 %v6145
    %6714 = vmatprep.subr.bf16.mxu0 %v6154
    %6715 = vmatpush1.bf16.msra.mxu0 %v6153
    %6716 = vmatprep.subr.bf16.mxu0 %v6162
    %6717 = vmatpush1.bf16.msra.mxu0 %v6161
    %6718 = vmatprep.subr.bf16.mxu0 %v6170
    %6719 = vmatpush1.bf16.msra.mxu0 %v6169
    %6720 = vmatprep.subr.bf16.mxu0 %v6178
    %6721 = vmatpush1.bf16.msra.mxu0 %v6177
    %6722 = vmatprep.subr.bf16.mxu0 %v6186
    %6723 = vmatpush1.bf16.msra.mxu0 %v6185
    %6724 = vmatprep.subr.bf16.mxu0 %v6194
    %6725 = vmatpush1.bf16.msra.mxu0 %v6193
    %6726 = vmatprep.subr.bf16.mxu0 %v6202
    %6727 = vmatpush1.bf16.msra.mxu0 %v6201
    %6728 = vmatprep.subr.bf16.mxu0 %v6210
    %6729 = vmatpush1.bf16.msra.mxu0 %v6209
    %6730 = vmatprep.subr.bf16.mxu0 %v6218
    %6731 = vmatpush1.bf16.msra.mxu0 %v6217
    %6732 = vmatprep.subr.bf16.mxu0 %v6226
    %6733 = vmatpush1.bf16.msra.mxu0 %v6225
    %6734 = vmatprep.subr.bf16.mxu0 %v6234
    %6735 = vmatpush1.bf16.msra.mxu0 %v6233
    %6736 = vmatprep.subr.bf16.mxu0 %v6242
    %6737 = vmatpush1.bf16.msra.mxu0 %v6241
    %6738 = vmatprep.mubr.bf16.mxu0 %v6476
    %6739 = vmatmul.mubr.bf16.gmra.mrb[0].mxu0 %v6475
    %v6740 = vpop.f32.mrb[0].mxu0
    %v6741 = vadd.f32 %v6608, %v6740
    %v6742 = vpop.f32.mrb[0].mxu0
    %v6743 = vadd.f32 %v6610, %v6742
    %v6744 = vpop.f32.mrb[0].mxu0
    %v6745 = vadd.f32 %v6612, %v6744
    %v6746 = vpop.f32.mrb[0].mxu0
    %v6747 = vadd.f32 %v6614, %v6746
    %6748 = vmatprep.mubr.bf16.mxu0 %v6481
    %6749 = vmatmul.mubr.bf16.gmra.mrb[0].mxu0 %v6480
    %v6750 = vpop.f32.mrb[0].mxu0
    %v6751 = vadd.f32 %v6618, %v6750
    %v6752 = vpop.f32.mrb[0].mxu0
    %v6753 = vadd.f32 %v6620, %v6752
    %v6754 = vpop.f32.mrb[0].mxu0
    %v6755 = vadd.f32 %v6622, %v6754
    %v6756 = vpop.f32.mrb[0].mxu0
    %v6757 = vadd.f32 %v6624, %v6756
    %6758 = vmatprep.mubr.bf16.mxu0 %v6486
    %6759 = vmatmul.mubr.bf16.gmra.mrb[0].mxu0 %v6485
    %v6760 = vpop.f32.mrb[0].mxu0
    %v6761 = vadd.f32 %v6628, %v6760
    %v6762 = vpop.f32.mrb[0].mxu0
    %v6763 = vadd.f32 %v6630, %v6762
    %v6764 = vpop.f32.mrb[0].mxu0
    %v6765 = vadd.f32 %v6632, %v6764
    %v6766 = vpop.f32.mrb[0].mxu0
    %v6767 = vadd.f32 %v6634, %v6766
    %6768 = vmatprep.mubr.bf16.mxu0 %v6491
    %6769 = vmatmul.mubr.bf16.gmra.mrb[0].mxu0 %v6490
    %v6770 = vpop.f32.mrb[0].mxu0
    %v6771 = vadd.f32 %v6638, %v6770
    %v6772 = vpop.f32.mrb[0].mxu0
    %v6773 = vadd.f32 %v6640, %v6772
    %v6774 = vpop.f32.mrb[0].mxu0
    %v6775 = vadd.f32 %v6642, %v6774
    %v6776 = vpop.f32.mrb[0].mxu0
    %v6777 = vadd.f32 %v6644, %v6776
    %6778 = vmatprep.mubr.bf16.mxu0 %v6496
    %6779 = vmatmul.mubr.bf16.gmra.mrb[0].mxu0 %v6495
    %v6780 = vpop.f32.mrb[0].mxu0
    %v6781 = vadd.f32 %v6648, %v6780
    %v6782 = vpop.f32.mrb[0].mxu0
    %v6783 = vadd.f32 %v6650, %v6782
    %v6784 = vpop.f32.mrb[0].mxu0
    %v6785 = vadd.f32 %v6652, %v6784
    %v6786 = vpop.f32.mrb[0].mxu0
    %v6787 = vadd.f32 %v6654, %v6786
    %6788 = vmatprep.mubr.bf16.mxu0 %v6501
    %6789 = vmatmul.mubr.bf16.gmra.mrb[0].mxu0 %v6500
    %v6790 = vpop.f32.mrb[0].mxu0
    %v6791 = vadd.f32 %v6658, %v6790
    %v6792 = vpop.f32.mrb[0].mxu0
    %v6793 = vadd.f32 %v6660, %v6792
    %v6794 = vpop.f32.mrb[0].mxu0
    %v6795 = vadd.f32 %v6662, %v6794
    %v6796 = vpop.f32.mrb[0].mxu0
    %v6797 = vadd.f32 %v6664, %v6796
    %6798 = vmatprep.mubr.bf16.mxu0 %v6506
    %6799 = vmatmul.mubr.bf16.gmra.mrb[0].mxu0 %v6505
    %v6800 = vpop.f32.mrb[0].mxu0
    %v6801 = vadd.f32 %v6668, %v6800
    %v6802 = vpop.f32.mrb[0].mxu0
    %v6803 = vadd.f32 %v6670, %v6802
    %v6804 = vpop.f32.mrb[0].mxu0
    %v6805 = vadd.f32 %v6672, %v6804
    %v6806 = vpop.f32.mrb[0].mxu0
    %v6807 = vadd.f32 %v6674, %v6806
    %6808 = vmatprep.mubr.bf16.mxu0 %v6511
    %6809 = vmatmul.mubr.bf16.gmra.mrb[0].mxu0 %v6510
    %v6810 = vpop.f32.mrb[0].mxu0
    %v6811 = vadd.f32 %v6678, %v6810
    %v6812 = vpop.f32.mrb[0].mxu0
    %v6813 = vadd.f32 %v6680, %v6812
    %v6814 = vpop.f32.mrb[0].mxu0
    %v6815 = vadd.f32 %v6682, %v6814
    %v6816 = vpop.f32.mrb[0].mxu0
    %v6817 = vadd.f32 %v6684, %v6816
    %6818 = vmatprep.mubr.bf16.mxu0 %v6516
    %6819 = vmatmul.mubr.bf16.gmra.mrb[0].mxu0 %v6515
    %v6820 = vpop.f32.mrb[0].mxu0
    %v6821 = vadd.f32 %v6688, %v6820
    %v6822 = vpop.f32.mrb[0].mxu0
    %v6823 = vadd.f32 %v6690, %v6822
    %v6824 = vpop.f32.mrb[0].mxu0
    %v6825 = vadd.f32 %v6692, %v6824
    %v6826 = vpop.f32.mrb[0].mxu0
    %v6827 = vadd.f32 %v6694, %v6826
    %6828 = vmatprep.mubr.bf16.mxu0 %v6521
    %6829 = vmatmul.mubr.bf16.gmra.mrb[0].mxu0 %v6520
    %v6830 = vpop.f32.mrb[0].mxu0
    %v6831 = vadd.f32 %v6698, %v6830
    %v6832 = vpop.f32.mrb[0].mxu0
    %v6833 = vadd.f32 %v6700, %v6832
    %v6834 = vpop.f32.mrb[0].mxu0
    %v6835 = vadd.f32 %v6702, %v6834
    %v6836 = vpop.f32.mrb[0].mxu0
    %v6837 = vadd.f32 %v6704, %v6836
    %6838 = vdwg.mxu0
    %6839 = vmatprep.subr.bf16.mxu0 %v6250
    %6840 = vmatpush1.bf16.msra.mxu0 %v6249
    %6841 = vmatprep.subr.bf16.mxu0 %v6258
    %6842 = vmatpush1.bf16.msra.mxu0 %v6257
    %6843 = vmatprep.subr.bf16.mxu0 %v6266
    %6844 = vmatpush1.bf16.msra.mxu0 %v6265
    %6845 = vmatprep.subr.bf16.mxu0 %v6274
    %6846 = vmatpush1.bf16.msra.mxu0 %v6273
    %6847 = vmatprep.subr.bf16.mxu0 %v6282
    %6848 = vmatpush1.bf16.msra.mxu0 %v6281
    %6849 = vmatprep.subr.bf16.mxu0 %v6290
    %6850 = vmatpush1.bf16.msra.mxu0 %v6289
    %6851 = vmatprep.subr.bf16.mxu0 %v6298
    %6852 = vmatpush1.bf16.msra.mxu0 %v6297
    %6853 = vmatprep.subr.bf16.mxu0 %v6306
    %6854 = vmatpush1.bf16.msra.mxu0 %v6305
    %6855 = vmatprep.subr.bf16.mxu0 0
    %6856 = vmatpush1.bf16.msra.mxu0 0
    %6857 = vmatprep.subr.bf16.mxu0 0
    %6858 = vmatpush1.bf16.msra.mxu0 0
    %6859 = vmatprep.subr.bf16.mxu0 0
    %6860 = vmatpush1.bf16.msra.mxu0 0
    %6861 = vmatprep.subr.bf16.mxu0 0
    %6862 = vmatpush1.bf16.msra.mxu0 0
    %6863 = vmatprep.subr.bf16.mxu0 0
    %6864 = vmatpush1.bf16.msra.mxu0 0
    %6865 = vmatprep.subr.bf16.mxu0 0
    %6866 = vmatpush1.bf16.msra.mxu0 0
    %6867 = vmatprep.subr.bf16.mxu0 0
    %6868 = vmatpush1.bf16.msra.mxu0 0
    %6869 = vmatprep.subr.bf16.mxu0 0
    %6870 = vmatpush1.bf16.msra.mxu0 0
    %6871 = vmatprep.mubr.bf16.mxu0 0
    %6872 = vmatmul.mubr.bf16.gmra.mrb[0].mxu0 %v6477
    %v6873 = vpop.f32.mrb[0].mxu0
    %v6874 = vadd.f32 %v6741, %v6873
    %v6875 = vpop.f32.mrb[0].mxu0
    %v6876 = vadd.f32 %v6743, %v6875
    %v6877 = vpop.f32.mrb[0].mxu0
    %v6878 = vadd.f32 %v6745, %v6877
    %v6879 = vpop.f32.mrb[0].mxu0
    %v6880 = vadd.f32 %v6747, %v6879
    %6881 = vmatprep.mubr.bf16.mxu0 0
    %6882 = vmatmul.mubr.bf16.gmra.mrb[0].mxu0 %v6482
    %v6883 = vpop.f32.mrb[0].mxu0
    %v6884 = vadd.f32 %v6751, %v6883
    %v6885 = vpop.f32.mrb[0].mxu0
    %v6886 = vadd.f32 %v6753, %v6885
    %v6887 = vpop.f32.mrb[0].mxu0
    %v6888 = vadd.f32 %v6755, %v6887
    %v6889 = vpop.f32.mrb[0].mxu0
    %v6890 = vadd.f32 %v6757, %v6889
    %6891 = vmatprep.mubr.bf16.mxu0 0
    %6892 = vmatmul.mubr.bf16.gmra.mrb[0].mxu0 %v6487
    %v6893 = vpop.f32.mrb[0].mxu0
    %v6894 = vadd.f32 %v6761, %v6893
    %v6895 = vpop.f32.mrb[0].mxu0
    %v6896 = vadd.f32 %v6763, %v6895
    %v6897 = vpop.f32.mrb[0].mxu0
    %v6898 = vadd.f32 %v6765, %v6897
    %v6899 = vpop.f32.mrb[0].mxu0
    %v6900 = vadd.f32 %v6767, %v6899
    %6901 = vmatprep.mubr.bf16.mxu0 0
    %6902 = vmatmul.mubr.bf16.gmra.mrb[0].mxu0 %v6492
    %v6903 = vpop.f32.mrb[0].mxu0
    %v6904 = vadd.f32 %v6771, %v6903
    %v6905 = vpop.f32.mrb[0].mxu0
    %v6906 = vadd.f32 %v6773, %v6905
    %v6907 = vpop.f32.mrb[0].mxu0
    %v6908 = vadd.f32 %v6775, %v6907
    %v6909 = vpop.f32.mrb[0].mxu0
    %v6910 = vadd.f32 %v6777, %v6909
    %6911 = vmatprep.mubr.bf16.mxu0 0
    %6912 = vmatmul.mubr.bf16.gmra.mrb[0].mxu0 %v6497
    %v6913 = vpop.f32.mrb[0].mxu0
    %v6914 = vadd.f32 %v6781, %v6913
    %v6915 = vpop.f32.mrb[0].mxu0
    %v6916 = vadd.f32 %v6783, %v6915
    %v6917 = vpop.f32.mrb[0].mxu0
    %v6918 = vadd.f32 %v6785, %v6917
    %v6919 = vpop.f32.mrb[0].mxu0
    %v6920 = vadd.f32 %v6787, %v6919
    %6921 = vmatprep.mubr.bf16.mxu0 0
    %6922 = vmatmul.mubr.bf16.gmra.mrb[0].mxu0 %v6502
    %v6923 = vpop.f32.mrb[0].mxu0
    %v6924 = vadd.f32 %v6791, %v6923
    %v6925 = vpop.f32.mrb[0].mxu0
    %v6926 = vadd.f32 %v6793, %v6925
    %v6927 = vpop.f32.mrb[0].mxu0
    %v6928 = vadd.f32 %v6795, %v6927
    %v6929 = vpop.f32.mrb[0].mxu0
    %v6930 = vadd.f32 %v6797, %v6929
    %6931 = vmatprep.mubr.bf16.mxu0 0
    %6932 = vmatmul.mubr.bf16.gmra.mrb[0].mxu0 %v6507
    %v6933 = vpop.f32.mrb[0].mxu0
    %v6934 = vadd.f32 %v6801, %v6933
    %v6935 = vpop.f32.mrb[0].mxu0
    %v6936 = vadd.f32 %v6803, %v6935
    %v6937 = vpop.f32.mrb[0].mxu0
    %v6938 = vadd.f32 %v6805, %v6937
    %v6939 = vpop.f32.mrb[0].mxu0
    %v6940 = vadd.f32 %v6807, %v6939
    %6941 = vmatprep.mubr.bf16.mxu0 0
    %6942 = vmatmul.mubr.bf16.gmra.mrb[0].mxu0 %v6512
    %v6943 = vpop.f32.mrb[0].mxu0
    %v6944 = vadd.f32 %v6811, %v6943
    %v6945 = vpop.f32.mrb[0].mxu0
    %v6946 = vadd.f32 %v6813, %v6945
    %v6947 = vpop.f32.mrb[0].mxu0
    %v6948 = vadd.f32 %v6815, %v6947
    %v6949 = vpop.f32.mrb[0].mxu0
    %v6950 = vadd.f32 %v6817, %v6949
    %6951 = vmatprep.mubr.bf16.mxu0 0
    %6952 = vmatmul.mubr.bf16.gmra.mrb[0].mxu0 %v6517
    %v6953 = vpop.f32.mrb[0].mxu0
    %v6954 = vadd.f32 %v6821, %v6953
    %v6955 = vpop.f32.mrb[0].mxu0
    %v6956 = vadd.f32 %v6823, %v6955
    %v6957 = vpop.f32.mrb[0].mxu0
    %v6958 = vadd.f32 %v6825, %v6957
    %v6959 = vpop.f32.mrb[0].mxu0
    %v6960 = vadd.f32 %v6827, %v6959
    %6961 = vmatprep.mubr.bf16.mxu0 0
    %6962 = vmatmul.mubr.bf16.gmra.mrb[0].mxu0 %v6522
    %v6963 = vpop.f32.mrb[0].mxu0
    %v6964 = vadd.f32 %v6831, %v6963
    %v6965 = vpop.f32.mrb[0].mxu0
    %v6966 = vadd.f32 %v6833, %v6965
    %v6967 = vpop.f32.mrb[0].mxu0
    %v6968 = vadd.f32 %v6835, %v6967
    %v6969 = vpop.f32.mrb[0].mxu0
    %v6970 = vadd.f32 %v6837, %v6969
    %6971 = vdwg.mxu0
    %6972 = vmatprep.subr.bf16.mxu0 %v5996
    %6973 = vmatpush1.bf16.msra.mxu0 %v5995
    %6974 = vmatprep.subr.bf16.mxu0 %v6004
    %6975 = vmatpush1.bf16.msra.mxu0 %v6003
    %6976 = vmatprep.subr.bf16.mxu0 %v6012
    %6977 = vmatpush1.bf16.msra.mxu0 %v6011
    %6978 = vmatprep.subr.bf16.mxu0 %v6020
    %6979 = vmatpush1.bf16.msra.mxu0 %v6019
    %6980 = vmatprep.subr.bf16.mxu0 %v6028
    %6981 = vmatpush1.bf16.msra.mxu0 %v6027
    %6982 = vmatprep.subr.bf16.mxu0 %v6036
    %6983 = vmatpush1.bf16.msra.mxu0 %v6035
    %6984 = vmatprep.subr.bf16.mxu0 %v6044
    %6985 = vmatpush1.bf16.msra.mxu0 %v6043
    %6986 = vmatprep.subr.bf16.mxu0 %v6052
    %6987 = vmatpush1.bf16.msra.mxu0 %v6051
    %6988 = vmatprep.subr.bf16.mxu0 %v6060
    %6989 = vmatpush1.bf16.msra.mxu0 %v6059
    %6990 = vmatprep.subr.bf16.mxu0 %v6068
    %6991 = vmatpush1.bf16.msra.mxu0 %v6067
    %6992 = vmatprep.subr.bf16.mxu0 %v6076
    %6993 = vmatpush1.bf16.msra.mxu0 %v6075
    %6994 = vmatprep.subr.bf16.mxu0 %v6084
    %6995 = vmatpush1.bf16.msra.mxu0 %v6083
    %6996 = vmatprep.subr.bf16.mxu0 %v6092
    %6997 = vmatpush1.bf16.msra.mxu0 %v6091
    %6998 = vmatprep.subr.bf16.mxu0 %v6100
    %6999 = vmatpush1.bf16.msra.mxu0 %v6099
    %7000 = vmatprep.subr.bf16.mxu0 %v6108
    %7001 = vmatpush1.bf16.msra.mxu0 %v6107
    %7002 = vmatprep.subr.bf16.mxu0 %v6116
    %7003 = vmatpush1.bf16.msra.mxu0 %v6115
    %7004 = vmatprep.mubr.bf16.mxu0 %v6474
    %7005 = vmatmul.mubr.bf16.gmra.mrb[0].mxu0 %v6473
    %v7006 = vpop.f32.mrb[0].mxu0
    %v7007 = vadd.f32 0.0, %v7006
    %v7008 = vpop.f32.mrb[0].mxu0
    %v7009 = vadd.f32 0.0, %v7008
    %v7010 = vpop.f32.mrb[0].mxu0
    %v7011 = vadd.f32 0.0, %v7010
    %v7012 = vpop.f32.mrb[0].mxu0
    %v7013 = vadd.f32 0.0, %v7012
    %7014 = vmatprep.mubr.bf16.mxu0 %v6479
    %7015 = vmatmul.mubr.bf16.gmra.mrb[0].mxu0 %v6478
    %v7016 = vpop.f32.mrb[0].mxu0
    %v7017 = vadd.f32 0.0, %v7016
    %v7018 = vpop.f32.mrb[0].mxu0
    %v7019 = vadd.f32 0.0, %v7018
    %v7020 = vpop.f32.mrb[0].mxu0
    %v7021 = vadd.f32 0.0, %v7020
    %v7022 = vpop.f32.mrb[0].mxu0
    %v7023 = vadd.f32 0.0, %v7022
    %7024 = vmatprep.mubr.bf16.mxu0 %v6484
    %7025 = vmatmul.mubr.bf16.gmra.mrb[0].mxu0 %v6483
    %v7026 = vpop.f32.mrb[0].mxu0
    %v7027 = vadd.f32 0.0, %v7026
    %v7028 = vpop.f32.mrb[0].mxu0
    %v7029 = vadd.f32 0.0, %v7028
    %v7030 = vpop.f32.mrb[0].mxu0
    %v7031 = vadd.f32 0.0, %v7030
    %v7032 = vpop.f32.mrb[0].mxu0
    %v7033 = vadd.f32 0.0, %v7032
    %7034 = vmatprep.mubr.bf16.mxu0 %v6489
    %7035 = vmatmul.mubr.bf16.gmra.mrb[0].mxu0 %v6488
    %v7036 = vpop.f32.mrb[0].mxu0
    %v7037 = vadd.f32 0.0, %v7036
    %v7038 = vpop.f32.mrb[0].mxu0
    %v7039 = vadd.f32 0.0, %v7038
    %v7040 = vpop.f32.mrb[0].mxu0
    %v7041 = vadd.f32 0.0, %v7040
    %v7042 = vpop.f32.mrb[0].mxu0
    %v7043 = vadd.f32 0.0, %v7042
    %7044 = vmatprep.mubr.bf16.mxu0 %v6494
    %7045 = vmatmul.mubr.bf16.gmra.mrb[0].mxu0 %v6493
    %v7046 = vpop.f32.mrb[0].mxu0
    %v7047 = vadd.f32 0.0, %v7046
    %v7048 = vpop.f32.mrb[0].mxu0
    %v7049 = vadd.f32 0.0, %v7048
    %v7050 = vpop.f32.mrb[0].mxu0
    %v7051 = vadd.f32 0.0, %v7050
    %v7052 = vpop.f32.mrb[0].mxu0
    %v7053 = vadd.f32 0.0, %v7052
    %7054 = vmatprep.mubr.bf16.mxu0 %v6499
    %7055 = vmatmul.mubr.bf16.gmra.mrb[0].mxu0 %v6498
    %v7056 = vpop.f32.mrb[0].mxu0
    %v7057 = vadd.f32 0.0, %v7056
    %v7058 = vpop.f32.mrb[0].mxu0
    %v7059 = vadd.f32 0.0, %v7058
    %v7060 = vpop.f32.mrb[0].mxu0
    %v7061 = vadd.f32 0.0, %v7060
    %v7062 = vpop.f32.mrb[0].mxu0
    %v7063 = vadd.f32 0.0, %v7062
    %7064 = vmatprep.mubr.bf16.mxu0 %v6504
    %7065 = vmatmul.mubr.bf16.gmra.mrb[0].mxu0 %v6503
    %v7066 = vpop.f32.mrb[0].mxu0
    %v7067 = vadd.f32 0.0, %v7066
    %v7068 = vpop.f32.mrb[0].mxu0
    %v7069 = vadd.f32 0.0, %v7068
    %v7070 = vpop.f32.mrb[0].mxu0
    %v7071 = vadd.f32 0.0, %v7070
    %v7072 = vpop.f32.mrb[0].mxu0
    %v7073 = vadd.f32 0.0, %v7072
    %7074 = vmatprep.mubr.bf16.mxu0 %v6509
    %7075 = vmatmul.mubr.bf16.gmra.mrb[0].mxu0 %v6508
    %v7076 = vpop.f32.mrb[0].mxu0
    %v7077 = vadd.f32 0.0, %v7076
    %v7078 = vpop.f32.mrb[0].mxu0
    %v7079 = vadd.f32 0.0, %v7078
    %v7080 = vpop.f32.mrb[0].mxu0
    %v7081 = vadd.f32 0.0, %v7080
    %v7082 = vpop.f32.mrb[0].mxu0
    %v7083 = vadd.f32 0.0, %v7082
    %7084 = vmatprep.mubr.bf16.mxu0 %v6514
    %7085 = vmatmul.mubr.bf16.gmra.mrb[0].mxu0 %v6513
    %v7086 = vpop.f32.mrb[0].mxu0
    %v7087 = vadd.f32 0.0, %v7086
    %v7088 = vpop.f32.mrb[0].mxu0
    %v7089 = vadd.f32 0.0, %v7088
    %v7090 = vpop.f32.mrb[0].mxu0
    %v7091 = vadd.f32 0.0, %v7090
    %v7092 = vpop.f32.mrb[0].mxu0
    %v7093 = vadd.f32 0.0, %v7092
    %7094 = vmatprep.mubr.bf16.mxu0 %v6519
    %7095 = vmatmul.mubr.bf16.gmra.mrb[0].mxu0 %v6518
    %v7096 = vpop.f32.mrb[0].mxu0
    %v7097 = vadd.f32 0.0, %v7096
    %v7098 = vpop.f32.mrb[0].mxu0
    %v7099 = vadd.f32 0.0, %v7098
    %v7100 = vpop.f32.mrb[0].mxu0
    %v7101 = vadd.f32 0.0, %v7100
    %v7102 = vpop.f32.mrb[0].mxu0
    %v7103 = vadd.f32 0.0, %v7102
    %7104 = vdwg.mxu0
    %7105 = vmatprep.subr.bf16.mxu0 %v6124
    %7106 = vmatpush1.bf16.msra.mxu0 %v6123
    %7107 = vmatprep.subr.bf16.mxu0 %v6132
    %7108 = vmatpush1.bf16.msra.mxu0 %v6131
    %7109 = vmatprep.subr.bf16.mxu0 %v6140
    %7110 = vmatpush1.bf16.msra.mxu0 %v6139
    %7111 = vmatprep.subr.bf16.mxu0 %v6148
    %7112 = vmatpush1.bf16.msra.mxu0 %v6147
    %7113 = vmatprep.subr.bf16.mxu0 %v6156
    %7114 = vmatpush1.bf16.msra.mxu0 %v6155
    %7115 = vmatprep.subr.bf16.mxu0 %v6164
    %7116 = vmatpush1.bf16.msra.mxu0 %v6163
    %7117 = vmatprep.subr.bf16.mxu0 %v6172
    %7118 = vmatpush1.bf16.msra.mxu0 %v6171
    %7119 = vmatprep.subr.bf16.mxu0 %v6180
    %7120 = vmatpush1.bf16.msra.mxu0 %v6179
    %7121 = vmatprep.subr.bf16.mxu0 %v6188
    %7122 = vmatpush1.bf16.msra.mxu0 %v6187
    %7123 = vmatprep.subr.bf16.mxu0 %v6196
    %7124 = vmatpush1.bf16.msra.mxu0 %v6195
    %7125 = vmatprep.subr.bf16.mxu0 %v6204
    %7126 = vmatpush1.bf16.msra.mxu0 %v6203
    %7127 = vmatprep.subr.bf16.mxu0 %v6212
    %7128 = vmatpush1.bf16.msra.mxu0 %v6211
    %7129 = vmatprep.subr.bf16.mxu0 %v6220
    %7130 = vmatpush1.bf16.msra.mxu0 %v6219
    %7131 = vmatprep.subr.bf16.mxu0 %v6228
    %7132 = vmatpush1.bf16.msra.mxu0 %v6227
    %7133 = vmatprep.subr.bf16.mxu0 %v6236
    %7134 = vmatpush1.bf16.msra.mxu0 %v6235
    %7135 = vmatprep.subr.bf16.mxu0 %v6244
    %7136 = vmatpush1.bf16.msra.mxu0 %v6243
    %7137 = vmatprep.mubr.bf16.mxu0 %v6476
    %7138 = vmatmul.mubr.bf16.gmra.mrb[0].mxu0 %v6475
    %v7139 = vpop.f32.mrb[0].mxu0
    %v7140 = vadd.f32 %v7007, %v7139
    %v7141 = vpop.f32.mrb[0].mxu0
    %v7142 = vadd.f32 %v7009, %v7141
    %v7143 = vpop.f32.mrb[0].mxu0
    %v7144 = vadd.f32 %v7011, %v7143
    %v7145 = vpop.f32.mrb[0].mxu0
    %v7146 = vadd.f32 %v7013, %v7145
    %7147 = vmatprep.mubr.bf16.mxu0 %v6481
    %7148 = vmatmul.mubr.bf16.gmra.mrb[0].mxu0 %v6480
    %v7149 = vpop.f32.mrb[0].mxu0
    %v7150 = vadd.f32 %v7017, %v7149
    %v7151 = vpop.f32.mrb[0].mxu0
    %v7152 = vadd.f32 %v7019, %v7151
    %v7153 = vpop.f32.mrb[0].mxu0
    %v7154 = vadd.f32 %v7021, %v7153
    %v7155 = vpop.f32.mrb[0].mxu0
    %v7156 = vadd.f32 %v7023, %v7155
    %7157 = vmatprep.mubr.bf16.mxu0 %v6486
    %7158 = vmatmul.mubr.bf16.gmra.mrb[0].mxu0 %v6485
    %v7159 = vpop.f32.mrb[0].mxu0
    %v7160 = vadd.f32 %v7027, %v7159
    %v7161 = vpop.f32.mrb[0].mxu0
    %v7162 = vadd.f32 %v7029, %v7161
    %v7163 = vpop.f32.mrb[0].mxu0
    %v7164 = vadd.f32 %v7031, %v7163
    %v7165 = vpop.f32.mrb[0].mxu0
    %v7166 = vadd.f32 %v7033, %v7165
    %7167 = vmatprep.mubr.bf16.mxu0 %v6491
    %7168 = vmatmul.mubr.bf16.gmra.mrb[0].mxu0 %v6490
    %v7169 = vpop.f32.mrb[0].mxu0
    %v7170 = vadd.f32 %v7037, %v7169
    %v7171 = vpop.f32.mrb[0].mxu0
    %v7172 = vadd.f32 %v7039, %v7171
    %v7173 = vpop.f32.mrb[0].mxu0
    %v7174 = vadd.f32 %v7041, %v7173
    %v7175 = vpop.f32.mrb[0].mxu0
    %v7176 = vadd.f32 %v7043, %v7175
    %7177 = vmatprep.mubr.bf16.mxu0 %v6496
    %7178 = vmatmul.mubr.bf16.gmra.mrb[0].mxu0 %v6495
    %v7179 = vpop.f32.mrb[0].mxu0
    %v7180 = vadd.f32 %v7047, %v7179
    %v7181 = vpop.f32.mrb[0].mxu0
    %v7182 = vadd.f32 %v7049, %v7181
    %v7183 = vpop.f32.mrb[0].mxu0
    %v7184 = vadd.f32 %v7051, %v7183
    %v7185 = vpop.f32.mrb[0].mxu0
    %v7186 = vadd.f32 %v7053, %v7185
    %7187 = vmatprep.mubr.bf16.mxu0 %v6501
    %7188 = vmatmul.mubr.bf16.gmra.mrb[0].mxu0 %v6500
    %v7189 = vpop.f32.mrb[0].mxu0
    %v7190 = vadd.f32 %v7057, %v7189
    %v7191 = vpop.f32.mrb[0].mxu0
    %v7192 = vadd.f32 %v7059, %v7191
    %v7193 = vpop.f32.mrb[0].mxu0
    %v7194 = vadd.f32 %v7061, %v7193
    %v7195 = vpop.f32.mrb[0].mxu0
    %v7196 = vadd.f32 %v7063, %v7195
    %7197 = vmatprep.mubr.bf16.mxu0 %v6506
    %7198 = vmatmul.mubr.bf16.gmra.mrb[0].mxu0 %v6505
    %v7199 = vpop.f32.mrb[0].mxu0
    %v7200 = vadd.f32 %v7067, %v7199
    %v7201 = vpop.f32.mrb[0].mxu0
    %v7202 = vadd.f32 %v7069, %v7201
    %v7203 = vpop.f32.mrb[0].mxu0
    %v7204 = vadd.f32 %v7071, %v7203
    %v7205 = vpop.f32.mrb[0].mxu0
    %v7206 = vadd.f32 %v7073, %v7205
    %7207 = vmatprep.mubr.bf16.mxu0 %v6511
    %7208 = vmatmul.mubr.bf16.gmra.mrb[0].mxu0 %v6510
    %v7209 = vpop.f32.mrb[0].mxu0
    %v7210 = vadd.f32 %v7077, %v7209
    %v7211 = vpop.f32.mrb[0].mxu0
    %v7212 = vadd.f32 %v7079, %v7211
    %v7213 = vpop.f32.mrb[0].mxu0
    %v7214 = vadd.f32 %v7081, %v7213
    %v7215 = vpop.f32.mrb[0].mxu0
    %v7216 = vadd.f32 %v7083, %v7215
    %7217 = vmatprep.mubr.bf16.mxu0 %v6516
    %7218 = vmatmul.mubr.bf16.gmra.mrb[0].mxu0 %v6515
    %v7219 = vpop.f32.mrb[0].mxu0
    %v7220 = vadd.f32 %v7087, %v7219
    %v7221 = vpop.f32.mrb[0].mxu0
    %v7222 = vadd.f32 %v7089, %v7221
    %v7223 = vpop.f32.mrb[0].mxu0
    %v7224 = vadd.f32 %v7091, %v7223
    %v7225 = vpop.f32.mrb[0].mxu0
    %v7226 = vadd.f32 %v7093, %v7225
    %7227 = vmatprep.mubr.bf16.mxu0 %v6521
    %7228 = vmatmul.mubr.bf16.gmra.mrb[0].mxu0 %v6520
    %v7229 = vpop.f32.mrb[0].mxu0
    %v7230 = vadd.f32 %v7097, %v7229
    %v7231 = vpop.f32.mrb[0].mxu0
    %v7232 = vadd.f32 %v7099, %v7231
    %v7233 = vpop.f32.mrb[0].mxu0
    %v7234 = vadd.f32 %v7101, %v7233
    %v7235 = vpop.f32.mrb[0].mxu0
    %v7236 = vadd.f32 %v7103, %v7235
    %7237 = vdwg.mxu0
    %7238 = vmatprep.subr.bf16.mxu0 %v6252
    %7239 = vmatpush1.bf16.msra.mxu0 %v6251
    %7240 = vmatprep.subr.bf16.mxu0 %v6260
    %7241 = vmatpush1.bf16.msra.mxu0 %v6259
    %7242 = vmatprep.subr.bf16.mxu0 %v6268
    %7243 = vmatpush1.bf16.msra.mxu0 %v6267
    %7244 = vmatprep.subr.bf16.mxu0 %v6276
    %7245 = vmatpush1.bf16.msra.mxu0 %v6275
    %7246 = vmatprep.subr.bf16.mxu0 %v6284
    %7247 = vmatpush1.bf16.msra.mxu0 %v6283
    %7248 = vmatprep.subr.bf16.mxu0 %v6292
    %7249 = vmatpush1.bf16.msra.mxu0 %v6291
    %7250 = vmatprep.subr.bf16.mxu0 %v6300
    %7251 = vmatpush1.bf16.msra.mxu0 %v6299
    %7252 = vmatprep.subr.bf16.mxu0 %v6308
    %7253 = vmatpush1.bf16.msra.mxu0 %v6307
    %7254 = vmatprep.subr.bf16.mxu0 0
    %7255 = vmatpush1.bf16.msra.mxu0 0
    %7256 = vmatprep.subr.bf16.mxu0 0
    %7257 = vmatpush1.bf16.msra.mxu0 0
    %7258 = vmatprep.subr.bf16.mxu0 0
    %7259 = vmatpush1.bf16.msra.mxu0 0
    %7260 = vmatprep.subr.bf16.mxu0 0
    %7261 = vmatpush1.bf16.msra.mxu0 0
    %7262 = vmatprep.subr.bf16.mxu0 0
    %7263 = vmatpush1.bf16.msra.mxu0 0
    %7264 = vmatprep.subr.bf16.mxu0 0
    %7265 = vmatpush1.bf16.msra.mxu0 0
    %7266 = vmatprep.subr.bf16.mxu0 0
    %7267 = vmatpush1.bf16.msra.mxu0 0
    %7268 = vmatprep.subr.bf16.mxu0 0
    %7269 = vmatpush1.bf16.msra.mxu0 0
    %7270 = vmatprep.mubr.bf16.mxu0 0
    %7271 = vmatmul.mubr.bf16.gmra.mrb[0].mxu0 %v6477
    %v7272 = vpop.f32.mrb[0].mxu0
    %v7273 = vadd.f32 %v7140, %v7272
    %v7274 = vpop.f32.mrb[0].mxu0
    %v7275 = vadd.f32 %v7142, %v7274
    %v7276 = vpop.f32.mrb[0].mxu0
    %v7277 = vadd.f32 %v7144, %v7276
    %v7278 = vpop.f32.mrb[0].mxu0
    %v7279 = vadd.f32 %v7146, %v7278
    %7280 = vmatprep.mubr.bf16.mxu0 0
    %7281 = vmatmul.mubr.bf16.gmra.mrb[0].mxu0 %v6482
    %v7282 = vpop.f32.mrb[0].mxu0
    %v7283 = vadd.f32 %v7150, %v7282
    %v7284 = vpop.f32.mrb[0].mxu0
    %v7285 = vadd.f32 %v7152, %v7284
    %v7286 = vpop.f32.mrb[0].mxu0
    %v7287 = vadd.f32 %v7154, %v7286
    %v7288 = vpop.f32.mrb[0].mxu0
    %v7289 = vadd.f32 %v7156, %v7288
    %7290 = vmatprep.mubr.bf16.mxu0 0
    %7291 = vmatmul.mubr.bf16.gmra.mrb[0].mxu0 %v6487
    %v7292 = vpop.f32.mrb[0].mxu0
    %v7293 = vadd.f32 %v7160, %v7292
    %v7294 = vpop.f32.mrb[0].mxu0
    %v7295 = vadd.f32 %v7162, %v7294
    %v7296 = vpop.f32.mrb[0].mxu0
    %v7297 = vadd.f32 %v7164, %v7296
    %v7298 = vpop.f32.mrb[0].mxu0
    %v7299 = vadd.f32 %v7166, %v7298
    %7300 = vmatprep.mubr.bf16.mxu0 0
    %7301 = vmatmul.mubr.bf16.gmra.mrb[0].mxu0 %v6492
    %v7302 = vpop.f32.mrb[0].mxu0
    %v7303 = vadd.f32 %v7170, %v7302
    %v7304 = vpop.f32.mrb[0].mxu0
    %v7305 = vadd.f32 %v7172, %v7304
    %v7306 = vpop.f32.mrb[0].mxu0
    %v7307 = vadd.f32 %v7174, %v7306
    %v7308 = vpop.f32.mrb[0].mxu0
    %v7309 = vadd.f32 %v7176, %v7308
    %7310 = vmatprep.mubr.bf16.mxu0 0
    %7311 = vmatmul.mubr.bf16.gmra.mrb[0].mxu0 %v6497
    %v7312 = vpop.f32.mrb[0].mxu0
    %v7313 = vadd.f32 %v7180, %v7312
    %v7314 = vpop.f32.mrb[0].mxu0
    %v7315 = vadd.f32 %v7182, %v7314
    %v7316 = vpop.f32.mrb[0].mxu0
    %v7317 = vadd.f32 %v7184, %v7316
    %v7318 = vpop.f32.mrb[0].mxu0
    %v7319 = vadd.f32 %v7186, %v7318
    %7320 = vmatprep.mubr.bf16.mxu0 0
    %7321 = vmatmul.mubr.bf16.gmra.mrb[0].mxu0 %v6502
    %v7322 = vpop.f32.mrb[0].mxu0
    %v7323 = vadd.f32 %v7190, %v7322
    %v7324 = vpop.f32.mrb[0].mxu0
    %v7325 = vadd.f32 %v7192, %v7324
    %v7326 = vpop.f32.mrb[0].mxu0
    %v7327 = vadd.f32 %v7194, %v7326
    %v7328 = vpop.f32.mrb[0].mxu0
    %v7329 = vadd.f32 %v7196, %v7328
    %7330 = vmatprep.mubr.bf16.mxu0 0
    %7331 = vmatmul.mubr.bf16.gmra.mrb[0].mxu0 %v6507
    %v7332 = vpop.f32.mrb[0].mxu0
    %v7333 = vadd.f32 %v7200, %v7332
    %v7334 = vpop.f32.mrb[0].mxu0
    %v7335 = vadd.f32 %v7202, %v7334
    %v7336 = vpop.f32.mrb[0].mxu0
    %v7337 = vadd.f32 %v7204, %v7336
    %v7338 = vpop.f32.mrb[0].mxu0
    %v7339 = vadd.f32 %v7206, %v7338
    %7340 = vmatprep.mubr.bf16.mxu0 0
    %7341 = vmatmul.mubr.bf16.gmra.mrb[0].mxu0 %v6512
    %v7342 = vpop.f32.mrb[0].mxu0
    %v7343 = vadd.f32 %v7210, %v7342
    %v7344 = vpop.f32.mrb[0].mxu0
    %v7345 = vadd.f32 %v7212, %v7344
    %v7346 = vpop.f32.mrb[0].mxu0
    %v7347 = vadd.f32 %v7214, %v7346
    %v7348 = vpop.f32.mrb[0].mxu0
    %v7349 = vadd.f32 %v7216, %v7348
    %7350 = vmatprep.mubr.bf16.mxu0 0
    %7351 = vmatmul.mubr.bf16.gmra.mrb[0].mxu0 %v6517
    %v7352 = vpop.f32.mrb[0].mxu0
    %v7353 = vadd.f32 %v7220, %v7352
    %v7354 = vpop.f32.mrb[0].mxu0
    %v7355 = vadd.f32 %v7222, %v7354
    %v7356 = vpop.f32.mrb[0].mxu0
    %v7357 = vadd.f32 %v7224, %v7356
    %v7358 = vpop.f32.mrb[0].mxu0
    %v7359 = vadd.f32 %v7226, %v7358
    %7360 = vmatprep.mubr.bf16.mxu0 0
    %7361 = vmatmul.mubr.bf16.gmra.mrb[0].mxu0 %v6522
    %v7362 = vpop.f32.mrb[0].mxu0
    %v7363 = vadd.f32 %v7230, %v7362
    %v7364 = vpop.f32.mrb[0].mxu0
    %v7365 = vadd.f32 %v7232, %v7364
    %v7366 = vpop.f32.mrb[0].mxu0
    %v7367 = vadd.f32 %v7234, %v7366
    %v7368 = vpop.f32.mrb[0].mxu0
    %v7369 = vadd.f32 %v7236, %v7368
    %7370 = vdwg.mxu0
    %7371 = vmatprep.subr.bf16.mxu0 %v5998
    %7372 = vmatpush1.bf16.msra.mxu0 %v5997
    %7373 = vmatprep.subr.bf16.mxu0 %v6006
    %7374 = vmatpush1.bf16.msra.mxu0 %v6005
    %7375 = vmatprep.subr.bf16.mxu0 %v6014
    %7376 = vmatpush1.bf16.msra.mxu0 %v6013
    %7377 = vmatprep.subr.bf16.mxu0 %v6022
    %7378 = vmatpush1.bf16.msra.mxu0 %v6021
    %7379 = vmatprep.subr.bf16.mxu0 %v6030
    %7380 = vmatpush1.bf16.msra.mxu0 %v6029
    %7381 = vmatprep.subr.bf16.mxu0 %v6038
    %7382 = vmatpush1.bf16.msra.mxu0 %v6037
    %7383 = vmatprep.subr.bf16.mxu0 %v6046
    %7384 = vmatpush1.bf16.msra.mxu0 %v6045
    %7385 = vmatprep.subr.bf16.mxu0 %v6054
    %7386 = vmatpush1.bf16.msra.mxu0 %v6053
    %7387 = vmatprep.subr.bf16.mxu0 %v6062
    %7388 = vmatpush1.bf16.msra.mxu0 %v6061
    %7389 = vmatprep.subr.bf16.mxu0 %v6070
    %7390 = vmatpush1.bf16.msra.mxu0 %v6069
    %7391 = vmatprep.subr.bf16.mxu0 %v6078
    %7392 = vmatpush1.bf16.msra.mxu0 %v6077
    %7393 = vmatprep.subr.bf16.mxu0 %v6086
    %7394 = vmatpush1.bf16.msra.mxu0 %v6085
    %7395 = vmatprep.subr.bf16.mxu0 %v6094
    %7396 = vmatpush1.bf16.msra.mxu0 %v6093
    %7397 = vmatprep.subr.bf16.mxu0 %v6102
    %7398 = vmatpush1.bf16.msra.mxu0 %v6101
    %7399 = vmatprep.subr.bf16.mxu0 %v6110
    %7400 = vmatpush1.bf16.msra.mxu0 %v6109
    %7401 = vmatprep.subr.bf16.mxu0 %v6118
    %7402 = vmatpush1.bf16.msra.mxu0 %v6117
    %7403 = vmatprep.mubr.bf16.mxu0 %v6474
    %7404 = vmatmul.mubr.bf16.gmra.mrb[0].mxu0 %v6473
    %v7405 = vpop.f32.mrb[0].mxu0
    %v7406 = vadd.f32 0.0, %v7405
    %v7407 = vpop.f32.mrb[0].mxu0
    %v7408 = vadd.f32 0.0, %v7407
    %v7409 = vpop.f32.mrb[0].mxu0
    %v7410 = vadd.f32 0.0, %v7409
    %v7411 = vpop.f32.mrb[0].mxu0
    %v7412 = vadd.f32 0.0, %v7411
    %7413 = vmatprep.mubr.bf16.mxu0 %v6479
    %7414 = vmatmul.mubr.bf16.gmra.mrb[0].mxu0 %v6478
    %v7415 = vpop.f32.mrb[0].mxu0
    %v7416 = vadd.f32 0.0, %v7415
    %v7417 = vpop.f32.mrb[0].mxu0
    %v7418 = vadd.f32 0.0, %v7417
    %v7419 = vpop.f32.mrb[0].mxu0
    %v7420 = vadd.f32 0.0, %v7419
    %v7421 = vpop.f32.mrb[0].mxu0
    %v7422 = vadd.f32 0.0, %v7421
    %7423 = vmatprep.mubr.bf16.mxu0 %v6484
    %7424 = vmatmul.mubr.bf16.gmra.mrb[0].mxu0 %v6483
    %v7425 = vpop.f32.mrb[0].mxu0
    %v7426 = vadd.f32 0.0, %v7425
    %v7427 = vpop.f32.mrb[0].mxu0
    %v7428 = vadd.f32 0.0, %v7427
    %v7429 = vpop.f32.mrb[0].mxu0
    %v7430 = vadd.f32 0.0, %v7429
    %v7431 = vpop.f32.mrb[0].mxu0
    %v7432 = vadd.f32 0.0, %v7431
    %7433 = vmatprep.mubr.bf16.mxu0 %v6489
    %7434 = vmatmul.mubr.bf16.gmra.mrb[0].mxu0 %v6488
    %v7435 = vpop.f32.mrb[0].mxu0
    %v7436 = vadd.f32 0.0, %v7435
    %v7437 = vpop.f32.mrb[0].mxu0
    %v7438 = vadd.f32 0.0, %v7437
    %v7439 = vpop.f32.mrb[0].mxu0
    %v7440 = vadd.f32 0.0, %v7439
    %v7441 = vpop.f32.mrb[0].mxu0
    %v7442 = vadd.f32 0.0, %v7441
    %7443 = vmatprep.mubr.bf16.mxu0 %v6494
    %7444 = vmatmul.mubr.bf16.gmra.mrb[0].mxu0 %v6493
    %v7445 = vpop.f32.mrb[0].mxu0
    %v7446 = vadd.f32 0.0, %v7445
    %v7447 = vpop.f32.mrb[0].mxu0
    %v7448 = vadd.f32 0.0, %v7447
    %v7449 = vpop.f32.mrb[0].mxu0
    %v7450 = vadd.f32 0.0, %v7449
    %v7451 = vpop.f32.mrb[0].mxu0
    %v7452 = vadd.f32 0.0, %v7451
    %7453 = vmatprep.mubr.bf16.mxu0 %v6499
    %7454 = vmatmul.mubr.bf16.gmra.mrb[0].mxu0 %v6498
    %v7455 = vpop.f32.mrb[0].mxu0
    %v7456 = vadd.f32 0.0, %v7455
    %v7457 = vpop.f32.mrb[0].mxu0
    %v7458 = vadd.f32 0.0, %v7457
    %v7459 = vpop.f32.mrb[0].mxu0
    %v7460 = vadd.f32 0.0, %v7459
    %v7461 = vpop.f32.mrb[0].mxu0
    %v7462 = vadd.f32 0.0, %v7461
    %7463 = vmatprep.mubr.bf16.mxu0 %v6504
    %7464 = vmatmul.mubr.bf16.gmra.mrb[0].mxu0 %v6503
    %v7465 = vpop.f32.mrb[0].mxu0
    %v7466 = vadd.f32 0.0, %v7465
    %v7467 = vpop.f32.mrb[0].mxu0
    %v7468 = vadd.f32 0.0, %v7467
    %v7469 = vpop.f32.mrb[0].mxu0
    %v7470 = vadd.f32 0.0, %v7469
    %v7471 = vpop.f32.mrb[0].mxu0
    %v7472 = vadd.f32 0.0, %v7471
    %7473 = vmatprep.mubr.bf16.mxu0 %v6509
    %7474 = vmatmul.mubr.bf16.gmra.mrb[0].mxu0 %v6508
    %v7475 = vpop.f32.mrb[0].mxu0
    %v7476 = vadd.f32 0.0, %v7475
    %v7477 = vpop.f32.mrb[0].mxu0
    %v7478 = vadd.f32 0.0, %v7477
    %v7479 = vpop.f32.mrb[0].mxu0
    %v7480 = vadd.f32 0.0, %v7479
    %v7481 = vpop.f32.mrb[0].mxu0
    %v7482 = vadd.f32 0.0, %v7481
    %7483 = vmatprep.mubr.bf16.mxu0 %v6514
    %7484 = vmatmul.mubr.bf16.gmra.mrb[0].mxu0 %v6513
    %v7485 = vpop.f32.mrb[0].mxu0
    %v7486 = vadd.f32 0.0, %v7485
    %v7487 = vpop.f32.mrb[0].mxu0
    %v7488 = vadd.f32 0.0, %v7487
    %v7489 = vpop.f32.mrb[0].mxu0
    %v7490 = vadd.f32 0.0, %v7489
    %v7491 = vpop.f32.mrb[0].mxu0
    %v7492 = vadd.f32 0.0, %v7491
    %7493 = vmatprep.mubr.bf16.mxu0 %v6519
    %7494 = vmatmul.mubr.bf16.gmra.mrb[0].mxu0 %v6518
    %v7495 = vpop.f32.mrb[0].mxu0
    %v7496 = vadd.f32 0.0, %v7495
    %v7497 = vpop.f32.mrb[0].mxu0
    %v7498 = vadd.f32 0.0, %v7497
    %v7499 = vpop.f32.mrb[0].mxu0
    %v7500 = vadd.f32 0.0, %v7499
    %v7501 = vpop.f32.mrb[0].mxu0
    %v7502 = vadd.f32 0.0, %v7501
    %7503 = vdwg.mxu0
    %7504 = vmatprep.subr.bf16.mxu0 %v6126
    %7505 = vmatpush1.bf16.msra.mxu0 %v6125
    %7506 = vmatprep.subr.bf16.mxu0 %v6134
    %7507 = vmatpush1.bf16.msra.mxu0 %v6133
    %7508 = vmatprep.subr.bf16.mxu0 %v6142
    %7509 = vmatpush1.bf16.msra.mxu0 %v6141
    %7510 = vmatprep.subr.bf16.mxu0 %v6150
    %7511 = vmatpush1.bf16.msra.mxu0 %v6149
    %7512 = vmatprep.subr.bf16.mxu0 %v6158
    %7513 = vmatpush1.bf16.msra.mxu0 %v6157
    %7514 = vmatprep.subr.bf16.mxu0 %v6166
    %7515 = vmatpush1.bf16.msra.mxu0 %v6165
    %7516 = vmatprep.subr.bf16.mxu0 %v6174
    %7517 = vmatpush1.bf16.msra.mxu0 %v6173
    %7518 = vmatprep.subr.bf16.mxu0 %v6182
    %7519 = vmatpush1.bf16.msra.mxu0 %v6181
    %7520 = vmatprep.subr.bf16.mxu0 %v6190
    %7521 = vmatpush1.bf16.msra.mxu0 %v6189
    %7522 = vmatprep.subr.bf16.mxu0 %v6198
    %7523 = vmatpush1.bf16.msra.mxu0 %v6197
    %7524 = vmatprep.subr.bf16.mxu0 %v6206
    %7525 = vmatpush1.bf16.msra.mxu0 %v6205
    %7526 = vmatprep.subr.bf16.mxu0 %v6214
    %7527 = vmatpush1.bf16.msra.mxu0 %v6213
    %7528 = vmatprep.subr.bf16.mxu0 %v6222
    %7529 = vmatpush1.bf16.msra.mxu0 %v6221
    %7530 = vmatprep.subr.bf16.mxu0 %v6230
    %7531 = vmatpush1.bf16.msra.mxu0 %v6229
    %7532 = vmatprep.subr.bf16.mxu0 %v6238
    %7533 = vmatpush1.bf16.msra.mxu0 %v6237
    %7534 = vmatprep.subr.bf16.mxu0 %v6246
    %7535 = vmatpush1.bf16.msra.mxu0 %v6245
    %7536 = vmatprep.mubr.bf16.mxu0 %v6476
    %7537 = vmatmul.mubr.bf16.gmra.mrb[0].mxu0 %v6475
    %v7538 = vpop.f32.mrb[0].mxu0
    %v7539 = vadd.f32 %v7406, %v7538
    %v7540 = vpop.f32.mrb[0].mxu0
    %v7541 = vadd.f32 %v7408, %v7540
    %v7542 = vpop.f32.mrb[0].mxu0
    %v7543 = vadd.f32 %v7410, %v7542
    %v7544 = vpop.f32.mrb[0].mxu0
    %v7545 = vadd.f32 %v7412, %v7544
    %7546 = vmatprep.mubr.bf16.mxu0 %v6481
    %7547 = vmatmul.mubr.bf16.gmra.mrb[0].mxu0 %v6480
    %v7548 = vpop.f32.mrb[0].mxu0
    %v7549 = vadd.f32 %v7416, %v7548
    %v7550 = vpop.f32.mrb[0].mxu0
    %v7551 = vadd.f32 %v7418, %v7550
    %v7552 = vpop.f32.mrb[0].mxu0
    %v7553 = vadd.f32 %v7420, %v7552
    %v7554 = vpop.f32.mrb[0].mxu0
    %v7555 = vadd.f32 %v7422, %v7554
    %7556 = vmatprep.mubr.bf16.mxu0 %v6486
    %7557 = vmatmul.mubr.bf16.gmra.mrb[0].mxu0 %v6485
    %v7558 = vpop.f32.mrb[0].mxu0
    %v7559 = vadd.f32 %v7426, %v7558
    %v7560 = vpop.f32.mrb[0].mxu0
    %v7561 = vadd.f32 %v7428, %v7560
    %v7562 = vpop.f32.mrb[0].mxu0
    %v7563 = vadd.f32 %v7430, %v7562
    %v7564 = vpop.f32.mrb[0].mxu0
    %v7565 = vadd.f32 %v7432, %v7564
    %7566 = vmatprep.mubr.bf16.mxu0 %v6491
    %7567 = vmatmul.mubr.bf16.gmra.mrb[0].mxu0 %v6490
    %v7568 = vpop.f32.mrb[0].mxu0
    %v7569 = vadd.f32 %v7436, %v7568
    %v7570 = vpop.f32.mrb[0].mxu0
    %v7571 = vadd.f32 %v7438, %v7570
    %v7572 = vpop.f32.mrb[0].mxu0
    %v7573 = vadd.f32 %v7440, %v7572
    %v7574 = vpop.f32.mrb[0].mxu0
    %v7575 = vadd.f32 %v7442, %v7574
    %7576 = vmatprep.mubr.bf16.mxu0 %v6496
    %7577 = vmatmul.mubr.bf16.gmra.mrb[0].mxu0 %v6495
    %v7578 = vpop.f32.mrb[0].mxu0
    %v7579 = vadd.f32 %v7446, %v7578
    %v7580 = vpop.f32.mrb[0].mxu0
    %v7581 = vadd.f32 %v7448, %v7580
    %v7582 = vpop.f32.mrb[0].mxu0
    %v7583 = vadd.f32 %v7450, %v7582
    %v7584 = vpop.f32.mrb[0].mxu0
    %v7585 = vadd.f32 %v7452, %v7584
    %7586 = vmatprep.mubr.bf16.mxu0 %v6501
    %7587 = vmatmul.mubr.bf16.gmra.mrb[0].mxu0 %v6500
    %v7588 = vpop.f32.mrb[0].mxu0
    %v7589 = vadd.f32 %v7456, %v7588
    %v7590 = vpop.f32.mrb[0].mxu0
    %v7591 = vadd.f32 %v7458, %v7590
    %v7592 = vpop.f32.mrb[0].mxu0
    %v7593 = vadd.f32 %v7460, %v7592
    %v7594 = vpop.f32.mrb[0].mxu0
    %v7595 = vadd.f32 %v7462, %v7594
    %7596 = vmatprep.mubr.bf16.mxu0 %v6506
    %7597 = vmatmul.mubr.bf16.gmra.mrb[0].mxu0 %v6505
    %v7598 = vpop.f32.mrb[0].mxu0
    %v7599 = vadd.f32 %v7466, %v7598
    %v7600 = vpop.f32.mrb[0].mxu0
    %v7601 = vadd.f32 %v7468, %v7600
    %v7602 = vpop.f32.mrb[0].mxu0
    %v7603 = vadd.f32 %v7470, %v7602
    %v7604 = vpop.f32.mrb[0].mxu0
    %v7605 = vadd.f32 %v7472, %v7604
    %7606 = vmatprep.mubr.bf16.mxu0 %v6511
    %7607 = vmatmul.mubr.bf16.gmra.mrb[0].mxu0 %v6510
    %v7608 = vpop.f32.mrb[0].mxu0
    %v7609 = vadd.f32 %v7476, %v7608
    %v7610 = vpop.f32.mrb[0].mxu0
    %v7611 = vadd.f32 %v7478, %v7610
    %v7612 = vpop.f32.mrb[0].mxu0
    %v7613 = vadd.f32 %v7480, %v7612
    %v7614 = vpop.f32.mrb[0].mxu0
    %v7615 = vadd.f32 %v7482, %v7614
    %7616 = vmatprep.mubr.bf16.mxu0 %v6516
    %7617 = vmatmul.mubr.bf16.gmra.mrb[0].mxu0 %v6515
    %v7618 = vpop.f32.mrb[0].mxu0
    %v7619 = vadd.f32 %v7486, %v7618
    %v7620 = vpop.f32.mrb[0].mxu0
    %v7621 = vadd.f32 %v7488, %v7620
    %v7622 = vpop.f32.mrb[0].mxu0
    %v7623 = vadd.f32 %v7490, %v7622
    %v7624 = vpop.f32.mrb[0].mxu0
    %v7625 = vadd.f32 %v7492, %v7624
    %7626 = vmatprep.mubr.bf16.mxu0 %v6521
    %7627 = vmatmul.mubr.bf16.gmra.mrb[0].mxu0 %v6520
    %v7628 = vpop.f32.mrb[0].mxu0
    %v7629 = vadd.f32 %v7496, %v7628
    %v7630 = vpop.f32.mrb[0].mxu0
    %v7631 = vadd.f32 %v7498, %v7630
    %v7632 = vpop.f32.mrb[0].mxu0
    %v7633 = vadd.f32 %v7500, %v7632
    %v7634 = vpop.f32.mrb[0].mxu0
    %v7635 = vadd.f32 %v7502, %v7634
    %7636 = vdwg.mxu0
    %7637 = vmatprep.subr.bf16.mxu0 %v6254
    %7638 = vmatpush1.bf16.msra.mxu0 %v6253
    %7639 = vmatprep.subr.bf16.mxu0 %v6262
    %7640 = vmatpush1.bf16.msra.mxu0 %v6261
    %7641 = vmatprep.subr.bf16.mxu0 %v6270
    %7642 = vmatpush1.bf16.msra.mxu0 %v6269
    %7643 = vmatprep.subr.bf16.mxu0 %v6278
    %7644 = vmatpush1.bf16.msra.mxu0 %v6277
    %7645 = vmatprep.subr.bf16.mxu0 %v6286
    %7646 = vmatpush1.bf16.msra.mxu0 %v6285
    %7647 = vmatprep.subr.bf16.mxu0 %v6294
    %7648 = vmatpush1.bf16.msra.mxu0 %v6293
    %7649 = vmatprep.subr.bf16.mxu0 %v6302
    %7650 = vmatpush1.bf16.msra.mxu0 %v6301
    %7651 = vmatprep.subr.bf16.mxu0 %v6310
    %7652 = vmatpush1.bf16.msra.mxu0 %v6309
    %7653 = vmatprep.subr.bf16.mxu0 0
    %7654 = vmatpush1.bf16.msra.mxu0 0
    %7655 = vmatprep.subr.bf16.mxu0 0
    %7656 = vmatpush1.bf16.msra.mxu0 0
    %7657 = vmatprep.subr.bf16.mxu0 0
    %7658 = vmatpush1.bf16.msra.mxu0 0
    %7659 = vmatprep.subr.bf16.mxu0 0
    %7660 = vmatpush1.bf16.msra.mxu0 0
    %7661 = vmatprep.subr.bf16.mxu0 0
    %7662 = vmatpush1.bf16.msra.mxu0 0
    %7663 = vmatprep.subr.bf16.mxu0 0
    %7664 = vmatpush1.bf16.msra.mxu0 0
    %7665 = vmatprep.subr.bf16.mxu0 0
    %7666 = vmatpush1.bf16.msra.mxu0 0
    %7667 = vmatprep.subr.bf16.mxu0 0
    %7668 = vmatpush1.bf16.msra.mxu0 0
    %7669 = vmatprep.mubr.bf16.mxu0 0
    %7670 = vmatmul.mubr.bf16.gmra.mrb[0].mxu0 %v6477
    %v7671 = vpop.f32.mrb[0].mxu0
    %v7672 = vadd.f32 %v7539, %v7671
    %v7673 = vpop.f32.mrb[0].mxu0
    %v7674 = vadd.f32 %v7541, %v7673
    %v7675 = vpop.f32.mrb[0].mxu0
    %v7676 = vadd.f32 %v7543, %v7675
    %v7677 = vpop.f32.mrb[0].mxu0
    %v7678 = vadd.f32 %v7545, %v7677
    %7679 = vmatprep.mubr.bf16.mxu0 0
    %7680 = vmatmul.mubr.bf16.gmra.mrb[0].mxu0 %v6482
    %v7681 = vpop.f32.mrb[0].mxu0
    %v7682 = vadd.f32 %v7549, %v7681
    %v7683 = vpop.f32.mrb[0].mxu0
    %v7684 = vadd.f32 %v7551, %v7683
    %v7685 = vpop.f32.mrb[0].mxu0
    %v7686 = vadd.f32 %v7553, %v7685
    %v7687 = vpop.f32.mrb[0].mxu0
    %v7688 = vadd.f32 %v7555, %v7687
    %7689 = vmatprep.mubr.bf16.mxu0 0
    %7690 = vmatmul.mubr.bf16.gmra.mrb[0].mxu0 %v6487
    %v7691 = vpop.f32.mrb[0].mxu0
    %v7692 = vadd.f32 %v7559, %v7691
    %v7693 = vpop.f32.mrb[0].mxu0
    %v7694 = vadd.f32 %v7561, %v7693
    %v7695 = vpop.f32.mrb[0].mxu0
    %v7696 = vadd.f32 %v7563, %v7695
    %v7697 = vpop.f32.mrb[0].mxu0
    %v7698 = vadd.f32 %v7565, %v7697
    %7699 = vmatprep.mubr.bf16.mxu0 0
    %7700 = vmatmul.mubr.bf16.gmra.mrb[0].mxu0 %v6492
    %v7701 = vpop.f32.mrb[0].mxu0
    %v7702 = vadd.f32 %v7569, %v7701
    %v7703 = vpop.f32.mrb[0].mxu0
    %v7704 = vadd.f32 %v7571, %v7703
    %v7705 = vpop.f32.mrb[0].mxu0
    %v7706 = vadd.f32 %v7573, %v7705
    %v7707 = vpop.f32.mrb[0].mxu0
    %v7708 = vadd.f32 %v7575, %v7707
    %7709 = vmatprep.mubr.bf16.mxu0 0
    %7710 = vmatmul.mubr.bf16.gmra.mrb[0].mxu0 %v6497
    %v7711 = vpop.f32.mrb[0].mxu0
    %v7712 = vadd.f32 %v7579, %v7711
    %v7713 = vpop.f32.mrb[0].mxu0
    %v7714 = vadd.f32 %v7581, %v7713
    %v7715 = vpop.f32.mrb[0].mxu0
    %v7716 = vadd.f32 %v7583, %v7715
    %v7717 = vpop.f32.mrb[0].mxu0
    %v7718 = vadd.f32 %v7585, %v7717
    %7719 = vmatprep.mubr.bf16.mxu0 0
    %7720 = vmatmul.mubr.bf16.gmra.mrb[0].mxu0 %v6502
    %v7721 = vpop.f32.mrb[0].mxu0
    %v7722 = vadd.f32 %v7589, %v7721
    %v7723 = vpop.f32.mrb[0].mxu0
    %v7724 = vadd.f32 %v7591, %v7723
    %v7725 = vpop.f32.mrb[0].mxu0
    %v7726 = vadd.f32 %v7593, %v7725
    %v7727 = vpop.f32.mrb[0].mxu0
    %v7728 = vadd.f32 %v7595, %v7727
    %7729 = vmatprep.mubr.bf16.mxu0 0
    %7730 = vmatmul.mubr.bf16.gmra.mrb[0].mxu0 %v6507
    %v7731 = vpop.f32.mrb[0].mxu0
    %v7732 = vadd.f32 %v7599, %v7731
    %v7733 = vpop.f32.mrb[0].mxu0
    %v7734 = vadd.f32 %v7601, %v7733
    %v7735 = vpop.f32.mrb[0].mxu0
    %v7736 = vadd.f32 %v7603, %v7735
    %v7737 = vpop.f32.mrb[0].mxu0
    %v7738 = vadd.f32 %v7605, %v7737
    %7739 = vmatprep.mubr.bf16.mxu0 0
    %7740 = vmatmul.mubr.bf16.gmra.mrb[0].mxu0 %v6512
    %v7741 = vpop.f32.mrb[0].mxu0
    %v7742 = vadd.f32 %v7609, %v7741
    %v7743 = vpop.f32.mrb[0].mxu0
    %v7744 = vadd.f32 %v7611, %v7743
    %v7745 = vpop.f32.mrb[0].mxu0
    %v7746 = vadd.f32 %v7613, %v7745
    %v7747 = vpop.f32.mrb[0].mxu0
    %v7748 = vadd.f32 %v7615, %v7747
    %7749 = vmatprep.mubr.bf16.mxu0 0
    %7750 = vmatmul.mubr.bf16.gmra.mrb[0].mxu0 %v6517
    %v7751 = vpop.f32.mrb[0].mxu0
    %v7752 = vadd.f32 %v7619, %v7751
    %v7753 = vpop.f32.mrb[0].mxu0
    %v7754 = vadd.f32 %v7621, %v7753
    %v7755 = vpop.f32.mrb[0].mxu0
    %v7756 = vadd.f32 %v7623, %v7755
    %v7757 = vpop.f32.mrb[0].mxu0
    %v7758 = vadd.f32 %v7625, %v7757
    %7759 = vmatprep.mubr.bf16.mxu0 0
    %7760 = vmatmul.mubr.bf16.gmra.mrb[0].mxu0 %v6522
    %v7761 = vpop.f32.mrb[0].mxu0
    %v7762 = vadd.f32 %v7629, %v7761
    %v7763 = vpop.f32.mrb[0].mxu0
    %v7764 = vadd.f32 %v7631, %v7763
    %v7765 = vpop.f32.mrb[0].mxu0
    %v7766 = vadd.f32 %v7633, %v7765
    %v7767 = vpop.f32.mrb[0].mxu0
    %v7768 = vadd.f32 %v7635, %v7767
    %7769 = vdwg.mxu0
    %7770 = vmatprep.subr.bf16.mxu0 %v6000
    %7771 = vmatpush1.bf16.msra.mxu0 %v5999
    %7772 = vmatprep.subr.bf16.mxu0 %v6008
    %7773 = vmatpush1.bf16.msra.mxu0 %v6007
    %7774 = vmatprep.subr.bf16.mxu0 %v6016
    %7775 = vmatpush1.bf16.msra.mxu0 %v6015
    %7776 = vmatprep.subr.bf16.mxu0 %v6024
    %7777 = vmatpush1.bf16.msra.mxu0 %v6023
    %7778 = vmatprep.subr.bf16.mxu0 %v6032
    %7779 = vmatpush1.bf16.msra.mxu0 %v6031
    %7780 = vmatprep.subr.bf16.mxu0 %v6040
    %7781 = vmatpush1.bf16.msra.mxu0 %v6039
    %7782 = vmatprep.subr.bf16.mxu0 %v6048
    %7783 = vmatpush1.bf16.msra.mxu0 %v6047
    %7784 = vmatprep.subr.bf16.mxu0 %v6056
    %7785 = vmatpush1.bf16.msra.mxu0 %v6055
    %7786 = vmatprep.subr.bf16.mxu0 %v6064
    %7787 = vmatpush1.bf16.msra.mxu0 %v6063
    %7788 = vmatprep.subr.bf16.mxu0 %v6072
    %7789 = vmatpush1.bf16.msra.mxu0 %v6071
    %7790 = vmatprep.subr.bf16.mxu0 %v6080
    %7791 = vmatpush1.bf16.msra.mxu0 %v6079
    %7792 = vmatprep.subr.bf16.mxu0 %v6088
    %7793 = vmatpush1.bf16.msra.mxu0 %v6087
    %7794 = vmatprep.subr.bf16.mxu0 %v6096
    %7795 = vmatpush1.bf16.msra.mxu0 %v6095
    %7796 = vmatprep.subr.bf16.mxu0 %v6104
    %7797 = vmatpush1.bf16.msra.mxu0 %v6103
    %7798 = vmatprep.subr.bf16.mxu0 %v6112
    %7799 = vmatpush1.bf16.msra.mxu0 %v6111
    %7800 = vmatprep.subr.bf16.mxu0 %v6120
    %7801 = vmatpush1.bf16.msra.mxu0 %v6119
    %7802 = vmatprep.mubr.bf16.mxu0 %v6474
    %7803 = vmatmul.mubr.bf16.gmra.mrb[0].mxu0 %v6473
    %v7804 = vpop.f32.mrb[0].mxu0
    %v7805 = vadd.f32 0.0, %v7804
    %v7806 = vpop.f32.mrb[0].mxu0
    %v7807 = vadd.f32 0.0, %v7806
    %v7808 = vpop.f32.mrb[0].mxu0
    %v7809 = vadd.f32 0.0, %v7808
    %v7810 = vpop.f32.mrb[0].mxu0
    %v7811 = vadd.f32 0.0, %v7810
    %7812 = vmatprep.mubr.bf16.mxu0 %v6479
    %7813 = vmatmul.mubr.bf16.gmra.mrb[0].mxu0 %v6478
    %v7814 = vpop.f32.mrb[0].mxu0
    %v7815 = vadd.f32 0.0, %v7814
    %v7816 = vpop.f32.mrb[0].mxu0
    %v7817 = vadd.f32 0.0, %v7816
    %v7818 = vpop.f32.mrb[0].mxu0
    %v7819 = vadd.f32 0.0, %v7818
    %v7820 = vpop.f32.mrb[0].mxu0
    %v7821 = vadd.f32 0.0, %v7820
    %7822 = vmatprep.mubr.bf16.mxu0 %v6484
    %7823 = vmatmul.mubr.bf16.gmra.mrb[0].mxu0 %v6483
    %v7824 = vpop.f32.mrb[0].mxu0
    %v7825 = vadd.f32 0.0, %v7824
    %v7826 = vpop.f32.mrb[0].mxu0
    %v7827 = vadd.f32 0.0, %v7826
    %v7828 = vpop.f32.mrb[0].mxu0
    %v7829 = vadd.f32 0.0, %v7828
    %v7830 = vpop.f32.mrb[0].mxu0
    %v7831 = vadd.f32 0.0, %v7830
    %7832 = vmatprep.mubr.bf16.mxu0 %v6489
    %7833 = vmatmul.mubr.bf16.gmra.mrb[0].mxu0 %v6488
    %v7834 = vpop.f32.mrb[0].mxu0
    %v7835 = vadd.f32 0.0, %v7834
    %v7836 = vpop.f32.mrb[0].mxu0
    %v7837 = vadd.f32 0.0, %v7836
    %v7838 = vpop.f32.mrb[0].mxu0
    %v7839 = vadd.f32 0.0, %v7838
    %v7840 = vpop.f32.mrb[0].mxu0
    %v7841 = vadd.f32 0.0, %v7840
    %7842 = vmatprep.mubr.bf16.mxu0 %v6494
    %7843 = vmatmul.mubr.bf16.gmra.mrb[0].mxu0 %v6493
    %v7844 = vpop.f32.mrb[0].mxu0
    %v7845 = vadd.f32 0.0, %v7844
    %v7846 = vpop.f32.mrb[0].mxu0
    %v7847 = vadd.f32 0.0, %v7846
    %v7848 = vpop.f32.mrb[0].mxu0
    %v7849 = vadd.f32 0.0, %v7848
    %v7850 = vpop.f32.mrb[0].mxu0
    %v7851 = vadd.f32 0.0, %v7850
    %7852 = vmatprep.mubr.bf16.mxu0 %v6499
    %7853 = vmatmul.mubr.bf16.gmra.mrb[0].mxu0 %v6498
    %v7854 = vpop.f32.mrb[0].mxu0
    %v7855 = vadd.f32 0.0, %v7854
    %v7856 = vpop.f32.mrb[0].mxu0
    %v7857 = vadd.f32 0.0, %v7856
    %v7858 = vpop.f32.mrb[0].mxu0
    %v7859 = vadd.f32 0.0, %v7858
    %v7860 = vpop.f32.mrb[0].mxu0
    %v7861 = vadd.f32 0.0, %v7860
    %7862 = vmatprep.mubr.bf16.mxu0 %v6504
    %7863 = vmatmul.mubr.bf16.gmra.mrb[0].mxu0 %v6503
    %v7864 = vpop.f32.mrb[0].mxu0
    %v7865 = vadd.f32 0.0, %v7864
    %v7866 = vpop.f32.mrb[0].mxu0
    %v7867 = vadd.f32 0.0, %v7866
    %v7868 = vpop.f32.mrb[0].mxu0
    %v7869 = vadd.f32 0.0, %v7868
    %v7870 = vpop.f32.mrb[0].mxu0
    %v7871 = vadd.f32 0.0, %v7870
    %7872 = vmatprep.mubr.bf16.mxu0 %v6509
    %7873 = vmatmul.mubr.bf16.gmra.mrb[0].mxu0 %v6508
    %v7874 = vpop.f32.mrb[0].mxu0
    %v7875 = vadd.f32 0.0, %v7874
    %v7876 = vpop.f32.mrb[0].mxu0
    %v7877 = vadd.f32 0.0, %v7876
    %v7878 = vpop.f32.mrb[0].mxu0
    %v7879 = vadd.f32 0.0, %v7878
    %v7880 = vpop.f32.mrb[0].mxu0
    %v7881 = vadd.f32 0.0, %v7880
    %7882 = vmatprep.mubr.bf16.mxu0 %v6514
    %7883 = vmatmul.mubr.bf16.gmra.mrb[0].mxu0 %v6513
    %v7884 = vpop.f32.mrb[0].mxu0
    %v7885 = vadd.f32 0.0, %v7884
    %v7886 = vpop.f32.mrb[0].mxu0
    %v7887 = vadd.f32 0.0, %v7886
    %v7888 = vpop.f32.mrb[0].mxu0
    %v7889 = vadd.f32 0.0, %v7888
    %v7890 = vpop.f32.mrb[0].mxu0
    %v7891 = vadd.f32 0.0, %v7890
    %7892 = vmatprep.mubr.bf16.mxu0 %v6519
    %7893 = vmatmul.mubr.bf16.gmra.mrb[0].mxu0 %v6518
    %v7894 = vpop.f32.mrb[0].mxu0
    %v7895 = vadd.f32 0.0, %v7894
    %v7896 = vpop.f32.mrb[0].mxu0
    %v7897 = vadd.f32 0.0, %v7896
    %v7898 = vpop.f32.mrb[0].mxu0
    %v7899 = vadd.f32 0.0, %v7898
    %v7900 = vpop.f32.mrb[0].mxu0
    %v7901 = vadd.f32 0.0, %v7900
    %7902 = vdwg.mxu0
    %7903 = vmatprep.subr.bf16.mxu0 %v6128
    %7904 = vmatpush1.bf16.msra.mxu0 %v6127
    %7905 = vmatprep.subr.bf16.mxu0 %v6136
    %7906 = vmatpush1.bf16.msra.mxu0 %v6135
    %7907 = vmatprep.subr.bf16.mxu0 %v6144
    %7908 = vmatpush1.bf16.msra.mxu0 %v6143
    %7909 = vmatprep.subr.bf16.mxu0 %v6152
    %7910 = vmatpush1.bf16.msra.mxu0 %v6151
    %7911 = vmatprep.subr.bf16.mxu0 %v6160
    %7912 = vmatpush1.bf16.msra.mxu0 %v6159
    %7913 = vmatprep.subr.bf16.mxu0 %v6168
    %7914 = vmatpush1.bf16.msra.mxu0 %v6167
    %7915 = vmatprep.subr.bf16.mxu0 %v6176
    %7916 = vmatpush1.bf16.msra.mxu0 %v6175
    %7917 = vmatprep.subr.bf16.mxu0 %v6184
    %7918 = vmatpush1.bf16.msra.mxu0 %v6183
    %7919 = vmatprep.subr.bf16.mxu0 %v6192
    %7920 = vmatpush1.bf16.msra.mxu0 %v6191
    %7921 = vmatprep.subr.bf16.mxu0 %v6200
    %7922 = vmatpush1.bf16.msra.mxu0 %v6199
    %7923 = vmatprep.subr.bf16.mxu0 %v6208
    %7924 = vmatpush1.bf16.msra.mxu0 %v6207
    %7925 = vmatprep.subr.bf16.mxu0 %v6216
    %7926 = vmatpush1.bf16.msra.mxu0 %v6215
    %7927 = vmatprep.subr.bf16.mxu0 %v6224
    %7928 = vmatpush1.bf16.msra.mxu0 %v6223
    %7929 = vmatprep.subr.bf16.mxu0 %v6232
    %7930 = vmatpush1.bf16.msra.mxu0 %v6231
    %7931 = vmatprep.subr.bf16.mxu0 %v6240
    %7932 = vmatpush1.bf16.msra.mxu0 %v6239
    %7933 = vmatprep.subr.bf16.mxu0 %v6248
    %7934 = vmatpush1.bf16.msra.mxu0 %v6247
    %7935 = vmatprep.mubr.bf16.mxu0 %v6476
    %7936 = vmatmul.mubr.bf16.gmra.mrb[0].mxu0 %v6475
    %v7937 = vpop.f32.mrb[0].mxu0
    %v7938 = vadd.f32 %v7805, %v7937
    %v7939 = vpop.f32.mrb[0].mxu0
    %v7940 = vadd.f32 %v7807, %v7939
    %v7941 = vpop.f32.mrb[0].mxu0
    %v7942 = vadd.f32 %v7809, %v7941
    %v7943 = vpop.f32.mrb[0].mxu0
    %v7944 = vadd.f32 %v7811, %v7943
    %7945 = vmatprep.mubr.bf16.mxu0 %v6481
    %7946 = vmatmul.mubr.bf16.gmra.mrb[0].mxu0 %v6480
    %v7947 = vpop.f32.mrb[0].mxu0
    %v7948 = vadd.f32 %v7815, %v7947
    %v7949 = vpop.f32.mrb[0].mxu0
    %v7950 = vadd.f32 %v7817, %v7949
    %v7951 = vpop.f32.mrb[0].mxu0
    %v7952 = vadd.f32 %v7819, %v7951
    %v7953 = vpop.f32.mrb[0].mxu0
    %v7954 = vadd.f32 %v7821, %v7953
    %7955 = vmatprep.mubr.bf16.mxu0 %v6486
    %7956 = vmatmul.mubr.bf16.gmra.mrb[0].mxu0 %v6485
    %v7957 = vpop.f32.mrb[0].mxu0
    %v7958 = vadd.f32 %v7825, %v7957
    %v7959 = vpop.f32.mrb[0].mxu0
    %v7960 = vadd.f32 %v7827, %v7959
    %v7961 = vpop.f32.mrb[0].mxu0
    %v7962 = vadd.f32 %v7829, %v7961
    %v7963 = vpop.f32.mrb[0].mxu0
    %v7964 = vadd.f32 %v7831, %v7963
    %7965 = vmatprep.mubr.bf16.mxu0 %v6491
    %7966 = vmatmul.mubr.bf16.gmra.mrb[0].mxu0 %v6490
    %v7967 = vpop.f32.mrb[0].mxu0
    %v7968 = vadd.f32 %v7835, %v7967
    %v7969 = vpop.f32.mrb[0].mxu0
    %v7970 = vadd.f32 %v7837, %v7969
    %v7971 = vpop.f32.mrb[0].mxu0
    %v7972 = vadd.f32 %v7839, %v7971
    %v7973 = vpop.f32.mrb[0].mxu0
    %v7974 = vadd.f32 %v7841, %v7973
    %7975 = vmatprep.mubr.bf16.mxu0 %v6496
    %7976 = vmatmul.mubr.bf16.gmra.mrb[0].mxu0 %v6495
    %v7977 = vpop.f32.mrb[0].mxu0
    %v7978 = vadd.f32 %v7845, %v7977
    %v7979 = vpop.f32.mrb[0].mxu0
    %v7980 = vadd.f32 %v7847, %v7979
    %v7981 = vpop.f32.mrb[0].mxu0
    %v7982 = vadd.f32 %v7849, %v7981
    %v7983 = vpop.f32.mrb[0].mxu0
    %v7984 = vadd.f32 %v7851, %v7983
    %7985 = vmatprep.mubr.bf16.mxu0 %v6501
    %7986 = vmatmul.mubr.bf16.gmra.mrb[0].mxu0 %v6500
    %v7987 = vpop.f32.mrb[0].mxu0
    %v7988 = vadd.f32 %v7855, %v7987
    %v7989 = vpop.f32.mrb[0].mxu0
    %v7990 = vadd.f32 %v7857, %v7989
    %v7991 = vpop.f32.mrb[0].mxu0
    %v7992 = vadd.f32 %v7859, %v7991
    %v7993 = vpop.f32.mrb[0].mxu0
    %v7994 = vadd.f32 %v7861, %v7993
    %7995 = vmatprep.mubr.bf16.mxu0 %v6506
    %7996 = vmatmul.mubr.bf16.gmra.mrb[0].mxu0 %v6505
    %v7997 = vpop.f32.mrb[0].mxu0
    %v7998 = vadd.f32 %v7865, %v7997
    %v7999 = vpop.f32.mrb[0].mxu0
    %v8000 = vadd.f32 %v7867, %v7999
    %v8001 = vpop.f32.mrb[0].mxu0
    %v8002 = vadd.f32 %v7869, %v8001
    %v8003 = vpop.f32.mrb[0].mxu0
    %v8004 = vadd.f32 %v7871, %v8003
    %8005 = vmatprep.mubr.bf16.mxu0 %v6511
    %8006 = vmatmul.mubr.bf16.gmra.mrb[0].mxu0 %v6510
    %v8007 = vpop.f32.mrb[0].mxu0
    %v8008 = vadd.f32 %v7875, %v8007
    %v8009 = vpop.f32.mrb[0].mxu0
    %v8010 = vadd.f32 %v7877, %v8009
    %v8011 = vpop.f32.mrb[0].mxu0
    %v8012 = vadd.f32 %v7879, %v8011
    %v8013 = vpop.f32.mrb[0].mxu0
    %v8014 = vadd.f32 %v7881, %v8013
    %8015 = vmatprep.mubr.bf16.mxu0 %v6516
    %8016 = vmatmul.mubr.bf16.gmra.mrb[0].mxu0 %v6515
    %v8017 = vpop.f32.mrb[0].mxu0
    %v8018 = vadd.f32 %v7885, %v8017
    %v8019 = vpop.f32.mrb[0].mxu0
    %v8020 = vadd.f32 %v7887, %v8019
    %v8021 = vpop.f32.mrb[0].mxu0
    %v8022 = vadd.f32 %v7889, %v8021
    %v8023 = vpop.f32.mrb[0].mxu0
    %v8024 = vadd.f32 %v7891, %v8023
    %8025 = vmatprep.mubr.bf16.mxu0 %v6521
    %8026 = vmatmul.mubr.bf16.gmra.mrb[0].mxu0 %v6520
    %v8027 = vpop.f32.mrb[0].mxu0
    %v8028 = vadd.f32 %v7895, %v8027
    %v8029 = vpop.f32.mrb[0].mxu0
    %v8030 = vadd.f32 %v7897, %v8029
    %v8031 = vpop.f32.mrb[0].mxu0
    %v8032 = vadd.f32 %v7899, %v8031
    %v8033 = vpop.f32.mrb[0].mxu0
    %v8034 = vadd.f32 %v7901, %v8033
    %8035 = vdwg.mxu0
    %8036 = vmatprep.subr.bf16.mxu0 %v6256
    %8037 = vmatpush1.bf16.msra.mxu0 %v6255
    %8038 = vmatprep.subr.bf16.mxu0 %v6264
    %8039 = vmatpush1.bf16.msra.mxu0 %v6263
    %8040 = vmatprep.subr.bf16.mxu0 %v6272
    %8041 = vmatpush1.bf16.msra.mxu0 %v6271
    %8042 = vmatprep.subr.bf16.mxu0 %v6280
    %8043 = vmatpush1.bf16.msra.mxu0 %v6279
    %8044 = vmatprep.subr.bf16.mxu0 %v6288
    %8045 = vmatpush1.bf16.msra.mxu0 %v6287
    %8046 = vmatprep.subr.bf16.mxu0 %v6296
    %8047 = vmatpush1.bf16.msra.mxu0 %v6295
    %8048 = vmatprep.subr.bf16.mxu0 %v6304
    %8049 = vmatpush1.bf16.msra.mxu0 %v6303
    %8050 = vmatprep.subr.bf16.mxu0 %v6312
    %8051 = vmatpush1.bf16.msra.mxu0 %v6311
    %8052 = vmatprep.subr.bf16.mxu0 0
    %8053 = vmatpush1.bf16.msra.mxu0 0
    %8054 = vmatprep.subr.bf16.mxu0 0
    %8055 = vmatpush1.bf16.msra.mxu0 0
    %8056 = vmatprep.subr.bf16.mxu0 0
    %8057 = vmatpush1.bf16.msra.mxu0 0
    %8058 = vmatprep.subr.bf16.mxu0 0
    %8059 = vmatpush1.bf16.msra.mxu0 0
    %8060 = vmatprep.subr.bf16.mxu0 0
    %8061 = vmatpush1.bf16.msra.mxu0 0
    %8062 = vmatprep.subr.bf16.mxu0 0
    %8063 = vmatpush1.bf16.msra.mxu0 0
    %8064 = vmatprep.subr.bf16.mxu0 0
    %8065 = vmatpush1.bf16.msra.mxu0 0
    %8066 = vmatprep.subr.bf16.mxu0 0
    %8067 = vmatpush1.bf16.msra.mxu0 0
    %8068 = vmatprep.mubr.bf16.mxu0 0
    %8069 = vmatmul.mubr.bf16.gmra.mrb[0].mxu0 %v6477
    %v8070 = vpop.f32.mrb[0].mxu0
    %v8071 = vadd.f32 %v7938, %v8070
    %v8072 = vpop.f32.mrb[0].mxu0
    %v8073 = vadd.f32 %v7940, %v8072
    %v8074 = vpop.f32.mrb[0].mxu0
    %v8075 = vadd.f32 %v7942, %v8074
    %v8076 = vpop.f32.mrb[0].mxu0
    %v8077 = vadd.f32 %v7944, %v8076
    %8078 = vmatprep.mubr.bf16.mxu0 0
    %8079 = vmatmul.mubr.bf16.gmra.mrb[0].mxu0 %v6482
    %v8080 = vpop.f32.mrb[0].mxu0
    %v8081 = vadd.f32 %v7948, %v8080
    %v8082 = vpop.f32.mrb[0].mxu0
    %v8083 = vadd.f32 %v7950, %v8082
    %v8084 = vpop.f32.mrb[0].mxu0
    %v8085 = vadd.f32 %v7952, %v8084
    %v8086 = vpop.f32.mrb[0].mxu0
    %v8087 = vadd.f32 %v7954, %v8086
    %8088 = vmatprep.mubr.bf16.mxu0 0
    %8089 = vmatmul.mubr.bf16.gmra.mrb[0].mxu0 %v6487
    %v8090 = vpop.f32.mrb[0].mxu0
    %v8091 = vadd.f32 %v7958, %v8090
    %v8092 = vpop.f32.mrb[0].mxu0
    %v8093 = vadd.f32 %v7960, %v8092
    %v8094 = vpop.f32.mrb[0].mxu0
    %v8095 = vadd.f32 %v7962, %v8094
    %v8096 = vpop.f32.mrb[0].mxu0
    %v8097 = vadd.f32 %v7964, %v8096
    %8098 = vmatprep.mubr.bf16.mxu0 0
    %8099 = vmatmul.mubr.bf16.gmra.mrb[0].mxu0 %v6492
    %v8100 = vpop.f32.mrb[0].mxu0
    %v8101 = vadd.f32 %v7968, %v8100
    %v8102 = vpop.f32.mrb[0].mxu0
    %v8103 = vadd.f32 %v7970, %v8102
    %v8104 = vpop.f32.mrb[0].mxu0
    %v8105 = vadd.f32 %v7972, %v8104
    %v8106 = vpop.f32.mrb[0].mxu0
    %v8107 = vadd.f32 %v7974, %v8106
    %8108 = vmatprep.mubr.bf16.mxu0 0
    %8109 = vmatmul.mubr.bf16.gmra.mrb[0].mxu0 %v6497
    %v8110 = vpop.f32.mrb[0].mxu0
    %v8111 = vadd.f32 %v7978, %v8110
    %v8112 = vpop.f32.mrb[0].mxu0
    %v8113 = vadd.f32 %v7980, %v8112
    %v8114 = vpop.f32.mrb[0].mxu0
    %v8115 = vadd.f32 %v7982, %v8114
    %v8116 = vpop.f32.mrb[0].mxu0
    %v8117 = vadd.f32 %v7984, %v8116
    %8118 = vmatprep.mubr.bf16.mxu0 0
    %8119 = vmatmul.mubr.bf16.gmra.mrb[0].mxu0 %v6502
    %v8120 = vpop.f32.mrb[0].mxu0
    %v8121 = vadd.f32 %v7988, %v8120
    %v8122 = vpop.f32.mrb[0].mxu0
    %v8123 = vadd.f32 %v7990, %v8122
    %v8124 = vpop.f32.mrb[0].mxu0
    %v8125 = vadd.f32 %v7992, %v8124
    %v8126 = vpop.f32.mrb[0].mxu0
    %v8127 = vadd.f32 %v7994, %v8126
    %8128 = vmatprep.mubr.bf16.mxu0 0
    %8129 = vmatmul.mubr.bf16.gmra.mrb[0].mxu0 %v6507
    %v8130 = vpop.f32.mrb[0].mxu0
    %v8131 = vadd.f32 %v7998, %v8130
    %v8132 = vpop.f32.mrb[0].mxu0
    %v8133 = vadd.f32 %v8000, %v8132
    %v8134 = vpop.f32.mrb[0].mxu0
    %v8135 = vadd.f32 %v8002, %v8134
    %v8136 = vpop.f32.mrb[0].mxu0
    %v8137 = vadd.f32 %v8004, %v8136
    %8138 = vmatprep.mubr.bf16.mxu0 0
    %8139 = vmatmul.mubr.bf16.gmra.mrb[0].mxu0 %v6512
    %v8140 = vpop.f32.mrb[0].mxu0
    %v8141 = vadd.f32 %v8008, %v8140
    %v8142 = vpop.f32.mrb[0].mxu0
    %v8143 = vadd.f32 %v8010, %v8142
    %v8144 = vpop.f32.mrb[0].mxu0
    %v8145 = vadd.f32 %v8012, %v8144
    %v8146 = vpop.f32.mrb[0].mxu0
    %v8147 = vadd.f32 %v8014, %v8146
    %8148 = vmatprep.mubr.bf16.mxu0 0
    %8149 = vmatmul.mubr.bf16.gmra.mrb[0].mxu0 %v6517
    %v8150 = vpop.f32.mrb[0].mxu0
    %v8151 = vadd.f32 %v8018, %v8150
    %v8152 = vpop.f32.mrb[0].mxu0
    %v8153 = vadd.f32 %v8020, %v8152
    %v8154 = vpop.f32.mrb[0].mxu0
    %v8155 = vadd.f32 %v8022, %v8154
    %v8156 = vpop.f32.mrb[0].mxu0
    %v8157 = vadd.f32 %v8024, %v8156
    %8158 = vmatprep.mubr.bf16.mxu0 0
    %8159 = vmatmul.mubr.bf16.gmra.mrb[0].mxu0 %v6522
    %v8160 = vpop.f32.mrb[0].mxu0
    %v8161 = vadd.f32 %v8028, %v8160
    %v8162 = vpop.f32.mrb[0].mxu0
    %v8163 = vadd.f32 %v8030, %v8162
    %v8164 = vpop.f32.mrb[0].mxu0
    %v8165 = vadd.f32 %v8032, %v8164
    %v8166 = vpop.f32.mrb[0].mxu0
    %v8167 = vadd.f32 %v8034, %v8166
    %8168 = vdwg.mxu0
    %v8169 = vmax.f32 %v6874, %v6924
    %v8170 = vmax.f32 %v6876, %v6926
    %v8171 = vmax.f32 %v7273, %v7323
    %v8172 = vmax.f32 %v7275, %v7325
    %v8173 = vmax.f32 %v7672, %v7722
    %v8174 = vmax.f32 %v7674, %v7724
    %v8175 = vmax.f32 %v8071, %v8121
    %v8176 = vmax.f32 %v8073, %v8123
    %v8177 = vmax.f32 %v6878, %v6928
    %v8178 = vmax.f32 %v6880, %v6930
    %v8179 = vmax.f32 %v7277, %v7327
    %v8180 = vmax.f32 %v7279, %v7329
    %v8181 = vmax.f32 %v7676, %v7726
    %v8182 = vmax.f32 %v7678, %v7728
    %v8183 = vmax.f32 %v8075, %v8125
    %v8184 = vmax.f32 %v8077, %v8127
    %v8185 = vmax.f32 %v6884, %v6934
    %v8186 = vmax.f32 %v6886, %v6936
    %v8187 = vmax.f32 %v7283, %v7333
    %v8188 = vmax.f32 %v7285, %v7335
    %v8189 = vmax.f32 %v7682, %v7732
    %v8190 = vmax.f32 %v7684, %v7734
    %v8191 = vmax.f32 %v8081, %v8131
    %v8192 = vmax.f32 %v8083, %v8133
    %v8193 = vmax.f32 %v6888, %v6938
    %v8194 = vmax.f32 %v6890, %v6940
    %v8195 = vmax.f32 %v7287, %v7337
    %v8196 = vmax.f32 %v7289, %v7339
    %v8197 = vmax.f32 %v7686, %v7736
    %v8198 = vmax.f32 %v7688, %v7738
    %v8199 = vmax.f32 %v8085, %v8135
    %v8200 = vmax.f32 %v8087, %v8137
    %v8201 = vmax.f32 %v6894, %v6944
    %v8202 = vmax.f32 %v6896, %v6946
    %v8203 = vmax.f32 %v7293, %v7343
    %v8204 = vmax.f32 %v7295, %v7345
    %v8205 = vmax.f32 %v7692, %v7742
    %v8206 = vmax.f32 %v7694, %v7744
    %v8207 = vmax.f32 %v8091, %v8141
    %v8208 = vmax.f32 %v8093, %v8143
    %v8209 = vmax.f32 %v6898, %v6948
    %v8210 = vmax.f32 %v6900, %v6950
    %v8211 = vmax.f32 %v7297, %v7347
    %v8212 = vmax.f32 %v7299, %v7349
    %v8213 = vmax.f32 %v7696, %v7746
    %v8214 = vmax.f32 %v7698, %v7748
    %v8215 = vmax.f32 %v8095, %v8145
    %v8216 = vmax.f32 %v8097, %v8147
    %v8217 = vmax.f32 %v6904, %v6954
    %v8218 = vmax.f32 %v6906, %v6956
    %v8219 = vmax.f32 %v7303, %v7353
    %v8220 = vmax.f32 %v7305, %v7355
    %v8221 = vmax.f32 %v7702, %v7752
    %v8222 = vmax.f32 %v7704, %v7754
    %v8223 = vmax.f32 %v8101, %v8151
    %v8224 = vmax.f32 %v8103, %v8153
    %v8225 = vmax.f32 %v6908, %v6958
    %v8226 = vmax.f32 %v6910, %v6960
    %v8227 = vmax.f32 %v7307, %v7357
    %v8228 = vmax.f32 %v7309, %v7359
    %v8229 = vmax.f32 %v7706, %v7756
    %v8230 = vmax.f32 %v7708, %v7758
    %v8231 = vmax.f32 %v8105, %v8155
    %v8232 = vmax.f32 %v8107, %v8157
    %v8233 = vmax.f32 %v6914, %v6964
    %v8234 = vmax.f32 %v6916, %v6966
    %v8235 = vmax.f32 %v7313, %v7363
    %v8236 = vmax.f32 %v7315, %v7365
    %v8237 = vmax.f32 %v7712, %v7762
    %v8238 = vmax.f32 %v7714, %v7764
    %v8239 = vmax.f32 %v8111, %v8161
    %v8240 = vmax.f32 %v8113, %v8163
    %v8241 = vmax.f32 %v6918, %v6968
    %v8242 = vmax.f32 %v6920, %v6970
    %v8243 = vmax.f32 %v7317, %v7367
    %v8244 = vmax.f32 %v7319, %v7369
    %v8245 = vmax.f32 %v7716, %v7766
    %v8246 = vmax.f32 %v7718, %v7768
    %v8247 = vmax.f32 %v8115, %v8165
    %v8248 = vmax.f32 %v8117, %v8167
    %v8249 = vmax.f32 %v8169, %v8170
    %v8250 = vmax.f32 %v8177, %v8178
    %v8251 = vmax.f32 %v8185, %v8186
    %v8252 = vmax.f32 %v8193, %v8194
    %v8253 = vmax.f32 %v8201, %v8202
    %v8254 = vmax.f32 %v8209, %v8210
    %v8255 = vmax.f32 %v8217, %v8218
    %v8256 = vmax.f32 %v8225, %v8226
    %v8257 = vmax.f32 %v8233, %v8234
    %v8258 = vmax.f32 %v8241, %v8242
    %v8259 = vld [vmem:[%s4] sm:$0xff]
    %v8260 = vld [vmem:[%s4 + $0x8] sm:$0xff]
    %v8261 = vld [vmem:[%s4 + $0x10] sm:$0xff]
    %v8262 = vld [vmem:[%s4 + $0x18] sm:$0xff]
    %v8263 = vld [vmem:[%s4 + $0x20] sm:$0xff]
    %v8264 = vld [vmem:[%s4 + $0x28] sm:$0xff]
    %v8265 = vld [vmem:[%s4 + $0x30] sm:$0xff]
    %v8266 = vld [vmem:[%s4 + $0x38] sm:$0xff]
    %v8267 = vld [vmem:[%s4 + $0x40] sm:$0xff]
    %v8268 = vld [vmem:[%s4 + $0x48] sm:$0xff]
    %8270 = vset.pattern.permute.xlu0 0
    %8271 = vperm.xlu0 %8270, %v8259
    %v8272 = vpop.permute.xlu0 %8271
    %8275 = vset.pattern.permute.xlu0 0
    %8276 = vperm.xlu0 %8275, %v8260
    %v8277 = vpop.permute.xlu0 %8276
    %8280 = vset.pattern.permute.xlu0 0
    %8281 = vperm.xlu0 %8280, %v8261
    %v8282 = vpop.permute.xlu0 %8281
    %8285 = vset.pattern.permute.xlu0 0
    %8286 = vperm.xlu0 %8285, %v8262
    %v8287 = vpop.permute.xlu0 %8286
    %8290 = vset.pattern.permute.xlu0 0
    %8291 = vperm.xlu0 %8290, %v8263
    %v8292 = vpop.permute.xlu0 %8291
    %8295 = vset.pattern.permute.xlu0 0
    %8296 = vperm.xlu0 %8295, %v8264
    %v8297 = vpop.permute.xlu0 %8296
    %8300 = vset.pattern.permute.xlu0 0
    %8301 = vperm.xlu0 %8300, %v8265
    %v8302 = vpop.permute.xlu0 %8301
    %8305 = vset.pattern.permute.xlu0 0
    %8306 = vperm.xlu0 %8305, %v8266
    %v8307 = vpop.permute.xlu0 %8306
    %8310 = vset.pattern.permute.xlu0 0
    %8311 = vperm.xlu0 %8310, %v8267
    %v8312 = vpop.permute.xlu0 %8311
    %8315 = vset.pattern.permute.xlu0 0
    %8316 = vperm.xlu0 %8315, %v8268
    %v8317 = vpop.permute.xlu0 %8316
    %v8319 = vadd.f32 %v8249, %v8272
    %v8320 = vadd.f32 %v8250, %v8277
    %v8321 = vadd.f32 %v8251, %v8282
    %v8322 = vadd.f32 %v8252, %v8287
    %v8323 = vadd.f32 %v8253, %v8292
    %v8324 = vadd.f32 %v8254, %v8297
    %v8325 = vadd.f32 %v8255, %v8302
    %v8326 = vadd.f32 %v8256, %v8307
    %v8327 = vadd.f32 %v8257, %v8312
    %v8328 = vadd.f32 %v8258, %v8317
    %v8329 = vmax.f32 %v8319, 0.0
    %v8330 = vmax.f32 %v8320, 0.0
    %v8331 = vmax.f32 %v8321, 0.0
    %v8332 = vmax.f32 %v8322, 0.0
    %v8333 = vmax.f32 %v8323, 0.0
    %v8334 = vmax.f32 %v8324, 0.0
    %v8335 = vmax.f32 %v8325, 0.0
    %v8336 = vmax.f32 %v8326, 0.0
    %v8337 = vmax.f32 %v8327, 0.0
    %v8338 = vmax.f32 %v8328, 0.0
    %v8339 = vpack.c.bf16 %v8330, %v8329
    %v8340 = vpack.c.bf16 %v8332, %v8331
    %v8341 = vpack.c.bf16 %v8334, %v8333
    %v8342 = vpack.c.bf16 %v8336, %v8335
    %v8343 = vpack.c.bf16 %v8338, %v8337
    %8344 = vst [vmem:[#allocation4] sm:$0xff] %v8339
    %8345 = vst [vmem:[#allocation4 + $0x8] sm:$0xff] %v8340
    %8346 = vst [vmem:[#allocation4 + $0x10] sm:$0xff] %v8341
    %8347 = vst [vmem:[#allocation4 + $0x18] sm:$0xff] %v8342
    %8348 = vst [vmem:[#allocation4 + $0x20] sm:$0xff] %v8343
    %v8349 = vmax.f32 %v8171, %v8172
    %v8350 = vmax.f32 %v8179, %v8180
    %v8351 = vmax.f32 %v8187, %v8188
    %v8352 = vmax.f32 %v8195, %v8196
    %v8353 = vmax.f32 %v8203, %v8204
    %v8354 = vmax.f32 %v8211, %v8212
    %v8355 = vmax.f32 %v8219, %v8220
    %v8356 = vmax.f32 %v8227, %v8228
    %v8357 = vmax.f32 %v8235, %v8236
    %v8358 = vmax.f32 %v8243, %v8244
    %v8359 = vld [vmem:[%s4] sm:$0xff]
    %v8360 = vld [vmem:[%s4 + $0x8] sm:$0xff]
    %v8361 = vld [vmem:[%s4 + $0x10] sm:$0xff]
    %v8362 = vld [vmem:[%s4 + $0x18] sm:$0xff]
    %v8363 = vld [vmem:[%s4 + $0x20] sm:$0xff]
    %v8364 = vld [vmem:[%s4 + $0x28] sm:$0xff]
    %v8365 = vld [vmem:[%s4 + $0x30] sm:$0xff]
    %v8366 = vld [vmem:[%s4 + $0x38] sm:$0xff]
    %v8367 = vld [vmem:[%s4 + $0x40] sm:$0xff]
    %v8368 = vld [vmem:[%s4 + $0x48] sm:$0xff]
    %8370 = vset.pattern.permute.xlu0 0
    %8371 = vperm.xlu0 %8370, %v8359
    %v8372 = vpop.permute.xlu0 %8371
    %8375 = vset.pattern.permute.xlu0 0
    %8376 = vperm.xlu0 %8375, %v8360
    %v8377 = vpop.permute.xlu0 %8376
    %8380 = vset.pattern.permute.xlu0 0
    %8381 = vperm.xlu0 %8380, %v8361
    %v8382 = vpop.permute.xlu0 %8381
    %8385 = vset.pattern.permute.xlu0 0
    %8386 = vperm.xlu0 %8385, %v8362
    %v8387 = vpop.permute.xlu0 %8386
    %8390 = vset.pattern.permute.xlu0 0
    %8391 = vperm.xlu0 %8390, %v8363
    %v8392 = vpop.permute.xlu0 %8391
    %8395 = vset.pattern.permute.xlu0 0
    %8396 = vperm.xlu0 %8395, %v8364
    %v8397 = vpop.permute.xlu0 %8396
    %8400 = vset.pattern.permute.xlu0 0
    %8401 = vperm.xlu0 %8400, %v8365
    %v8402 = vpop.permute.xlu0 %8401
    %8405 = vset.pattern.permute.xlu0 0
    %8406 = vperm.xlu0 %8405, %v8366
    %v8407 = vpop.permute.xlu0 %8406
    %8410 = vset.pattern.permute.xlu0 0
    %8411 = vperm.xlu0 %8410, %v8367
    %v8412 = vpop.permute.xlu0 %8411
    %8415 = vset.pattern.permute.xlu0 0
    %8416 = vperm.xlu0 %8415, %v8368
    %v8417 = vpop.permute.xlu0 %8416
    %v8419 = vadd.f32 %v8349, %v8372
    %v8420 = vadd.f32 %v8350, %v8377
    %v8421 = vadd.f32 %v8351, %v8382
    %v8422 = vadd.f32 %v8352, %v8387
    %v8423 = vadd.f32 %v8353, %v8392
    %v8424 = vadd.f32 %v8354, %v8397
    %v8425 = vadd.f32 %v8355, %v8402
    %v8426 = vadd.f32 %v8356, %v8407
    %v8427 = vadd.f32 %v8357, %v8412
    %v8428 = vadd.f32 %v8358, %v8417
    %v8429 = vmax.f32 %v8419, 0.0
    %v8430 = vmax.f32 %v8420, 0.0
    %v8431 = vmax.f32 %v8421, 0.0
    %v8432 = vmax.f32 %v8422, 0.0
    %v8433 = vmax.f32 %v8423, 0.0
    %v8434 = vmax.f32 %v8424, 0.0
    %v8435 = vmax.f32 %v8425, 0.0
    %v8436 = vmax.f32 %v8426, 0.0
    %v8437 = vmax.f32 %v8427, 0.0
    %v8438 = vmax.f32 %v8428, 0.0
    %v8439 = vpack.c.bf16 %v8430, %v8429
    %v8440 = vpack.c.bf16 %v8432, %v8431
    %v8441 = vpack.c.bf16 %v8434, %v8433
    %v8442 = vpack.c.bf16 %v8436, %v8435
    %v8443 = vpack.c.bf16 %v8438, %v8437
    %8444 = vst [vmem:[#allocation4 + $0x28] sm:$0xff] %v8439
    %8445 = vst [vmem:[#allocation4 + $0x30] sm:$0xff] %v8440
    %8446 = vst [vmem:[#allocation4 + $0x38] sm:$0xff] %v8441
    %8447 = vst [vmem:[#allocation4 + $0x40] sm:$0xff] %v8442
    %8448 = vst [vmem:[#allocation4 + $0x48] sm:$0xff] %v8443
    %v8449 = vmax.f32 %v8173, %v8174
    %v8450 = vmax.f32 %v8181, %v8182
    %v8451 = vmax.f32 %v8189, %v8190
    %v8452 = vmax.f32 %v8197, %v8198
    %v8453 = vmax.f32 %v8205, %v8206
    %v8454 = vmax.f32 %v8213, %v8214
    %v8455 = vmax.f32 %v8221, %v8222
    %v8456 = vmax.f32 %v8229, %v8230
    %v8457 = vmax.f32 %v8237, %v8238
    %v8458 = vmax.f32 %v8245, %v8246
    %v8459 = vld [vmem:[%s4] sm:$0xff]
    %v8460 = vld [vmem:[%s4 + $0x8] sm:$0xff]
    %v8461 = vld [vmem:[%s4 + $0x10] sm:$0xff]
    %v8462 = vld [vmem:[%s4 + $0x18] sm:$0xff]
    %v8463 = vld [vmem:[%s4 + $0x20] sm:$0xff]
    %v8464 = vld [vmem:[%s4 + $0x28] sm:$0xff]
    %v8465 = vld [vmem:[%s4 + $0x30] sm:$0xff]
    %v8466 = vld [vmem:[%s4 + $0x38] sm:$0xff]
    %v8467 = vld [vmem:[%s4 + $0x40] sm:$0xff]
    %v8468 = vld [vmem:[%s4 + $0x48] sm:$0xff]
    %8470 = vset.pattern.permute.xlu0 0
    %8471 = vperm.xlu0 %8470, %v8459
    %v8472 = vpop.permute.xlu0 %8471
    %8475 = vset.pattern.permute.xlu0 0
    %8476 = vperm.xlu0 %8475, %v8460
    %v8477 = vpop.permute.xlu0 %8476
    %8480 = vset.pattern.permute.xlu0 0
    %8481 = vperm.xlu0 %8480, %v8461
    %v8482 = vpop.permute.xlu0 %8481
    %8485 = vset.pattern.permute.xlu0 0
    %8486 = vperm.xlu0 %8485, %v8462
    %v8487 = vpop.permute.xlu0 %8486
    %8490 = vset.pattern.permute.xlu0 0
    %8491 = vperm.xlu0 %8490, %v8463
    %v8492 = vpop.permute.xlu0 %8491
    %8495 = vset.pattern.permute.xlu0 0
    %8496 = vperm.xlu0 %8495, %v8464
    %v8497 = vpop.permute.xlu0 %8496
    %8500 = vset.pattern.permute.xlu0 0
    %8501 = vperm.xlu0 %8500, %v8465
    %v8502 = vpop.permute.xlu0 %8501
    %8505 = vset.pattern.permute.xlu0 0
    %8506 = vperm.xlu0 %8505, %v8466
    %v8507 = vpop.permute.xlu0 %8506
    %8510 = vset.pattern.permute.xlu0 0
    %8511 = vperm.xlu0 %8510, %v8467
    %v8512 = vpop.permute.xlu0 %8511
    %8515 = vset.pattern.permute.xlu0 0
    %8516 = vperm.xlu0 %8515, %v8468
    %v8517 = vpop.permute.xlu0 %8516
    %v8519 = vadd.f32 %v8449, %v8472
    %v8520 = vadd.f32 %v8450, %v8477
    %v8521 = vadd.f32 %v8451, %v8482
    %v8522 = vadd.f32 %v8452, %v8487
    %v8523 = vadd.f32 %v8453, %v8492
    %v8524 = vadd.f32 %v8454, %v8497
    %v8525 = vadd.f32 %v8455, %v8502
    %v8526 = vadd.f32 %v8456, %v8507
    %v8527 = vadd.f32 %v8457, %v8512
    %v8528 = vadd.f32 %v8458, %v8517
    %v8529 = vmax.f32 %v8519, 0.0
    %v8530 = vmax.f32 %v8520, 0.0
    %v8531 = vmax.f32 %v8521, 0.0
    %v8532 = vmax.f32 %v8522, 0.0
    %v8533 = vmax.f32 %v8523, 0.0
    %v8534 = vmax.f32 %v8524, 0.0
    %v8535 = vmax.f32 %v8525, 0.0
    %v8536 = vmax.f32 %v8526, 0.0
    %v8537 = vmax.f32 %v8527, 0.0
    %v8538 = vmax.f32 %v8528, 0.0
    %v8539 = vpack.c.bf16 %v8530, %v8529
    %v8540 = vpack.c.bf16 %v8532, %v8531
    %v8541 = vpack.c.bf16 %v8534, %v8533
    %v8542 = vpack.c.bf16 %v8536, %v8535
    %v8543 = vpack.c.bf16 %v8538, %v8537
    %8544 = vst [vmem:[#allocation4 + $0x50] sm:$0xff] %v8539
    %8545 = vst [vmem:[#allocation4 + $0x58] sm:$0xff] %v8540
    %8546 = vst [vmem:[#allocation4 + $0x60] sm:$0xff] %v8541
    %8547 = vst [vmem:[#allocation4 + $0x68] sm:$0xff] %v8542
    %8548 = vst [vmem:[#allocation4 + $0x70] sm:$0xff] %v8543
    %v8549 = vmax.f32 %v8175, %v8176
    %v8550 = vmax.f32 %v8183, %v8184
    %v8551 = vmax.f32 %v8191, %v8192
    %v8552 = vmax.f32 %v8199, %v8200
    %v8553 = vmax.f32 %v8207, %v8208
    %v8554 = vmax.f32 %v8215, %v8216
    %v8555 = vmax.f32 %v8223, %v8224
    %v8556 = vmax.f32 %v8231, %v8232
    %v8557 = vmax.f32 %v8239, %v8240
    %v8558 = vmax.f32 %v8247, %v8248
    %v8559 = vld [vmem:[%s4] sm:$0xff]
    %v8560 = vld [vmem:[%s4 + $0x8] sm:$0xff]
    %v8561 = vld [vmem:[%s4 + $0x10] sm:$0xff]
    %v8562 = vld [vmem:[%s4 + $0x18] sm:$0xff]
    %v8563 = vld [vmem:[%s4 + $0x20] sm:$0xff]
    %v8564 = vld [vmem:[%s4 + $0x28] sm:$0xff]
    %v8565 = vld [vmem:[%s4 + $0x30] sm:$0xff]
    %v8566 = vld [vmem:[%s4 + $0x38] sm:$0xff]
    %v8567 = vld [vmem:[%s4 + $0x40] sm:$0xff]
    %v8568 = vld [vmem:[%s4 + $0x48] sm:$0xff]
    %8570 = vset.pattern.permute.xlu0 0
    %8571 = vperm.xlu0 %8570, %v8559
    %v8572 = vpop.permute.xlu0 %8571
    %8575 = vset.pattern.permute.xlu0 0
    %8576 = vperm.xlu0 %8575, %v8560
    %v8577 = vpop.permute.xlu0 %8576
    %8580 = vset.pattern.permute.xlu0 0
    %8581 = vperm.xlu0 %8580, %v8561
    %v8582 = vpop.permute.xlu0 %8581
    %8585 = vset.pattern.permute.xlu0 0
    %8586 = vperm.xlu0 %8585, %v8562
    %v8587 = vpop.permute.xlu0 %8586
    %8590 = vset.pattern.permute.xlu0 0
    %8591 = vperm.xlu0 %8590, %v8563
    %v8592 = vpop.permute.xlu0 %8591
    %8595 = vset.pattern.permute.xlu0 0
    %8596 = vperm.xlu0 %8595, %v8564
    %v8597 = vpop.permute.xlu0 %8596
    %8600 = vset.pattern.permute.xlu0 0
    %8601 = vperm.xlu0 %8600, %v8565
    %v8602 = vpop.permute.xlu0 %8601
    %8605 = vset.pattern.permute.xlu0 0
    %8606 = vperm.xlu0 %8605, %v8566
    %v8607 = vpop.permute.xlu0 %8606
    %8610 = vset.pattern.permute.xlu0 0
    %8611 = vperm.xlu0 %8610, %v8567
    %v8612 = vpop.permute.xlu0 %8611
    %8615 = vset.pattern.permute.xlu0 0
    %8616 = vperm.xlu0 %8615, %v8568
    %v8617 = vpop.permute.xlu0 %8616
    %v8619 = vadd.f32 %v8549, %v8572
    %v8620 = vadd.f32 %v8550, %v8577
    %v8621 = vadd.f32 %v8551, %v8582
    %v8622 = vadd.f32 %v8552, %v8587
    %v8623 = vadd.f32 %v8553, %v8592
    %v8624 = vadd.f32 %v8554, %v8597
    %v8625 = vadd.f32 %v8555, %v8602
    %v8626 = vadd.f32 %v8556, %v8607
    %v8627 = vadd.f32 %v8557, %v8612
    %v8628 = vadd.f32 %v8558, %v8617
    %v8629 = vmax.f32 %v8619, 0.0
    %v8630 = vmax.f32 %v8620, 0.0
    %v8631 = vmax.f32 %v8621, 0.0
    %v8632 = vmax.f32 %v8622, 0.0
    %v8633 = vmax.f32 %v8623, 0.0
    %v8634 = vmax.f32 %v8624, 0.0
    %v8635 = vmax.f32 %v8625, 0.0
    %v8636 = vmax.f32 %v8626, 0.0
    %v8637 = vmax.f32 %v8627, 0.0
    %v8638 = vmax.f32 %v8628, 0.0
    %v8639 = vpack.c.bf16 %v8630, %v8629
    %v8640 = vpack.c.bf16 %v8632, %v8631
    %v8641 = vpack.c.bf16 %v8634, %v8633
    %v8642 = vpack.c.bf16 %v8636, %v8635
    %v8643 = vpack.c.bf16 %v8638, %v8637
    %8644 = vst [vmem:[#allocation4 + $0x78] sm:$0xff] %v8639
    %8645 = vst [vmem:[#allocation4 + $0x80] sm:$0xff] %v8640
    %8646 = vst [vmem:[#allocation4 + $0x88] sm:$0xff] %v8641
    %8647 = vst [vmem:[#allocation4 + $0x90] sm:$0xff] %v8642
    %8648 = vst [vmem:[#allocation4 + $0x98] sm:$0xff] %v8643
    %v8649 = vld [vmem:[%s5] sm:$0xff]
    %v8650 = vld [vmem:[%s5 + $0x8] sm:$0xf]
    %v8651 = vld [vmem:[%s5 + $0xc] sm:$0xff]
    %v8652 = vld [vmem:[%s5 + $0x14] sm:$0xf]
    %v8653 = vld [vmem:[%s5 + $0x18] sm:$0xff]
    %v8654 = vld [vmem:[%s5 + $0x20] sm:$0xf]
    %v8655 = vld [vmem:[%s5 + $0x24] sm:$0xff]
    %v8656 = vld [vmem:[%s5 + $0x2c] sm:$0xf]
    %v8657 = vld [vmem:[%s5 + $0x30] sm:$0xff]
    %v8658 = vld [vmem:[%s5 + $0x38] sm:$0xf]
    %v8659 = vld [vmem:[%s5 + $0x3c] sm:$0xff]
    %v8660 = vld [vmem:[%s5 + $0x44] sm:$0xf]
    %v8661 = vld [vmem:[%s5 + $0x48] sm:$0x11]
    %v8662 = vld [vmem:[%s5 + $0x50] sm:$0x1]
    %v8663 = vld [vmem:[#allocation4] sm:$0xff]
    %v8664 = vld [vmem:[#allocation4 + $0x8] sm:$0xff]
    %v8665 = vld [vmem:[#allocation4 + $0x10] sm:$0xff]
    %v8666 = vld [vmem:[#allocation4 + $0x18] sm:$0xff]
    %v8667 = vld [vmem:[#allocation4 + $0x20] sm:$0xff]
    %v8668 = vld [vmem:[#allocation4 + $0x28] sm:$0xff]
    %v8669 = vld [vmem:[#allocation4 + $0x30] sm:$0xff]
    %v8670 = vld [vmem:[#allocation4 + $0x38] sm:$0xff]
    %v8671 = vld [vmem:[#allocation4 + $0x40] sm:$0xff]
    %v8672 = vld [vmem:[#allocation4 + $0x48] sm:$0xff]
    %v8673 = vld [vmem:[#allocation4 + $0x50] sm:$0xff]
    %v8674 = vld [vmem:[#allocation4 + $0x58] sm:$0xff]
    %v8675 = vld [vmem:[#allocation4 + $0x60] sm:$0xff]
    %v8676 = vld [vmem:[#allocation4 + $0x68] sm:$0xff]
    %v8677 = vld [vmem:[#allocation4 + $0x70] sm:$0xff]
    %v8678 = vld [vmem:[#allocation4 + $0x78] sm:$0xff]
    %v8679 = vld [vmem:[#allocation4 + $0x80] sm:$0xff]
    %v8680 = vld [vmem:[#allocation4 + $0x88] sm:$0xff]
    %v8681 = vld [vmem:[#allocation4 + $0x90] sm:$0xff]
    %v8682 = vld [vmem:[#allocation4 + $0x98] sm:$0xff]
    %v8683 = vld [vmem:[%s6] sm:$0xff]
    %v8684 = vld [vmem:[%s6 + $0x8] sm:$0xff]
    %v8685 = vld [vmem:[%s6 + $0x10] sm:$0xff]
    %v8686 = vld [vmem:[%s6 + $0x18] sm:$0xff]
    %v8687 = vld [vmem:[%s6 + $0x20] sm:$0xff]
    %v8688 = vld [vmem:[%s6 + $0x28] sm:$0xff]
    %v8689 = vld [vmem:[%s6 + $0x30] sm:$0x3]
    %8691 = vset.pattern.permute.xlu0 0
    %8692 = vperm.xlu0 %8691, %v8683
    %v8693 = vpop.permute.xlu0 %8692
    %8696 = vset.pattern.permute.xlu0 0
    %8697 = vperm.xlu0 %8696, %v8684
    %v8698 = vpop.permute.xlu0 %8697
    %8701 = vset.pattern.permute.xlu0 0
    %8702 = vperm.xlu0 %8701, %v8685
    %v8703 = vpop.permute.xlu0 %8702
    %8706 = vset.pattern.permute.xlu0 0
    %8707 = vperm.xlu0 %8706, %v8686
    %v8708 = vpop.permute.xlu0 %8707
    %8711 = vset.pattern.permute.xlu0 0
    %8712 = vperm.xlu0 %8711, %v8687
    %v8713 = vpop.permute.xlu0 %8712
    %8716 = vset.pattern.permute.xlu0 0
    %8717 = vperm.xlu0 %8716, %v8688
    %v8718 = vpop.permute.xlu0 %8717
    %8721 = vset.pattern.permute.xlu0 0
    %8722 = vperm.xlu0 %8721, %v8689
    %v8723 = vpop.permute.xlu0 %8722
    %v8739 = vunpack.c.l.b16 %v8649
    %v8740 = vunpack.c.h.b16 %v8649
    %v8741 = vunpack.c.l.b16 %v8650
    %v8742 = vunpack.c.l.b16 %v8651
    %v8743 = vunpack.c.h.b16 %v8651
    %v8744 = vunpack.c.l.b16 %v8652
    %v8745 = vunpack.c.l.b16 %v8653
    %v8746 = vunpack.c.h.b16 %v8653
    %v8747 = vunpack.c.l.b16 %v8654
    %v8748 = vunpack.c.l.b16 %v8655
    %v8749 = vunpack.c.h.b16 %v8655
    %v8750 = vunpack.c.l.b16 %v8656
    %v8751 = vunpack.c.l.b16 %v8657
    %v8752 = vunpack.c.h.b16 %v8657
    %v8753 = vunpack.c.l.b16 %v8658
    %v8754 = vunpack.c.l.b16 %v8659
    %v8755 = vunpack.c.h.b16 %v8659
    %v8756 = vunpack.c.l.b16 %v8660
    %v8757 = vunpack.c.l.b16 %v8661
    %v8758 = vunpack.c.h.b16 %v8661
    %v8759 = vunpack.c.l.b16 %v8662
    %v8760 = vpack.c.b16 %v8742, %v8739
    %v8761 = vpack.c.b16 %v8743, %v8740
    %v8762 = vpack.c.b16 %v8744, %v8741
    %v8763 = vpack.c.b16 %v8748, %v8745
    %v8764 = vpack.c.b16 %v8749, %v8746
    %v8765 = vpack.c.b16 %v8750, %v8747
    %v8766 = vpack.c.b16 %v8754, %v8751
    %v8767 = vpack.c.b16 %v8755, %v8752
    %v8768 = vpack.c.b16 %v8756, %v8753
    %v8769 = vpack.c.b16 %v8757, %v8757
    %v8770 = vpack.c.b16 %v8758, %v8758
    %v8771 = vpack.c.b16 %v8759, %v8759
    %vm8780 = vcmask 523264
    %v8782 = vsel %vm8780, %v8762, 0
    %v8785 = vsel %vm8780, %v8765, 0
    %v8788 = vsel %vm8780, %v8768, 0
    %v8791 = vsel %vm8780, %v8771, 0
    %8793 = vmatprep.subr.bf16.mxu0 0
    %8794 = vmatpush1.bf16.msra.mxu0 %v8663
    %8795 = vmatprep.subr.bf16.mxu0 0
    %8796 = vmatpush1.bf16.msra.mxu0 %v8664
    %8797 = vmatprep.subr.bf16.mxu0 0
    %8798 = vmatpush1.bf16.msra.mxu0 %v8665
    %8799 = vmatprep.subr.bf16.mxu0 0
    %8800 = vmatpush1.bf16.msra.mxu0 %v8666
    %8801 = vmatprep.subr.bf16.mxu0 0
    %8802 = vmatpush1.bf16.msra.mxu0 %v8667
    %8803 = vmatprep.subr.bf16.mxu0 0
    %8804 = vmatpush1.bf16.msra.mxu0 %v8668
    %8805 = vmatprep.subr.bf16.mxu0 0
    %8806 = vmatpush1.bf16.msra.mxu0 %v8669
    %8807 = vmatprep.subr.bf16.mxu0 0
    %8808 = vmatpush1.bf16.msra.mxu0 %v8670
    %8809 = vmatprep.subr.bf16.mxu0 0
    %8810 = vmatpush1.bf16.msra.mxu0 %v8671
    %8811 = vmatprep.subr.bf16.mxu0 0
    %8812 = vmatpush1.bf16.msra.mxu0 %v8672
    %8813 = vmatprep.subr.bf16.mxu0 0
    %8814 = vmatpush1.bf16.msra.mxu0 %v8673
    %8815 = vmatprep.subr.bf16.mxu0 0
    %8816 = vmatpush1.bf16.msra.mxu0 %v8674
    %8817 = vmatprep.subr.bf16.mxu0 0
    %8818 = vmatpush1.bf16.msra.mxu0 %v8675
    %8819 = vmatprep.subr.bf16.mxu0 0
    %8820 = vmatpush1.bf16.msra.mxu0 %v8676
    %8821 = vmatprep.subr.bf16.mxu0 0
    %8822 = vmatpush1.bf16.msra.mxu0 %v8677
    %8823 = vmatprep.subr.bf16.mxu0 0
    %8824 = vmatpush1.bf16.msra.mxu0 %v8678
    %8825 = vmatprep.mubr.bf16.mxu0 %v8761
    %8826 = vmatmul.mubr.bf16.gmra.mrb[0].mxu0 %v8760
    %v8827 = vpop.f32.mrb[0].mxu0
    %v8828 = vadd.f32 %v8693, %v8827
    %v8829 = vpop.f32.mrb[0].mxu0
    %v8830 = vpop.f32.mrb[0].mxu0
    %v8831 = vadd.f32 %v8698, %v8830
    %v8832 = vpop.f32.mrb[0].mxu0
    %8833 = vmatprep.mubr.bf16.mxu0 %v8764
    %8834 = vmatmul.mubr.bf16.gmra.mrb[0].mxu0 %v8763
    %v8835 = vpop.f32.mrb[0].mxu0
    %v8836 = vadd.f32 %v8703, %v8835
    %v8837 = vpop.f32.mrb[0].mxu0
    %v8838 = vpop.f32.mrb[0].mxu0
    %v8839 = vadd.f32 %v8708, %v8838
    %v8840 = vpop.f32.mrb[0].mxu0
    %8841 = vmatprep.mubr.bf16.mxu0 %v8767
    %8842 = vmatmul.mubr.bf16.gmra.mrb[0].mxu0 %v8766
    %v8843 = vpop.f32.mrb[0].mxu0
    %v8844 = vadd.f32 %v8713, %v8843
    %v8845 = vpop.f32.mrb[0].mxu0
    %v8846 = vpop.f32.mrb[0].mxu0
    %v8847 = vadd.f32 %v8718, %v8846
    %v8848 = vpop.f32.mrb[0].mxu0
    %8849 = vmatprep.mubr.bf16.mxu0 %v8770
    %8850 = vmatmul.mubr.bf16.gmra.mrb[0].mxu0 %v8769
    %v8851 = vpop.f32.mrb[0].mxu0
    %v8852 = vadd.f32 %v8723, %v8851
    %v8853 = vpop.f32.mrb[0].mxu0
    %v8854 = vpop.f32.mrb[0].mxu0
    %v8855 = vpop.f32.mrb[0].mxu0
    %8856 = vdwg.mxu0
    %8857 = vmatprep.subr.bf16.mxu0 0
    %8858 = vmatpush1.bf16.msra.mxu0 %v8679
    %8859 = vmatprep.subr.bf16.mxu0 0
    %8860 = vmatpush1.bf16.msra.mxu0 %v8680
    %8861 = vmatprep.subr.bf16.mxu0 0
    %8862 = vmatpush1.bf16.msra.mxu0 %v8681
    %8863 = vmatprep.subr.bf16.mxu0 0
    %8864 = vmatpush1.bf16.msra.mxu0 %v8682
    %8865 = vmatprep.subr.bf16.mxu0 0
    %8866 = vmatpush1.bf16.msra.mxu0 0
    %8867 = vmatprep.subr.bf16.mxu0 0
    %8868 = vmatpush1.bf16.msra.mxu0 0
    %8869 = vmatprep.subr.bf16.mxu0 0
    %8870 = vmatpush1.bf16.msra.mxu0 0
    %8871 = vmatprep.subr.bf16.mxu0 0
    %8872 = vmatpush1.bf16.msra.mxu0 0
    %8873 = vmatprep.subr.bf16.mxu0 0
    %8874 = vmatpush1.bf16.msra.mxu0 0
    %8875 = vmatprep.subr.bf16.mxu0 0
    %8876 = vmatpush1.bf16.msra.mxu0 0
    %8877 = vmatprep.subr.bf16.mxu0 0
    %8878 = vmatpush1.bf16.msra.mxu0 0
    %8879 = vmatprep.subr.bf16.mxu0 0
    %8880 = vmatpush1.bf16.msra.mxu0 0
    %8881 = vmatprep.subr.bf16.mxu0 0
    %8882 = vmatpush1.bf16.msra.mxu0 0
    %8883 = vmatprep.subr.bf16.mxu0 0
    %8884 = vmatpush1.bf16.msra.mxu0 0
    %8885 = vmatprep.subr.bf16.mxu0 0
    %8886 = vmatpush1.bf16.msra.mxu0 0
    %8887 = vmatprep.subr.bf16.mxu0 0
    %8888 = vmatpush1.bf16.msra.mxu0 0
    %8889 = vmatprep.mubr.bf16.mxu0 0
    %8890 = vmatmul.mubr.bf16.gmra.mrb[0].mxu0 %v8782
    %v8891 = vpop.f32.mrb[0].mxu0
    %v8892 = vadd.f32 %v8828, %v8891
    %v8893 = vpop.f32.mrb[0].mxu0
    %v8894 = vpop.f32.mrb[0].mxu0
    %v8895 = vadd.f32 %v8831, %v8894
    %v8896 = vpop.f32.mrb[0].mxu0
    %8897 = vmatprep.mubr.bf16.mxu0 0
    %8898 = vmatmul.mubr.bf16.gmra.mrb[0].mxu0 %v8785
    %v8899 = vpop.f32.mrb[0].mxu0
    %v8900 = vadd.f32 %v8836, %v8899
    %v8901 = vpop.f32.mrb[0].mxu0
    %v8902 = vpop.f32.mrb[0].mxu0
    %v8903 = vadd.f32 %v8839, %v8902
    %v8904 = vpop.f32.mrb[0].mxu0
    %8905 = vmatprep.mubr.bf16.mxu0 0
    %8906 = vmatmul.mubr.bf16.gmra.mrb[0].mxu0 %v8788
    %v8907 = vpop.f32.mrb[0].mxu0
    %v8908 = vadd.f32 %v8844, %v8907
    %v8909 = vpop.f32.mrb[0].mxu0
    %v8910 = vpop.f32.mrb[0].mxu0
    %v8911 = vadd.f32 %v8847, %v8910
    %v8912 = vpop.f32.mrb[0].mxu0
    %8913 = vmatprep.mubr.bf16.mxu0 0
    %8914 = vmatmul.mubr.bf16.gmra.mrb[0].mxu0 %v8791
    %v8915 = vpop.f32.mrb[0].mxu0
    %v8916 = vadd.f32 %v8852, %v8915
    %v8917 = vpop.f32.mrb[0].mxu0
    %v8918 = vpop.f32.mrb[0].mxu0
    %v8919 = vpop.f32.mrb[0].mxu0
    %8920 = vdwg.mxu0
    %v8921 = vmax.f32 %v8892, 0.0
    %v8922 = vmax.f32 %v8895, 0.0
    %v8923 = vmax.f32 %v8900, 0.0
    %v8924 = vmax.f32 %v8903, 0.0
    %v8925 = vmax.f32 %v8908, 0.0
    %v8926 = vmax.f32 %v8911, 0.0
    %v8927 = vmax.f32 %v8916, 0.0
    %v8928 = vpack.c.bf16 %v8922, %v8921
    %v8929 = vpack.c.bf16 %v8924, %v8923
    %v8930 = vpack.c.bf16 %v8926, %v8925
    %v8931 = vpack.c.bf16 %v8927, %v8927
    %v8932 = vld [vmem:[%s7] sm:$0xf]
    %v8933 = vld [vmem:[%s7 + $0x4] sm:$0x1]
    %v8934 = vld [vmem:[%s8] sm:$0xff]
    %v8935 = vld [vmem:[%s8 + $0x8] sm:$0x3]
    %8937 = vset.pattern.permute.xlu0 0
    %8938 = vperm.xlu0 %8937, %v8934
    %v8939 = vpop.permute.xlu0 %8938
    %8942 = vset.pattern.permute.xlu0 0
    %8943 = vperm.xlu0 %8942, %v8935
    %v8944 = vpop.permute.xlu0 %8943
    %v8948 = vunpack.c.l.b16 %v8932
    %v8949 = vunpack.c.l.b16 %v8933
    %v8950 = vpack.c.b16 %v8949, %v8948
    %vm8951 = vcmask 408576
    %v8953 = vsel %vm8951, %v8950, 0
    %vm8955 = vcmask 1040384
    %v8957 = vsel %vm8955, %v8931, 0
    %8959 = vmatprep.subr.bf16.mxu0 0
    %8960 = vmatpush1.bf16.msra.mxu0 %v8928
    %8961 = vmatprep.subr.bf16.mxu0 0
    %8962 = vmatpush1.bf16.msra.mxu0 %v8929
    %8963 = vmatprep.subr.bf16.mxu0 0
    %8964 = vmatpush1.bf16.msra.mxu0 %v8930
    %8965 = vmatprep.subr.bf16.mxu0 0
    %8966 = vmatpush1.bf16.msra.mxu0 %v8957
    %8967 = vmatprep.subr.bf16.mxu0 0
    %8968 = vmatpush1.bf16.msra.mxu0 0
    %8969 = vmatprep.subr.bf16.mxu0 0
    %8970 = vmatpush1.bf16.msra.mxu0 0
    %8971 = vmatprep.subr.bf16.mxu0 0
    %8972 = vmatpush1.bf16.msra.mxu0 0
    %8973 = vmatprep.subr.bf16.mxu0 0
    %8974 = vmatpush1.bf16.msra.mxu0 0
    %8975 = vmatprep.subr.bf16.mxu0 0
    %8976 = vmatpush1.bf16.msra.mxu0 0
    %8977 = vmatprep.subr.bf16.mxu0 0
    %8978 = vmatpush1.bf16.msra.mxu0 0
    %8979 = vmatprep.subr.bf16.mxu0 0
    %8980 = vmatpush1.bf16.msra.mxu0 0
    %8981 = vmatprep.subr.bf16.mxu0 0
    %8982 = vmatpush1.bf16.msra.mxu0 0
    %8983 = vmatprep.subr.bf16.mxu0 0
    %8984 = vmatpush1.bf16.msra.mxu0 0
    %8985 = vmatprep.subr.bf16.mxu0 0
    %8986 = vmatpush1.bf16.msra.mxu0 0
    %8987 = vmatprep.subr.bf16.mxu0 0
    %8988 = vmatpush1.bf16.msra.mxu0 0
    %8989 = vmatprep.subr.bf16.mxu0 0
    %8990 = vmatpush1.bf16.msra.mxu0 0
    %8991 = vmatprep.mubr.bf16.mxu0 0
    %8992 = vmatmul.mubr.bf16.gmra.mrb[0].mxu0 %v8953
    %v8993 = vpop.f32.mrb[0].mxu0
    %v8994 = vadd.f32 %v8939, %v8993
    %v8995 = vpop.f32.mrb[0].mxu0
    %v8996 = vpop.f32.mrb[0].mxu0
    %v8997 = vadd.f32 %v8944, %v8996
    %v8998 = vpop.f32.mrb[0].mxu0
    %8999 = vdwg.mxu0
    %9000 = vst [vmem:[#allocation8] sm:$0xff] %v8994
    %9001 = vst [vmem:[#allocation8 + $0x8] sm:$0x3] %v8997
    // Predicated region
    $region42: #{tpu_custom_call.1} parent=1 // pred_check
      _
    $region43: #{tpu_custom_call.1} parent=1 // pred_check_branch
      %9003 = sbr.rel (0) target = $region45
    $region44: #{tpu_custom_call.1} parent=1 // pred_region
      %s9005 = ssub.s32 256, 256
      %9006 = vsyncadd [#allocation7], %s9005
      %s9007 = sshll.u32 [#allocation8], 4
      %s9008 = int_to_ptr.vmem [resolvable:$true] %s9007
      %9013 = dma.vmem_to_hbm [thread:$0]  %s9008, 256, %s9, [#allocation7], 128, 128, 8
    $region45: #{tpu_custom_call.1} parent=1 // pred_fallthru
      _
    // Predicated region
    $region46: #{tpu_custom_call.1} parent=1 // pred_check
      _
    $region47: #{tpu_custom_call.1} parent=1 // pred_check_branch
      %9015 = sbr.rel (0) target = $region49
    $region48: #{tpu_custom_call.1} parent=1 // pred_region
      %9016 = dma.done [#allocation7], 256
    $region49: #{tpu_custom_call.1} parent=1 // pred_fallthru
      _
    %9017 = vsyncpa [#allocation6], 1
    %9018 = vsyncpa [#allocation7], 1

</llo_original>
